<compile_context>
chip_gen: v5e
topology: v5e:2x2
jax: 0.10.0
libtpu: 0.0.40
codegen_flags: <defaults>
</compile_context>

<pallas_src>
import functools
import math

import jax
import jax.numpy as jnp
from jax.experimental import pallas as pl
from jax.experimental.pallas import tpu as pltpu


def _pick_tile(dim, candidates):
    """Largest candidate that evenly divides `dim`; else the full dim."""
    for c in candidates:
        if dim % c == 0:
            return c
    return dim


# ----------------------------------------------------------------------------
# Fused linear kernel: tiled matmul + bias (+ activation) (+ residual + LayerNorm)
# ----------------------------------------------------------------------------
def _linear_kernel(*refs, activation, fuse_residual, fuse_ln):
    it = iter(refs)
    x_ref = next(it)
    w_ref = next(it)
    b_ref = next(it)
    res_ref = next(it) if fuse_residual else None
    g_ref = next(it) if fuse_ln else None
    lb_ref = next(it) if fuse_ln else None
    o_ref = next(it)
    acc_ref = next(it)

    k = pl.program_id(1)

    @pl.when(k == 0)
    def _init():
        acc_ref[...] = jnp.zeros_like(acc_ref)

    # bf16 x bf16 -> f32 accumulate on the MXU.
    acc_ref[...] += jnp.dot(x_ref[...], w_ref[...],
                            preferred_element_type=jnp.float32)

    @pl.when(k == pl.num_programs(1) - 1)
    def _finalize():
        y = acc_ref[...] + b_ref[...].astype(jnp.float32)
        if activation == "gelu":
            # NOTE: tanh-approx gelu (HF RoBERTa uses erf-gelu; ~1e-3 deviation).
            y = jax.nn.gelu(y, approximate=True)
        elif activation == "tanh":
            y = jnp.tanh(y)
        if fuse_residual:
            y = y + res_ref[...].astype(jnp.float32)
        if fuse_ln:
            mu = jnp.mean(y, axis=-1, keepdims=True)
            var = jnp.mean((y - mu) ** 2, axis=-1, keepdims=True)
            y = (y - mu) * jax.lax.rsqrt(var + 1e-5)
            y = y * g_ref[...].astype(jnp.float32) + lb_ref[...].astype(jnp.float32)
        o_ref[...] = y.astype(o_ref.dtype)


def linear_pallas(x, w, b, *, activation=None, residual=None,
                  ln_gamma=None, ln_beta=None, out_dtype=None):
    M, K = x.shape
    K2, N = w.shape
    assert K == K2
    out_dtype = out_dtype or x.dtype

    # Modest tiles keep per-step VMEM (double-buffered inputs + f32 acc) well
    # under the 32 MiB default scoped limit even at H=1024 / FFN=4096.
    tm = _pick_tile(M, (256, 128, 64, 32, 16, 8))
    tk = _pick_tile(K, (512, 256, 128))
    fuse_residual = residual is not None
    fuse_ln = ln_gamma is not None  # LayerNorm needs full N rows: N is untiled.

    in_specs = [
        pl.BlockSpec((tm, tk), lambda i, k: (i, k)),
        pl.BlockSpec((tk, N), lambda i, k: (k, 0)),
        pl.BlockSpec((1, N), lambda i, k: (0, 0)),
    ]
    args = [x, w, b.reshape(1, N)]
    if fuse_residual:
        in_specs.append(pl.BlockSpec((tm, N), lambda i, k: (i, 0)))
        args.append(residual)
    if fuse_ln:
        in_specs.append(pl.BlockSpec((1, N), lambda i, k: (0, 0)))
        in_specs.append(pl.BlockSpec((1, N), lambda i, k: (0, 0)))
        args.append(ln_gamma.reshape(1, N))
        args.append(ln_beta.reshape(1, N))

    kernel = functools.partial(_linear_kernel, activation=activation,
                               fuse_residual=fuse_residual, fuse_ln=fuse_ln)
    return pl.pallas_call(
        kernel,
        out_shape=jax.ShapeDtypeStruct((M, N), out_dtype),
        grid=(M // tm, K // tk),
        in_specs=in_specs,
        out_specs=pl.BlockSpec((tm, N), lambda i, k: (i, 0)),
        scratch_shapes=[pltpu.VMEM((tm, N), jnp.float32)],
        compiler_params=pltpu.CompilerParams(
            dimension_semantics=("parallel", "arbitrary")),
    )(*args)


# ----------------------------------------------------------------------------
# Standalone LayerNorm (embeddings only — everywhere else LN is fused above)
# ----------------------------------------------------------------------------
def _layernorm_kernel(x_ref, g_ref, b_ref, o_ref):
    x = x_ref[...].astype(jnp.float32)
    mu = jnp.mean(x, axis=-1, keepdims=True)
    var = jnp.mean((x - mu) ** 2, axis=-1, keepdims=True)
    y = (x - mu) * jax.lax.rsqrt(var + 1e-5)
    o_ref[...] = (y * g_ref[...] + b_ref[...]).astype(o_ref.dtype)


def layernorm_pallas(x, gamma, beta, *, out_dtype=None):
    M, H = x.shape
    out_dtype = out_dtype or x.dtype
    tm = _pick_tile(M, (256, 128, 64, 32, 16, 8))
    return pl.pallas_call(
        _layernorm_kernel,
        out_shape=jax.ShapeDtypeStruct((M, H), out_dtype),
        grid=(M // tm,),
        in_specs=[
            pl.BlockSpec((tm, H), lambda i: (i, 0)),
            pl.BlockSpec((1, H), lambda i: (0, 0)),
            pl.BlockSpec((1, H), lambda i: (0, 0)),
        ],
        out_specs=pl.BlockSpec((tm, H), lambda i: (i, 0)),
        compiler_params=pltpu.CompilerParams(dimension_semantics=("parallel",)),
    )(x, gamma.reshape(1, H).astype(jnp.float32),
      beta.reshape(1, H).astype(jnp.float32))


# ----------------------------------------------------------------------------
# Attention: heads indexed straight out of the fused (B*S, 3H) QKV tensor,
# per-head output written back into (B*S, H) layout (no host transposes).
# ----------------------------------------------------------------------------
def _attention_kernel(q_ref, k_ref, v_ref, mb_ref, o_ref, *, scale):
    q = q_ref[...]                                            # (S, D) bf16
    k = k_ref[...]
    v = v_ref[...]
    s = jax.lax.dot_general(q, k, (((1,), (1,)), ((), ())),   # q @ k^T -> f32
                            preferred_element_type=jnp.float32)
    s = s * scale + mb_ref[0]                                 # (S,S) + (1,S)
    m = jnp.max(s, axis=-1, keepdims=True)
    p = jnp.exp(s - m)
    denom = jnp.sum(p, axis=-1, keepdims=True)
    p = p * pl.reciprocal(denom, approx=True)
    o = jnp.dot(p.astype(v.dtype), v, preferred_element_type=jnp.float32)
    o_ref[...] = o.astype(o_ref.dtype)


def attention_pallas(qkv, mask_bias, *, batch, seq, n_heads, head_dim, out_dtype):
    # TODO(synk): for head_dim < 128 (e.g. real RoBERTa-large D=64) pack two
    # heads per block so the attention block's last dim is lane-aligned (128).
    H = n_heads * head_dim
    kernel = functools.partial(_attention_kernel, scale=1.0 / math.sqrt(head_dim))
    blk = (seq, head_dim)
    return pl.pallas_call(
        kernel,
        out_shape=jax.ShapeDtypeStruct((batch * seq, H), out_dtype),
        grid=(batch, n_heads),
        in_specs=[
            pl.BlockSpec(blk, lambda b, h: (b, h)),                 # Q
            pl.BlockSpec(blk, lambda b, h: (b, n_heads + h)),       # K
            pl.BlockSpec(blk, lambda b, h: (b, 2 * n_heads + h)),   # V
            pl.BlockSpec((1, 1, seq), lambda b, h: (b, 0, 0)),      # mask bias
        ],
        out_specs=pl.BlockSpec(blk, lambda b, h: (b, h)),
        compiler_params=pltpu.CompilerParams(
            dimension_semantics=("parallel", "parallel")),
    )(qkv, qkv, qkv, mask_bias)


# ----------------------------------------------------------------------------
# Pooler (dense+tanh on CLS) + mixup + classifier, fused in one kernel
# ----------------------------------------------------------------------------
def _pool_mixup_head_kernel(beta_ref, c1_ref, c2_ref, wp_ref, bp_ref,
                            wc_ref, bc_ref, mixed_ref, logits_ref):
    beta = beta_ref[0, 0]
    wp = wp_ref[...]
    bp = bp_ref[...].astype(jnp.float32)
    p1 = jnp.tanh(jnp.dot(c1_ref[...], wp, preferred_element_type=jnp.float32) + bp)
    p2 = jnp.tanh(jnp.dot(c2_ref[...], wp, preferred_element_type=jnp.float32) + bp)
    mixed = beta * p1 + (1.0 - beta) * p2
    mixed_ref[...] = mixed.astype(mixed_ref.dtype)
    logits = jnp.dot(mixed.astype(wc_ref.dtype), wc_ref[...],
                     preferred_element_type=jnp.float32) + bc_ref[...].astype(jnp.float32)
    logits_ref[...] = logits.astype(logits_ref.dtype)


def pool_mixup_head_pallas(cls_1, cls_2, beta, wp, bp, wc, bc):
    B, H = cls_1.shape
    beta_arr = jnp.asarray(beta, jnp.float32).reshape(1, 1)
    return pl.pallas_call(
        _pool_mixup_head_kernel,
        out_shape=(
            jax.ShapeDtypeStruct((B, H), jnp.float32),   # mixed_emb
            jax.ShapeDtypeStruct((B, 1), jnp.float32),   # logits
        ),
        grid=(1,),
        in_specs=[
            pl.BlockSpec(memory_space=pltpu.MemorySpace.SMEM),   # beta scalar
            pl.BlockSpec((B, H), lambda i: (0, 0)),
            pl.BlockSpec((B, H), lambda i: (0, 0)),
            pl.BlockSpec((H, H), lambda i: (0, 0)),
            pl.BlockSpec((1, H), lambda i: (0, 0)),
            pl.BlockSpec((H, 1), lambda i: (0, 0)),
            pl.BlockSpec((1, 1), lambda i: (0, 0)),
        ],
        out_specs=(
            pl.BlockSpec((B, H), lambda i: (0, 0)),
            pl.BlockSpec((B, 1), lambda i: (0, 0)),
        ),
    )(beta_arr, cls_1, cls_2, wp, bp.reshape(1, H), wc, bc.reshape(1, 1))


# ----------------------------------------------------------------------------
# Synthetic RoBERTa encoder (glue in plain JAX; hot-path math in Pallas)
# ----------------------------------------------------------------------------
def init_params(key, *, vocab, max_pos, hidden, n_layers, n_heads, ffn):
    def nrm(k, shape, dtype=jnp.bfloat16):
        return (0.02 * jax.random.normal(k, shape, jnp.float32)).astype(dtype)

    keys = iter(jax.random.split(key, 8 + 8 * n_layers))
    params = {
        "word_emb": nrm(next(keys), (vocab, hidden), jnp.float32),
        "pos_emb": nrm(next(keys), (max_pos, hidden), jnp.float32),
        "type_emb": nrm(next(keys), (1, hidden), jnp.float32),
        "emb_ln_g": jnp.ones((hidden,), jnp.float32),
        "emb_ln_b": jnp.zeros((hidden,), jnp.float32),
        "wp": nrm(next(keys), (hidden, hidden)),            # pooler dense (bf16)
        "bp": jnp.zeros((hidden,), jnp.float32),
        "wc": nrm(next(keys), (hidden, 1)),                 # classifier (bf16)
        "bc": jnp.zeros((1,), jnp.float32),
        "layers": [],
    }
    for _ in range(n_layers):
        kq, kk, kv, ko, kf1, kf2 = (next(keys) for _ in range(6))
        wq, wk, wv = (nrm(kq, (hidden, hidden)), nrm(kk, (hidden, hidden)),
                      nrm(kv, (hidden, hidden)))
        lp = {
            "wqkv": jnp.concatenate([wq, wk, wv], axis=1),  # (H, 3H) bf16
            "bqkv": jnp.zeros((3 * hidden,), jnp.float32),
            "wo": nrm(ko, (hidden, hidden)),
            "bo": jnp.zeros((hidden,), jnp.float32),
            "ln1_g": jnp.ones((hidden,), jnp.float32),
            "ln1_b": jnp.zeros((hidden,), jnp.float32),
            "w1": nrm(kf1, (hidden, ffn)),
            "b1": jnp.zeros((ffn,), jnp.float32),
            "w2": nrm(kf2, (ffn, hidden)),
            "b2": jnp.zeros((hidden,), jnp.float32),
            "ln2_g": jnp.ones((hidden,), jnp.float32),
            "ln2_b": jnp.zeros((hidden,), jnp.float32),
        }
        params["layers"].append(lp)
    return params


def roberta_encoder_cls(params, input_ids, attention_mask, *, n_heads):
    B, S = input_ids.shape
    H = params["word_emb"].shape[1]
    D = H // n_heads

    emb = (params["word_emb"][input_ids]
           + params["pos_emb"][jnp.arange(S)][None, :, :]
           + params["type_emb"][0][None, None, :])
    h = layernorm_pallas(emb.reshape(B * S, H), params["emb_ln_g"],
                         params["emb_ln_b"], out_dtype=jnp.bfloat16)

    # additive attention-mask bias, shape (B, 1, S), kept in f32
    mask_bias = ((1.0 - attention_mask.astype(jnp.float32)) * -1e4)[:, None, :]

    for lp in params["layers"]:
        # fused QKV projection: x read once, one big (H,3H) matmul
        qkv = linear_pallas(h, lp["wqkv"], lp["bqkv"])                 # (B*S, 3H)
        attn = attention_pallas(qkv, mask_bias, batch=B, seq=S,
                                n_heads=n_heads, head_dim=D,
                                out_dtype=jnp.bfloat16)                # (B*S, H)
        # output projection + residual + LayerNorm fused
        h2 = linear_pallas(attn, lp["wo"], lp["bo"], residual=h,
                           ln_gamma=lp["ln1_g"], ln_beta=lp["ln1_b"])
        # FFN: w1+gelu fused, w2 + residual + LayerNorm fused
        ffn = linear_pallas(h2, lp["w1"], lp["b1"], activation="gelu")
        h = linear_pallas(ffn, lp["w2"], lp["b2"], residual=h2,
                          ln_gamma=lp["ln2_g"], ln_beta=lp["ln2_b"])

    return h.reshape(B, S, H)[:, 0, :]        # CLS token, (B, H) bf16


def forward(params, input_ids_1, attention_mask_1, input_ids_2,
            attention_mask_2, beta, *, n_heads):
    B = input_ids_1.shape[0]
    # Batch both encoder passes: layer weights stream from HBM once, M doubles.
    ids = jnp.concatenate([input_ids_1, input_ids_2], axis=0)
    mask = jnp.concatenate([attention_mask_1, attention_mask_2], axis=0)
    cls = roberta_encoder_cls(params, ids, mask, n_heads=n_heads)  # (2B, H)
    cls_1, cls_2 = cls[:B], cls[B:]
    # dropout_prob = 0 in the reference module -> identity
    mixed_emb, logits = pool_mixup_head_pallas(
        cls_1, cls_2, beta, params["wp"], params["bp"],
        params["wc"], params["bc"])
    return mixed_emb, logits


# ----------------------------------------------------------------------------
# Main
# ----------------------------------------------------------------------------
if __name__ == "__main__":
    # Small shapes consistent with the module; head_dim = 128 for lane alignment.
    B, S = 2, 8
    HIDDEN, N_HEADS, FFN, N_LAYERS = 256, 2, 512, 2
    VOCAB, MAX_POS = 64, 16

    key = jax.random.PRNGKey(0)
    kp, ka, kb = jax.random.split(key, 3)
    params = init_params(kp, vocab=VOCAB, max_pos=MAX_POS, hidden=HIDDEN,
                         n_layers=N_LAYERS, n_heads=N_HEADS, ffn=FFN)

    input_ids_1 = jax.random.randint(ka, (B, S), 0, VOCAB, dtype=jnp.int32)
    input_ids_2 = jax.random.randint(kb, (B, S), 0, VOCAB, dtype=jnp.int32)
    attention_mask_1 = jnp.ones((B, S), jnp.int32).at[0, S - 2:].set(0)
    attention_mask_2 = jnp.ones((B, S), jnp.int32).at[1, S - 3:].set(0)
    beta = jnp.float32(0.3)

    fwd = jax.jit(functools.partial(forward, n_heads=N_HEADS))
    mixed_emb, logits = fwd(params, input_ids_1, attention_mask_1,
                            input_ids_2, attention_mask_2, beta)
    jax.block_until_ready((mixed_emb, logits))
    assert mixed_emb.shape == (B, HIDDEN) and logits.shape == (B, 1)
    assert bool(jnp.all(jnp.isfinite(mixed_emb))) and bool(jnp.all(jnp.isfinite(logits)))
    print("KERNEL_OK")
</pallas_src>

<mosaic_0001>
module attributes {stable_mosaic.version = 11 : i64} {
  func.func @_linear_kernel(%arg0: i32, %arg1: i32, %arg2: memref<32x256xbf16, #tpu.memory_space<vmem>>, %arg3: memref<256x768xbf16, #tpu.memory_space<vmem>>, %arg4: memref<1x768xf32, #tpu.memory_space<vmem>>, %arg5: memref<32x768xbf16, #tpu.memory_space<vmem>>, %arg6: memref<32x768xf32, #tpu.memory_space<vmem>>) attributes {dimension_semantics = [#tpu.dimension_semantics<parallel>, #tpu.dimension_semantics<arbitrary>], iteration_bounds = array<i64: 1, 1>, scalar_prefetch = 0 : i64, scratch_operands = 1 : i64, tpu.core_type = #tpu.core_type<tc>, window_params = [{transform_indices = @transform_0, window_bounds = array<i64: 32, 256>}, {transform_indices = @transform_1, window_bounds = array<i64: 256, 768>}, {pipeline_mode = #tpu.pipeline_mode<synchronous>, transform_indices = @transform_2, window_bounds = array<i64: 1, 768>}, {transform_indices = @transform_3, window_bounds = array<i64: 32, 768>}]} {
    %c0_i32 = arith.constant 0 : i32
    %0 = arith.cmpi eq, %arg1, %c0_i32 : i32
    %1 = arith.extui %0 : i1 to i32
    %c0_i32_0 = arith.constant 0 : i32
    %2 = arith.cmpi ne, %1, %c0_i32_0 : i32
    scf.if %2 {
      %cst_10 = arith.constant 0.000000e+00 : f32
      %12 = vector.broadcast %cst_10 : f32 to vector<32x768xf32>
      %c0_11 = arith.constant 0 : index
      %c0_12 = arith.constant 0 : index
      %13 = vector.load %arg6[%c0_11, %c0_12] : memref<32x768xf32, #tpu.memory_space<vmem>>, vector<32x768xf32>
      tpu.vector_store %arg6[%c0_11, %c0_12], %12 {strides = array<i32>} : memref<32x768xf32, #tpu.memory_space<vmem>>, vector<32x768xf32>,
    } else {
    }
    %c0 = arith.constant 0 : index
    %c0_1 = arith.constant 0 : index
    %3 = vector.load %arg6[%c0, %c0_1] : memref<32x768xf32, #tpu.memory_space<vmem>>, vector<32x768xf32>
    %c0_2 = arith.constant 0 : index
    %c0_3 = arith.constant 0 : index
    %4 = vector.load %arg2[%c0_2, %c0_3] : memref<32x256xbf16, #tpu.memory_space<vmem>>, vector<32x256xbf16>
    %c0_4 = arith.constant 0 : index
    %c0_5 = arith.constant 0 : index
    %5 = vector.load %arg3[%c0_4, %c0_5] : memref<256x768xbf16, #tpu.memory_space<vmem>>, vector<256x768xbf16>
    %cst = arith.constant dense<0.000000e+00> : vector<32x768xf32>
    %6 = tpu.matmul %4, %5, %cst {dimension_numbers = #tpu.dot_dimension_numbers<[1], [0], [0], [1], [0, 0, 1, 1], [], []>} : vector<32x256xbf16>, vector<256x768xbf16>, vector<32x768xf32> -> vector<32x768xf32>
    %7 = arith.addf %3, %6 : vector<32x768xf32>
    %c0_6 = arith.constant 0 : index
    %c0_7 = arith.constant 0 : index
    %8 = vector.load %arg6[%c0_6, %c0_7] : memref<32x768xf32, #tpu.memory_space<vmem>>, vector<32x768xf32>
    tpu.vector_store %arg6[%c0_6, %c0_7], %7 {strides = array<i32>} : memref<32x768xf32, #tpu.memory_space<vmem>>, vector<32x768xf32>,
    %c0_i32_8 = arith.constant 0 : i32
    %9 = arith.cmpi eq, %arg1, %c0_i32_8 : i32
    %10 = arith.extui %9 : i1 to i32
    %c0_i32_9 = arith.constant 0 : i32
    %11 = arith.cmpi ne, %10, %c0_i32_9 : i32
    scf.if %11 {
      %c0_10 = arith.constant 0 : index
      %c0_11 = arith.constant 0 : index
      %12 = vector.load %arg6[%c0_10, %c0_11] : memref<32x768xf32, #tpu.memory_space<vmem>>, vector<32x768xf32>
      %c0_12 = arith.constant 0 : index
      %c0_13 = arith.constant 0 : index
      %13 = vector.load %arg4[%c0_12, %c0_13] : memref<1x768xf32, #tpu.memory_space<vmem>>, vector<1x768xf32>
      %14 = vector.broadcast %13 : vector<1x768xf32> to vector<32x768xf32>
      %15 = arith.addf %12, %14 : vector<32x768xf32>
      %16 = arith.truncf %15 : vector<32x768xf32> to vector<32x768xbf16>
      %c0_14 = arith.constant 0 : index
      %c0_15 = arith.constant 0 : index
      %17 = vector.load %arg5[%c0_14, %c0_15] : memref<32x768xbf16, #tpu.memory_space<vmem>>, vector<32x768xbf16>
      tpu.vector_store %arg5[%c0_14, %c0_15], %16 {strides = array<i32>} : memref<32x768xbf16, #tpu.memory_space<vmem>>, vector<32x768xbf16>,
    } else {
    }
    return
  }
  func.func @transform_0(%arg0: i32, %arg1: i32) -> (i32, i32) {
    %c0_i32 = arith.constant 0 : i32
    return %arg0, %arg1 : i32, i32
  }
  func.func @transform_1(%arg0: i32, %arg1: i32) -> (i32, i32) {
    %c0_i32 = arith.constant 0 : i32
    %c0_i32_0 = arith.constant 0 : i32
    return %arg1, %c0_i32 : i32, i32
  }
  func.func @transform_2(%arg0: i32, %arg1: i32) -> (i32, i32) {
    %c0_i32 = arith.constant 0 : i32
    %c0_i32_0 = arith.constant 0 : i32
    %c0_i32_1 = arith.constant 0 : i32
    return %c0_i32, %c0_i32_0 : i32, i32
  }
  func.func @transform_3(%arg0: i32, %arg1: i32) -> (i32, i32) {
    %c0_i32 = arith.constant 0 : i32
    %c0_i32_0 = arith.constant 0 : i32
    return %arg0, %c0_i32 : i32, i32
  }
}

module attributes {stable_mosaic.version = 11 : i64} {
  func.func @_layernorm_kernel(%arg0: i32, %arg1: memref<32x256xf32, #tpu.memory_space<vmem>>, %arg2: memref<1x256xf32, #tpu.memory_space<vmem>>, %arg3: memref<1x256xf32, #tpu.memory_space<vmem>>, %arg4: memref<32x256xbf16, #tpu.memory_space<vmem>>) attributes {dimension_semantics = [#tpu.dimension_semantics<parallel>], iteration_bounds = array<i64: 1>, scalar_prefetch = 0 : i64, scratch_operands = 0 : i64, tpu.core_type = #tpu.core_type<tc>, window_params = [{transform_indices = @transform_0, window_bounds = array<i64: 32, 256>}, {pipeline_mode = #tpu.pipeline_mode<synchronous>, transform_indices = @transform_1, window_bounds = array<i64: 1, 256>}, {pipeline_mode = #tpu.pipeline_mode<synchronous>, transform_indices = @transform_2, window_bounds = array<i64: 1, 256>}, {transform_indices = @transform_3, window_bounds = array<i64: 32, 256>}]} {
    %c0 = arith.constant 0 : index
    %c0_0 = arith.constant 0 : index
    %0 = vector.load %arg1[%c0, %c0_0] : memref<32x256xf32, #tpu.memory_space<vmem>>, vector<32x256xf32>
    %cst = arith.constant dense<0.000000e+00> : vector<32xf32>
    %1 = vector.multi_reduction <add>, %0, %cst [1] : vector<32x256xf32> to vector<32xf32>
    %2 = vector.shape_cast %1 : vector<32xf32> to vector<32x1xf32>
    %cst_1 = arith.constant 2.560000e+02 : f32
    %3 = vector.broadcast %cst_1 : f32 to vector<32x1xf32>
    %4 = arith.divf %2, %3 : vector<32x1xf32>
    %5 = vector.broadcast %4 : vector<32x1xf32> to vector<32x256xf32>
    %6 = arith.subf %0, %5 : vector<32x256xf32>
    %7 = arith.mulf %6, %6 : vector<32x256xf32>
    %cst_2 = arith.constant dense<0.000000e+00> : vector<32xf32>
    %8 = vector.multi_reduction <add>, %7, %cst_2 [1] : vector<32x256xf32> to vector<32xf32>
    %9 = vector.shape_cast %8 : vector<32xf32> to vector<32x1xf32>
    %cst_3 = arith.constant 2.560000e+02 : f32
    %10 = vector.broadcast %cst_3 : f32 to vector<32x1xf32>
    %11 = arith.divf %9, %10 : vector<32x1xf32>
    %12 = vector.broadcast %4 : vector<32x1xf32> to vector<32x256xf32>
    %13 = arith.subf %0, %12 : vector<32x256xf32>
    %cst_4 = arith.constant 9.99999974E-6 : f32
    %14 = vector.broadcast %cst_4 : f32 to vector<32x1xf32>
    %15 = arith.addf %11, %14 : vector<32x1xf32>
    %16 = math.rsqrt %15 : vector<32x1xf32>
    %17 = vector.broadcast %16 : vector<32x1xf32> to vector<32x256xf32>
    %18 = arith.mulf %13, %17 : vector<32x256xf32>
    %c0_5 = arith.constant 0 : index
    %c0_6 = arith.constant 0 : index
    %19 = vector.load %arg2[%c0_5, %c0_6] : memref<1x256xf32, #tpu.memory_space<vmem>>, vector<1x256xf32>
    %20 = vector.broadcast %19 : vector<1x256xf32> to vector<32x256xf32>
    %21 = arith.mulf %18, %20 : vector<32x256xf32>
    %c0_7 = arith.constant 0 : index
    %c0_8 = arith.constant 0 : index
    %22 = vector.load %arg3[%c0_7, %c0_8] : memref<1x256xf32, #tpu.memory_space<vmem>>, vector<1x256xf32>
    %23 = vector.broadcast %22 : vector<1x256xf32> to vector<32x256xf32>
    %24 = arith.addf %21, %23 : vector<32x256xf32>
    %25 = arith.truncf %24 : vector<32x256xf32> to vector<32x256xbf16>
    %c0_9 = arith.constant 0 : index
    %c0_10 = arith.constant 0 : index
    %26 = vector.load %arg4[%c0_9, %c0_10] : memref<32x256xbf16, #tpu.memory_space<vmem>>, vector<32x256xbf16>
    tpu.vector_store %arg4[%c0_9, %c0_10], %25 {strides = array<i32>} : memref<32x256xbf16, #tpu.memory_space<vmem>>, vector<32x256xbf16>,
    return
  }
  func.func @transform_0(%arg0: i32) -> (i32, i32) {
    %c0_i32 = arith.constant 0 : i32
    %c0_i32_0 = arith.constant 0 : i32
    return %arg0, %c0_i32 : i32, i32
  }
  func.func @transform_1(%arg0: i32) -> (i32, i32) {
    %c0_i32 = arith.constant 0 : i32
    %c0_i32_0 = arith.constant 0 : i32
    %c0_i32_1 = arith.constant 0 : i32
    return %c0_i32, %c0_i32_0 : i32, i32
  }
  func.func @transform_2(%arg0: i32) -> (i32, i32) {
    %c0_i32 = arith.constant 0 : i32
    %c0_i32_0 = arith.constant 0 : i32
    %c0_i32_1 = arith.constant 0 : i32
    return %c0_i32, %c0_i32_0 : i32, i32
  }
  func.func @transform_3(%arg0: i32) -> (i32, i32) {
    %c0_i32 = arith.constant 0 : i32
    %c0_i32_0 = arith.constant 0 : i32
    return %arg0, %c0_i32 : i32, i32
  }
}

module attributes {stable_mosaic.version = 11 : i64} {
  func.func @_attention_kernel(%arg0: i32, %arg1: i32, %arg2: memref<8x128xbf16, #tpu.memory_space<vmem>>, %arg3: memref<8x128xbf16, #tpu.memory_space<vmem>>, %arg4: memref<8x128xbf16, #tpu.memory_space<vmem>>, %arg5: memref<1x1x8xf32, #tpu.memory_space<vmem>>, %arg6: memref<8x128xbf16, #tpu.memory_space<vmem>>) attributes {dimension_semantics = [#tpu.dimension_semantics<parallel>, #tpu.dimension_semantics<parallel>], iteration_bounds = array<i64: 4, 2>, scalar_prefetch = 0 : i64, scratch_operands = 0 : i64, tpu.core_type = #tpu.core_type<tc>, window_params = [{transform_indices = @transform_0, window_bounds = array<i64: 8, 128>}, {transform_indices = @transform_1, window_bounds = array<i64: 8, 128>}, {transform_indices = @transform_2, window_bounds = array<i64: 8, 128>}, {transform_indices = @transform_3, window_bounds = array<i64: 1, 1, 8>}, {transform_indices = @transform_4, window_bounds = array<i64: 8, 128>}]} {
    %c0 = arith.constant 0 : index
    %c0_0 = arith.constant 0 : index
    %0 = vector.load %arg2[%c0, %c0_0] : memref<8x128xbf16, #tpu.memory_space<vmem>>, vector<8x128xbf16>
    %c0_1 = arith.constant 0 : index
    %c0_2 = arith.constant 0 : index
    %1 = vector.load %arg3[%c0_1, %c0_2] : memref<8x128xbf16, #tpu.memory_space<vmem>>, vector<8x128xbf16>
    %c0_3 = arith.constant 0 : index
    %c0_4 = arith.constant 0 : index
    %2 = vector.load %arg4[%c0_3, %c0_4] : memref<8x128xbf16, #tpu.memory_space<vmem>>, vector<8x128xbf16>
    %cst = arith.constant dense<0.000000e+00> : vector<8x8xf32>
    %3 = tpu.matmul %0, %1, %cst {dimension_numbers = #tpu.dot_dimension_numbers<[1], [1], [0], [0], [0, 0, 1, 0], [], []>} : vector<8x128xbf16>, vector<8x128xbf16>, vector<8x8xf32> -> vector<8x8xf32>
    %cst_5 = arith.constant 0.0883883461 : f32
    %4 = vector.broadcast %cst_5 : f32 to vector<8x8xf32>
    %5 = arith.mulf %3, %4 : vector<8x8xf32>
    %c0_6 = arith.constant 0 : index
    %c0_7 = arith.constant 0 : index
    %c0_8 = arith.constant 0 : index
    %6 = vector.load %arg5[%c0_6, %c0_7, %c0_8] : memref<1x1x8xf32, #tpu.memory_space<vmem>>, vector<1x1x8xf32>
    %7 = vector.shape_cast %6 : vector<1x1x8xf32> to vector<1x8xf32>
    %8 = vector.broadcast %7 : vector<1x8xf32> to vector<8x8xf32>
    %9 = arith.addf %5, %8 : vector<8x8xf32>
    %cst_9 = arith.constant dense<0xFF800000> : vector<8xf32>
    %10 = vector.multi_reduction <maximumf>, %9, %cst_9 [1] : vector<8x8xf32> to vector<8xf32>
    %11 = vector.shape_cast %10 : vector<8xf32> to vector<8x1xf32>
    %12 = vector.broadcast %11 : vector<8x1xf32> to vector<8x8xf32>
    %13 = arith.subf %9, %12 : vector<8x8xf32>
    %14 = math.exp %13 : vector<8x8xf32>
    %cst_10 = arith.constant dense<0.000000e+00> : vector<8xf32>
    %15 = vector.multi_reduction <add>, %14, %cst_10 [1] : vector<8x8xf32> to vector<8xf32>
    %16 = vector.shape_cast %15 : vector<8xf32> to vector<8x1xf32>
    %17 = tpu.reciprocal %16 {approx = true} : vector<8x1xf32> -> vector<8x1xf32>
    %18 = vector.broadcast %17 : vector<8x1xf32> to vector<8x8xf32>
    %19 = arith.mulf %14, %18 : vector<8x8xf32>
    %20 = arith.truncf %19 : vector<8x8xf32> to vector<8x8xbf16>
    %cst_11 = arith.constant dense<0.000000e+00> : vector<8x128xf32>
    %21 = tpu.matmul %20, %2, %cst_11 {dimension_numbers = #tpu.dot_dimension_numbers<[1], [0], [0], [1], [0, 0, 1, 1], [], []>} : vector<8x8xbf16>, vector<8x128xbf16>, vector<8x128xf32> -> vector<8x128xf32>
    %22 = arith.truncf %21 : vector<8x128xf32> to vector<8x128xbf16>
    %c0_12 = arith.constant 0 : index
    %c0_13 = arith.constant 0 : index
    %23 = vector.load %arg6[%c0_12, %c0_13] : memref<8x128xbf16, #tpu.memory_space<vmem>>, vector<8x128xbf16>
    tpu.vector_store %arg6[%c0_12, %c0_13], %22 {strides = array<i32>} : memref<8x128xbf16, #tpu.memory_space<vmem>>, vector<8x128xbf16>,
    return
  }
  func.func @transform_0(%arg0: i32, %arg1: i32) -> (i32, i32) {
    %c0_i32 = arith.constant 0 : i32
    return %arg0, %arg1 : i32, i32
  }
  func.func @transform_1(%arg0: i32, %arg1: i32) -> (i32, i32) {
    %c2_i32 = arith.constant 2 : i32
    %0 = arith.addi %c2_i32, %arg1 : i32
    %c0_i32 = arith.constant 0 : i32
    return %arg0, %0 : i32, i32
  }
  func.func @transform_2(%arg0: i32, %arg1: i32) -> (i32, i32) {
    %c4_i32 = arith.constant 4 : i32
    %0 = arith.addi %c4_i32, %arg1 : i32
    %c0_i32 = arith.constant 0 : i32
    return %arg0, %0 : i32, i32
  }
  func.func @transform_3(%arg0: i32, %arg1: i32) -> (i32, i32, i32) {
    %c0_i32 = arith.constant 0 : i32
    %c0_i32_0 = arith.constant 0 : i32
    %c0_i32_1 = arith.constant 0 : i32
    return %arg0, %c0_i32, %c0_i32_0 : i32, i32, i32
  }
  func.func @transform_4(%arg0: i32, %arg1: i32) -> (i32, i32) {
    %c0_i32 = arith.constant 0 : i32
    return %arg0, %arg1 : i32, i32
  }
}

module attributes {stable_mosaic.version = 11 : i64} {
  func.func @_linear_kernel(%arg0: i32, %arg1: i32, %arg2: memref<32x256xbf16, #tpu.memory_space<vmem>>, %arg3: memref<256x256xbf16, #tpu.memory_space<vmem>>, %arg4: memref<1x256xf32, #tpu.memory_space<vmem>>, %arg5: memref<32x256xbf16, #tpu.memory_space<vmem>>, %arg6: memref<1x256xf32, #tpu.memory_space<vmem>>, %arg7: memref<1x256xf32, #tpu.memory_space<vmem>>, %arg8: memref<32x256xbf16, #tpu.memory_space<vmem>>, %arg9: memref<32x256xf32, #tpu.memory_space<vmem>>) attributes {dimension_semantics = [#tpu.dimension_semantics<parallel>, #tpu.dimension_semantics<arbitrary>], iteration_bounds = array<i64: 1, 1>, scalar_prefetch = 0 : i64, scratch_operands = 1 : i64, tpu.core_type = #tpu.core_type<tc>, window_params = [{transform_indices = @transform_0, window_bounds = array<i64: 32, 256>}, {transform_indices = @transform_1, window_bounds = array<i64: 256, 256>}, {pipeline_mode = #tpu.pipeline_mode<synchronous>, transform_indices = @transform_2, window_bounds = array<i64: 1, 256>}, {transform_indices = @transform_3, window_bounds = array<i64: 32, 256>}, {pipeline_mode = #tpu.pipeline_mode<synchronous>, transform_indices = @transform_4, window_bounds = array<i64: 1, 256>}, {pipeline_mode = #tpu.pipeline_mode<synchronous>, transform_indices = @transform_5, window_bounds = array<i64: 1, 256>}, {transform_indices = @transform_6, window_bounds = array<i64: 32, 256>}]} {
    %c0_i32 = arith.constant 0 : i32
    %0 = arith.cmpi eq, %arg1, %c0_i32 : i32
    %1 = arith.extui %0 : i1 to i32
    %c0_i32_0 = arith.constant 0 : i32
    %2 = arith.cmpi ne, %1, %c0_i32_0 : i32
    scf.if %2 {
      %cst_10 = arith.constant 0.000000e+00 : f32
      %12 = vector.broadcast %cst_10 : f32 to vector<32x256xf32>
      %c0_11 = arith.constant 0 : index
      %c0_12 = arith.constant 0 : index
      %13 = vector.load %arg9[%c0_11, %c0_12] : memref<32x256xf32, #tpu.memory_space<vmem>>, vector<32x256xf32>
      tpu.vector_store %arg9[%c0_11, %c0_12], %12 {strides = array<i32>} : memref<32x256xf32, #tpu.memory_space<vmem>>, vector<32x256xf32>,
    } else {
    }
    %c0 = arith.constant 0 : index
    %c0_1 = arith.constant 0 : index
    %3 = vector.load %arg9[%c0, %c0_1] : memref<32x256xf32, #tpu.memory_space<vmem>>, vector<32x256xf32>
    %c0_2 = arith.constant 0 : index
    %c0_3 = arith.constant 0 : index
    %4 = vector.load %arg2[%c0_2, %c0_3] : memref<32x256xbf16, #tpu.memory_space<vmem>>, vector<32x256xbf16>
    %c0_4 = arith.constant 0 : index
    %c0_5 = arith.constant 0 : index
    %5 = vector.load %arg3[%c0_4, %c0_5] : memref<256x256xbf16, #tpu.memory_space<vmem>>, vector<256x256xbf16>
    %cst = arith.constant dense<0.000000e+00> : vector<32x256xf32>
    %6 = tpu.matmul %4, %5, %cst {dimension_numbers = #tpu.dot_dimension_numbers<[1], [0], [0], [1], [0, 0, 1, 1], [], []>} : vector<32x256xbf16>, vector<256x256xbf16>, vector<32x256xf32> -> vector<32x256xf32>
    %7 = arith.addf %3, %6 : vector<32x256xf32>
    %c0_6 = arith.constant 0 : index
    %c0_7 = arith.constant 0 : index
    %8 = vector.load %arg9[%c0_6, %c0_7] : memref<32x256xf32, #tpu.memory_space<vmem>>, vector<32x256xf32>
    tpu.vector_store %arg9[%c0_6, %c0_7], %7 {strides = array<i32>} : memref<32x256xf32, #tpu.memory_space<vmem>>, vector<32x256xf32>,
    %c0_i32_8 = arith.constant 0 : i32
    %9 = arith.cmpi eq, %arg1, %c0_i32_8 : i32
    %10 = arith.extui %9 : i1 to i32
    %c0_i32_9 = arith.constant 0 : i32
    %11 = arith.cmpi ne, %10, %c0_i32_9 : i32
    scf.if %11 {
      %c0_10 = arith.constant 0 : index
      %c0_11 = arith.constant 0 : index
      %12 = vector.load %arg9[%c0_10, %c0_11] : memref<32x256xf32, #tpu.memory_space<vmem>>, vector<32x256xf32>
      %c0_12 = arith.constant 0 : index
      %c0_13 = arith.constant 0 : index
      %13 = vector.load %arg4[%c0_12, %c0_13] : memref<1x256xf32, #tpu.memory_space<vmem>>, vector<1x256xf32>
      %14 = vector.broadcast %13 : vector<1x256xf32> to vector<32x256xf32>
      %15 = arith.addf %12, %14 : vector<32x256xf32>
      %c0_14 = arith.constant 0 : index
      %c0_15 = arith.constant 0 : index
      %16 = vector.load %arg5[%c0_14, %c0_15] : memref<32x256xbf16, #tpu.memory_space<vmem>>, vector<32x256xbf16>
      %17 = arith.extf %16 : vector<32x256xbf16> to vector<32x256xf32>
      %18 = arith.addf %15, %17 : vector<32x256xf32>
      %cst_16 = arith.constant dense<0.000000e+00> : vector<32xf32>
      %19 = vector.multi_reduction <add>, %18, %cst_16 [1] : vector<32x256xf32> to vector<32xf32>
      %20 = vector.shape_cast %19 : vector<32xf32> to vector<32x1xf32>
      %cst_17 = arith.constant 2.560000e+02 : f32
      %21 = vector.broadcast %cst_17 : f32 to vector<32x1xf32>
      %22 = arith.divf %20, %21 : vector<32x1xf32>
      %23 = vector.broadcast %22 : vector<32x1xf32> to vector<32x256xf32>
      %24 = arith.subf %18, %23 : vector<32x256xf32>
      %25 = arith.mulf %24, %24 : vector<32x256xf32>
      %cst_18 = arith.constant dense<0.000000e+00> : vector<32xf32>
      %26 = vector.multi_reduction <add>, %25, %cst_18 [1] : vector<32x256xf32> to vector<32xf32>
      %27 = vector.shape_cast %26 : vector<32xf32> to vector<32x1xf32>
      %cst_19 = arith.constant 2.560000e+02 : f32
      %28 = vector.broadcast %cst_19 : f32 to vector<32x1xf32>
      %29 = arith.divf %27, %28 : vector<32x1xf32>
      %30 = vector.broadcast %22 : vector<32x1xf32> to vector<32x256xf32>
      %31 = arith.subf %18, %30 : vector<32x256xf32>
      %cst_20 = arith.constant 9.99999974E-6 : f32
      %32 = vector.broadcast %cst_20 : f32 to vector<32x1xf32>
      %33 = arith.addf %29, %32 : vector<32x1xf32>
      %34 = math.rsqrt %33 : vector<32x1xf32>
      %35 = vector.broadcast %34 : vector<32x1xf32> to vector<32x256xf32>
      %36 = arith.mulf %31, %35 : vector<32x256xf32>
      %c0_21 = arith.constant 0 : index
      %c0_22 = arith.constant 0 : index
      %37 = vector.load %arg6[%c0_21, %c0_22] : memref<1x256xf32, #tpu.memory_space<vmem>>, vector<1x256xf32>
      %38 = vector.broadcast %37 : vector<1x256xf32> to vector<32x256xf32>
      %39 = arith.mulf %36, %38 : vector<32x256xf32>
      %c0_23 = arith.constant 0 : index
      %c0_24 = arith.constant 0 : index
      %40 = vector.load %arg7[%c0_23, %c0_24] : memref<1x256xf32, #tpu.memory_space<vmem>>, vector<1x256xf32>
      %41 = vector.broadcast %40 : vector<1x256xf32> to vector<32x256xf32>
      %42 = arith.addf %39, %41 : vector<32x256xf32>
      %43 = arith.truncf %42 : vector<32x256xf32> to vector<32x256xbf16>
      %c0_25 = arith.constant 0 : index
      %c0_26 = arith.constant 0 : index
      %44 = vector.load %arg8[%c0_25, %c0_26] : memref<32x256xbf16, #tpu.memory_space<vmem>>, vector<32x256xbf16>
      tpu.vector_store %arg8[%c0_25, %c0_26], %43 {strides = array<i32>} : memref<32x256xbf16, #tpu.memory_space<vmem>>, vector<32x256xbf16>,
    } else {
    }
    return
  }
  func.func @transform_0(%arg0: i32, %arg1: i32) -> (i32, i32) {
    %c0_i32 = arith.constant 0 : i32
    return %arg0, %arg1 : i32, i32
  }
  func.func @transform_1(%arg0: i32, %arg1: i32) -> (i32, i32) {
    %c0_i32 = arith.constant 0 : i32
    %c0_i32_0 = arith.constant 0 : i32
    return %arg1, %c0_i32 : i32, i32
  }
  func.func @transform_2(%arg0: i32, %arg1: i32) -> (i32, i32) {
    %c0_i32 = arith.constant 0 : i32
    %c0_i32_0 = arith.constant 0 : i32
    %c0_i32_1 = arith.constant 0 : i32
    return %c0_i32, %c0_i32_0 : i32, i32
  }
  func.func @transform_3(%arg0: i32, %arg1: i32) -> (i32, i32) {
    %c0_i32 = arith.constant 0 : i32
    %c0_i32_0 = arith.constant 0 : i32
    return %arg0, %c0_i32 : i32, i32
  }
  func.func @transform_4(%arg0: i32, %arg1: i32) -> (i32, i32) {
    %c0_i32 = arith.constant 0 : i32
    %c0_i32_0 = arith.constant 0 : i32
    %c0_i32_1 = arith.constant 0 : i32
    return %c0_i32, %c0_i32_0 : i32, i32
  }
  func.func @transform_5(%arg0: i32, %arg1: i32) -> (i32, i32) {
    %c0_i32 = arith.constant 0 : i32
    %c0_i32_0 = arith.constant 0 : i32
    %c0_i32_1 = arith.constant 0 : i32
    return %c0_i32, %c0_i32_0 : i32, i32
  }
  func.func @transform_6(%arg0: i32, %arg1: i32) -> (i32, i32) {
    %c0_i32 = arith.constant 0 : i32
    %c0_i32_0 = arith.constant 0 : i32
    return %arg0, %c0_i32 : i32, i32
  }
}

module attributes {stable_mosaic.version = 11 : i64} {
  func.func @_linear_kernel(%arg0: i32, %arg1: i32, %arg2: memref<32x256xbf16, #tpu.memory_space<vmem>>, %arg3: memref<256x512xbf16, #tpu.memory_space<vmem>>, %arg4: memref<1x512xf32, #tpu.memory_space<vmem>>, %arg5: memref<32x512xbf16, #tpu.memory_space<vmem>>, %arg6: memref<32x512xf32, #tpu.memory_space<vmem>>) attributes {dimension_semantics = [#tpu.dimension_semantics<parallel>, #tpu.dimension_semantics<arbitrary>], iteration_bounds = array<i64: 1, 1>, scalar_prefetch = 0 : i64, scratch_operands = 1 : i64, tpu.core_type = #tpu.core_type<tc>, window_params = [{transform_indices = @transform_0, window_bounds = array<i64: 32, 256>}, {transform_indices = @transform_1, window_bounds = array<i64: 256, 512>}, {pipeline_mode = #tpu.pipeline_mode<synchronous>, transform_indices = @transform_2, window_bounds = array<i64: 1, 512>}, {transform_indices = @transform_3, window_bounds = array<i64: 32, 512>}]} {
    %c0_i32 = arith.constant 0 : i32
    %0 = arith.cmpi eq, %arg1, %c0_i32 : i32
    %1 = arith.extui %0 : i1 to i32
    %c0_i32_0 = arith.constant 0 : i32
    %2 = arith.cmpi ne, %1, %c0_i32_0 : i32
    scf.if %2 {
      %cst_10 = arith.constant 0.000000e+00 : f32
      %12 = vector.broadcast %cst_10 : f32 to vector<32x512xf32>
      %c0_11 = arith.constant 0 : index
      %c0_12 = arith.constant 0 : index
      %13 = vector.load %arg6[%c0_11, %c0_12] : memref<32x512xf32, #tpu.memory_space<vmem>>, vector<32x512xf32>
      tpu.vector_store %arg6[%c0_11, %c0_12], %12 {strides = array<i32>} : memref<32x512xf32, #tpu.memory_space<vmem>>, vector<32x512xf32>,
    } else {
    }
    %c0 = arith.constant 0 : index
    %c0_1 = arith.constant 0 : index
    %3 = vector.load %arg6[%c0, %c0_1] : memref<32x512xf32, #tpu.memory_space<vmem>>, vector<32x512xf32>
    %c0_2 = arith.constant 0 : index
    %c0_3 = arith.constant 0 : index
    %4 = vector.load %arg2[%c0_2, %c0_3] : memref<32x256xbf16, #tpu.memory_space<vmem>>, vector<32x256xbf16>
    %c0_4 = arith.constant 0 : index
    %c0_5 = arith.constant 0 : index
    %5 = vector.load %arg3[%c0_4, %c0_5] : memref<256x512xbf16, #tpu.memory_space<vmem>>, vector<256x512xbf16>
    %cst = arith.constant dense<0.000000e+00> : vector<32x512xf32>
    %6 = tpu.matmul %4, %5, %cst {dimension_numbers = #tpu.dot_dimension_numbers<[1], [0], [0], [1], [0, 0, 1, 1], [], []>} : vector<32x256xbf16>, vector<256x512xbf16>, vector<32x512xf32> -> vector<32x512xf32>
    %7 = arith.addf %3, %6 : vector<32x512xf32>
    %c0_6 = arith.constant 0 : index
    %c0_7 = arith.constant 0 : index
    %8 = vector.load %arg6[%c0_6, %c0_7] : memref<32x512xf32, #tpu.memory_space<vmem>>, vector<32x512xf32>
    tpu.vector_store %arg6[%c0_6, %c0_7], %7 {strides = array<i32>} : memref<32x512xf32, #tpu.memory_space<vmem>>, vector<32x512xf32>,
    %c0_i32_8 = arith.constant 0 : i32
    %9 = arith.cmpi eq, %arg1, %c0_i32_8 : i32
    %10 = arith.extui %9 : i1 to i32
    %c0_i32_9 = arith.constant 0 : i32
    %11 = arith.cmpi ne, %10, %c0_i32_9 : i32
    scf.if %11 {
      %c0_10 = arith.constant 0 : index
      %c0_11 = arith.constant 0 : index
      %12 = vector.load %arg6[%c0_10, %c0_11] : memref<32x512xf32, #tpu.memory_space<vmem>>, vector<32x512xf32>
      %c0_12 = arith.constant 0 : index
      %c0_13 = arith.constant 0 : index
      %13 = vector.load %arg4[%c0_12, %c0_13] : memref<1x512xf32, #tpu.memory_space<vmem>>, vector<1x512xf32>
      %14 = vector.broadcast %13 : vector<1x512xf32> to vector<32x512xf32>
      %15 = arith.addf %12, %14 : vector<32x512xf32>
      %16 = arith.mulf %15, %15 : vector<32x512xf32>
      %17 = arith.mulf %15, %16 : vector<32x512xf32>
      %cst_14 = arith.constant 4.471500e-02 : f32
      %18 = vector.broadcast %cst_14 : f32 to vector<32x512xf32>
      %19 = arith.mulf %18, %17 : vector<32x512xf32>
      %20 = arith.addf %15, %19 : vector<32x512xf32>
      %cst_15 = arith.constant 0.797884583 : f32
      %21 = vector.broadcast %cst_15 : f32 to vector<32x512xf32>
      %22 = arith.mulf %21, %20 : vector<32x512xf32>
      %23 = math.tanh %22 : vector<32x512xf32>
      %cst_16 = arith.constant 1.000000e+00 : f32
      %24 = vector.broadcast %cst_16 : f32 to vector<32x512xf32>
      %25 = arith.addf %24, %23 : vector<32x512xf32>
      %cst_17 = arith.constant 5.000000e-01 : f32
      %26 = vector.broadcast %cst_17 : f32 to vector<32x512xf32>
      %27 = arith.mulf %26, %25 : vector<32x512xf32>
      %28 = arith.mulf %15, %27 : vector<32x512xf32>
      %29 = arith.truncf %28 : vector<32x512xf32> to vector<32x512xbf16>
      %c0_18 = arith.constant 0 : index
      %c0_19 = arith.constant 0 : index
      %30 = vector.load %arg5[%c0_18, %c0_19] : memref<32x512xbf16, #tpu.memory_space<vmem>>, vector<32x512xbf16>
      tpu.vector_store %arg5[%c0_18, %c0_19], %29 {strides = array<i32>} : memref<32x512xbf16, #tpu.memory_space<vmem>>, vector<32x512xbf16>,
    } else {
    }
    return
  }
  func.func @transform_0(%arg0: i32, %arg1: i32) -> (i32, i32) {
    %c0_i32 = arith.constant 0 : i32
    return %arg0, %arg1 : i32, i32
  }
  func.func @transform_1(%arg0: i32, %arg1: i32) -> (i32, i32) {
    %c0_i32 = arith.constant 0 : i32
    %c0_i32_0 = arith.constant 0 : i32
    return %arg1, %c0_i32 : i32, i32
  }
  func.func @transform_2(%arg0: i32, %arg1: i32) -> (i32, i32) {
    %c0_i32 = arith.constant 0 : i32
    %c0_i32_0 = arith.constant 0 : i32
    %c0_i32_1 = arith.constant 0 : i32
    return %c0_i32, %c0_i32_0 : i32, i32
  }
  func.func @transform_3(%arg0: i32, %arg1: i32) -> (i32, i32) {
    %c0_i32 = arith.constant 0 : i32
    %c0_i32_0 = arith.constant 0 : i32
    return %arg0, %c0_i32 : i32, i32
  }
}

module attributes {stable_mosaic.version = 11 : i64} {
  func.func @_linear_kernel(%arg0: i32, %arg1: i32, %arg2: memref<32x512xbf16, #tpu.memory_space<vmem>>, %arg3: memref<512x256xbf16, #tpu.memory_space<vmem>>, %arg4: memref<1x256xf32, #tpu.memory_space<vmem>>, %arg5: memref<32x256xbf16, #tpu.memory_space<vmem>>, %arg6: memref<1x256xf32, #tpu.memory_space<vmem>>, %arg7: memref<1x256xf32, #tpu.memory_space<vmem>>, %arg8: memref<32x256xbf16, #tpu.memory_space<vmem>>, %arg9: memref<32x256xf32, #tpu.memory_space<vmem>>) attributes {dimension_semantics = [#tpu.dimension_semantics<parallel>, #tpu.dimension_semantics<arbitrary>], iteration_bounds = array<i64: 1, 1>, scalar_prefetch = 0 : i64, scratch_operands = 1 : i64, tpu.core_type = #tpu.core_type<tc>, window_params = [{transform_indices = @transform_0, window_bounds = array<i64: 32, 512>}, {transform_indices = @transform_1, window_bounds = array<i64: 512, 256>}, {pipeline_mode = #tpu.pipeline_mode<synchronous>, transform_indices = @transform_2, window_bounds = array<i64: 1, 256>}, {transform_indices = @transform_3, window_bounds = array<i64: 32, 256>}, {pipeline_mode = #tpu.pipeline_mode<synchronous>, transform_indices = @transform_4, window_bounds = array<i64: 1, 256>}, {pipeline_mode = #tpu.pipeline_mode<synchronous>, transform_indices = @transform_5, window_bounds = array<i64: 1, 256>}, {transform_indices = @transform_6, window_bounds = array<i64: 32, 256>}]} {
    %c0_i32 = arith.constant 0 : i32
    %0 = arith.cmpi eq, %arg1, %c0_i32 : i32
    %1 = arith.extui %0 : i1 to i32
    %c0_i32_0 = arith.constant 0 : i32
    %2 = arith.cmpi ne, %1, %c0_i32_0 : i32
    scf.if %2 {
      %cst_10 = arith.constant 0.000000e+00 : f32
      %12 = vector.broadcast %cst_10 : f32 to vector<32x256xf32>
      %c0_11 = arith.constant 0 : index
      %c0_12 = arith.constant 0 : index
      %13 = vector.load %arg9[%c0_11, %c0_12] : memref<32x256xf32, #tpu.memory_space<vmem>>, vector<32x256xf32>
      tpu.vector_store %arg9[%c0_11, %c0_12], %12 {strides = array<i32>} : memref<32x256xf32, #tpu.memory_space<vmem>>, vector<32x256xf32>,
    } else {
    }
    %c0 = arith.constant 0 : index
    %c0_1 = arith.constant 0 : index
    %3 = vector.load %arg9[%c0, %c0_1] : memref<32x256xf32, #tpu.memory_space<vmem>>, vector<32x256xf32>
    %c0_2 = arith.constant 0 : index
    %c0_3 = arith.constant 0 : index
    %4 = vector.load %arg2[%c0_2, %c0_3] : memref<32x512xbf16, #tpu.memory_space<vmem>>, vector<32x512xbf16>
    %c0_4 = arith.constant 0 : index
    %c0_5 = arith.constant 0 : index
    %5 = vector.load %arg3[%c0_4, %c0_5] : memref<512x256xbf16, #tpu.memory_space<vmem>>, vector<512x256xbf16>
    %cst = arith.constant dense<0.000000e+00> : vector<32x256xf32>
    %6 = tpu.matmul %4, %5, %cst {dimension_numbers = #tpu.dot_dimension_numbers<[1], [0], [0], [1], [0, 0, 1, 1], [], []>} : vector<32x512xbf16>, vector<512x256xbf16>, vector<32x256xf32> -> vector<32x256xf32>
    %7 = arith.addf %3, %6 : vector<32x256xf32>
    %c0_6 = arith.constant 0 : index
    %c0_7 = arith.constant 0 : index
    %8 = vector.load %arg9[%c0_6, %c0_7] : memref<32x256xf32, #tpu.memory_space<vmem>>, vector<32x256xf32>
    tpu.vector_store %arg9[%c0_6, %c0_7], %7 {strides = array<i32>} : memref<32x256xf32, #tpu.memory_space<vmem>>, vector<32x256xf32>,
    %c0_i32_8 = arith.constant 0 : i32
    %9 = arith.cmpi eq, %arg1, %c0_i32_8 : i32
    %10 = arith.extui %9 : i1 to i32
    %c0_i32_9 = arith.constant 0 : i32
    %11 = arith.cmpi ne, %10, %c0_i32_9 : i32
    scf.if %11 {
      %c0_10 = arith.constant 0 : index
      %c0_11 = arith.constant 0 : index
      %12 = vector.load %arg9[%c0_10, %c0_11] : memref<32x256xf32, #tpu.memory_space<vmem>>, vector<32x256xf32>
      %c0_12 = arith.constant 0 : index
      %c0_13 = arith.constant 0 : index
      %13 = vector.load %arg4[%c0_12, %c0_13] : memref<1x256xf32, #tpu.memory_space<vmem>>, vector<1x256xf32>
      %14 = vector.broadcast %13 : vector<1x256xf32> to vector<32x256xf32>
      %15 = arith.addf %12, %14 : vector<32x256xf32>
      %c0_14 = arith.constant 0 : index
      %c0_15 = arith.constant 0 : index
      %16 = vector.load %arg5[%c0_14, %c0_15] : memref<32x256xbf16, #tpu.memory_space<vmem>>, vector<32x256xbf16>
      %17 = arith.extf %16 : vector<32x256xbf16> to vector<32x256xf32>
      %18 = arith.addf %15, %17 : vector<32x256xf32>
      %cst_16 = arith.constant dense<0.000000e+00> : vector<32xf32>
      %19 = vector.multi_reduction <add>, %18, %cst_16 [1] : vector<32x256xf32> to vector<32xf32>
      %20 = vector.shape_cast %19 : vector<32xf32> to vector<32x1xf32>
      %cst_17 = arith.constant 2.560000e+02 : f32
      %21 = vector.broadcast %cst_17 : f32 to vector<32x1xf32>
      %22 = arith.divf %20, %21 : vector<32x1xf32>
      %23 = vector.broadcast %22 : vector<32x1xf32> to vector<32x256xf32>
      %24 = arith.subf %18, %23 : vector<32x256xf32>
      %25 = arith.mulf %24, %24 : vector<32x256xf32>
      %cst_18 = arith.constant dense<0.000000e+00> : vector<32xf32>
      %26 = vector.multi_reduction <add>, %25, %cst_18 [1] : vector<32x256xf32> to vector<32xf32>
      %27 = vector.shape_cast %26 : vector<32xf32> to vector<32x1xf32>
      %cst_19 = arith.constant 2.560000e+02 : f32
      %28 = vector.broadcast %cst_19 : f32 to vector<32x1xf32>
      %29 = arith.divf %27, %28 : vector<32x1xf32>
      %30 = vector.broadcast %22 : vector<32x1xf32> to vector<32x256xf32>
      %31 = arith.subf %18, %30 : vector<32x256xf32>
      %cst_20 = arith.constant 9.99999974E-6 : f32
      %32 = vector.broadcast %cst_20 : f32 to vector<32x1xf32>
      %33 = arith.addf %29, %32 : vector<32x1xf32>
      %34 = math.rsqrt %33 : vector<32x1xf32>
      %35 = vector.broadcast %34 : vector<32x1xf32> to vector<32x256xf32>
      %36 = arith.mulf %31, %35 : vector<32x256xf32>
      %c0_21 = arith.constant 0 : index
      %c0_22 = arith.constant 0 : index
      %37 = vector.load %arg6[%c0_21, %c0_22] : memref<1x256xf32, #tpu.memory_space<vmem>>, vector<1x256xf32>
      %38 = vector.broadcast %37 : vector<1x256xf32> to vector<32x256xf32>
      %39 = arith.mulf %36, %38 : vector<32x256xf32>
      %c0_23 = arith.constant 0 : index
      %c0_24 = arith.constant 0 : index
      %40 = vector.load %arg7[%c0_23, %c0_24] : memref<1x256xf32, #tpu.memory_space<vmem>>, vector<1x256xf32>
      %41 = vector.broadcast %40 : vector<1x256xf32> to vector<32x256xf32>
      %42 = arith.addf %39, %41 : vector<32x256xf32>
      %43 = arith.truncf %42 : vector<32x256xf32> to vector<32x256xbf16>
      %c0_25 = arith.constant 0 : index
      %c0_26 = arith.constant 0 : index
      %44 = vector.load %arg8[%c0_25, %c0_26] : memref<32x256xbf16, #tpu.memory_space<vmem>>, vector<32x256xbf16>
      tpu.vector_store %arg8[%c0_25, %c0_26], %43 {strides = array<i32>} : memref<32x256xbf16, #tpu.memory_space<vmem>>, vector<32x256xbf16>,
    } else {
    }
    return
  }
  func.func @transform_0(%arg0: i32, %arg1: i32) -> (i32, i32) {
    %c0_i32 = arith.constant 0 : i32
    return %arg0, %arg1 : i32, i32
  }
  func.func @transform_1(%arg0: i32, %arg1: i32) -> (i32, i32) {
    %c0_i32 = arith.constant 0 : i32
    %c0_i32_0 = arith.constant 0 : i32
    return %arg1, %c0_i32 : i32, i32
  }
  func.func @transform_2(%arg0: i32, %arg1: i32) -> (i32, i32) {
    %c0_i32 = arith.constant 0 : i32
    %c0_i32_0 = arith.constant 0 : i32
    %c0_i32_1 = arith.constant 0 : i32
    return %c0_i32, %c0_i32_0 : i32, i32
  }
  func.func @transform_3(%arg0: i32, %arg1: i32) -> (i32, i32) {
    %c0_i32 = arith.constant 0 : i32
    %c0_i32_0 = arith.constant 0 : i32
    return %arg0, %c0_i32 : i32, i32
  }
  func.func @transform_4(%arg0: i32, %arg1: i32) -> (i32, i32) {
    %c0_i32 = arith.constant 0 : i32
    %c0_i32_0 = arith.constant 0 : i32
    %c0_i32_1 = arith.constant 0 : i32
    return %c0_i32, %c0_i32_0 : i32, i32
  }
  func.func @transform_5(%arg0: i32, %arg1: i32) -> (i32, i32) {
    %c0_i32 = arith.constant 0 : i32
    %c0_i32_0 = arith.constant 0 : i32
    %c0_i32_1 = arith.constant 0 : i32
    return %c0_i32, %c0_i32_0 : i32, i32
  }
  func.func @transform_6(%arg0: i32, %arg1: i32) -> (i32, i32) {
    %c0_i32 = arith.constant 0 : i32
    %c0_i32_0 = arith.constant 0 : i32
    return %arg0, %c0_i32 : i32, i32
  }
}

module attributes {stable_mosaic.version = 11 : i64} {
  func.func @_linear_kernel(%arg0: i32, %arg1: i32, %arg2: memref<32x256xbf16, #tpu.memory_space<vmem>>, %arg3: memref<256x256xbf16, #tpu.memory_space<vmem>>, %arg4: memref<1x256xf32, #tpu.memory_space<vmem>>, %arg5: memref<32x256xbf16, #tpu.memory_space<vmem>>, %arg6: memref<1x256xf32, #tpu.memory_space<vmem>>, %arg7: memref<1x256xf32, #tpu.memory_space<vmem>>, %arg8: memref<32x256xbf16, #tpu.memory_space<vmem>>, %arg9: memref<32x256xf32, #tpu.memory_space<vmem>>) attributes {dimension_semantics = [#tpu.dimension_semantics<parallel>, #tpu.dimension_semantics<arbitrary>], iteration_bounds = array<i64: 1, 1>, scalar_prefetch = 0 : i64, scratch_operands = 1 : i64, tpu.core_type = #tpu.core_type<tc>, window_params = [{transform_indices = @transform_0, window_bounds = array<i64: 32, 256>}, {transform_indices = @transform_1, window_bounds = array<i64: 256, 256>}, {pipeline_mode = #tpu.pipeline_mode<synchronous>, transform_indices = @transform_2, window_bounds = array<i64: 1, 256>}, {transform_indices = @transform_3, window_bounds = array<i64: 32, 256>}, {pipeline_mode = #tpu.pipeline_mode<synchronous>, transform_indices = @transform_4, window_bounds = array<i64: 1, 256>}, {pipeline_mode = #tpu.pipeline_mode<synchronous>, transform_indices = @transform_5, window_bounds = array<i64: 1, 256>}, {transform_indices = @transform_6, window_bounds = array<i64: 32, 256>}]} {
    %c0_i32 = arith.constant 0 : i32
    %0 = arith.cmpi eq, %arg1, %c0_i32 : i32
    %1 = arith.extui %0 : i1 to i32
    %c0_i32_0 = arith.constant 0 : i32
    %2 = arith.cmpi ne, %1, %c0_i32_0 : i32
    scf.if %2 {
      %cst_10 = arith.constant 0.000000e+00 : f32
      %12 = vector.broadcast %cst_10 : f32 to vector<32x256xf32>
      %c0_11 = arith.constant 0 : index
      %c0_12 = arith.constant 0 : index
      %13 = vector.load %arg9[%c0_11, %c0_12] : memref<32x256xf32, #tpu.memory_space<vmem>>, vector<32x256xf32>
      tpu.vector_store %arg9[%c0_11, %c0_12], %12 {strides = array<i32>} : memref<32x256xf32, #tpu.memory_space<vmem>>, vector<32x256xf32>,
    } else {
    }
    %c0 = arith.constant 0 : index
    %c0_1 = arith.constant 0 : index
    %3 = vector.load %arg9[%c0, %c0_1] : memref<32x256xf32, #tpu.memory_space<vmem>>, vector<32x256xf32>
    %c0_2 = arith.constant 0 : index
    %c0_3 = arith.constant 0 : index
    %4 = vector.load %arg2[%c0_2, %c0_3] : memref<32x256xbf16, #tpu.memory_space<vmem>>, vector<32x256xbf16>
    %c0_4 = arith.constant 0 : index
    %c0_5 = arith.constant 0 : index
    %5 = vector.load %arg3[%c0_4, %c0_5] : memref<256x256xbf16, #tpu.memory_space<vmem>>, vector<256x256xbf16>
    %cst = arith.constant dense<0.000000e+00> : vector<32x256xf32>
    %6 = tpu.matmul %4, %5, %cst {dimension_numbers = #tpu.dot_dimension_numbers<[1], [0], [0], [1], [0, 0, 1, 1], [], []>} : vector<32x256xbf16>, vector<256x256xbf16>, vector<32x256xf32> -> vector<32x256xf32>
    %7 = arith.addf %3, %6 : vector<32x256xf32>
    %c0_6 = arith.constant 0 : index
    %c0_7 = arith.constant 0 : index
    %8 = vector.load %arg9[%c0_6, %c0_7] : memref<32x256xf32, #tpu.memory_space<vmem>>, vector<32x256xf32>
    tpu.vector_store %arg9[%c0_6, %c0_7], %7 {strides = array<i32>} : memref<32x256xf32, #tpu.memory_space<vmem>>, vector<32x256xf32>,
    %c0_i32_8 = arith.constant 0 : i32
    %9 = arith.cmpi eq, %arg1, %c0_i32_8 : i32
    %10 = arith.extui %9 : i1 to i32
    %c0_i32_9 = arith.constant 0 : i32
    %11 = arith.cmpi ne, %10, %c0_i32_9 : i32
    scf.if %11 {
      %c0_10 = arith.constant 0 : index
      %c0_11 = arith.constant 0 : index
      %12 = vector.load %arg9[%c0_10, %c0_11] : memref<32x256xf32, #tpu.memory_space<vmem>>, vector<32x256xf32>
      %c0_12 = arith.constant 0 : index
      %c0_13 = arith.constant 0 : index
      %13 = vector.load %arg4[%c0_12, %c0_13] : memref<1x256xf32, #tpu.memory_space<vmem>>, vector<1x256xf32>
      %14 = vector.broadcast %13 : vector<1x256xf32> to vector<32x256xf32>
      %15 = arith.addf %12, %14 : vector<32x256xf32>
      %c0_14 = arith.constant 0 : index
      %c0_15 = arith.constant 0 : index
      %16 = vector.load %arg5[%c0_14, %c0_15] : memref<32x256xbf16, #tpu.memory_space<vmem>>, vector<32x256xbf16>
      %17 = arith.extf %16 : vector<32x256xbf16> to vector<32x256xf32>
      %18 = arith.addf %15, %17 : vector<32x256xf32>
      %cst_16 = arith.constant dense<0.000000e+00> : vector<32xf32>
      %19 = vector.multi_reduction <add>, %18, %cst_16 [1] : vector<32x256xf32> to vector<32xf32>
      %20 = vector.shape_cast %19 : vector<32xf32> to vector<32x1xf32>
      %cst_17 = arith.constant 2.560000e+02 : f32
      %21 = vector.broadcast %cst_17 : f32 to vector<32x1xf32>
      %22 = arith.divf %20, %21 : vector<32x1xf32>
      %23 = vector.broadcast %22 : vector<32x1xf32> to vector<32x256xf32>
      %24 = arith.subf %18, %23 : vector<32x256xf32>
      %25 = arith.mulf %24, %24 : vector<32x256xf32>
      %cst_18 = arith.constant dense<0.000000e+00> : vector<32xf32>
      %26 = vector.multi_reduction <add>, %25, %cst_18 [1] : vector<32x256xf32> to vector<32xf32>
      %27 = vector.shape_cast %26 : vector<32xf32> to vector<32x1xf32>
      %cst_19 = arith.constant 2.560000e+02 : f32
      %28 = vector.broadcast %cst_19 : f32 to vector<32x1xf32>
      %29 = arith.divf %27, %28 : vector<32x1xf32>
      %30 = vector.broadcast %22 : vector<32x1xf32> to vector<32x256xf32>
      %31 = arith.subf %18, %30 : vector<32x256xf32>
      %cst_20 = arith.constant 9.99999974E-6 : f32
      %32 = vector.broadcast %cst_20 : f32 to vector<32x1xf32>
      %33 = arith.addf %29, %32 : vector<32x1xf32>
      %34 = math.rsqrt %33 : vector<32x1xf32>
      %35 = vector.broadcast %34 : vector<32x1xf32> to vector<32x256xf32>
      %36 = arith.mulf %31, %35 : vector<32x256xf32>
      %c0_21 = arith.constant 0 : index
      %c0_22 = arith.constant 0 : index
      %37 = vector.load %arg6[%c0_21, %c0_22] : memref<1x256xf32, #tpu.memory_space<vmem>>, vector<1x256xf32>
      %38 = vector.broadcast %37 : vector<1x256xf32> to vector<32x256xf32>
      %39 = arith.mulf %36, %38 : vector<32x256xf32>
      %c0_23 = arith.constant 0 : index
      %c0_24 = arith.constant 0 : index
      %40 = vector.load %arg7[%c0_23, %c0_24] : memref<1x256xf32, #tpu.memory_space<vmem>>, vector<1x256xf32>
      %41 = vector.broadcast %40 : vector<1x256xf32> to vector<32x256xf32>
      %42 = arith.addf %39, %41 : vector<32x256xf32>
      %43 = arith.truncf %42 : vector<32x256xf32> to vector<32x256xbf16>
      %c0_25 = arith.constant 0 : index
      %c0_26 = arith.constant 0 : index
      %44 = vector.load %arg8[%c0_25, %c0_26] : memref<32x256xbf16, #tpu.memory_space<vmem>>, vector<32x256xbf16>
      tpu.vector_store %arg8[%c0_25, %c0_26], %43 {strides = array<i32>} : memref<32x256xbf16, #tpu.memory_space<vmem>>, vector<32x256xbf16>,
    } else {
    }
    return
  }
  func.func @transform_0(%arg0: i32, %arg1: i32) -> (i32, i32) {
    %c0_i32 = arith.constant 0 : i32
    return %arg0, %arg1 : i32, i32
  }
  func.func @transform_1(%arg0: i32, %arg1: i32) -> (i32, i32) {
    %c0_i32 = arith.constant 0 : i32
    %c0_i32_0 = arith.constant 0 : i32
    return %arg1, %c0_i32 : i32, i32
  }
  func.func @transform_2(%arg0: i32, %arg1: i32) -> (i32, i32) {
    %c0_i32 = arith.constant 0 : i32
    %c0_i32_0 = arith.constant 0 : i32
    %c0_i32_1 = arith.constant 0 : i32
    return %c0_i32, %c0_i32_0 : i32, i32
  }
  func.func @transform_3(%arg0: i32, %arg1: i32) -> (i32, i32) {
    %c0_i32 = arith.constant 0 : i32
    %c0_i32_0 = arith.constant 0 : i32
    return %arg0, %c0_i32 : i32, i32
  }
  func.func @transform_4(%arg0: i32, %arg1: i32) -> (i32, i32) {
    %c0_i32 = arith.constant 0 : i32
    %c0_i32_0 = arith.constant 0 : i32
    %c0_i32_1 = arith.constant 0 : i32
    return %c0_i32, %c0_i32_0 : i32, i32
  }
  func.func @transform_5(%arg0: i32, %arg1: i32) -> (i32, i32) {
    %c0_i32 = arith.constant 0 : i32
    %c0_i32_0 = arith.constant 0 : i32
    %c0_i32_1 = arith.constant 0 : i32
    return %c0_i32, %c0_i32_0 : i32, i32
  }
  func.func @transform_6(%arg0: i32, %arg1: i32) -> (i32, i32) {
    %c0_i32 = arith.constant 0 : i32
    %c0_i32_0 = arith.constant 0 : i32
    return %arg0, %c0_i32 : i32, i32
  }
}

module attributes {stable_mosaic.version = 11 : i64} {
  func.func @_linear_kernel(%arg0: i32, %arg1: i32, %arg2: memref<32x256xbf16, #tpu.memory_space<vmem>>, %arg3: memref<256x512xbf16, #tpu.memory_space<vmem>>, %arg4: memref<1x512xf32, #tpu.memory_space<vmem>>, %arg5: memref<32x512xbf16, #tpu.memory_space<vmem>>, %arg6: memref<32x512xf32, #tpu.memory_space<vmem>>) attributes {dimension_semantics = [#tpu.dimension_semantics<parallel>, #tpu.dimension_semantics<arbitrary>], iteration_bounds = array<i64: 1, 1>, scalar_prefetch = 0 : i64, scratch_operands = 1 : i64, tpu.core_type = #tpu.core_type<tc>, window_params = [{transform_indices = @transform_0, window_bounds = array<i64: 32, 256>}, {transform_indices = @transform_1, window_bounds = array<i64: 256, 512>}, {pipeline_mode = #tpu.pipeline_mode<synchronous>, transform_indices = @transform_2, window_bounds = array<i64: 1, 512>}, {transform_indices = @transform_3, window_bounds = array<i64: 32, 512>}]} {
    %c0_i32 = arith.constant 0 : i32
    %0 = arith.cmpi eq, %arg1, %c0_i32 : i32
    %1 = arith.extui %0 : i1 to i32
    %c0_i32_0 = arith.constant 0 : i32
    %2 = arith.cmpi ne, %1, %c0_i32_0 : i32
    scf.if %2 {
      %cst_10 = arith.constant 0.000000e+00 : f32
      %12 = vector.broadcast %cst_10 : f32 to vector<32x512xf32>
      %c0_11 = arith.constant 0 : index
      %c0_12 = arith.constant 0 : index
      %13 = vector.load %arg6[%c0_11, %c0_12] : memref<32x512xf32, #tpu.memory_space<vmem>>, vector<32x512xf32>
      tpu.vector_store %arg6[%c0_11, %c0_12], %12 {strides = array<i32>} : memref<32x512xf32, #tpu.memory_space<vmem>>, vector<32x512xf32>,
    } else {
    }
    %c0 = arith.constant 0 : index
    %c0_1 = arith.constant 0 : index
    %3 = vector.load %arg6[%c0, %c0_1] : memref<32x512xf32, #tpu.memory_space<vmem>>, vector<32x512xf32>
    %c0_2 = arith.constant 0 : index
    %c0_3 = arith.constant 0 : index
    %4 = vector.load %arg2[%c0_2, %c0_3] : memref<32x256xbf16, #tpu.memory_space<vmem>>, vector<32x256xbf16>
    %c0_4 = arith.constant 0 : index
    %c0_5 = arith.constant 0 : index
    %5 = vector.load %arg3[%c0_4, %c0_5] : memref<256x512xbf16, #tpu.memory_space<vmem>>, vector<256x512xbf16>
    %cst = arith.constant dense<0.000000e+00> : vector<32x512xf32>
    %6 = tpu.matmul %4, %5, %cst {dimension_numbers = #tpu.dot_dimension_numbers<[1], [0], [0], [1], [0, 0, 1, 1], [], []>} : vector<32x256xbf16>, vector<256x512xbf16>, vector<32x512xf32> -> vector<32x512xf32>
    %7 = arith.addf %3, %6 : vector<32x512xf32>
    %c0_6 = arith.constant 0 : index
    %c0_7 = arith.constant 0 : index
    %8 = vector.load %arg6[%c0_6, %c0_7] : memref<32x512xf32, #tpu.memory_space<vmem>>, vector<32x512xf32>
    tpu.vector_store %arg6[%c0_6, %c0_7], %7 {strides = array<i32>} : memref<32x512xf32, #tpu.memory_space<vmem>>, vector<32x512xf32>,
    %c0_i32_8 = arith.constant 0 : i32
    %9 = arith.cmpi eq, %arg1, %c0_i32_8 : i32
    %10 = arith.extui %9 : i1 to i32
    %c0_i32_9 = arith.constant 0 : i32
    %11 = arith.cmpi ne, %10, %c0_i32_9 : i32
    scf.if %11 {
      %c0_10 = arith.constant 0 : index
      %c0_11 = arith.constant 0 : index
      %12 = vector.load %arg6[%c0_10, %c0_11] : memref<32x512xf32, #tpu.memory_space<vmem>>, vector<32x512xf32>
      %c0_12 = arith.constant 0 : index
      %c0_13 = arith.constant 0 : index
      %13 = vector.load %arg4[%c0_12, %c0_13] : memref<1x512xf32, #tpu.memory_space<vmem>>, vector<1x512xf32>
      %14 = vector.broadcast %13 : vector<1x512xf32> to vector<32x512xf32>
      %15 = arith.addf %12, %14 : vector<32x512xf32>
      %16 = arith.mulf %15, %15 : vector<32x512xf32>
      %17 = arith.mulf %15, %16 : vector<32x512xf32>
      %cst_14 = arith.constant 4.471500e-02 : f32
      %18 = vector.broadcast %cst_14 : f32 to vector<32x512xf32>
      %19 = arith.mulf %18, %17 : vector<32x512xf32>
      %20 = arith.addf %15, %19 : vector<32x512xf32>
      %cst_15 = arith.constant 0.797884583 : f32
      %21 = vector.broadcast %cst_15 : f32 to vector<32x512xf32>
      %22 = arith.mulf %21, %20 : vector<32x512xf32>
      %23 = math.tanh %22 : vector<32x512xf32>
      %cst_16 = arith.constant 1.000000e+00 : f32
      %24 = vector.broadcast %cst_16 : f32 to vector<32x512xf32>
      %25 = arith.addf %24, %23 : vector<32x512xf32>
      %cst_17 = arith.constant 5.000000e-01 : f32
      %26 = vector.broadcast %cst_17 : f32 to vector<32x512xf32>
      %27 = arith.mulf %26, %25 : vector<32x512xf32>
      %28 = arith.mulf %15, %27 : vector<32x512xf32>
      %29 = arith.truncf %28 : vector<32x512xf32> to vector<32x512xbf16>
      %c0_18 = arith.constant 0 : index
      %c0_19 = arith.constant 0 : index
      %30 = vector.load %arg5[%c0_18, %c0_19] : memref<32x512xbf16, #tpu.memory_space<vmem>>, vector<32x512xbf16>
      tpu.vector_store %arg5[%c0_18, %c0_19], %29 {strides = array<i32>} : memref<32x512xbf16, #tpu.memory_space<vmem>>, vector<32x512xbf16>,
    } else {
    }
    return
  }
  func.func @transform_0(%arg0: i32, %arg1: i32) -> (i32, i32) {
    %c0_i32 = arith.constant 0 : i32
    return %arg0, %arg1 : i32, i32
  }
  func.func @transform_1(%arg0: i32, %arg1: i32) -> (i32, i32) {
    %c0_i32 = arith.constant 0 : i32
    %c0_i32_0 = arith.constant 0 : i32
    return %arg1, %c0_i32 : i32, i32
  }
  func.func @transform_2(%arg0: i32, %arg1: i32) -> (i32, i32) {
    %c0_i32 = arith.constant 0 : i32
    %c0_i32_0 = arith.constant 0 : i32
    %c0_i32_1 = arith.constant 0 : i32
    return %c0_i32, %c0_i32_0 : i32, i32
  }
  func.func @transform_3(%arg0: i32, %arg1: i32) -> (i32, i32) {
    %c0_i32 = arith.constant 0 : i32
    %c0_i32_0 = arith.constant 0 : i32
    return %arg0, %c0_i32 : i32, i32
  }
}

module attributes {stable_mosaic.version = 11 : i64} {
  func.func @_pool_mixup_head_kernel(%arg0: i32, %arg1: memref<1x1xf32, #tpu.memory_space<smem>>, %arg2: memref<2x256xbf16, #tpu.memory_space<vmem>>, %arg3: memref<2x256xbf16, #tpu.memory_space<vmem>>, %arg4: memref<256x256xbf16, #tpu.memory_space<vmem>>, %arg5: memref<1x256xf32, #tpu.memory_space<vmem>>, %arg6: memref<256x1xbf16, #tpu.memory_space<vmem>>, %arg7: memref<1x1xf32, #tpu.memory_space<vmem>>, %arg8: memref<2x256xf32, #tpu.memory_space<vmem>>, %arg9: memref<2x1xf32, #tpu.memory_space<vmem>>) attributes {dimension_semantics = [#tpu.dimension_semantics<arbitrary>], iteration_bounds = array<i64: 1>, scalar_prefetch = 0 : i64, scratch_operands = 0 : i64, tpu.core_type = #tpu.core_type<tc>, window_params = [{transform_indices = @transform_0, window_bounds = array<i64: 1, 1>}, {pipeline_mode = #tpu.pipeline_mode<synchronous>, transform_indices = @transform_1, window_bounds = array<i64: 2, 256>}, {pipeline_mode = #tpu.pipeline_mode<synchronous>, transform_indices = @transform_2, window_bounds = array<i64: 2, 256>}, {pipeline_mode = #tpu.pipeline_mode<synchronous>, transform_indices = @transform_3, window_bounds = array<i64: 256, 256>}, {pipeline_mode = #tpu.pipeline_mode<synchronous>, transform_indices = @transform_4, window_bounds = array<i64: 1, 256>}, {pipeline_mode = #tpu.pipeline_mode<synchronous>, transform_indices = @transform_5, window_bounds = array<i64: 256, 1>}, {pipeline_mode = #tpu.pipeline_mode<synchronous>, transform_indices = @transform_6, window_bounds = array<i64: 1, 1>}, {pipeline_mode = #tpu.pipeline_mode<synchronous>, transform_indices = @transform_7, window_bounds = array<i64: 2, 256>}, {pipeline_mode = #tpu.pipeline_mode<synchronous>, transform_indices = @transform_8, window_bounds = array<i64: 2, 1>}]} {
    %c0 = arith.constant 0 : index
    %c0_0 = arith.constant 0 : index
    %0 = memref.load %arg1[%c0, %c0_0] : memref<1x1xf32, #tpu.memory_space<smem>>
    %c0_1 = arith.constant 0 : index
    %c0_2 = arith.constant 0 : index
    %1 = vector.load %arg4[%c0_1, %c0_2] : memref<256x256xbf16, #tpu.memory_space<vmem>>, vector<256x256xbf16>
    %c0_3 = arith.constant 0 : index
    %c0_4 = arith.constant 0 : index
    %2 = vector.load %arg5[%c0_3, %c0_4] : memref<1x256xf32, #tpu.memory_space<vmem>>, vector<1x256xf32>
    %c0_5 = arith.constant 0 : index
    %c0_6 = arith.constant 0 : index
    %3 = vector.load %arg2[%c0_5, %c0_6] : memref<2x256xbf16, #tpu.memory_space<vmem>>, vector<2x256xbf16>
    %cst = arith.constant dense<0.000000e+00> : vector<2x256xf32>
    %4 = tpu.matmul %3, %1, %cst {dimension_numbers = #tpu.dot_dimension_numbers<[1], [0], [0], [1], [0, 0, 1, 1], [], []>} : vector<2x256xbf16>, vector<256x256xbf16>, vector<2x256xf32> -> vector<2x256xf32>
    %5 = vector.broadcast %2 : vector<1x256xf32> to vector<2x256xf32>
    %6 = arith.addf %4, %5 : vector<2x256xf32>
    %7 = math.tanh %6 : vector<2x256xf32>
    %c0_7 = arith.constant 0 : index
    %c0_8 = arith.constant 0 : index
    %8 = vector.load %arg3[%c0_7, %c0_8] : memref<2x256xbf16, #tpu.memory_space<vmem>>, vector<2x256xbf16>
    %cst_9 = arith.constant dense<0.000000e+00> : vector<2x256xf32>
    %9 = tpu.matmul %8, %1, %cst_9 {dimension_numbers = #tpu.dot_dimension_numbers<[1], [0], [0], [1], [0, 0, 1, 1], [], []>} : vector<2x256xbf16>, vector<256x256xbf16>, vector<2x256xf32> -> vector<2x256xf32>
    %10 = vector.broadcast %2 : vector<1x256xf32> to vector<2x256xf32>
    %11 = arith.addf %9, %10 : vector<2x256xf32>
    %12 = math.tanh %11 : vector<2x256xf32>
    %13 = vector.broadcast %0 : f32 to vector<2x256xf32>
    %14 = arith.mulf %13, %7 : vector<2x256xf32>
    %cst_10 = arith.constant 1.000000e+00 : f32
    %15 = arith.subf %cst_10, %0 : f32
    %16 = vector.broadcast %15 : f32 to vector<2x256xf32>
    %17 = arith.mulf %16, %12 : vector<2x256xf32>
    %18 = arith.addf %14, %17 : vector<2x256xf32>
    %c0_11 = arith.constant 0 : index
    %c0_12 = arith.constant 0 : index
    %19 = vector.load %arg8[%c0_11, %c0_12] : memref<2x256xf32, #tpu.memory_space<vmem>>, vector<2x256xf32>
    tpu.vector_store %arg8[%c0_11, %c0_12], %18 {strides = array<i32>} : memref<2x256xf32, #tpu.memory_space<vmem>>, vector<2x256xf32>,
    %20 = arith.truncf %18 : vector<2x256xf32> to vector<2x256xbf16>
    %c0_13 = arith.constant 0 : index
    %c0_14 = arith.constant 0 : index
    %21 = vector.load %arg6[%c0_13, %c0_14] : memref<256x1xbf16, #tpu.memory_space<vmem>>, vector<256x1xbf16>
    %cst_15 = arith.constant dense<0.000000e+00> : vector<2x1xf32>
    %22 = tpu.matmul %20, %21, %cst_15 {dimension_numbers = #tpu.dot_dimension_numbers<[1], [0], [0], [1], [0, 0, 1, 1], [], []>} : vector<2x256xbf16>, vector<256x1xbf16>, vector<2x1xf32> -> vector<2x1xf32>
    %c0_16 = arith.constant 0 : index
    %c0_17 = arith.constant 0 : index
    %23 = vector.load %arg7[%c0_16, %c0_17] : memref<1x1xf32, #tpu.memory_space<vmem>>, vector<1x1xf32>
    %24 = vector.broadcast %23 : vector<1x1xf32> to vector<2x1xf32>
    %25 = arith.addf %22, %24 : vector<2x1xf32>
    %c0_18 = arith.constant 0 : index
    %c0_19 = arith.constant 0 : index
    %26 = vector.load %arg9[%c0_18, %c0_19] : memref<2x1xf32, #tpu.memory_space<vmem>>, vector<2x1xf32>
    tpu.vector_store %arg9[%c0_18, %c0_19], %25 {strides = array<i32>} : memref<2x1xf32, #tpu.memory_space<vmem>>, vector<2x1xf32>,
    return
  }
  func.func @transform_0(%arg0: i32) -> (i32, i32) {
    %c0_i32 = arith.constant 0 : i32
    %c0_i32_0 = arith.constant 0 : i32
    %c0_i32_1 = arith.constant 0 : i32
    return %c0_i32, %c0_i32_0 : i32, i32
  }
  func.func @transform_1(%arg0: i32) -> (i32, i32) {
    %c0_i32 = arith.constant 0 : i32
    %c0_i32_0 = arith.constant 0 : i32
    %c0_i32_1 = arith.constant 0 : i32
    return %c0_i32, %c0_i32_0 : i32, i32
  }
  func.func @transform_2(%arg0: i32) -> (i32, i32) {
    %c0_i32 = arith.constant 0 : i32
    %c0_i32_0 = arith.constant 0 : i32
    %c0_i32_1 = arith.constant 0 : i32
    return %c0_i32, %c0_i32_0 : i32, i32
  }
  func.func @transform_3(%arg0: i32) -> (i32, i32) {
    %c0_i32 = arith.constant 0 : i32
    %c0_i32_0 = arith.constant 0 : i32
    %c0_i32_1 = arith.constant 0 : i32
    return %c0_i32, %c0_i32_0 : i32, i32
  }
  func.func @transform_4(%arg0: i32) -> (i32, i32) {
    %c0_i32 = arith.constant 0 : i32
    %c0_i32_0 = arith.constant 0 : i32
    %c0_i32_1 = arith.constant 0 : i32
    return %c0_i32, %c0_i32_0 : i32, i32
  }
  func.func @transform_5(%arg0: i32) -> (i32, i32) {
    %c0_i32 = arith.constant 0 : i32
    %c0_i32_0 = arith.constant 0 : i32
    %c0_i32_1 = arith.constant 0 : i32
    return %c0_i32, %c0_i32_0 : i32, i32
  }
  func.func @transform_6(%arg0: i32) -> (i32, i32) {
    %c0_i32 = arith.constant 0 : i32
    %c0_i32_0 = arith.constant 0 : i32
    %c0_i32_1 = arith.constant 0 : i32
    return %c0_i32, %c0_i32_0 : i32, i32
  }
  func.func @transform_7(%arg0: i32) -> (i32, i32) {
    %c0_i32 = arith.constant 0 : i32
    %c0_i32_0 = arith.constant 0 : i32
    %c0_i32_1 = arith.constant 0 : i32
    return %c0_i32, %c0_i32_0 : i32, i32
  }
  func.func @transform_8(%arg0: i32) -> (i32, i32) {
    %c0_i32 = arith.constant 0 : i32
    %c0_i32_0 = arith.constant 0 : i32
    %c0_i32_1 = arith.constant 0 : i32
    return %c0_i32, %c0_i32_0 : i32, i32
  }
}

</mosaic_0001>

<llo_original>
// kernel: forward.12
$region0: #{forward.12}
  #allocation0 [shape = 'u32[]', space=smem, size = 0x4, offset = 0x4, fixed_abs, tag = 'smem constant byte address 0x4 - core index']
  #allocation1 [shape = 'u32[72,128]{1,0:T(1,128)}', space=vmem, size = 0x9000, scoped, tag = 'internal scratch']
  %s0 = inlined_call_operand.vmem [shape: f32[32,256], index: 0, kind: input, shape index: {}]
  %s1 = inlined_call_operand.vmem [shape: f32[1,256], index: 1, kind: input, shape index: {}]
  %s2 = inlined_call_operand.vmem [shape: f32[1,256], index: 2, kind: input, shape index: {}]
  %s3 = inlined_call_operand.vmem [shape: bf16[32,256], index: 3, kind: output, shape index: {}]
  %s4 = sld [smem:[#allocation0]]
  $region22: #{forward.12} parent=0
    _
  %s6 = ssub.s32 1, %s4
  %s7 = scalar_select 0, %s6, %s4
  // Predicated region
  $region2: #{forward.12} parent=0 // pred_check
    _
  $region3: #{forward.12} parent=0 // pred_check_branch
    %9 = sbr.rel (0) target = $region5
  $region4: #{forward.12} parent=0 // pred_region
    _
  $region5: #{forward.12} parent=0 // pred_fallthru
    _
  // Predicated region
  $region6: #{forward.12} parent=0 // pred_check
    _
  $region7: #{forward.12} parent=0 // pred_check_branch
    %11 = sbr.rel (0) target = $region9
  $region8: #{forward.12} parent=0 // pred_region
    _
  $region9: #{forward.12} parent=0 // pred_fallthru
    _
  // Predicated region
  $region10: #{forward.12} parent=0 // pred_check
    _
  $region11: #{forward.12} parent=0 // pred_check_branch
    %13 = sbr.rel (0) target = $region13
  $region12: #{forward.12} parent=0 // pred_region
    _
  $region13: #{forward.12} parent=0 // pred_fallthru
    _
  %v14 = vld [vmem:[%s0] sm:$0xff]
  %v15 = vld [vmem:[%s0 + $0x8] sm:$0xff]
  %v16 = vld [vmem:[%s0 + $0x10] sm:$0xff]
  %v17 = vld [vmem:[%s0 + $0x18] sm:$0xff]
  %v18 = vld [vmem:[%s0 + $0x20] sm:$0xff]
  %v19 = vld [vmem:[%s0 + $0x28] sm:$0xff]
  %v20 = vld [vmem:[%s0 + $0x30] sm:$0xff]
  %v21 = vld [vmem:[%s0 + $0x38] sm:$0xff]
  %v22 = vadd.f32 %v14, %v15
  %23 = vadd.xlane.f32.xlu0 %v22
  %v24 = vpop.xlane.xlu0 %23
  %v25 = vadd.f32 %v16, %v17
  %26 = vadd.xlane.f32.xlu0 %v25
  %v27 = vpop.xlane.xlu0 %26
  %v28 = vadd.f32 %v18, %v19
  %29 = vadd.xlane.f32.xlu0 %v28
  %v30 = vpop.xlane.xlu0 %29
  %v31 = vadd.f32 %v20, %v21
  %32 = vadd.xlane.f32.xlu0 %v31
  %v33 = vpop.xlane.xlu0 %32
  %v34 = vrcp.pop 256.0
  %v35 = vmul.f32 256.0, %v34
  %v36 = vsub.f32 1.0, %v35
  %v37 = vmul.f32 %v34, %v36
  %v38 = vadd.f32 %v34, %v37
  %vm39 = vweird.f32 %v34
  %v40 = vsel %vm39, %v34, %v38
  %v41 = vmul.f32 %v24, %v40
  %v42 = vmul.f32 %v27, %v40
  %v43 = vmul.f32 %v30, %v40
  %v44 = vmul.f32 %v33, %v40
  %v45 = vsub.f32 %v14, %v41
  %v46 = vsub.f32 %v15, %v41
  %v47 = vsub.f32 %v16, %v42
  %v48 = vsub.f32 %v17, %v42
  %v49 = vsub.f32 %v18, %v43
  %v50 = vsub.f32 %v19, %v43
  %v51 = vsub.f32 %v20, %v44
  %v52 = vsub.f32 %v21, %v44
  %v53 = vmul.f32 %v45, %v45
  %v54 = vmul.f32 %v46, %v46
  %v55 = vmul.f32 %v47, %v47
  %v56 = vmul.f32 %v48, %v48
  %v57 = vmul.f32 %v49, %v49
  %v58 = vmul.f32 %v50, %v50
  %v59 = vmul.f32 %v51, %v51
  %v60 = vmul.f32 %v52, %v52
  %v61 = vadd.f32 %v53, %v54
  %62 = vadd.xlane.f32.xlu0 %v61
  %v63 = vpop.xlane.xlu0 %62
  %v64 = vadd.f32 %v55, %v56
  %65 = vadd.xlane.f32.xlu0 %v64
  %v66 = vpop.xlane.xlu0 %65
  %v67 = vadd.f32 %v57, %v58
  %68 = vadd.xlane.f32.xlu0 %v67
  %v69 = vpop.xlane.xlu0 %68
  %v70 = vadd.f32 %v59, %v60
  %71 = vadd.xlane.f32.xlu0 %v70
  %v72 = vpop.xlane.xlu0 %71
  %v73 = vmul.f32 %v63, %v40
  %v74 = vmul.f32 %v66, %v40
  %v75 = vmul.f32 %v69, %v40
  %v76 = vmul.f32 %v72, %v40
  %v77 = vadd.f32 %v73, 1e-05
  %v78 = vadd.f32 %v74, 1e-05
  %v79 = vadd.f32 %v75, 1e-05
  %v80 = vadd.f32 %v76, 1e-05
  %v81 = vrsqrt.pop %v77
  %v82 = vmul.f32 %v81, %v77
  %v83 = vmul.f32 %v82, %v81
  %v84 = vmul.f32 0.5, %v83
  %v85 = vsub.f32 1.5, %v84
  %v86 = vmul.f32 %v81, %v85
  %vm87 = vweird.f32 %v77
  %vm88 = vweird.f32 %v81
  %vm89 = vmor %vm87, %vm88
  %v90 = vsel %vm89, %v81, %v86
  %v91 = vrsqrt.pop %v78
  %v92 = vmul.f32 %v91, %v78
  %v93 = vmul.f32 %v92, %v91
  %v94 = vmul.f32 0.5, %v93
  %v95 = vsub.f32 1.5, %v94
  %v96 = vmul.f32 %v91, %v95
  %vm97 = vweird.f32 %v78
  %vm98 = vweird.f32 %v91
  %vm99 = vmor %vm97, %vm98
  %v100 = vsel %vm99, %v91, %v96
  %v101 = vrsqrt.pop %v79
  %v102 = vmul.f32 %v101, %v79
  %v103 = vmul.f32 %v102, %v101
  %v104 = vmul.f32 0.5, %v103
  %v105 = vsub.f32 1.5, %v104
  %v106 = vmul.f32 %v101, %v105
  %vm107 = vweird.f32 %v79
  %vm108 = vweird.f32 %v101
  %vm109 = vmor %vm107, %vm108
  %v110 = vsel %vm109, %v101, %v106
  %v111 = vrsqrt.pop %v80
  %v112 = vmul.f32 %v111, %v80
  %v113 = vmul.f32 %v112, %v111
  %v114 = vmul.f32 0.5, %v113
  %v115 = vsub.f32 1.5, %v114
  %v116 = vmul.f32 %v111, %v115
  %vm117 = vweird.f32 %v80
  %vm118 = vweird.f32 %v111
  %vm119 = vmor %vm117, %vm118
  %v120 = vsel %vm119, %v111, %v116
  %v121 = vmul.f32 %v45, %v90
  %v122 = vmul.f32 %v46, %v90
  %v123 = vmul.f32 %v47, %v100
  %v124 = vmul.f32 %v48, %v100
  %v125 = vmul.f32 %v49, %v110
  %v126 = vmul.f32 %v50, %v110
  %v127 = vmul.f32 %v51, %v120
  %v128 = vmul.f32 %v52, %v120
  %v129 = vld [vmem:[%s1] sm:$0x3]
  %v131 = vperm.slane %v129, 0
  %v132 = vperm.slane %v129, 1
  %v135 = vmul.f32 %v121, %v131
  %v136 = vmul.f32 %v122, %v132
  %v137 = vmul.f32 %v123, %v131
  %v138 = vmul.f32 %v124, %v132
  %v139 = vmul.f32 %v125, %v131
  %v140 = vmul.f32 %v126, %v132
  %v141 = vmul.f32 %v127, %v131
  %v142 = vmul.f32 %v128, %v132
  %v143 = vld [vmem:[%s2] sm:$0x3]
  %v145 = vperm.slane %v143, 0
  %v146 = vperm.slane %v143, 1
  %v149 = vadd.f32 %v135, %v145
  %v150 = vadd.f32 %v136, %v146
  %v151 = vadd.f32 %v137, %v145
  %v152 = vadd.f32 %v138, %v146
  %v153 = vadd.f32 %v139, %v145
  %v154 = vadd.f32 %v140, %v146
  %v155 = vadd.f32 %v141, %v145
  %v156 = vadd.f32 %v142, %v146
  %v157 = vpack.c.bf16 %v150, %v149
  %v158 = vpack.c.bf16 %v152, %v151
  %v159 = vpack.c.bf16 %v154, %v153
  %v160 = vpack.c.bf16 %v156, %v155
  %161 = vst [vmem:[%s3] sm:$0xff] %v157
  %162 = vst [vmem:[%s3 + $0x8] sm:$0xff] %v158
  %163 = vst [vmem:[%s3 + $0x10] sm:$0xff] %v159
  %164 = vst [vmem:[%s3 + $0x18] sm:$0xff] %v160
  // Predicated region
  $region14: #{forward.12} parent=0 // pred_check
    _
  $region15: #{forward.12} parent=0 // pred_check_branch
    %166 = sbr.rel (0) target = $region17
  $region16: #{forward.12} parent=0 // pred_region
    _
  $region17: #{forward.12} parent=0 // pred_fallthru
    _
  // Predicated region
  $region18: #{forward.12} parent=0 // pred_check
    _
  $region19: #{forward.12} parent=0 // pred_check_branch
    %168 = sbr.rel (0) target = $region21
  $region20: #{forward.12} parent=0 // pred_region
    _
  $region21: #{forward.12} parent=0 // pred_fallthru
    _

// kernel: forward.14
$region0: #{forward.14}
  #allocation0 [shape = 'u32[]', space=smem, size = 0x4, offset = 0x4, fixed_abs, tag = 'smem constant byte address 0x4 - core index']
  #allocation1 [shape = 'u32[72,128]{1,0:T(1,128)}', space=vmem, size = 0x9000, scoped, tag = 'internal scratch']
  %s0 = inlined_call_operand.vmem [shape: bf16[32,768], index: 0, kind: input, shape index: {}, may-alias: {0,1,2}]
  %s1 = inlined_call_operand.vmem [shape: bf16[32,768], index: 1, kind: input, shape index: {}, may-alias: {0,1,2}]
  %s2 = inlined_call_operand.vmem [shape: bf16[32,768], index: 2, kind: input, shape index: {}, may-alias: {0,1,2}]
  %s3 = inlined_call_operand.vmem [shape: f32[4,1,8], index: 3, kind: input, shape index: {}]
  %s4 = inlined_call_operand.vmem [shape: bf16[32,256], index: 4, kind: output, shape index: {}]
  %s5 = sld [smem:[#allocation0]]
  $region49: #{forward.14} parent=0
    _
  %s7 = ssub.s32 1, %s5
  %s8 = scalar_select 0, %s7, %s5
  loop: start=0, step=1, limit=10
  $region2: #{forward.14} parent=0 // loop_pre_header
    _
  $region3: #{forward.14} parent=0 // loop_header
    %s10 = sphi 0, %s14
    %p11 = scmp.ge.s32.totalorder %s10, 10
    %s17 = sphi 0, %s29
    %s18 = sphi 0, %s25
    %s19 = sphi 0, %s17
    %s20 = sphi 0, %s18
    %s21 = sphi 0, %s19
    %s22 = sphi 0, %s20
    %s34 = sphi 0, %s36
    %s37 = sphi 0, %s34
    %s38 = sphi 0, %s37
    %s54 = sphi 0, %s38
    %s64 = sphi 0, %s66
    %s67 = sphi 0, %s64
    %s68 = sphi 0, %s67
    %s84 = sphi 0, %s68
    %s94 = sphi 0, %s96
    %s97 = sphi 0, %s94
    %s98 = sphi 0, %s97
    %s114 = sphi 0, %s98
    %s120 = sphi 0, %s122
    %s123 = sphi 0, %s120
    %s124 = sphi 0, %s123
    %s140 = sphi 0, %s124
    %s148 = sphi 0, %s150
    %s151 = sphi 0, %s148
    %s152 = sphi 0, %s151
    %s168 = sphi 0, %s152
  $region4: #{forward.14} parent=0 // loop_header_branch
    %13 = sbr.rel (%p11) target = $region8
  $region5: #{forward.14} parent=0 // loop_body
    %s15 = ssub.s32 %s10, 1
    %s16 = ssub.s32 %s10, 2
    %s23 = sadd.s32 1, %s18
    %p24 = scmp.ge.s32.totalorder %s23, 2
    %s25 = scalar_select %p24, 0, %s23
    %s26 = sadd.s32 1, %s17
    %s27 = scalar_select %p24, %s26, %s17
    %p28 = scmp.ge.s32.totalorder %s27, 4
    %s29 = scalar_select %p28, 0, %s27
    %s30 = ssub.s32 %s17, %s29
    %s31 = ssub.s32 %s18, %s25
    %s32 = sor.u32 %s30, %s31
    %p33 = scmp.eq.s32.totalorder %s32, 0
    %s35 = sadd.s32 %s34, 1
    %s36 = scalar_select %p33, %s34, %s35
    %p39 = pneg %p33
    %p40 = scmp.eq.s32.totalorder %s10, 7
    %p41 = por %p39, %p40
    %p42 = scmp.ne.s32.totalorder %s34, %s37
    %p43 = scmp.eq.s32.totalorder %s10, 0
    %p44 = por %p42, %p43
    %p45 = scmp.ne.s32.totalorder %s34, %s37
    %p46 = scmp.eq.s32.totalorder %s15, 7
    %p47 = por %p45, %p46
    %p48 = scmp.ne.s32.totalorder %s37, %s38
    %p49 = scmp.eq.s32.totalorder %s15, 0
    %p50 = por %p48, %p49
    %p51 = scmp.ne.s32.totalorder %s37, %s38
    %p52 = scmp.eq.s32.totalorder %s16, 7
    %p53 = por %p51, %p52
    %p55 = scmp.ne.s32.totalorder %s38, %s54
    %p56 = scmp.eq.s32.totalorder %s16, 0
    %p57 = por %p55, %p56
    %s58 = sadd.s32 %s18, 2
    %s59 = sadd.s32 %s25, 2
    %s60 = ssub.s32 %s17, %s29
    %s61 = ssub.s32 %s58, %s59
    %s62 = sor.u32 %s60, %s61
    %p63 = scmp.eq.s32.totalorder %s62, 0
    %s65 = sadd.s32 %s64, 1
    %s66 = scalar_select %p63, %s64, %s65
    %p69 = pneg %p63
    %p70 = scmp.eq.s32.totalorder %s10, 7
    %p71 = por %p69, %p70
    %p72 = scmp.ne.s32.totalorder %s64, %s67
    %p73 = scmp.eq.s32.totalorder %s10, 0
    %p74 = por %p72, %p73
    %p75 = scmp.ne.s32.totalorder %s64, %s67
    %p76 = scmp.eq.s32.totalorder %s15, 7
    %p77 = por %p75, %p76
    %p78 = scmp.ne.s32.totalorder %s67, %s68
    %p79 = scmp.eq.s32.totalorder %s15, 0
    %p80 = por %p78, %p79
    %p81 = scmp.ne.s32.totalorder %s67, %s68
    %p82 = scmp.eq.s32.totalorder %s16, 7
    %p83 = por %p81, %p82
    %p85 = scmp.ne.s32.totalorder %s68, %s84
    %p86 = scmp.eq.s32.totalorder %s16, 0
    %p87 = por %p85, %p86
    %s88 = sadd.s32 %s18, 4
    %s89 = sadd.s32 %s25, 4
    %s90 = ssub.s32 %s17, %s29
    %s91 = ssub.s32 %s88, %s89
    %s92 = sor.u32 %s90, %s91
    %p93 = scmp.eq.s32.totalorder %s92, 0
    %s95 = sadd.s32 %s94, 1
    %s96 = scalar_select %p93, %s94, %s95
    %p99 = pneg %p93
    %p100 = scmp.eq.s32.totalorder %s10, 7
    %p101 = por %p99, %p100
    %p102 = scmp.ne.s32.totalorder %s94, %s97
    %p103 = scmp.eq.s32.totalorder %s10, 0
    %p104 = por %p102, %p103
    %p105 = scmp.ne.s32.totalorder %s94, %s97
    %p106 = scmp.eq.s32.totalorder %s15, 7
    %p107 = por %p105, %p106
    %p108 = scmp.ne.s32.totalorder %s97, %s98
    %p109 = scmp.eq.s32.totalorder %s15, 0
    %p110 = por %p108, %p109
    %p111 = scmp.ne.s32.totalorder %s97, %s98
    %p112 = scmp.eq.s32.totalorder %s16, 7
    %p113 = por %p111, %p112
    %p115 = scmp.ne.s32.totalorder %s98, %s114
    %p116 = scmp.eq.s32.totalorder %s16, 0
    %p117 = por %p115, %p116
    %s118 = ssub.s32 %s17, %s29
    %p119 = scmp.eq.s32.totalorder %s118, 0
    %s121 = sadd.s32 %s120, 1
    %s122 = scalar_select %p119, %s120, %s121
    %p125 = pneg %p119
    %p126 = scmp.eq.s32.totalorder %s10, 7
    %p127 = por %p125, %p126
    %p128 = scmp.ne.s32.totalorder %s120, %s123
    %p129 = scmp.eq.s32.totalorder %s10, 0
    %p130 = por %p128, %p129
    %p131 = scmp.ne.s32.totalorder %s120, %s123
    %p132 = scmp.eq.s32.totalorder %s15, 7
    %p133 = por %p131, %p132
    %p134 = scmp.ne.s32.totalorder %s123, %s124
    %p135 = scmp.eq.s32.totalorder %s15, 0
    %p136 = por %p134, %p135
    %p137 = scmp.ne.s32.totalorder %s123, %s124
    %p138 = scmp.eq.s32.totalorder %s16, 7
    %p139 = por %p137, %p138
    %p141 = scmp.ne.s32.totalorder %s124, %s140
    %p142 = scmp.eq.s32.totalorder %s16, 0
    %p143 = por %p141, %p142
    %s144 = ssub.s32 %s17, %s29
    %s145 = ssub.s32 %s18, %s25
    %s146 = sor.u32 %s144, %s145
    %p147 = scmp.eq.s32.totalorder %s146, 0
    %s149 = sadd.s32 %s148, 1
    %s150 = scalar_select %p147, %s148, %s149
    %p153 = pneg %p147
    %p154 = scmp.eq.s32.totalorder %s10, 7
    %p155 = por %p153, %p154
    %p156 = scmp.ne.s32.totalorder %s148, %s151
    %p157 = scmp.eq.s32.totalorder %s10, 0
    %p158 = por %p156, %p157
    %p159 = scmp.ne.s32.totalorder %s148, %s151
    %p160 = scmp.eq.s32.totalorder %s15, 7
    %p161 = por %p159, %p160
    %p162 = scmp.ne.s32.totalorder %s151, %s152
    %p163 = scmp.eq.s32.totalorder %s15, 0
    %p164 = por %p162, %p163
    %p165 = scmp.ne.s32.totalorder %s151, %s152
    %p166 = scmp.eq.s32.totalorder %s16, 7
    %p167 = por %p165, %p166
    %p169 = scmp.ne.s32.totalorder %s152, %s168
    %p170 = scmp.eq.s32.totalorder %s16, 0
    %p171 = por %p169, %p170
    %p172 = scmp.le.s32.totalorder 1, %s10
    %p173 = scmp.lt.s32.totalorder %s10, 9
    %p174 = pnand %p172, %p173
    %p175 = pneg %p174
    // Predicated region
    $region9: #{forward.14} parent=5 // pred_check
      _
    $region10: #{forward.14} parent=5 // pred_check_branch
      %177 = sbr.rel (%p174) target = $region12
    $region11: #{forward.14} parent=5 // pred_region
      %s178 = ssub.s32 %s10, 1
    $region12: #{forward.14} parent=5 // pred_fallthru
      _
    %p179 = scmp.lt.s32.totalorder %s10, 8
    // Predicated region
    $region13: #{forward.14} parent=5 // pred_check
      %p180 = pneg %p179
    $region14: #{forward.14} parent=5 // pred_check_branch
      %182 = sbr.rel (%p180) target = $region16
    $region15: #{forward.14} parent=5 // pred_region
      // Predicated region
      $region17: #{forward.14} parent=15 // pred_check
        %p183 = pneg %p44
      $region18: #{forward.14} parent=15 // pred_check_branch
        %185 = sbr.rel (%p183) target = $region20
      $region19: #{forward.14} parent=15 // pred_region
        %p186 = scmp.lt.s32.totalorder %s17, 3
        %s187 = scalar_select %p186, %s17, 3
        %p188 = scmp.lt.s32.totalorder %s18, 5
        %s189 = scalar_select %p188, %s18, 5
        %s190 = smul.addr %s187, 6
        %s191 = sadd.s32 %s189, %s190
        %s192 = smul.addr %s191, 4
        %s193 = scalar_lea.vmem %s0, %s192
      $region20: #{forward.14} parent=15 // pred_fallthru
        _
      // Predicated region
      $region21: #{forward.14} parent=15 // pred_check
        %p194 = pneg %p74
      $region22: #{forward.14} parent=15 // pred_check_branch
        %196 = sbr.rel (%p194) target = $region24
      $region23: #{forward.14} parent=15 // pred_region
        %s197 = sadd.s32 %s18, 2
        %p198 = scmp.lt.s32.totalorder %s17, 3
        %s199 = scalar_select %p198, %s17, 3
        %p200 = scmp.lt.s32.totalorder %s197, 5
        %s201 = scalar_select %p200, %s197, 5
        %s202 = smul.addr %s199, 6
        %s203 = sadd.s32 %s201, %s202
        %s204 = smul.addr %s203, 4
        %s205 = scalar_lea.vmem %s1, %s204
        %s206 = sadd.s32 %s18, 2
      $region24: #{forward.14} parent=15 // pred_fallthru
        _
      // Predicated region
      $region25: #{forward.14} parent=15 // pred_check
        %p207 = pneg %p104
      $region26: #{forward.14} parent=15 // pred_check_branch
        %209 = sbr.rel (%p207) target = $region28
      $region27: #{forward.14} parent=15 // pred_region
        %s210 = sadd.s32 %s18, 4
        %p211 = scmp.lt.s32.totalorder %s17, 3
        %s212 = scalar_select %p211, %s17, 3
        %p213 = scmp.lt.s32.totalorder %s210, 5
        %s214 = scalar_select %p213, %s210, 5
        %s215 = smul.addr %s212, 6
        %s216 = sadd.s32 %s214, %s215
        %s217 = smul.addr %s216, 4
        %s218 = scalar_lea.vmem %s2, %s217
        %s219 = sadd.s32 %s18, 4
      $region28: #{forward.14} parent=15 // pred_fallthru
        _
      // Predicated region
      $region29: #{forward.14} parent=15 // pred_check
        %p220 = pneg %p130
      $region30: #{forward.14} parent=15 // pred_check_branch
        %222 = sbr.rel (%p220) target = $region32
      $region31: #{forward.14} parent=15 // pred_region
        %p223 = scmp.lt.s32.totalorder %s17, 3
        %s224 = scalar_select %p223, %s17, 3
        %s225 = scalar_lea.vmem %s3, %s224
      $region32: #{forward.14} parent=15 // pred_fallthru
        _
    $region16: #{forward.14} parent=5 // pred_fallthru
      _
    %p226 = scmp.le.s32.totalorder 1, %s10
    %p227 = scmp.lt.s32.totalorder %s10, 9
    %p228 = pnand %p226, %p227
    %p229 = pneg %p228
    // Predicated region
    $region33: #{forward.14} parent=5 // pred_check
      _
    $region34: #{forward.14} parent=5 // pred_check_branch
      %231 = sbr.rel (%p228) target = $region36
    $region35: #{forward.14} parent=5 // pred_region
      %s232 = ssub.s32 %s10, 1
      %p233 = scmp.lt.s32.totalorder %s19, 3
      %s234 = scalar_select %p233, %s19, 3
      %p235 = scmp.lt.s32.totalorder %s20, 5
      %s236 = scalar_select %p235, %s20, 5
      %s237 = smul.addr %s234, 6
      %s238 = sadd.s32 %s236, %s237
      %s239 = smul.addr %s238, 4
      %s240 = scalar_lea.vmem %s0, %s239
      %p241 = pneg %p50
      %p242 = pneg %p47
      %s243 = sadd.s32 %s20, 2
      %p244 = scmp.lt.s32.totalorder %s19, 3
      %s245 = scalar_select %p244, %s19, 3
      %p246 = scmp.lt.s32.totalorder %s243, 5
      %s247 = scalar_select %p246, %s243, 5
      %s248 = smul.addr %s245, 6
      %s249 = sadd.s32 %s247, %s248
      %s250 = smul.addr %s249, 4
      %s251 = scalar_lea.vmem %s1, %s250
      %p252 = pneg %p80
      %p253 = pneg %p77
      %s254 = sadd.s32 %s20, 4
      %p255 = scmp.lt.s32.totalorder %s19, 3
      %s256 = scalar_select %p255, %s19, 3
      %p257 = scmp.lt.s32.totalorder %s254, 5
      %s258 = scalar_select %p257, %s254, 5
      %s259 = smul.addr %s256, 6
      %s260 = sadd.s32 %s258, %s259
      %s261 = smul.addr %s260, 4
      %s262 = scalar_lea.vmem %s2, %s261
      %p263 = pneg %p110
      %p264 = pneg %p107
      %p265 = scmp.lt.s32.totalorder %s19, 3
      %s266 = scalar_select %p265, %s19, 3
      %s267 = scalar_lea.vmem %s3, %s266
      %p268 = pneg %p136
      %p269 = pneg %p133
      %p270 = pneg %p164
      %p271 = pneg %p161
      %p272 = scmp.lt.s32.totalorder %s19, 3
      %s273 = scalar_select %p272, %s19, 3
      %p274 = scmp.lt.s32.totalorder %s20, 1
      %s275 = scalar_select %p274, %s20, 1
      %s276 = smul.addr %s273, 2
      %s277 = sadd.s32 %s275, %s276
      %s278 = smul.addr %s277, 4
      %s279 = scalar_lea.vmem %s4, %s278
      %p280 = scmp.lt.s32.totalorder %s19, 3
      %s281 = scalar_select %p280, %s19, 3
      %p282 = scmp.lt.s32.totalorder %s20, 5
      %s283 = scalar_select %p282, %s20, 5
      %s284 = smul.addr %s281, 6
      %s285 = sadd.s32 %s283, %s284
      %s286 = smul.addr %s285, 4
      %s287 = scalar_lea.vmem %s0, %s286
      %s288 = sadd.s32 %s20, 2
      %p289 = scmp.lt.s32.totalorder %s19, 3
      %s290 = scalar_select %p289, %s19, 3
      %p291 = scmp.lt.s32.totalorder %s288, 5
      %s292 = scalar_select %p291, %s288, 5
      %s293 = smul.addr %s290, 6
      %s294 = sadd.s32 %s292, %s293
      %s295 = smul.addr %s294, 4
      %s296 = scalar_lea.vmem %s1, %s295
      %s297 = sadd.s32 %s20, 2
      %s298 = sadd.s32 %s20, 4
      %p299 = scmp.lt.s32.totalorder %s19, 3
      %s300 = scalar_select %p299, %s19, 3
      %p301 = scmp.lt.s32.totalorder %s298, 5
      %s302 = scalar_select %p301, %s298, 5
      %s303 = smul.addr %s300, 6
      %s304 = sadd.s32 %s302, %s303
      %s305 = smul.addr %s304, 4
      %s306 = scalar_lea.vmem %s2, %s305
      %s307 = sadd.s32 %s20, 4
      %p308 = scmp.lt.s32.totalorder %s19, 3
      %s309 = scalar_select %p308, %s19, 3
      %s310 = scalar_lea.vmem %s3, %s309
      %p311 = scmp.lt.s32.totalorder %s19, 3
      %s312 = scalar_select %p311, %s19, 3
      %p313 = scmp.lt.s32.totalorder %s20, 1
      %s314 = scalar_select %p313, %s20, 1
      %s315 = smul.addr %s312, 2
      %s316 = sadd.s32 %s314, %s315
      %s317 = smul.addr %s316, 4
      %s318 = scalar_lea.vmem %s4, %s317
      %v320 = vld [vmem:[%s287] sm:$0xf]
      %v321 = vld [vmem:[%s296] sm:$0xf]
      %v322 = vld [vmem:[%s306] sm:$0xf]
      %323 = vmatpush.bf16.xpose.msra.mxu0 0
      %324 = vmatpush.bf16.xpose.msra.mxu0 0
      %325 = vmatpush.bf16.xpose.msra.mxu0 0
      %326 = vmatpush.bf16.xpose.msra.mxu0 0
      %327 = vmatpush.bf16.xpose.msra.mxu0 0
      %328 = vmatpush.bf16.xpose.msra.mxu0 0
      %329 = vmatpush.bf16.xpose.msra.mxu0 0
      %330 = vmatpush.bf16.xpose.msra.mxu0 %v321
      %331 = vmatmul.bf16.gmra.mxu0 %v320
      %v332 = vpop.f32.mrf.mxu0
      %v333 = vadd.f32 0.0, %v332
      %v334 = vpop.f32.mrf.mxu0
      %335 = vdwg.mxu0
      %v336 = vmul.f32 %v333, 0.088388346
      %v337 = vld [vmem:[%s310] sm:$0x1]
      %v339 = vperm.slane %v337, 0
      %v341 = vadd.f32 %v336, %v339
      %vm342 = vcmask 64512
      %v343 = vsel %vm342, %v341, -inf
      %344 = vmax.xlane.f32.xlu0 %v343
      %v345 = vpop.xlane.xlu0 %344
      %v346 = vsub.f32 %v341, %v345
      %v347 = vmul.f32 %v346, 1.442695
      %v348 = vpow.pop %v347
      %v349 = vsel %vm342, %v348, 0.0
      %350 = vadd.xlane.f32.xlu0 %v349
      %v351 = vpop.xlane.xlu0 %350
      %v352 = vrcp.pop %v351
      %v353 = vmul.f32 %v348, %v352
      %v354 = vpack.c.bf16 %v353, %v353
      %v356 = vsel %vm342, %v354, 0
      %vm358 = vcmask 1043456
      %v360 = vsel %vm358, %v322, 0
      %362 = vmatpush.bf16.msra.mxu0 0
      %363 = vmatpush.bf16.msra.mxu0 0
      %364 = vmatpush.bf16.msra.mxu0 0
      %365 = vmatpush.bf16.msra.mxu0 0
      %366 = vmatpush.bf16.msra.mxu0 0
      %367 = vmatpush.bf16.msra.mxu0 0
      %368 = vmatpush.bf16.msra.mxu0 0
      %369 = vmatpush.bf16.msra.mxu0 %v360
      %370 = vmatmul.bf16.gmra.mxu0 %v356
      %v371 = vpop.f32.mrf.mxu0
      %v372 = vadd.f32 0.0, %v371
      %v373 = vpop.f32.mrf.mxu0
      %374 = vdwg.mxu0
      %v375 = vpack.c.bf16 %v372, %v372
      %376 = vst [vmem:[%s318] sm:$0xf] %v375
      %p377 = scmp.lt.s32.totalorder %s19, 3
      %s378 = scalar_select %p377, %s19, 3
      %p379 = scmp.lt.s32.totalorder %s20, 1
      %s380 = scalar_select %p379, %s20, 1
      %s381 = smul.addr %s378, 2
      %s382 = sadd.s32 %s380, %s381
      %s383 = smul.addr %s382, 4
      %s384 = scalar_lea.vmem %s4, %s383
      // Predicated region
      $region37: #{forward.14} parent=35 // pred_check
        %p385 = pneg %p161
      $region38: #{forward.14} parent=35 // pred_check_branch
        %387 = sbr.rel (%p385) target = $region40
      $region39: #{forward.14} parent=35 // pred_region
        _
      $region40: #{forward.14} parent=35 // pred_fallthru
        _
    $region36: #{forward.14} parent=5 // pred_fallthru
      _
    %p388 = scmp.le.s32.totalorder 2, %s10
    // Predicated region
    $region41: #{forward.14} parent=5 // pred_check
      %p389 = pneg %p388
    $region42: #{forward.14} parent=5 // pred_check_branch
      %391 = sbr.rel (%p389) target = $region44
    $region43: #{forward.14} parent=5 // pred_region
      %s392 = ssub.s32 %s10, 2
      // Predicated region
      $region45: #{forward.14} parent=43 // pred_check
        %p393 = pneg %p167
      $region46: #{forward.14} parent=43 // pred_check_branch
        %395 = sbr.rel (%p393) target = $region48
      $region47: #{forward.14} parent=43 // pred_region
        %p396 = scmp.lt.s32.totalorder %s21, 3
        %s397 = scalar_select %p396, %s21, 3
        %p398 = scmp.lt.s32.totalorder %s22, 1
        %s399 = scalar_select %p398, %s22, 1
        %s400 = smul.addr %s397, 2
        %s401 = sadd.s32 %s399, %s400
        %s402 = smul.addr %s401, 4
        %s403 = scalar_lea.vmem %s4, %s402
      $region48: #{forward.14} parent=43 // pred_fallthru
        _
    $region44: #{forward.14} parent=5 // pred_fallthru
      _
  $region6: #{forward.14} parent=0 // loop_footer
    %s14 = sadd.s32 1, %s10
  $region7: #{forward.14} parent=0 // loop_footer_branch
    %9 = sbr.rel target = $region3
  $region8: #{forward.14} parent=0 // loop_exit
    _

// kernel: forward.15
$region0: #{forward.15}
  #allocation0 [shape = 'u32[]', space=smem, size = 0x4, offset = 0x4, fixed_abs, tag = 'smem constant byte address 0x4 - core index']
  #allocation1 [shape = 'u32[72,128]{1,0:T(1,128)}', space=vmem, size = 0x9000, scoped, tag = 'internal scratch']
  #allocation2 [shape = 'f32[32,256]{1,0:T(8,128)}', space=vmem, size = 0x8000, scoped, tag = 'scratch operand']
  %s0 = inlined_call_operand.vmem [shape: bf16[32,256], index: 0, kind: input, shape index: {}]
  %s1 = inlined_call_operand.vmem [shape: bf16[256,256], index: 1, kind: input, shape index: {}]
  %s2 = inlined_call_operand.vmem [shape: f32[1,256], index: 2, kind: input, shape index: {}]
  %s3 = inlined_call_operand.vmem [shape: bf16[32,256], index: 3, kind: input, shape index: {}]
  %s4 = inlined_call_operand.vmem [shape: f32[1,256], index: 4, kind: input, shape index: {}]
  %s5 = inlined_call_operand.vmem [shape: f32[1,256], index: 5, kind: input, shape index: {}]
  %s6 = inlined_call_operand.vmem [shape: bf16[32,256], index: 6, kind: output, shape index: {}]
  %s7 = sld [smem:[#allocation0]]
  $region42: #{forward.15} parent=0
    _
  %s9 = ssub.s32 1, %s7
  %s10 = scalar_select 0, %s9, %s7
  // Predicated region
  $region2: #{forward.15} parent=0 // pred_check
    _
  $region3: #{forward.15} parent=0 // pred_check_branch
    %12 = sbr.rel (0) target = $region5
  $region4: #{forward.15} parent=0 // pred_region
    _
  $region5: #{forward.15} parent=0 // pred_fallthru
    _
  // Predicated region
  $region6: #{forward.15} parent=0 // pred_check
    _
  $region7: #{forward.15} parent=0 // pred_check_branch
    %14 = sbr.rel (0) target = $region9
  $region8: #{forward.15} parent=0 // pred_region
    _
  $region9: #{forward.15} parent=0 // pred_fallthru
    _
  // Predicated region
  $region10: #{forward.15} parent=0 // pred_check
    _
  $region11: #{forward.15} parent=0 // pred_check_branch
    %16 = sbr.rel (0) target = $region13
  $region12: #{forward.15} parent=0 // pred_region
    _
  $region13: #{forward.15} parent=0 // pred_fallthru
    _
  // Predicated region
  $region14: #{forward.15} parent=0 // pred_check
    _
  $region15: #{forward.15} parent=0 // pred_check_branch
    %18 = sbr.rel (0) target = $region17
  $region16: #{forward.15} parent=0 // pred_region
    _
  $region17: #{forward.15} parent=0 // pred_fallthru
    _
  // Predicated region
  $region18: #{forward.15} parent=0 // pred_check
    _
  $region19: #{forward.15} parent=0 // pred_check_branch
    %20 = sbr.rel (0) target = $region21
  $region20: #{forward.15} parent=0 // pred_region
    _
  $region21: #{forward.15} parent=0 // pred_fallthru
    _
  // Predicated region
  $region22: #{forward.15} parent=0 // pred_check
    _
  $region23: #{forward.15} parent=0 // pred_check_branch
    %22 = sbr.rel (0) target = $region25
  $region24: #{forward.15} parent=0 // pred_region
    _
  $region25: #{forward.15} parent=0 // pred_fallthru
    _
  %p23 = scmp.eq.s32.totalorder 0, 0
  // Predicated region
  $region26: #{forward.15} parent=0 // pred_check
    %p24 = pneg %p23
  $region27: #{forward.15} parent=0 // pred_check_branch
    %26 = sbr.rel (%p24) target = $region29
  $region28: #{forward.15} parent=0 // pred_region
    %27 = vst [vmem:[#allocation2] sm:$0xff] 0.0
    %28 = vst [vmem:[#allocation2 + $0x8] sm:$0xff] 0.0
    %29 = vst [vmem:[#allocation2 + $0x10] sm:$0xff] 0.0
    %30 = vst [vmem:[#allocation2 + $0x18] sm:$0xff] 0.0
    %31 = vst [vmem:[#allocation2 + $0x20] sm:$0xff] 0.0
    %32 = vst [vmem:[#allocation2 + $0x28] sm:$0xff] 0.0
    %33 = vst [vmem:[#allocation2 + $0x30] sm:$0xff] 0.0
    %34 = vst [vmem:[#allocation2 + $0x38] sm:$0xff] 0.0
  $region29: #{forward.15} parent=0 // pred_fallthru
    _
  %v35 = vld [vmem:[#allocation2] sm:$0xff]
  %v36 = vld [vmem:[#allocation2 + $0x8] sm:$0xff]
  %v37 = vld [vmem:[#allocation2 + $0x10] sm:$0xff]
  %v38 = vld [vmem:[#allocation2 + $0x18] sm:$0xff]
  %v39 = vld [vmem:[#allocation2 + $0x20] sm:$0xff]
  %v40 = vld [vmem:[#allocation2 + $0x28] sm:$0xff]
  %v41 = vld [vmem:[#allocation2 + $0x30] sm:$0xff]
  %v42 = vld [vmem:[#allocation2 + $0x38] sm:$0xff]
  %v43 = vld [vmem:[%s0] sm:$0xff]
  %v44 = vld [vmem:[%s0 + $0x8] sm:$0xff]
  %v45 = vld [vmem:[%s0 + $0x10] sm:$0xff]
  %v46 = vld [vmem:[%s0 + $0x18] sm:$0xff]
  %v47 = vld [vmem:[%s1] sm:$0xff]
  %v48 = vld [vmem:[%s1 + $0x8] sm:$0xff]
  %v49 = vld [vmem:[%s1 + $0x10] sm:$0xff]
  %v50 = vld [vmem:[%s1 + $0x18] sm:$0xff]
  %v51 = vld [vmem:[%s1 + $0x20] sm:$0xff]
  %v52 = vld [vmem:[%s1 + $0x28] sm:$0xff]
  %v53 = vld [vmem:[%s1 + $0x30] sm:$0xff]
  %v54 = vld [vmem:[%s1 + $0x38] sm:$0xff]
  %v55 = vld [vmem:[%s1 + $0x40] sm:$0xff]
  %v56 = vld [vmem:[%s1 + $0x48] sm:$0xff]
  %v57 = vld [vmem:[%s1 + $0x50] sm:$0xff]
  %v58 = vld [vmem:[%s1 + $0x58] sm:$0xff]
  %v59 = vld [vmem:[%s1 + $0x60] sm:$0xff]
  %v60 = vld [vmem:[%s1 + $0x68] sm:$0xff]
  %v61 = vld [vmem:[%s1 + $0x70] sm:$0xff]
  %v62 = vld [vmem:[%s1 + $0x78] sm:$0xff]
  %v63 = vld [vmem:[%s1 + $0x80] sm:$0xff]
  %v64 = vld [vmem:[%s1 + $0x88] sm:$0xff]
  %v65 = vld [vmem:[%s1 + $0x90] sm:$0xff]
  %v66 = vld [vmem:[%s1 + $0x98] sm:$0xff]
  %v67 = vld [vmem:[%s1 + $0xa0] sm:$0xff]
  %v68 = vld [vmem:[%s1 + $0xa8] sm:$0xff]
  %v69 = vld [vmem:[%s1 + $0xb0] sm:$0xff]
  %v70 = vld [vmem:[%s1 + $0xb8] sm:$0xff]
  %v71 = vld [vmem:[%s1 + $0xc0] sm:$0xff]
  %v72 = vld [vmem:[%s1 + $0xc8] sm:$0xff]
  %v73 = vld [vmem:[%s1 + $0xd0] sm:$0xff]
  %v74 = vld [vmem:[%s1 + $0xd8] sm:$0xff]
  %v75 = vld [vmem:[%s1 + $0xe0] sm:$0xff]
  %v76 = vld [vmem:[%s1 + $0xe8] sm:$0xff]
  %v77 = vld [vmem:[%s1 + $0xf0] sm:$0xff]
  %v78 = vld [vmem:[%s1 + $0xf8] sm:$0xff]
  %v83 = vunpack.c.l.b16 %v43
  %v84 = vunpack.c.h.b16 %v43
  %v85 = vunpack.c.l.b16 %v44
  %v86 = vunpack.c.h.b16 %v44
  %v87 = vunpack.c.l.b16 %v45
  %v88 = vunpack.c.h.b16 %v45
  %v89 = vunpack.c.l.b16 %v46
  %v90 = vunpack.c.h.b16 %v46
  %v91 = vpack.c.b16 %v85, %v83
  %v92 = vpack.c.b16 %v86, %v84
  %v93 = vpack.c.b16 %v89, %v87
  %v94 = vpack.c.b16 %v90, %v88
  %v131 = vunpack.c.l.b16 %v47
  %v132 = vunpack.c.h.b16 %v47
  %v133 = vunpack.c.l.b16 %v48
  %v134 = vunpack.c.h.b16 %v48
  %v135 = vunpack.c.l.b16 %v49
  %v136 = vunpack.c.h.b16 %v49
  %v137 = vunpack.c.l.b16 %v50
  %v138 = vunpack.c.h.b16 %v50
  %v139 = vunpack.c.l.b16 %v51
  %v140 = vunpack.c.h.b16 %v51
  %v141 = vunpack.c.l.b16 %v52
  %v142 = vunpack.c.h.b16 %v52
  %v143 = vunpack.c.l.b16 %v53
  %v144 = vunpack.c.h.b16 %v53
  %v145 = vunpack.c.l.b16 %v54
  %v146 = vunpack.c.h.b16 %v54
  %v147 = vunpack.c.l.b16 %v55
  %v148 = vunpack.c.h.b16 %v55
  %v149 = vunpack.c.l.b16 %v56
  %v150 = vunpack.c.h.b16 %v56
  %v151 = vunpack.c.l.b16 %v57
  %v152 = vunpack.c.h.b16 %v57
  %v153 = vunpack.c.l.b16 %v58
  %v154 = vunpack.c.h.b16 %v58
  %v155 = vunpack.c.l.b16 %v59
  %v156 = vunpack.c.h.b16 %v59
  %v157 = vunpack.c.l.b16 %v60
  %v158 = vunpack.c.h.b16 %v60
  %v159 = vunpack.c.l.b16 %v61
  %v160 = vunpack.c.h.b16 %v61
  %v161 = vunpack.c.l.b16 %v62
  %v162 = vunpack.c.h.b16 %v62
  %v163 = vunpack.c.l.b16 %v63
  %v164 = vunpack.c.h.b16 %v63
  %v165 = vunpack.c.l.b16 %v64
  %v166 = vunpack.c.h.b16 %v64
  %v167 = vunpack.c.l.b16 %v65
  %v168 = vunpack.c.h.b16 %v65
  %v169 = vunpack.c.l.b16 %v66
  %v170 = vunpack.c.h.b16 %v66
  %v171 = vunpack.c.l.b16 %v67
  %v172 = vunpack.c.h.b16 %v67
  %v173 = vunpack.c.l.b16 %v68
  %v174 = vunpack.c.h.b16 %v68
  %v175 = vunpack.c.l.b16 %v69
  %v176 = vunpack.c.h.b16 %v69
  %v177 = vunpack.c.l.b16 %v70
  %v178 = vunpack.c.h.b16 %v70
  %v179 = vunpack.c.l.b16 %v71
  %v180 = vunpack.c.h.b16 %v71
  %v181 = vunpack.c.l.b16 %v72
  %v182 = vunpack.c.h.b16 %v72
  %v183 = vunpack.c.l.b16 %v73
  %v184 = vunpack.c.h.b16 %v73
  %v185 = vunpack.c.l.b16 %v74
  %v186 = vunpack.c.h.b16 %v74
  %v187 = vunpack.c.l.b16 %v75
  %v188 = vunpack.c.h.b16 %v75
  %v189 = vunpack.c.l.b16 %v76
  %v190 = vunpack.c.h.b16 %v76
  %v191 = vunpack.c.l.b16 %v77
  %v192 = vunpack.c.h.b16 %v77
  %v193 = vunpack.c.l.b16 %v78
  %v194 = vunpack.c.h.b16 %v78
  %v195 = vpack.c.b16 %v133, %v131
  %v196 = vpack.c.b16 %v134, %v132
  %v197 = vpack.c.b16 %v137, %v135
  %v198 = vpack.c.b16 %v138, %v136
  %v199 = vpack.c.b16 %v141, %v139
  %v200 = vpack.c.b16 %v142, %v140
  %v201 = vpack.c.b16 %v145, %v143
  %v202 = vpack.c.b16 %v146, %v144
  %v203 = vpack.c.b16 %v149, %v147
  %v204 = vpack.c.b16 %v150, %v148
  %v205 = vpack.c.b16 %v153, %v151
  %v206 = vpack.c.b16 %v154, %v152
  %v207 = vpack.c.b16 %v157, %v155
  %v208 = vpack.c.b16 %v158, %v156
  %v209 = vpack.c.b16 %v161, %v159
  %v210 = vpack.c.b16 %v162, %v160
  %v211 = vpack.c.b16 %v165, %v163
  %v212 = vpack.c.b16 %v166, %v164
  %v213 = vpack.c.b16 %v169, %v167
  %v214 = vpack.c.b16 %v170, %v168
  %v215 = vpack.c.b16 %v173, %v171
  %v216 = vpack.c.b16 %v174, %v172
  %v217 = vpack.c.b16 %v177, %v175
  %v218 = vpack.c.b16 %v178, %v176
  %v219 = vpack.c.b16 %v181, %v179
  %v220 = vpack.c.b16 %v182, %v180
  %v221 = vpack.c.b16 %v185, %v183
  %v222 = vpack.c.b16 %v186, %v184
  %v223 = vpack.c.b16 %v189, %v187
  %v224 = vpack.c.b16 %v190, %v188
  %v225 = vpack.c.b16 %v193, %v191
  %v226 = vpack.c.b16 %v194, %v192
  %259 = vmatpush.bf16.msra.mxu0 %v209
  %260 = vmatpush.bf16.msra.mxu0 %v207
  %261 = vmatpush.bf16.msra.mxu0 %v205
  %262 = vmatpush.bf16.msra.mxu0 %v203
  %263 = vmatpush.bf16.msra.mxu0 %v201
  %264 = vmatpush.bf16.msra.mxu0 %v199
  %265 = vmatpush.bf16.msra.mxu0 %v197
  %266 = vmatpush.bf16.msra.mxu0 %v195
  %267 = vmatmul.bf16.gmra.mxu0 %v91
  %v268 = vpop.f32.mrf.mxu0
  %v269 = vadd.f32 0.0, %v268
  %v270 = vpop.f32.mrf.mxu0
  %v271 = vadd.f32 0.0, %v270
  %272 = vmatmul.bf16.gmra.mxu0 %v93
  %v273 = vpop.f32.mrf.mxu0
  %v274 = vadd.f32 0.0, %v273
  %v275 = vpop.f32.mrf.mxu0
  %v276 = vadd.f32 0.0, %v275
  %277 = vdwg.mxu0
  %278 = vmatpush.bf16.msra.mxu0 %v225
  %279 = vmatpush.bf16.msra.mxu0 %v223
  %280 = vmatpush.bf16.msra.mxu0 %v221
  %281 = vmatpush.bf16.msra.mxu0 %v219
  %282 = vmatpush.bf16.msra.mxu0 %v217
  %283 = vmatpush.bf16.msra.mxu0 %v215
  %284 = vmatpush.bf16.msra.mxu0 %v213
  %285 = vmatpush.bf16.msra.mxu0 %v211
  %286 = vmatmul.bf16.gmra.mxu0 %v92
  %v287 = vpop.f32.mrf.mxu0
  %v288 = vadd.f32 %v269, %v287
  %v289 = vpop.f32.mrf.mxu0
  %v290 = vadd.f32 %v271, %v289
  %291 = vmatmul.bf16.gmra.mxu0 %v94
  %v292 = vpop.f32.mrf.mxu0
  %v293 = vadd.f32 %v274, %v292
  %v294 = vpop.f32.mrf.mxu0
  %v295 = vadd.f32 %v276, %v294
  %296 = vdwg.mxu0
  %297 = vmatpush.bf16.msra.mxu0 %v210
  %298 = vmatpush.bf16.msra.mxu0 %v208
  %299 = vmatpush.bf16.msra.mxu0 %v206
  %300 = vmatpush.bf16.msra.mxu0 %v204
  %301 = vmatpush.bf16.msra.mxu0 %v202
  %302 = vmatpush.bf16.msra.mxu0 %v200
  %303 = vmatpush.bf16.msra.mxu0 %v198
  %304 = vmatpush.bf16.msra.mxu0 %v196
  %305 = vmatmul.bf16.gmra.mxu0 %v91
  %v306 = vpop.f32.mrf.mxu0
  %v307 = vadd.f32 0.0, %v306
  %v308 = vpop.f32.mrf.mxu0
  %v309 = vadd.f32 0.0, %v308
  %310 = vmatmul.bf16.gmra.mxu0 %v93
  %v311 = vpop.f32.mrf.mxu0
  %v312 = vadd.f32 0.0, %v311
  %v313 = vpop.f32.mrf.mxu0
  %v314 = vadd.f32 0.0, %v313
  %315 = vdwg.mxu0
  %316 = vmatpush.bf16.msra.mxu0 %v226
  %317 = vmatpush.bf16.msra.mxu0 %v224
  %318 = vmatpush.bf16.msra.mxu0 %v222
  %319 = vmatpush.bf16.msra.mxu0 %v220
  %320 = vmatpush.bf16.msra.mxu0 %v218
  %321 = vmatpush.bf16.msra.mxu0 %v216
  %322 = vmatpush.bf16.msra.mxu0 %v214
  %323 = vmatpush.bf16.msra.mxu0 %v212
  %324 = vmatmul.bf16.gmra.mxu0 %v92
  %v325 = vpop.f32.mrf.mxu0
  %v326 = vadd.f32 %v307, %v325
  %v327 = vpop.f32.mrf.mxu0
  %v328 = vadd.f32 %v309, %v327
  %329 = vmatmul.bf16.gmra.mxu0 %v94
  %v330 = vpop.f32.mrf.mxu0
  %v331 = vadd.f32 %v312, %v330
  %v332 = vpop.f32.mrf.mxu0
  %v333 = vadd.f32 %v314, %v332
  %334 = vdwg.mxu0
  %v335 = vadd.f32 %v35, %v288
  %v336 = vadd.f32 %v36, %v326
  %v337 = vadd.f32 %v37, %v290
  %v338 = vadd.f32 %v38, %v328
  %v339 = vadd.f32 %v39, %v293
  %v340 = vadd.f32 %v40, %v331
  %v341 = vadd.f32 %v41, %v295
  %v342 = vadd.f32 %v42, %v333
  %343 = vst [vmem:[#allocation2] sm:$0xff] %v335
  %344 = vst [vmem:[#allocation2 + $0x8] sm:$0xff] %v336
  %345 = vst [vmem:[#allocation2 + $0x10] sm:$0xff] %v337
  %346 = vst [vmem:[#allocation2 + $0x18] sm:$0xff] %v338
  %347 = vst [vmem:[#allocation2 + $0x20] sm:$0xff] %v339
  %348 = vst [vmem:[#allocation2 + $0x28] sm:$0xff] %v340
  %349 = vst [vmem:[#allocation2 + $0x30] sm:$0xff] %v341
  %350 = vst [vmem:[#allocation2 + $0x38] sm:$0xff] %v342
  // Predicated region
  $region30: #{forward.15} parent=0 // pred_check
    %p351 = pneg %p23
  $region31: #{forward.15} parent=0 // pred_check_branch
    %353 = sbr.rel (%p351) target = $region33
  $region32: #{forward.15} parent=0 // pred_region
    %v354 = vld [vmem:[#allocation2] sm:$0xff]
    %v355 = vld [vmem:[#allocation2 + $0x8] sm:$0xff]
    %v356 = vld [vmem:[#allocation2 + $0x10] sm:$0xff]
    %v357 = vld [vmem:[#allocation2 + $0x18] sm:$0xff]
    %v358 = vld [vmem:[#allocation2 + $0x20] sm:$0xff]
    %v359 = vld [vmem:[#allocation2 + $0x28] sm:$0xff]
    %v360 = vld [vmem:[#allocation2 + $0x30] sm:$0xff]
    %v361 = vld [vmem:[#allocation2 + $0x38] sm:$0xff]
    %v362 = vld [vmem:[%s2] sm:$0x3]
    %v364 = vperm.slane %v362, 0
    %v365 = vperm.slane %v362, 1
    %v368 = vadd.f32 %v354, %v364
    %v369 = vadd.f32 %v355, %v365
    %v370 = vadd.f32 %v356, %v364
    %v371 = vadd.f32 %v357, %v365
    %v372 = vadd.f32 %v358, %v364
    %v373 = vadd.f32 %v359, %v365
    %v374 = vadd.f32 %v360, %v364
    %v375 = vadd.f32 %v361, %v365
    %v376 = vld [vmem:[%s3] sm:$0xff]
    %v377 = vld [vmem:[%s3 + $0x8] sm:$0xff]
    %v378 = vld [vmem:[%s3 + $0x10] sm:$0xff]
    %v379 = vld [vmem:[%s3 + $0x18] sm:$0xff]
    %v380 = vunpack.c.l.bf16 %v376
    %v381 = vunpack.c.h.bf16 %v376
    %v382 = vunpack.c.l.bf16 %v377
    %v383 = vunpack.c.h.bf16 %v377
    %v384 = vunpack.c.l.bf16 %v378
    %v385 = vunpack.c.h.bf16 %v378
    %v386 = vunpack.c.l.bf16 %v379
    %v387 = vunpack.c.h.bf16 %v379
    %v388 = vadd.f32 %v368, %v380
    %v389 = vadd.f32 %v369, %v381
    %v390 = vadd.f32 %v370, %v382
    %v391 = vadd.f32 %v371, %v383
    %v392 = vadd.f32 %v372, %v384
    %v393 = vadd.f32 %v373, %v385
    %v394 = vadd.f32 %v374, %v386
    %v395 = vadd.f32 %v375, %v387
    %v396 = vadd.f32 %v388, %v389
    %397 = vadd.xlane.f32.xlu0 %v396
    %v398 = vpop.xlane.xlu0 %397
    %v399 = vadd.f32 %v390, %v391
    %400 = vadd.xlane.f32.xlu0 %v399
    %v401 = vpop.xlane.xlu0 %400
    %v402 = vadd.f32 %v392, %v393
    %403 = vadd.xlane.f32.xlu0 %v402
    %v404 = vpop.xlane.xlu0 %403
    %v405 = vadd.f32 %v394, %v395
    %406 = vadd.xlane.f32.xlu0 %v405
    %v407 = vpop.xlane.xlu0 %406
    %v408 = vrcp.pop 256.0
    %v409 = vmul.f32 256.0, %v408
    %v410 = vsub.f32 1.0, %v409
    %v411 = vmul.f32 %v408, %v410
    %v412 = vadd.f32 %v408, %v411
    %vm413 = vweird.f32 %v408
    %v414 = vsel %vm413, %v408, %v412
    %v415 = vmul.f32 %v398, %v414
    %v416 = vmul.f32 %v401, %v414
    %v417 = vmul.f32 %v404, %v414
    %v418 = vmul.f32 %v407, %v414
    %v419 = vsub.f32 %v388, %v415
    %v420 = vsub.f32 %v389, %v415
    %v421 = vsub.f32 %v390, %v416
    %v422 = vsub.f32 %v391, %v416
    %v423 = vsub.f32 %v392, %v417
    %v424 = vsub.f32 %v393, %v417
    %v425 = vsub.f32 %v394, %v418
    %v426 = vsub.f32 %v395, %v418
    %v427 = vmul.f32 %v419, %v419
    %v428 = vmul.f32 %v420, %v420
    %v429 = vmul.f32 %v421, %v421
    %v430 = vmul.f32 %v422, %v422
    %v431 = vmul.f32 %v423, %v423
    %v432 = vmul.f32 %v424, %v424
    %v433 = vmul.f32 %v425, %v425
    %v434 = vmul.f32 %v426, %v426
    %v435 = vadd.f32 %v427, %v428
    %436 = vadd.xlane.f32.xlu0 %v435
    %v437 = vpop.xlane.xlu0 %436
    %v438 = vadd.f32 %v429, %v430
    %439 = vadd.xlane.f32.xlu0 %v438
    %v440 = vpop.xlane.xlu0 %439
    %v441 = vadd.f32 %v431, %v432
    %442 = vadd.xlane.f32.xlu0 %v441
    %v443 = vpop.xlane.xlu0 %442
    %v444 = vadd.f32 %v433, %v434
    %445 = vadd.xlane.f32.xlu0 %v444
    %v446 = vpop.xlane.xlu0 %445
    %v447 = vmul.f32 %v437, %v414
    %v448 = vmul.f32 %v440, %v414
    %v449 = vmul.f32 %v443, %v414
    %v450 = vmul.f32 %v446, %v414
    %v451 = vadd.f32 %v447, 1e-05
    %v452 = vadd.f32 %v448, 1e-05
    %v453 = vadd.f32 %v449, 1e-05
    %v454 = vadd.f32 %v450, 1e-05
    %v455 = vrsqrt.pop %v451
    %v456 = vmul.f32 %v455, %v451
    %v457 = vmul.f32 %v456, %v455
    %v458 = vmul.f32 0.5, %v457
    %v459 = vsub.f32 1.5, %v458
    %v460 = vmul.f32 %v455, %v459
    %vm461 = vweird.f32 %v451
    %vm462 = vweird.f32 %v455
    %vm463 = vmor %vm461, %vm462
    %v464 = vsel %vm463, %v455, %v460
    %v465 = vrsqrt.pop %v452
    %v466 = vmul.f32 %v465, %v452
    %v467 = vmul.f32 %v466, %v465
    %v468 = vmul.f32 0.5, %v467
    %v469 = vsub.f32 1.5, %v468
    %v470 = vmul.f32 %v465, %v469
    %vm471 = vweird.f32 %v452
    %vm472 = vweird.f32 %v465
    %vm473 = vmor %vm471, %vm472
    %v474 = vsel %vm473, %v465, %v470
    %v475 = vrsqrt.pop %v453
    %v476 = vmul.f32 %v475, %v453
    %v477 = vmul.f32 %v476, %v475
    %v478 = vmul.f32 0.5, %v477
    %v479 = vsub.f32 1.5, %v478
    %v480 = vmul.f32 %v475, %v479
    %vm481 = vweird.f32 %v453
    %vm482 = vweird.f32 %v475
    %vm483 = vmor %vm481, %vm482
    %v484 = vsel %vm483, %v475, %v480
    %v485 = vrsqrt.pop %v454
    %v486 = vmul.f32 %v485, %v454
    %v487 = vmul.f32 %v486, %v485
    %v488 = vmul.f32 0.5, %v487
    %v489 = vsub.f32 1.5, %v488
    %v490 = vmul.f32 %v485, %v489
    %vm491 = vweird.f32 %v454
    %vm492 = vweird.f32 %v485
    %vm493 = vmor %vm491, %vm492
    %v494 = vsel %vm493, %v485, %v490
    %v495 = vmul.f32 %v419, %v464
    %v496 = vmul.f32 %v420, %v464
    %v497 = vmul.f32 %v421, %v474
    %v498 = vmul.f32 %v422, %v474
    %v499 = vmul.f32 %v423, %v484
    %v500 = vmul.f32 %v424, %v484
    %v501 = vmul.f32 %v425, %v494
    %v502 = vmul.f32 %v426, %v494
    %v503 = vld [vmem:[%s4] sm:$0x3]
    %v505 = vperm.slane %v503, 0
    %v506 = vperm.slane %v503, 1
    %v509 = vmul.f32 %v495, %v505
    %v510 = vmul.f32 %v496, %v506
    %v511 = vmul.f32 %v497, %v505
    %v512 = vmul.f32 %v498, %v506
    %v513 = vmul.f32 %v499, %v505
    %v514 = vmul.f32 %v500, %v506
    %v515 = vmul.f32 %v501, %v505
    %v516 = vmul.f32 %v502, %v506
    %v517 = vld [vmem:[%s5] sm:$0x3]
    %v519 = vperm.slane %v517, 0
    %v520 = vperm.slane %v517, 1
    %v523 = vadd.f32 %v509, %v519
    %v524 = vadd.f32 %v510, %v520
    %v525 = vadd.f32 %v511, %v519
    %v526 = vadd.f32 %v512, %v520
    %v527 = vadd.f32 %v513, %v519
    %v528 = vadd.f32 %v514, %v520
    %v529 = vadd.f32 %v515, %v519
    %v530 = vadd.f32 %v516, %v520
    %v531 = vpack.c.bf16 %v524, %v523
    %v532 = vpack.c.bf16 %v526, %v525
    %v533 = vpack.c.bf16 %v528, %v527
    %v534 = vpack.c.bf16 %v530, %v529
    %535 = vst [vmem:[%s6] sm:$0xff] %v531
    %536 = vst [vmem:[%s6 + $0x8] sm:$0xff] %v532
    %537 = vst [vmem:[%s6 + $0x10] sm:$0xff] %v533
    %538 = vst [vmem:[%s6 + $0x18] sm:$0xff] %v534
  $region33: #{forward.15} parent=0 // pred_fallthru
    _
  // Predicated region
  $region34: #{forward.15} parent=0 // pred_check
    _
  $region35: #{forward.15} parent=0 // pred_check_branch
    %540 = sbr.rel (0) target = $region37
  $region36: #{forward.15} parent=0 // pred_region
    _
  $region37: #{forward.15} parent=0 // pred_fallthru
    _
  // Predicated region
  $region38: #{forward.15} parent=0 // pred_check
    _
  $region39: #{forward.15} parent=0 // pred_check_branch
    %542 = sbr.rel (0) target = $region41
  $region40: #{forward.15} parent=0 // pred_region
    _
  $region41: #{forward.15} parent=0 // pred_fallthru
    _

// kernel: forward.13
$region0: #{forward.13}
  #allocation0 [shape = 'u32[]', space=smem, size = 0x4, offset = 0x4, fixed_abs, tag = 'smem constant byte address 0x4 - core index']
  #allocation1 [shape = 'u32[72,128]{1,0:T(1,128)}', space=vmem, size = 0x9000, scoped, tag = 'internal scratch']
  #allocation2 [shape = 'f32[32,768]{1,0:T(8,128)}', space=vmem, size = 0x18000, scoped, tag = 'scratch operand']
  %s0 = inlined_call_operand.vmem [shape: bf16[32,256], index: 0, kind: input, shape index: {}]
  %s1 = inlined_call_operand.hbm [shape: bf16[256,768], index: 1, kind: input, shape index: {}]
  %s2 = inlined_call_operand.vmem [shape: f32[1,768], index: 2, kind: input, shape index: {}]
  %s3 = inlined_call_operand.vmem [shape: bf16[32,768], index: 3, kind: output, shape index: {}]
  %s4 = sld [smem:[#allocation0]]
  $region34: #{forward.13} parent=0
    _
  %s6 = ssub.s32 1, %s4
  %s7 = scalar_select 0, %s6, %s4
  $region1: #{forward.13} parent=0
    #allocation3 [shape = 'u8[393216]{0}', space=vmem, size = 0x60000, scoped, tag = 'input window, operand 1, single buffered']
    #allocation4 [shape = 's32[1]{0}', space=sflag, size = 0x4, scoped, tag = 'scoped memory for forward.13']
    %8 = vsyncpa [#allocation4], 0
    // Predicated region
    $region2: #{forward.13} parent=1 // pred_check
      _
    $region3: #{forward.13} parent=1 // pred_check_branch
      %10 = sbr.rel (0) target = $region5
    $region4: #{forward.13} parent=1 // pred_region
      _
    $region5: #{forward.13} parent=1 // pred_fallthru
      _
    // Predicated region
    $region6: #{forward.13} parent=1 // pred_check
      _
    $region7: #{forward.13} parent=1 // pred_check_branch
      %12 = sbr.rel (0) target = $region9
    $region8: #{forward.13} parent=1 // pred_region
      %14 = vsyncadd [#allocation4], 0
      %s15 = sshll.u32 %s1, 4
      %s16 = int_to_ptr.hbm [resolvable:$true] %s15
      %s17 = sshll.u32 [#allocation3], 4
      %s18 = int_to_ptr.vmem [resolvable:$true] %s17
      %23 = dma.hbm_to_vmem [thread:$0]  %s16, 12288, %s18, [#allocation4], 384, 384, 24
    $region9: #{forward.13} parent=1 // pred_fallthru
      _
    // Predicated region
    $region10: #{forward.13} parent=1 // pred_check
      _
    $region11: #{forward.13} parent=1 // pred_check_branch
      %25 = sbr.rel (0) target = $region13
    $region12: #{forward.13} parent=1 // pred_region
      _
    $region13: #{forward.13} parent=1 // pred_fallthru
      _
    // Predicated region
    $region14: #{forward.13} parent=1 // pred_check
      _
    $region15: #{forward.13} parent=1 // pred_check_branch
      %27 = sbr.rel (0) target = $region17
    $region16: #{forward.13} parent=1 // pred_region
      %29 = dma.done [#allocation4], 12288
    $region17: #{forward.13} parent=1 // pred_fallthru
      _
    %p30 = scmp.eq.s32.totalorder 0, 0
    // Predicated region
    $region18: #{forward.13} parent=1 // pred_check
      %p31 = pneg %p30
    $region19: #{forward.13} parent=1 // pred_check_branch
      %33 = sbr.rel (%p31) target = $region21
    $region20: #{forward.13} parent=1 // pred_region
      %34 = vst [vmem:[#allocation2] sm:$0xff] 0.0
      %35 = vst [vmem:[#allocation2 + $0x8] sm:$0xff] 0.0
      %36 = vst [vmem:[#allocation2 + $0x10] sm:$0xff] 0.0
      %37 = vst [vmem:[#allocation2 + $0x18] sm:$0xff] 0.0
      %38 = vst [vmem:[#allocation2 + $0x20] sm:$0xff] 0.0
      %39 = vst [vmem:[#allocation2 + $0x28] sm:$0xff] 0.0
      %40 = vst [vmem:[#allocation2 + $0x30] sm:$0xff] 0.0
      %41 = vst [vmem:[#allocation2 + $0x38] sm:$0xff] 0.0
      %42 = vst [vmem:[#allocation2 + $0x40] sm:$0xff] 0.0
      %43 = vst [vmem:[#allocation2 + $0x48] sm:$0xff] 0.0
      %44 = vst [vmem:[#allocation2 + $0x50] sm:$0xff] 0.0
      %45 = vst [vmem:[#allocation2 + $0x58] sm:$0xff] 0.0
      %46 = vst [vmem:[#allocation2 + $0x60] sm:$0xff] 0.0
      %47 = vst [vmem:[#allocation2 + $0x68] sm:$0xff] 0.0
      %48 = vst [vmem:[#allocation2 + $0x70] sm:$0xff] 0.0
      %49 = vst [vmem:[#allocation2 + $0x78] sm:$0xff] 0.0
      %50 = vst [vmem:[#allocation2 + $0x80] sm:$0xff] 0.0
      %51 = vst [vmem:[#allocation2 + $0x88] sm:$0xff] 0.0
      %52 = vst [vmem:[#allocation2 + $0x90] sm:$0xff] 0.0
      %53 = vst [vmem:[#allocation2 + $0x98] sm:$0xff] 0.0
      %54 = vst [vmem:[#allocation2 + $0xa0] sm:$0xff] 0.0
      %55 = vst [vmem:[#allocation2 + $0xa8] sm:$0xff] 0.0
      %56 = vst [vmem:[#allocation2 + $0xb0] sm:$0xff] 0.0
      %57 = vst [vmem:[#allocation2 + $0xb8] sm:$0xff] 0.0
    $region21: #{forward.13} parent=1 // pred_fallthru
      _
    %v58 = vld [vmem:[#allocation2] sm:$0xff]
    %v59 = vld [vmem:[#allocation2 + $0x8] sm:$0xff]
    %v60 = vld [vmem:[#allocation2 + $0x10] sm:$0xff]
    %v61 = vld [vmem:[#allocation2 + $0x18] sm:$0xff]
    %v62 = vld [vmem:[#allocation2 + $0x20] sm:$0xff]
    %v63 = vld [vmem:[#allocation2 + $0x28] sm:$0xff]
    %v64 = vld [vmem:[#allocation2 + $0x30] sm:$0xff]
    %v65 = vld [vmem:[#allocation2 + $0x38] sm:$0xff]
    %v66 = vld [vmem:[#allocation2 + $0x40] sm:$0xff]
    %v67 = vld [vmem:[#allocation2 + $0x48] sm:$0xff]
    %v68 = vld [vmem:[#allocation2 + $0x50] sm:$0xff]
    %v69 = vld [vmem:[#allocation2 + $0x58] sm:$0xff]
    %v70 = vld [vmem:[#allocation2 + $0x60] sm:$0xff]
    %v71 = vld [vmem:[#allocation2 + $0x68] sm:$0xff]
    %v72 = vld [vmem:[#allocation2 + $0x70] sm:$0xff]
    %v73 = vld [vmem:[#allocation2 + $0x78] sm:$0xff]
    %v74 = vld [vmem:[#allocation2 + $0x80] sm:$0xff]
    %v75 = vld [vmem:[#allocation2 + $0x88] sm:$0xff]
    %v76 = vld [vmem:[#allocation2 + $0x90] sm:$0xff]
    %v77 = vld [vmem:[#allocation2 + $0x98] sm:$0xff]
    %v78 = vld [vmem:[#allocation2 + $0xa0] sm:$0xff]
    %v79 = vld [vmem:[#allocation2 + $0xa8] sm:$0xff]
    %v80 = vld [vmem:[#allocation2 + $0xb0] sm:$0xff]
    %v81 = vld [vmem:[#allocation2 + $0xb8] sm:$0xff]
    %v82 = vld [vmem:[%s0] sm:$0xff]
    %v83 = vld [vmem:[%s0 + $0x8] sm:$0xff]
    %v84 = vld [vmem:[%s0 + $0x10] sm:$0xff]
    %v85 = vld [vmem:[%s0 + $0x18] sm:$0xff]
    %v86 = vld [vmem:[#allocation3] sm:$0xff]
    %v87 = vld [vmem:[#allocation3 + $0x8] sm:$0xff]
    %v88 = vld [vmem:[#allocation3 + $0x10] sm:$0xff]
    %v89 = vld [vmem:[#allocation3 + $0x18] sm:$0xff]
    %v90 = vld [vmem:[#allocation3 + $0x20] sm:$0xff]
    %v91 = vld [vmem:[#allocation3 + $0x28] sm:$0xff]
    %v92 = vld [vmem:[#allocation3 + $0x30] sm:$0xff]
    %v93 = vld [vmem:[#allocation3 + $0x38] sm:$0xff]
    %v94 = vld [vmem:[#allocation3 + $0x40] sm:$0xff]
    %v95 = vld [vmem:[#allocation3 + $0x48] sm:$0xff]
    %v96 = vld [vmem:[#allocation3 + $0x50] sm:$0xff]
    %v97 = vld [vmem:[#allocation3 + $0x58] sm:$0xff]
    %v98 = vld [vmem:[#allocation3 + $0x60] sm:$0xff]
    %v99 = vld [vmem:[#allocation3 + $0x68] sm:$0xff]
    %v100 = vld [vmem:[#allocation3 + $0x70] sm:$0xff]
    %v101 = vld [vmem:[#allocation3 + $0x78] sm:$0xff]
    %v102 = vld [vmem:[#allocation3 + $0x80] sm:$0xff]
    %v103 = vld [vmem:[#allocation3 + $0x88] sm:$0xff]
    %v104 = vld [vmem:[#allocation3 + $0x90] sm:$0xff]
    %v105 = vld [vmem:[#allocation3 + $0x98] sm:$0xff]
    %v106 = vld [vmem:[#allocation3 + $0xa0] sm:$0xff]
    %v107 = vld [vmem:[#allocation3 + $0xa8] sm:$0xff]
    %v108 = vld [vmem:[#allocation3 + $0xb0] sm:$0xff]
    %v109 = vld [vmem:[#allocation3 + $0xb8] sm:$0xff]
    %v110 = vld [vmem:[#allocation3 + $0xc0] sm:$0xff]
    %v111 = vld [vmem:[#allocation3 + $0xc8] sm:$0xff]
    %v112 = vld [vmem:[#allocation3 + $0xd0] sm:$0xff]
    %v113 = vld [vmem:[#allocation3 + $0xd8] sm:$0xff]
    %v114 = vld [vmem:[#allocation3 + $0xe0] sm:$0xff]
    %v115 = vld [vmem:[#allocation3 + $0xe8] sm:$0xff]
    %v116 = vld [vmem:[#allocation3 + $0xf0] sm:$0xff]
    %v117 = vld [vmem:[#allocation3 + $0xf8] sm:$0xff]
    %v118 = vld [vmem:[#allocation3 + $0x100] sm:$0xff]
    %v119 = vld [vmem:[#allocation3 + $0x108] sm:$0xff]
    %v120 = vld [vmem:[#allocation3 + $0x110] sm:$0xff]
    %v121 = vld [vmem:[#allocation3 + $0x118] sm:$0xff]
    %v122 = vld [vmem:[#allocation3 + $0x120] sm:$0xff]
    %v123 = vld [vmem:[#allocation3 + $0x128] sm:$0xff]
    %v124 = vld [vmem:[#allocation3 + $0x130] sm:$0xff]
    %v125 = vld [vmem:[#allocation3 + $0x138] sm:$0xff]
    %v126 = vld [vmem:[#allocation3 + $0x140] sm:$0xff]
    %v127 = vld [vmem:[#allocation3 + $0x148] sm:$0xff]
    %v128 = vld [vmem:[#allocation3 + $0x150] sm:$0xff]
    %v129 = vld [vmem:[#allocation3 + $0x158] sm:$0xff]
    %v130 = vld [vmem:[#allocation3 + $0x160] sm:$0xff]
    %v131 = vld [vmem:[#allocation3 + $0x168] sm:$0xff]
    %v132 = vld [vmem:[#allocation3 + $0x170] sm:$0xff]
    %v133 = vld [vmem:[#allocation3 + $0x178] sm:$0xff]
    %v134 = vld [vmem:[#allocation3 + $0x180] sm:$0xff]
    %v135 = vld [vmem:[#allocation3 + $0x188] sm:$0xff]
    %v136 = vld [vmem:[#allocation3 + $0x190] sm:$0xff]
    %v137 = vld [vmem:[#allocation3 + $0x198] sm:$0xff]
    %v138 = vld [vmem:[#allocation3 + $0x1a0] sm:$0xff]
    %v139 = vld [vmem:[#allocation3 + $0x1a8] sm:$0xff]
    %v140 = vld [vmem:[#allocation3 + $0x1b0] sm:$0xff]
    %v141 = vld [vmem:[#allocation3 + $0x1b8] sm:$0xff]
    %v142 = vld [vmem:[#allocation3 + $0x1c0] sm:$0xff]
    %v143 = vld [vmem:[#allocation3 + $0x1c8] sm:$0xff]
    %v144 = vld [vmem:[#allocation3 + $0x1d0] sm:$0xff]
    %v145 = vld [vmem:[#allocation3 + $0x1d8] sm:$0xff]
    %v146 = vld [vmem:[#allocation3 + $0x1e0] sm:$0xff]
    %v147 = vld [vmem:[#allocation3 + $0x1e8] sm:$0xff]
    %v148 = vld [vmem:[#allocation3 + $0x1f0] sm:$0xff]
    %v149 = vld [vmem:[#allocation3 + $0x1f8] sm:$0xff]
    %v150 = vld [vmem:[#allocation3 + $0x200] sm:$0xff]
    %v151 = vld [vmem:[#allocation3 + $0x208] sm:$0xff]
    %v152 = vld [vmem:[#allocation3 + $0x210] sm:$0xff]
    %v153 = vld [vmem:[#allocation3 + $0x218] sm:$0xff]
    %v154 = vld [vmem:[#allocation3 + $0x220] sm:$0xff]
    %v155 = vld [vmem:[#allocation3 + $0x228] sm:$0xff]
    %v156 = vld [vmem:[#allocation3 + $0x230] sm:$0xff]
    %v157 = vld [vmem:[#allocation3 + $0x238] sm:$0xff]
    %v158 = vld [vmem:[#allocation3 + $0x240] sm:$0xff]
    %v159 = vld [vmem:[#allocation3 + $0x248] sm:$0xff]
    %v160 = vld [vmem:[#allocation3 + $0x250] sm:$0xff]
    %v161 = vld [vmem:[#allocation3 + $0x258] sm:$0xff]
    %v162 = vld [vmem:[#allocation3 + $0x260] sm:$0xff]
    %v163 = vld [vmem:[#allocation3 + $0x268] sm:$0xff]
    %v164 = vld [vmem:[#allocation3 + $0x270] sm:$0xff]
    %v165 = vld [vmem:[#allocation3 + $0x278] sm:$0xff]
    %v166 = vld [vmem:[#allocation3 + $0x280] sm:$0xff]
    %v167 = vld [vmem:[#allocation3 + $0x288] sm:$0xff]
    %v168 = vld [vmem:[#allocation3 + $0x290] sm:$0xff]
    %v169 = vld [vmem:[#allocation3 + $0x298] sm:$0xff]
    %v170 = vld [vmem:[#allocation3 + $0x2a0] sm:$0xff]
    %v171 = vld [vmem:[#allocation3 + $0x2a8] sm:$0xff]
    %v172 = vld [vmem:[#allocation3 + $0x2b0] sm:$0xff]
    %v173 = vld [vmem:[#allocation3 + $0x2b8] sm:$0xff]
    %v174 = vld [vmem:[#allocation3 + $0x2c0] sm:$0xff]
    %v175 = vld [vmem:[#allocation3 + $0x2c8] sm:$0xff]
    %v176 = vld [vmem:[#allocation3 + $0x2d0] sm:$0xff]
    %v177 = vld [vmem:[#allocation3 + $0x2d8] sm:$0xff]
    %v178 = vld [vmem:[#allocation3 + $0x2e0] sm:$0xff]
    %v179 = vld [vmem:[#allocation3 + $0x2e8] sm:$0xff]
    %v180 = vld [vmem:[#allocation3 + $0x2f0] sm:$0xff]
    %v181 = vld [vmem:[#allocation3 + $0x2f8] sm:$0xff]
    %v186 = vunpack.c.l.b16 %v82
    %v187 = vunpack.c.h.b16 %v82
    %v188 = vunpack.c.l.b16 %v83
    %v189 = vunpack.c.h.b16 %v83
    %v190 = vunpack.c.l.b16 %v84
    %v191 = vunpack.c.h.b16 %v84
    %v192 = vunpack.c.l.b16 %v85
    %v193 = vunpack.c.h.b16 %v85
    %v194 = vpack.c.b16 %v188, %v186
    %v195 = vpack.c.b16 %v189, %v187
    %v196 = vpack.c.b16 %v192, %v190
    %v197 = vpack.c.b16 %v193, %v191
    %v298 = vunpack.c.l.b16 %v86
    %v299 = vunpack.c.h.b16 %v86
    %v300 = vunpack.c.l.b16 %v87
    %v301 = vunpack.c.h.b16 %v87
    %v302 = vunpack.c.l.b16 %v88
    %v303 = vunpack.c.h.b16 %v88
    %v304 = vunpack.c.l.b16 %v89
    %v305 = vunpack.c.h.b16 %v89
    %v306 = vunpack.c.l.b16 %v90
    %v307 = vunpack.c.h.b16 %v90
    %v308 = vunpack.c.l.b16 %v91
    %v309 = vunpack.c.h.b16 %v91
    %v310 = vunpack.c.l.b16 %v92
    %v311 = vunpack.c.h.b16 %v92
    %v312 = vunpack.c.l.b16 %v93
    %v313 = vunpack.c.h.b16 %v93
    %v314 = vunpack.c.l.b16 %v94
    %v315 = vunpack.c.h.b16 %v94
    %v316 = vunpack.c.l.b16 %v95
    %v317 = vunpack.c.h.b16 %v95
    %v318 = vunpack.c.l.b16 %v96
    %v319 = vunpack.c.h.b16 %v96
    %v320 = vunpack.c.l.b16 %v97
    %v321 = vunpack.c.h.b16 %v97
    %v322 = vunpack.c.l.b16 %v98
    %v323 = vunpack.c.h.b16 %v98
    %v324 = vunpack.c.l.b16 %v99
    %v325 = vunpack.c.h.b16 %v99
    %v326 = vunpack.c.l.b16 %v100
    %v327 = vunpack.c.h.b16 %v100
    %v328 = vunpack.c.l.b16 %v101
    %v329 = vunpack.c.h.b16 %v101
    %v330 = vunpack.c.l.b16 %v102
    %v331 = vunpack.c.h.b16 %v102
    %v332 = vunpack.c.l.b16 %v103
    %v333 = vunpack.c.h.b16 %v103
    %v334 = vunpack.c.l.b16 %v104
    %v335 = vunpack.c.h.b16 %v104
    %v336 = vunpack.c.l.b16 %v105
    %v337 = vunpack.c.h.b16 %v105
    %v338 = vunpack.c.l.b16 %v106
    %v339 = vunpack.c.h.b16 %v106
    %v340 = vunpack.c.l.b16 %v107
    %v341 = vunpack.c.h.b16 %v107
    %v342 = vunpack.c.l.b16 %v108
    %v343 = vunpack.c.h.b16 %v108
    %v344 = vunpack.c.l.b16 %v109
    %v345 = vunpack.c.h.b16 %v109
    %v346 = vunpack.c.l.b16 %v110
    %v347 = vunpack.c.h.b16 %v110
    %v348 = vunpack.c.l.b16 %v111
    %v349 = vunpack.c.h.b16 %v111
    %v350 = vunpack.c.l.b16 %v112
    %v351 = vunpack.c.h.b16 %v112
    %v352 = vunpack.c.l.b16 %v113
    %v353 = vunpack.c.h.b16 %v113
    %v354 = vunpack.c.l.b16 %v114
    %v355 = vunpack.c.h.b16 %v114
    %v356 = vunpack.c.l.b16 %v115
    %v357 = vunpack.c.h.b16 %v115
    %v358 = vunpack.c.l.b16 %v116
    %v359 = vunpack.c.h.b16 %v116
    %v360 = vunpack.c.l.b16 %v117
    %v361 = vunpack.c.h.b16 %v117
    %v362 = vunpack.c.l.b16 %v118
    %v363 = vunpack.c.h.b16 %v118
    %v364 = vunpack.c.l.b16 %v119
    %v365 = vunpack.c.h.b16 %v119
    %v366 = vunpack.c.l.b16 %v120
    %v367 = vunpack.c.h.b16 %v120
    %v368 = vunpack.c.l.b16 %v121
    %v369 = vunpack.c.h.b16 %v121
    %v370 = vunpack.c.l.b16 %v122
    %v371 = vunpack.c.h.b16 %v122
    %v372 = vunpack.c.l.b16 %v123
    %v373 = vunpack.c.h.b16 %v123
    %v374 = vunpack.c.l.b16 %v124
    %v375 = vunpack.c.h.b16 %v124
    %v376 = vunpack.c.l.b16 %v125
    %v377 = vunpack.c.h.b16 %v125
    %v378 = vunpack.c.l.b16 %v126
    %v379 = vunpack.c.h.b16 %v126
    %v380 = vunpack.c.l.b16 %v127
    %v381 = vunpack.c.h.b16 %v127
    %v382 = vunpack.c.l.b16 %v128
    %v383 = vunpack.c.h.b16 %v128
    %v384 = vunpack.c.l.b16 %v129
    %v385 = vunpack.c.h.b16 %v129
    %v386 = vunpack.c.l.b16 %v130
    %v387 = vunpack.c.h.b16 %v130
    %v388 = vunpack.c.l.b16 %v131
    %v389 = vunpack.c.h.b16 %v131
    %v390 = vunpack.c.l.b16 %v132
    %v391 = vunpack.c.h.b16 %v132
    %v392 = vunpack.c.l.b16 %v133
    %v393 = vunpack.c.h.b16 %v133
    %v394 = vunpack.c.l.b16 %v134
    %v395 = vunpack.c.h.b16 %v134
    %v396 = vunpack.c.l.b16 %v135
    %v397 = vunpack.c.h.b16 %v135
    %v398 = vunpack.c.l.b16 %v136
    %v399 = vunpack.c.h.b16 %v136
    %v400 = vunpack.c.l.b16 %v137
    %v401 = vunpack.c.h.b16 %v137
    %v402 = vunpack.c.l.b16 %v138
    %v403 = vunpack.c.h.b16 %v138
    %v404 = vunpack.c.l.b16 %v139
    %v405 = vunpack.c.h.b16 %v139
    %v406 = vunpack.c.l.b16 %v140
    %v407 = vunpack.c.h.b16 %v140
    %v408 = vunpack.c.l.b16 %v141
    %v409 = vunpack.c.h.b16 %v141
    %v410 = vunpack.c.l.b16 %v142
    %v411 = vunpack.c.h.b16 %v142
    %v412 = vunpack.c.l.b16 %v143
    %v413 = vunpack.c.h.b16 %v143
    %v414 = vunpack.c.l.b16 %v144
    %v415 = vunpack.c.h.b16 %v144
    %v416 = vunpack.c.l.b16 %v145
    %v417 = vunpack.c.h.b16 %v145
    %v418 = vunpack.c.l.b16 %v146
    %v419 = vunpack.c.h.b16 %v146
    %v420 = vunpack.c.l.b16 %v147
    %v421 = vunpack.c.h.b16 %v147
    %v422 = vunpack.c.l.b16 %v148
    %v423 = vunpack.c.h.b16 %v148
    %v424 = vunpack.c.l.b16 %v149
    %v425 = vunpack.c.h.b16 %v149
    %v426 = vunpack.c.l.b16 %v150
    %v427 = vunpack.c.h.b16 %v150
    %v428 = vunpack.c.l.b16 %v151
    %v429 = vunpack.c.h.b16 %v151
    %v430 = vunpack.c.l.b16 %v152
    %v431 = vunpack.c.h.b16 %v152
    %v432 = vunpack.c.l.b16 %v153
    %v433 = vunpack.c.h.b16 %v153
    %v434 = vunpack.c.l.b16 %v154
    %v435 = vunpack.c.h.b16 %v154
    %v436 = vunpack.c.l.b16 %v155
    %v437 = vunpack.c.h.b16 %v155
    %v438 = vunpack.c.l.b16 %v156
    %v439 = vunpack.c.h.b16 %v156
    %v440 = vunpack.c.l.b16 %v157
    %v441 = vunpack.c.h.b16 %v157
    %v442 = vunpack.c.l.b16 %v158
    %v443 = vunpack.c.h.b16 %v158
    %v444 = vunpack.c.l.b16 %v159
    %v445 = vunpack.c.h.b16 %v159
    %v446 = vunpack.c.l.b16 %v160
    %v447 = vunpack.c.h.b16 %v160
    %v448 = vunpack.c.l.b16 %v161
    %v449 = vunpack.c.h.b16 %v161
    %v450 = vunpack.c.l.b16 %v162
    %v451 = vunpack.c.h.b16 %v162
    %v452 = vunpack.c.l.b16 %v163
    %v453 = vunpack.c.h.b16 %v163
    %v454 = vunpack.c.l.b16 %v164
    %v455 = vunpack.c.h.b16 %v164
    %v456 = vunpack.c.l.b16 %v165
    %v457 = vunpack.c.h.b16 %v165
    %v458 = vunpack.c.l.b16 %v166
    %v459 = vunpack.c.h.b16 %v166
    %v460 = vunpack.c.l.b16 %v167
    %v461 = vunpack.c.h.b16 %v167
    %v462 = vunpack.c.l.b16 %v168
    %v463 = vunpack.c.h.b16 %v168
    %v464 = vunpack.c.l.b16 %v169
    %v465 = vunpack.c.h.b16 %v169
    %v466 = vunpack.c.l.b16 %v170
    %v467 = vunpack.c.h.b16 %v170
    %v468 = vunpack.c.l.b16 %v171
    %v469 = vunpack.c.h.b16 %v171
    %v470 = vunpack.c.l.b16 %v172
    %v471 = vunpack.c.h.b16 %v172
    %v472 = vunpack.c.l.b16 %v173
    %v473 = vunpack.c.h.b16 %v173
    %v474 = vunpack.c.l.b16 %v174
    %v475 = vunpack.c.h.b16 %v174
    %v476 = vunpack.c.l.b16 %v175
    %v477 = vunpack.c.h.b16 %v175
    %v478 = vunpack.c.l.b16 %v176
    %v479 = vunpack.c.h.b16 %v176
    %v480 = vunpack.c.l.b16 %v177
    %v481 = vunpack.c.h.b16 %v177
    %v482 = vunpack.c.l.b16 %v178
    %v483 = vunpack.c.h.b16 %v178
    %v484 = vunpack.c.l.b16 %v179
    %v485 = vunpack.c.h.b16 %v179
    %v486 = vunpack.c.l.b16 %v180
    %v487 = vunpack.c.h.b16 %v180
    %v488 = vunpack.c.l.b16 %v181
    %v489 = vunpack.c.h.b16 %v181
    %v490 = vpack.c.b16 %v304, %v298
    %v491 = vpack.c.b16 %v305, %v299
    %v492 = vpack.c.b16 %v306, %v300
    %v493 = vpack.c.b16 %v307, %v301
    %v494 = vpack.c.b16 %v308, %v302
    %v495 = vpack.c.b16 %v309, %v303
    %v496 = vpack.c.b16 %v316, %v310
    %v497 = vpack.c.b16 %v317, %v311
    %v498 = vpack.c.b16 %v318, %v312
    %v499 = vpack.c.b16 %v319, %v313
    %v500 = vpack.c.b16 %v320, %v314
    %v501 = vpack.c.b16 %v321, %v315
    %v502 = vpack.c.b16 %v328, %v322
    %v503 = vpack.c.b16 %v329, %v323
    %v504 = vpack.c.b16 %v330, %v324
    %v505 = vpack.c.b16 %v331, %v325
    %v506 = vpack.c.b16 %v332, %v326
    %v507 = vpack.c.b16 %v333, %v327
    %v508 = vpack.c.b16 %v340, %v334
    %v509 = vpack.c.b16 %v341, %v335
    %v510 = vpack.c.b16 %v342, %v336
    %v511 = vpack.c.b16 %v343, %v337
    %v512 = vpack.c.b16 %v344, %v338
    %v513 = vpack.c.b16 %v345, %v339
    %v514 = vpack.c.b16 %v352, %v346
    %v515 = vpack.c.b16 %v353, %v347
    %v516 = vpack.c.b16 %v354, %v348
    %v517 = vpack.c.b16 %v355, %v349
    %v518 = vpack.c.b16 %v356, %v350
    %v519 = vpack.c.b16 %v357, %v351
    %v520 = vpack.c.b16 %v364, %v358
    %v521 = vpack.c.b16 %v365, %v359
    %v522 = vpack.c.b16 %v366, %v360
    %v523 = vpack.c.b16 %v367, %v361
    %v524 = vpack.c.b16 %v368, %v362
    %v525 = vpack.c.b16 %v369, %v363
    %v526 = vpack.c.b16 %v376, %v370
    %v527 = vpack.c.b16 %v377, %v371
    %v528 = vpack.c.b16 %v378, %v372
    %v529 = vpack.c.b16 %v379, %v373
    %v530 = vpack.c.b16 %v380, %v374
    %v531 = vpack.c.b16 %v381, %v375
    %v532 = vpack.c.b16 %v388, %v382
    %v533 = vpack.c.b16 %v389, %v383
    %v534 = vpack.c.b16 %v390, %v384
    %v535 = vpack.c.b16 %v391, %v385
    %v536 = vpack.c.b16 %v392, %v386
    %v537 = vpack.c.b16 %v393, %v387
    %v538 = vpack.c.b16 %v400, %v394
    %v539 = vpack.c.b16 %v401, %v395
    %v540 = vpack.c.b16 %v402, %v396
    %v541 = vpack.c.b16 %v403, %v397
    %v542 = vpack.c.b16 %v404, %v398
    %v543 = vpack.c.b16 %v405, %v399
    %v544 = vpack.c.b16 %v412, %v406
    %v545 = vpack.c.b16 %v413, %v407
    %v546 = vpack.c.b16 %v414, %v408
    %v547 = vpack.c.b16 %v415, %v409
    %v548 = vpack.c.b16 %v416, %v410
    %v549 = vpack.c.b16 %v417, %v411
    %v550 = vpack.c.b16 %v424, %v418
    %v551 = vpack.c.b16 %v425, %v419
    %v552 = vpack.c.b16 %v426, %v420
    %v553 = vpack.c.b16 %v427, %v421
    %v554 = vpack.c.b16 %v428, %v422
    %v555 = vpack.c.b16 %v429, %v423
    %v556 = vpack.c.b16 %v436, %v430
    %v557 = vpack.c.b16 %v437, %v431
    %v558 = vpack.c.b16 %v438, %v432
    %v559 = vpack.c.b16 %v439, %v433
    %v560 = vpack.c.b16 %v440, %v434
    %v561 = vpack.c.b16 %v441, %v435
    %v562 = vpack.c.b16 %v448, %v442
    %v563 = vpack.c.b16 %v449, %v443
    %v564 = vpack.c.b16 %v450, %v444
    %v565 = vpack.c.b16 %v451, %v445
    %v566 = vpack.c.b16 %v452, %v446
    %v567 = vpack.c.b16 %v453, %v447
    %v568 = vpack.c.b16 %v460, %v454
    %v569 = vpack.c.b16 %v461, %v455
    %v570 = vpack.c.b16 %v462, %v456
    %v571 = vpack.c.b16 %v463, %v457
    %v572 = vpack.c.b16 %v464, %v458
    %v573 = vpack.c.b16 %v465, %v459
    %v574 = vpack.c.b16 %v472, %v466
    %v575 = vpack.c.b16 %v473, %v467
    %v576 = vpack.c.b16 %v474, %v468
    %v577 = vpack.c.b16 %v475, %v469
    %v578 = vpack.c.b16 %v476, %v470
    %v579 = vpack.c.b16 %v477, %v471
    %v580 = vpack.c.b16 %v484, %v478
    %v581 = vpack.c.b16 %v485, %v479
    %v582 = vpack.c.b16 %v486, %v480
    %v583 = vpack.c.b16 %v487, %v481
    %v584 = vpack.c.b16 %v488, %v482
    %v585 = vpack.c.b16 %v489, %v483
    %682 = vmatpush.bf16.msra.mxu0 %v532
    %683 = vmatpush.bf16.msra.mxu0 %v526
    %684 = vmatpush.bf16.msra.mxu0 %v520
    %685 = vmatpush.bf16.msra.mxu0 %v514
    %686 = vmatpush.bf16.msra.mxu0 %v508
    %687 = vmatpush.bf16.msra.mxu0 %v502
    %688 = vmatpush.bf16.msra.mxu0 %v496
    %689 = vmatpush.bf16.msra.mxu0 %v490
    %690 = vmatmul.bf16.gmra.mxu0 %v194
    %v691 = vpop.f32.mrf.mxu0
    %v692 = vadd.f32 0.0, %v691
    %v693 = vpop.f32.mrf.mxu0
    %v694 = vadd.f32 0.0, %v693
    %695 = vmatmul.bf16.gmra.mxu0 %v196
    %v696 = vpop.f32.mrf.mxu0
    %v697 = vadd.f32 0.0, %v696
    %v698 = vpop.f32.mrf.mxu0
    %v699 = vadd.f32 0.0, %v698
    %700 = vdwg.mxu0
    %701 = vmatpush.bf16.msra.mxu0 %v580
    %702 = vmatpush.bf16.msra.mxu0 %v574
    %703 = vmatpush.bf16.msra.mxu0 %v568
    %704 = vmatpush.bf16.msra.mxu0 %v562
    %705 = vmatpush.bf16.msra.mxu0 %v556
    %706 = vmatpush.bf16.msra.mxu0 %v550
    %707 = vmatpush.bf16.msra.mxu0 %v544
    %708 = vmatpush.bf16.msra.mxu0 %v538
    %709 = vmatmul.bf16.gmra.mxu0 %v195
    %v710 = vpop.f32.mrf.mxu0
    %v711 = vadd.f32 %v692, %v710
    %v712 = vpop.f32.mrf.mxu0
    %v713 = vadd.f32 %v694, %v712
    %714 = vmatmul.bf16.gmra.mxu0 %v197
    %v715 = vpop.f32.mrf.mxu0
    %v716 = vadd.f32 %v697, %v715
    %v717 = vpop.f32.mrf.mxu0
    %v718 = vadd.f32 %v699, %v717
    %719 = vdwg.mxu0
    %720 = vmatpush.bf16.msra.mxu0 %v533
    %721 = vmatpush.bf16.msra.mxu0 %v527
    %722 = vmatpush.bf16.msra.mxu0 %v521
    %723 = vmatpush.bf16.msra.mxu0 %v515
    %724 = vmatpush.bf16.msra.mxu0 %v509
    %725 = vmatpush.bf16.msra.mxu0 %v503
    %726 = vmatpush.bf16.msra.mxu0 %v497
    %727 = vmatpush.bf16.msra.mxu0 %v491
    %728 = vmatmul.bf16.gmra.mxu0 %v194
    %v729 = vpop.f32.mrf.mxu0
    %v730 = vadd.f32 0.0, %v729
    %v731 = vpop.f32.mrf.mxu0
    %v732 = vadd.f32 0.0, %v731
    %733 = vmatmul.bf16.gmra.mxu0 %v196
    %v734 = vpop.f32.mrf.mxu0
    %v735 = vadd.f32 0.0, %v734
    %v736 = vpop.f32.mrf.mxu0
    %v737 = vadd.f32 0.0, %v736
    %738 = vdwg.mxu0
    %739 = vmatpush.bf16.msra.mxu0 %v581
    %740 = vmatpush.bf16.msra.mxu0 %v575
    %741 = vmatpush.bf16.msra.mxu0 %v569
    %742 = vmatpush.bf16.msra.mxu0 %v563
    %743 = vmatpush.bf16.msra.mxu0 %v557
    %744 = vmatpush.bf16.msra.mxu0 %v551
    %745 = vmatpush.bf16.msra.mxu0 %v545
    %746 = vmatpush.bf16.msra.mxu0 %v539
    %747 = vmatmul.bf16.gmra.mxu0 %v195
    %v748 = vpop.f32.mrf.mxu0
    %v749 = vadd.f32 %v730, %v748
    %v750 = vpop.f32.mrf.mxu0
    %v751 = vadd.f32 %v732, %v750
    %752 = vmatmul.bf16.gmra.mxu0 %v197
    %v753 = vpop.f32.mrf.mxu0
    %v754 = vadd.f32 %v735, %v753
    %v755 = vpop.f32.mrf.mxu0
    %v756 = vadd.f32 %v737, %v755
    %757 = vdwg.mxu0
    %758 = vmatpush.bf16.msra.mxu0 %v534
    %759 = vmatpush.bf16.msra.mxu0 %v528
    %760 = vmatpush.bf16.msra.mxu0 %v522
    %761 = vmatpush.bf16.msra.mxu0 %v516
    %762 = vmatpush.bf16.msra.mxu0 %v510
    %763 = vmatpush.bf16.msra.mxu0 %v504
    %764 = vmatpush.bf16.msra.mxu0 %v498
    %765 = vmatpush.bf16.msra.mxu0 %v492
    %766 = vmatmul.bf16.gmra.mxu0 %v194
    %v767 = vpop.f32.mrf.mxu0
    %v768 = vadd.f32 0.0, %v767
    %v769 = vpop.f32.mrf.mxu0
    %v770 = vadd.f32 0.0, %v769
    %771 = vmatmul.bf16.gmra.mxu0 %v196
    %v772 = vpop.f32.mrf.mxu0
    %v773 = vadd.f32 0.0, %v772
    %v774 = vpop.f32.mrf.mxu0
    %v775 = vadd.f32 0.0, %v774
    %776 = vdwg.mxu0
    %777 = vmatpush.bf16.msra.mxu0 %v582
    %778 = vmatpush.bf16.msra.mxu0 %v576
    %779 = vmatpush.bf16.msra.mxu0 %v570
    %780 = vmatpush.bf16.msra.mxu0 %v564
    %781 = vmatpush.bf16.msra.mxu0 %v558
    %782 = vmatpush.bf16.msra.mxu0 %v552
    %783 = vmatpush.bf16.msra.mxu0 %v546
    %784 = vmatpush.bf16.msra.mxu0 %v540
    %785 = vmatmul.bf16.gmra.mxu0 %v195
    %v786 = vpop.f32.mrf.mxu0
    %v787 = vadd.f32 %v768, %v786
    %v788 = vpop.f32.mrf.mxu0
    %v789 = vadd.f32 %v770, %v788
    %790 = vmatmul.bf16.gmra.mxu0 %v197
    %v791 = vpop.f32.mrf.mxu0
    %v792 = vadd.f32 %v773, %v791
    %v793 = vpop.f32.mrf.mxu0
    %v794 = vadd.f32 %v775, %v793
    %795 = vdwg.mxu0
    %796 = vmatpush.bf16.msra.mxu0 %v535
    %797 = vmatpush.bf16.msra.mxu0 %v529
    %798 = vmatpush.bf16.msra.mxu0 %v523
    %799 = vmatpush.bf16.msra.mxu0 %v517
    %800 = vmatpush.bf16.msra.mxu0 %v511
    %801 = vmatpush.bf16.msra.mxu0 %v505
    %802 = vmatpush.bf16.msra.mxu0 %v499
    %803 = vmatpush.bf16.msra.mxu0 %v493
    %804 = vmatmul.bf16.gmra.mxu0 %v194
    %v805 = vpop.f32.mrf.mxu0
    %v806 = vadd.f32 0.0, %v805
    %v807 = vpop.f32.mrf.mxu0
    %v808 = vadd.f32 0.0, %v807
    %809 = vmatmul.bf16.gmra.mxu0 %v196
    %v810 = vpop.f32.mrf.mxu0
    %v811 = vadd.f32 0.0, %v810
    %v812 = vpop.f32.mrf.mxu0
    %v813 = vadd.f32 0.0, %v812
    %814 = vdwg.mxu0
    %815 = vmatpush.bf16.msra.mxu0 %v583
    %816 = vmatpush.bf16.msra.mxu0 %v577
    %817 = vmatpush.bf16.msra.mxu0 %v571
    %818 = vmatpush.bf16.msra.mxu0 %v565
    %819 = vmatpush.bf16.msra.mxu0 %v559
    %820 = vmatpush.bf16.msra.mxu0 %v553
    %821 = vmatpush.bf16.msra.mxu0 %v547
    %822 = vmatpush.bf16.msra.mxu0 %v541
    %823 = vmatmul.bf16.gmra.mxu0 %v195
    %v824 = vpop.f32.mrf.mxu0
    %v825 = vadd.f32 %v806, %v824
    %v826 = vpop.f32.mrf.mxu0
    %v827 = vadd.f32 %v808, %v826
    %828 = vmatmul.bf16.gmra.mxu0 %v197
    %v829 = vpop.f32.mrf.mxu0
    %v830 = vadd.f32 %v811, %v829
    %v831 = vpop.f32.mrf.mxu0
    %v832 = vadd.f32 %v813, %v831
    %833 = vdwg.mxu0
    %834 = vmatpush.bf16.msra.mxu0 %v536
    %835 = vmatpush.bf16.msra.mxu0 %v530
    %836 = vmatpush.bf16.msra.mxu0 %v524
    %837 = vmatpush.bf16.msra.mxu0 %v518
    %838 = vmatpush.bf16.msra.mxu0 %v512
    %839 = vmatpush.bf16.msra.mxu0 %v506
    %840 = vmatpush.bf16.msra.mxu0 %v500
    %841 = vmatpush.bf16.msra.mxu0 %v494
    %842 = vmatmul.bf16.gmra.mxu0 %v194
    %v843 = vpop.f32.mrf.mxu0
    %v844 = vadd.f32 0.0, %v843
    %v845 = vpop.f32.mrf.mxu0
    %v846 = vadd.f32 0.0, %v845
    %847 = vmatmul.bf16.gmra.mxu0 %v196
    %v848 = vpop.f32.mrf.mxu0
    %v849 = vadd.f32 0.0, %v848
    %v850 = vpop.f32.mrf.mxu0
    %v851 = vadd.f32 0.0, %v850
    %852 = vdwg.mxu0
    %853 = vmatpush.bf16.msra.mxu0 %v584
    %854 = vmatpush.bf16.msra.mxu0 %v578
    %855 = vmatpush.bf16.msra.mxu0 %v572
    %856 = vmatpush.bf16.msra.mxu0 %v566
    %857 = vmatpush.bf16.msra.mxu0 %v560
    %858 = vmatpush.bf16.msra.mxu0 %v554
    %859 = vmatpush.bf16.msra.mxu0 %v548
    %860 = vmatpush.bf16.msra.mxu0 %v542
    %861 = vmatmul.bf16.gmra.mxu0 %v195
    %v862 = vpop.f32.mrf.mxu0
    %v863 = vadd.f32 %v844, %v862
    %v864 = vpop.f32.mrf.mxu0
    %v865 = vadd.f32 %v846, %v864
    %866 = vmatmul.bf16.gmra.mxu0 %v197
    %v867 = vpop.f32.mrf.mxu0
    %v868 = vadd.f32 %v849, %v867
    %v869 = vpop.f32.mrf.mxu0
    %v870 = vadd.f32 %v851, %v869
    %871 = vdwg.mxu0
    %872 = vmatpush.bf16.msra.mxu0 %v537
    %873 = vmatpush.bf16.msra.mxu0 %v531
    %874 = vmatpush.bf16.msra.mxu0 %v525
    %875 = vmatpush.bf16.msra.mxu0 %v519
    %876 = vmatpush.bf16.msra.mxu0 %v513
    %877 = vmatpush.bf16.msra.mxu0 %v507
    %878 = vmatpush.bf16.msra.mxu0 %v501
    %879 = vmatpush.bf16.msra.mxu0 %v495
    %880 = vmatmul.bf16.gmra.mxu0 %v194
    %v881 = vpop.f32.mrf.mxu0
    %v882 = vadd.f32 0.0, %v881
    %v883 = vpop.f32.mrf.mxu0
    %v884 = vadd.f32 0.0, %v883
    %885 = vmatmul.bf16.gmra.mxu0 %v196
    %v886 = vpop.f32.mrf.mxu0
    %v887 = vadd.f32 0.0, %v886
    %v888 = vpop.f32.mrf.mxu0
    %v889 = vadd.f32 0.0, %v888
    %890 = vdwg.mxu0
    %891 = vmatpush.bf16.msra.mxu0 %v585
    %892 = vmatpush.bf16.msra.mxu0 %v579
    %893 = vmatpush.bf16.msra.mxu0 %v573
    %894 = vmatpush.bf16.msra.mxu0 %v567
    %895 = vmatpush.bf16.msra.mxu0 %v561
    %896 = vmatpush.bf16.msra.mxu0 %v555
    %897 = vmatpush.bf16.msra.mxu0 %v549
    %898 = vmatpush.bf16.msra.mxu0 %v543
    %899 = vmatmul.bf16.gmra.mxu0 %v195
    %v900 = vpop.f32.mrf.mxu0
    %v901 = vadd.f32 %v882, %v900
    %v902 = vpop.f32.mrf.mxu0
    %v903 = vadd.f32 %v884, %v902
    %904 = vmatmul.bf16.gmra.mxu0 %v197
    %v905 = vpop.f32.mrf.mxu0
    %v906 = vadd.f32 %v887, %v905
    %v907 = vpop.f32.mrf.mxu0
    %v908 = vadd.f32 %v889, %v907
    %909 = vdwg.mxu0
    %v910 = vadd.f32 %v58, %v711
    %v911 = vadd.f32 %v59, %v749
    %v912 = vadd.f32 %v60, %v787
    %v913 = vadd.f32 %v61, %v825
    %v914 = vadd.f32 %v62, %v863
    %v915 = vadd.f32 %v63, %v901
    %v916 = vadd.f32 %v64, %v713
    %v917 = vadd.f32 %v65, %v751
    %v918 = vadd.f32 %v66, %v789
    %v919 = vadd.f32 %v67, %v827
    %v920 = vadd.f32 %v68, %v865
    %v921 = vadd.f32 %v69, %v903
    %v922 = vadd.f32 %v70, %v716
    %v923 = vadd.f32 %v71, %v754
    %v924 = vadd.f32 %v72, %v792
    %v925 = vadd.f32 %v73, %v830
    %v926 = vadd.f32 %v74, %v868
    %v927 = vadd.f32 %v75, %v906
    %v928 = vadd.f32 %v76, %v718
    %v929 = vadd.f32 %v77, %v756
    %v930 = vadd.f32 %v78, %v794
    %v931 = vadd.f32 %v79, %v832
    %v932 = vadd.f32 %v80, %v870
    %v933 = vadd.f32 %v81, %v908
    %934 = vst [vmem:[#allocation2] sm:$0xff] %v910
    %935 = vst [vmem:[#allocation2 + $0x8] sm:$0xff] %v911
    %936 = vst [vmem:[#allocation2 + $0x10] sm:$0xff] %v912
    %937 = vst [vmem:[#allocation2 + $0x18] sm:$0xff] %v913
    %938 = vst [vmem:[#allocation2 + $0x20] sm:$0xff] %v914
    %939 = vst [vmem:[#allocation2 + $0x28] sm:$0xff] %v915
    %940 = vst [vmem:[#allocation2 + $0x30] sm:$0xff] %v916
    %941 = vst [vmem:[#allocation2 + $0x38] sm:$0xff] %v917
    %942 = vst [vmem:[#allocation2 + $0x40] sm:$0xff] %v918
    %943 = vst [vmem:[#allocation2 + $0x48] sm:$0xff] %v919
    %944 = vst [vmem:[#allocation2 + $0x50] sm:$0xff] %v920
    %945 = vst [vmem:[#allocation2 + $0x58] sm:$0xff] %v921
    %946 = vst [vmem:[#allocation2 + $0x60] sm:$0xff] %v922
    %947 = vst [vmem:[#allocation2 + $0x68] sm:$0xff] %v923
    %948 = vst [vmem:[#allocation2 + $0x70] sm:$0xff] %v924
    %949 = vst [vmem:[#allocation2 + $0x78] sm:$0xff] %v925
    %950 = vst [vmem:[#allocation2 + $0x80] sm:$0xff] %v926
    %951 = vst [vmem:[#allocation2 + $0x88] sm:$0xff] %v927
    %952 = vst [vmem:[#allocation2 + $0x90] sm:$0xff] %v928
    %953 = vst [vmem:[#allocation2 + $0x98] sm:$0xff] %v929
    %954 = vst [vmem:[#allocation2 + $0xa0] sm:$0xff] %v930
    %955 = vst [vmem:[#allocation2 + $0xa8] sm:$0xff] %v931
    %956 = vst [vmem:[#allocation2 + $0xb0] sm:$0xff] %v932
    %957 = vst [vmem:[#allocation2 + $0xb8] sm:$0xff] %v933
    // Predicated region
    $region22: #{forward.13} parent=1 // pred_check
      %p958 = pneg %p30
    $region23: #{forward.13} parent=1 // pred_check_branch
      %960 = sbr.rel (%p958) target = $region25
    $region24: #{forward.13} parent=1 // pred_region
      %v961 = vld [vmem:[#allocation2] sm:$0xff]
      %v962 = vld [vmem:[#allocation2 + $0x8] sm:$0xff]
      %v963 = vld [vmem:[#allocation2 + $0x10] sm:$0xff]
      %v964 = vld [vmem:[#allocation2 + $0x18] sm:$0xff]
      %v965 = vld [vmem:[#allocation2 + $0x20] sm:$0xff]
      %v966 = vld [vmem:[#allocation2 + $0x28] sm:$0xff]
      %v967 = vld [vmem:[#allocation2 + $0x30] sm:$0xff]
      %v968 = vld [vmem:[#allocation2 + $0x38] sm:$0xff]
      %v969 = vld [vmem:[#allocation2 + $0x40] sm:$0xff]
      %v970 = vld [vmem:[#allocation2 + $0x48] sm:$0xff]
      %v971 = vld [vmem:[#allocation2 + $0x50] sm:$0xff]
      %v972 = vld [vmem:[#allocation2 + $0x58] sm:$0xff]
      %v973 = vld [vmem:[#allocation2 + $0x60] sm:$0xff]
      %v974 = vld [vmem:[#allocation2 + $0x68] sm:$0xff]
      %v975 = vld [vmem:[#allocation2 + $0x70] sm:$0xff]
      %v976 = vld [vmem:[#allocation2 + $0x78] sm:$0xff]
      %v977 = vld [vmem:[#allocation2 + $0x80] sm:$0xff]
      %v978 = vld [vmem:[#allocation2 + $0x88] sm:$0xff]
      %v979 = vld [vmem:[#allocation2 + $0x90] sm:$0xff]
      %v980 = vld [vmem:[#allocation2 + $0x98] sm:$0xff]
      %v981 = vld [vmem:[#allocation2 + $0xa0] sm:$0xff]
      %v982 = vld [vmem:[#allocation2 + $0xa8] sm:$0xff]
      %v983 = vld [vmem:[#allocation2 + $0xb0] sm:$0xff]
      %v984 = vld [vmem:[#allocation2 + $0xb8] sm:$0xff]
      %v985 = vld [vmem:[%s2] sm:$0x3f]
      %v987 = vperm.slane %v985, 0
      %v988 = vperm.slane %v985, 1
      %v989 = vperm.slane %v985, 2
      %v990 = vperm.slane %v985, 3
      %v991 = vperm.slane %v985, 4
      %v992 = vperm.slane %v985, 5
      %v999 = vadd.f32 %v961, %v987
      %v1000 = vadd.f32 %v962, %v988
      %v1001 = vadd.f32 %v963, %v989
      %v1002 = vadd.f32 %v964, %v990
      %v1003 = vadd.f32 %v965, %v991
      %v1004 = vadd.f32 %v966, %v992
      %v1005 = vadd.f32 %v967, %v987
      %v1006 = vadd.f32 %v968, %v988
      %v1007 = vadd.f32 %v969, %v989
      %v1008 = vadd.f32 %v970, %v990
      %v1009 = vadd.f32 %v971, %v991
      %v1010 = vadd.f32 %v972, %v992
      %v1011 = vadd.f32 %v973, %v987
      %v1012 = vadd.f32 %v974, %v988
      %v1013 = vadd.f32 %v975, %v989
      %v1014 = vadd.f32 %v976, %v990
      %v1015 = vadd.f32 %v977, %v991
      %v1016 = vadd.f32 %v978, %v992
      %v1017 = vadd.f32 %v979, %v987
      %v1018 = vadd.f32 %v980, %v988
      %v1019 = vadd.f32 %v981, %v989
      %v1020 = vadd.f32 %v982, %v990
      %v1021 = vadd.f32 %v983, %v991
      %v1022 = vadd.f32 %v984, %v992
      %v1023 = vpack.c.bf16 %v1000, %v999
      %v1024 = vpack.c.bf16 %v1002, %v1001
      %v1025 = vpack.c.bf16 %v1004, %v1003
      %v1026 = vpack.c.bf16 %v1006, %v1005
      %v1027 = vpack.c.bf16 %v1008, %v1007
      %v1028 = vpack.c.bf16 %v1010, %v1009
      %v1029 = vpack.c.bf16 %v1012, %v1011
      %v1030 = vpack.c.bf16 %v1014, %v1013
      %v1031 = vpack.c.bf16 %v1016, %v1015
      %v1032 = vpack.c.bf16 %v1018, %v1017
      %v1033 = vpack.c.bf16 %v1020, %v1019
      %v1034 = vpack.c.bf16 %v1022, %v1021
      %1035 = vst [vmem:[%s3] sm:$0xff] %v1023
      %1036 = vst [vmem:[%s3 + $0x8] sm:$0xff] %v1024
      %1037 = vst [vmem:[%s3 + $0x10] sm:$0xff] %v1025
      %1038 = vst [vmem:[%s3 + $0x18] sm:$0xff] %v1026
      %1039 = vst [vmem:[%s3 + $0x20] sm:$0xff] %v1027
      %1040 = vst [vmem:[%s3 + $0x28] sm:$0xff] %v1028
      %1041 = vst [vmem:[%s3 + $0x30] sm:$0xff] %v1029
      %1042 = vst [vmem:[%s3 + $0x38] sm:$0xff] %v1030
      %1043 = vst [vmem:[%s3 + $0x40] sm:$0xff] %v1031
      %1044 = vst [vmem:[%s3 + $0x48] sm:$0xff] %v1032
      %1045 = vst [vmem:[%s3 + $0x50] sm:$0xff] %v1033
      %1046 = vst [vmem:[%s3 + $0x58] sm:$0xff] %v1034
    $region25: #{forward.13} parent=1 // pred_fallthru
      _
    // Predicated region
    $region26: #{forward.13} parent=1 // pred_check
      _
    $region27: #{forward.13} parent=1 // pred_check_branch
      %1048 = sbr.rel (0) target = $region29
    $region28: #{forward.13} parent=1 // pred_region
      _
    $region29: #{forward.13} parent=1 // pred_fallthru
      _
    // Predicated region
    $region30: #{forward.13} parent=1 // pred_check
      _
    $region31: #{forward.13} parent=1 // pred_check_branch
      %1050 = sbr.rel (0) target = $region33
    $region32: #{forward.13} parent=1 // pred_region
      _
    $region33: #{forward.13} parent=1 // pred_fallthru
      _
    %1051 = vsyncpa [#allocation4], 1

// kernel: forward.16
$region0: #{forward.16}
  #allocation0 [shape = 'u32[]', space=smem, size = 0x4, offset = 0x4, fixed_abs, tag = 'smem constant byte address 0x4 - core index']
  #allocation1 [shape = 'u32[72,128]{1,0:T(1,128)}', space=vmem, size = 0x9000, scoped, tag = 'internal scratch']
  #allocation2 [shape = 'f32[32,512]{1,0:T(8,128)}', space=vmem, size = 0x10000, scoped, tag = 'scratch operand']
  %s0 = inlined_call_operand.vmem [shape: bf16[32,256], index: 0, kind: input, shape index: {}]
  %s1 = inlined_call_operand.vmem [shape: bf16[256,512], index: 1, kind: input, shape index: {}]
  %s2 = inlined_call_operand.vmem [shape: f32[1,512], index: 2, kind: input, shape index: {}]
  %s3 = inlined_call_operand.vmem [shape: bf16[32,512], index: 3, kind: output, shape index: {}]
  %s4 = sld [smem:[#allocation0]]
  $region30: #{forward.16} parent=0
    _
  %s6 = ssub.s32 1, %s4
  %s7 = scalar_select 0, %s6, %s4
  // Predicated region
  $region2: #{forward.16} parent=0 // pred_check
    _
  $region3: #{forward.16} parent=0 // pred_check_branch
    %9 = sbr.rel (0) target = $region5
  $region4: #{forward.16} parent=0 // pred_region
    _
  $region5: #{forward.16} parent=0 // pred_fallthru
    _
  // Predicated region
  $region6: #{forward.16} parent=0 // pred_check
    _
  $region7: #{forward.16} parent=0 // pred_check_branch
    %11 = sbr.rel (0) target = $region9
  $region8: #{forward.16} parent=0 // pred_region
    _
  $region9: #{forward.16} parent=0 // pred_fallthru
    _
  // Predicated region
  $region10: #{forward.16} parent=0 // pred_check
    _
  $region11: #{forward.16} parent=0 // pred_check_branch
    %13 = sbr.rel (0) target = $region13
  $region12: #{forward.16} parent=0 // pred_region
    _
  $region13: #{forward.16} parent=0 // pred_fallthru
    _
  %p14 = scmp.eq.s32.totalorder 0, 0
  // Predicated region
  $region14: #{forward.16} parent=0 // pred_check
    %p15 = pneg %p14
  $region15: #{forward.16} parent=0 // pred_check_branch
    %17 = sbr.rel (%p15) target = $region17
  $region16: #{forward.16} parent=0 // pred_region
    %18 = vst [vmem:[#allocation2] sm:$0xff] 0.0
    %19 = vst [vmem:[#allocation2 + $0x8] sm:$0xff] 0.0
    %20 = vst [vmem:[#allocation2 + $0x10] sm:$0xff] 0.0
    %21 = vst [vmem:[#allocation2 + $0x18] sm:$0xff] 0.0
    %22 = vst [vmem:[#allocation2 + $0x20] sm:$0xff] 0.0
    %23 = vst [vmem:[#allocation2 + $0x28] sm:$0xff] 0.0
    %24 = vst [vmem:[#allocation2 + $0x30] sm:$0xff] 0.0
    %25 = vst [vmem:[#allocation2 + $0x38] sm:$0xff] 0.0
    %26 = vst [vmem:[#allocation2 + $0x40] sm:$0xff] 0.0
    %27 = vst [vmem:[#allocation2 + $0x48] sm:$0xff] 0.0
    %28 = vst [vmem:[#allocation2 + $0x50] sm:$0xff] 0.0
    %29 = vst [vmem:[#allocation2 + $0x58] sm:$0xff] 0.0
    %30 = vst [vmem:[#allocation2 + $0x60] sm:$0xff] 0.0
    %31 = vst [vmem:[#allocation2 + $0x68] sm:$0xff] 0.0
    %32 = vst [vmem:[#allocation2 + $0x70] sm:$0xff] 0.0
    %33 = vst [vmem:[#allocation2 + $0x78] sm:$0xff] 0.0
  $region17: #{forward.16} parent=0 // pred_fallthru
    _
  %v34 = vld [vmem:[#allocation2] sm:$0xff]
  %v35 = vld [vmem:[#allocation2 + $0x8] sm:$0xff]
  %v36 = vld [vmem:[#allocation2 + $0x10] sm:$0xff]
  %v37 = vld [vmem:[#allocation2 + $0x18] sm:$0xff]
  %v38 = vld [vmem:[#allocation2 + $0x20] sm:$0xff]
  %v39 = vld [vmem:[#allocation2 + $0x28] sm:$0xff]
  %v40 = vld [vmem:[#allocation2 + $0x30] sm:$0xff]
  %v41 = vld [vmem:[#allocation2 + $0x38] sm:$0xff]
  %v42 = vld [vmem:[#allocation2 + $0x40] sm:$0xff]
  %v43 = vld [vmem:[#allocation2 + $0x48] sm:$0xff]
  %v44 = vld [vmem:[#allocation2 + $0x50] sm:$0xff]
  %v45 = vld [vmem:[#allocation2 + $0x58] sm:$0xff]
  %v46 = vld [vmem:[#allocation2 + $0x60] sm:$0xff]
  %v47 = vld [vmem:[#allocation2 + $0x68] sm:$0xff]
  %v48 = vld [vmem:[#allocation2 + $0x70] sm:$0xff]
  %v49 = vld [vmem:[#allocation2 + $0x78] sm:$0xff]
  %v50 = vld [vmem:[%s0] sm:$0xff]
  %v51 = vld [vmem:[%s0 + $0x8] sm:$0xff]
  %v52 = vld [vmem:[%s0 + $0x10] sm:$0xff]
  %v53 = vld [vmem:[%s0 + $0x18] sm:$0xff]
  %v54 = vld [vmem:[%s1] sm:$0xff]
  %v55 = vld [vmem:[%s1 + $0x8] sm:$0xff]
  %v56 = vld [vmem:[%s1 + $0x10] sm:$0xff]
  %v57 = vld [vmem:[%s1 + $0x18] sm:$0xff]
  %v58 = vld [vmem:[%s1 + $0x20] sm:$0xff]
  %v59 = vld [vmem:[%s1 + $0x28] sm:$0xff]
  %v60 = vld [vmem:[%s1 + $0x30] sm:$0xff]
  %v61 = vld [vmem:[%s1 + $0x38] sm:$0xff]
  %v62 = vld [vmem:[%s1 + $0x40] sm:$0xff]
  %v63 = vld [vmem:[%s1 + $0x48] sm:$0xff]
  %v64 = vld [vmem:[%s1 + $0x50] sm:$0xff]
  %v65 = vld [vmem:[%s1 + $0x58] sm:$0xff]
  %v66 = vld [vmem:[%s1 + $0x60] sm:$0xff]
  %v67 = vld [vmem:[%s1 + $0x68] sm:$0xff]
  %v68 = vld [vmem:[%s1 + $0x70] sm:$0xff]
  %v69 = vld [vmem:[%s1 + $0x78] sm:$0xff]
  %v70 = vld [vmem:[%s1 + $0x80] sm:$0xff]
  %v71 = vld [vmem:[%s1 + $0x88] sm:$0xff]
  %v72 = vld [vmem:[%s1 + $0x90] sm:$0xff]
  %v73 = vld [vmem:[%s1 + $0x98] sm:$0xff]
  %v74 = vld [vmem:[%s1 + $0xa0] sm:$0xff]
  %v75 = vld [vmem:[%s1 + $0xa8] sm:$0xff]
  %v76 = vld [vmem:[%s1 + $0xb0] sm:$0xff]
  %v77 = vld [vmem:[%s1 + $0xb8] sm:$0xff]
  %v78 = vld [vmem:[%s1 + $0xc0] sm:$0xff]
  %v79 = vld [vmem:[%s1 + $0xc8] sm:$0xff]
  %v80 = vld [vmem:[%s1 + $0xd0] sm:$0xff]
  %v81 = vld [vmem:[%s1 + $0xd8] sm:$0xff]
  %v82 = vld [vmem:[%s1 + $0xe0] sm:$0xff]
  %v83 = vld [vmem:[%s1 + $0xe8] sm:$0xff]
  %v84 = vld [vmem:[%s1 + $0xf0] sm:$0xff]
  %v85 = vld [vmem:[%s1 + $0xf8] sm:$0xff]
  %v86 = vld [vmem:[%s1 + $0x100] sm:$0xff]
  %v87 = vld [vmem:[%s1 + $0x108] sm:$0xff]
  %v88 = vld [vmem:[%s1 + $0x110] sm:$0xff]
  %v89 = vld [vmem:[%s1 + $0x118] sm:$0xff]
  %v90 = vld [vmem:[%s1 + $0x120] sm:$0xff]
  %v91 = vld [vmem:[%s1 + $0x128] sm:$0xff]
  %v92 = vld [vmem:[%s1 + $0x130] sm:$0xff]
  %v93 = vld [vmem:[%s1 + $0x138] sm:$0xff]
  %v94 = vld [vmem:[%s1 + $0x140] sm:$0xff]
  %v95 = vld [vmem:[%s1 + $0x148] sm:$0xff]
  %v96 = vld [vmem:[%s1 + $0x150] sm:$0xff]
  %v97 = vld [vmem:[%s1 + $0x158] sm:$0xff]
  %v98 = vld [vmem:[%s1 + $0x160] sm:$0xff]
  %v99 = vld [vmem:[%s1 + $0x168] sm:$0xff]
  %v100 = vld [vmem:[%s1 + $0x170] sm:$0xff]
  %v101 = vld [vmem:[%s1 + $0x178] sm:$0xff]
  %v102 = vld [vmem:[%s1 + $0x180] sm:$0xff]
  %v103 = vld [vmem:[%s1 + $0x188] sm:$0xff]
  %v104 = vld [vmem:[%s1 + $0x190] sm:$0xff]
  %v105 = vld [vmem:[%s1 + $0x198] sm:$0xff]
  %v106 = vld [vmem:[%s1 + $0x1a0] sm:$0xff]
  %v107 = vld [vmem:[%s1 + $0x1a8] sm:$0xff]
  %v108 = vld [vmem:[%s1 + $0x1b0] sm:$0xff]
  %v109 = vld [vmem:[%s1 + $0x1b8] sm:$0xff]
  %v110 = vld [vmem:[%s1 + $0x1c0] sm:$0xff]
  %v111 = vld [vmem:[%s1 + $0x1c8] sm:$0xff]
  %v112 = vld [vmem:[%s1 + $0x1d0] sm:$0xff]
  %v113 = vld [vmem:[%s1 + $0x1d8] sm:$0xff]
  %v114 = vld [vmem:[%s1 + $0x1e0] sm:$0xff]
  %v115 = vld [vmem:[%s1 + $0x1e8] sm:$0xff]
  %v116 = vld [vmem:[%s1 + $0x1f0] sm:$0xff]
  %v117 = vld [vmem:[%s1 + $0x1f8] sm:$0xff]
  %v122 = vunpack.c.l.b16 %v50
  %v123 = vunpack.c.h.b16 %v50
  %v124 = vunpack.c.l.b16 %v51
  %v125 = vunpack.c.h.b16 %v51
  %v126 = vunpack.c.l.b16 %v52
  %v127 = vunpack.c.h.b16 %v52
  %v128 = vunpack.c.l.b16 %v53
  %v129 = vunpack.c.h.b16 %v53
  %v130 = vpack.c.b16 %v124, %v122
  %v131 = vpack.c.b16 %v125, %v123
  %v132 = vpack.c.b16 %v128, %v126
  %v133 = vpack.c.b16 %v129, %v127
  %v202 = vunpack.c.l.b16 %v54
  %v203 = vunpack.c.h.b16 %v54
  %v204 = vunpack.c.l.b16 %v55
  %v205 = vunpack.c.h.b16 %v55
  %v206 = vunpack.c.l.b16 %v56
  %v207 = vunpack.c.h.b16 %v56
  %v208 = vunpack.c.l.b16 %v57
  %v209 = vunpack.c.h.b16 %v57
  %v210 = vunpack.c.l.b16 %v58
  %v211 = vunpack.c.h.b16 %v58
  %v212 = vunpack.c.l.b16 %v59
  %v213 = vunpack.c.h.b16 %v59
  %v214 = vunpack.c.l.b16 %v60
  %v215 = vunpack.c.h.b16 %v60
  %v216 = vunpack.c.l.b16 %v61
  %v217 = vunpack.c.h.b16 %v61
  %v218 = vunpack.c.l.b16 %v62
  %v219 = vunpack.c.h.b16 %v62
  %v220 = vunpack.c.l.b16 %v63
  %v221 = vunpack.c.h.b16 %v63
  %v222 = vunpack.c.l.b16 %v64
  %v223 = vunpack.c.h.b16 %v64
  %v224 = vunpack.c.l.b16 %v65
  %v225 = vunpack.c.h.b16 %v65
  %v226 = vunpack.c.l.b16 %v66
  %v227 = vunpack.c.h.b16 %v66
  %v228 = vunpack.c.l.b16 %v67
  %v229 = vunpack.c.h.b16 %v67
  %v230 = vunpack.c.l.b16 %v68
  %v231 = vunpack.c.h.b16 %v68
  %v232 = vunpack.c.l.b16 %v69
  %v233 = vunpack.c.h.b16 %v69
  %v234 = vunpack.c.l.b16 %v70
  %v235 = vunpack.c.h.b16 %v70
  %v236 = vunpack.c.l.b16 %v71
  %v237 = vunpack.c.h.b16 %v71
  %v238 = vunpack.c.l.b16 %v72
  %v239 = vunpack.c.h.b16 %v72
  %v240 = vunpack.c.l.b16 %v73
  %v241 = vunpack.c.h.b16 %v73
  %v242 = vunpack.c.l.b16 %v74
  %v243 = vunpack.c.h.b16 %v74
  %v244 = vunpack.c.l.b16 %v75
  %v245 = vunpack.c.h.b16 %v75
  %v246 = vunpack.c.l.b16 %v76
  %v247 = vunpack.c.h.b16 %v76
  %v248 = vunpack.c.l.b16 %v77
  %v249 = vunpack.c.h.b16 %v77
  %v250 = vunpack.c.l.b16 %v78
  %v251 = vunpack.c.h.b16 %v78
  %v252 = vunpack.c.l.b16 %v79
  %v253 = vunpack.c.h.b16 %v79
  %v254 = vunpack.c.l.b16 %v80
  %v255 = vunpack.c.h.b16 %v80
  %v256 = vunpack.c.l.b16 %v81
  %v257 = vunpack.c.h.b16 %v81
  %v258 = vunpack.c.l.b16 %v82
  %v259 = vunpack.c.h.b16 %v82
  %v260 = vunpack.c.l.b16 %v83
  %v261 = vunpack.c.h.b16 %v83
  %v262 = vunpack.c.l.b16 %v84
  %v263 = vunpack.c.h.b16 %v84
  %v264 = vunpack.c.l.b16 %v85
  %v265 = vunpack.c.h.b16 %v85
  %v266 = vunpack.c.l.b16 %v86
  %v267 = vunpack.c.h.b16 %v86
  %v268 = vunpack.c.l.b16 %v87
  %v269 = vunpack.c.h.b16 %v87
  %v270 = vunpack.c.l.b16 %v88
  %v271 = vunpack.c.h.b16 %v88
  %v272 = vunpack.c.l.b16 %v89
  %v273 = vunpack.c.h.b16 %v89
  %v274 = vunpack.c.l.b16 %v90
  %v275 = vunpack.c.h.b16 %v90
  %v276 = vunpack.c.l.b16 %v91
  %v277 = vunpack.c.h.b16 %v91
  %v278 = vunpack.c.l.b16 %v92
  %v279 = vunpack.c.h.b16 %v92
  %v280 = vunpack.c.l.b16 %v93
  %v281 = vunpack.c.h.b16 %v93
  %v282 = vunpack.c.l.b16 %v94
  %v283 = vunpack.c.h.b16 %v94
  %v284 = vunpack.c.l.b16 %v95
  %v285 = vunpack.c.h.b16 %v95
  %v286 = vunpack.c.l.b16 %v96
  %v287 = vunpack.c.h.b16 %v96
  %v288 = vunpack.c.l.b16 %v97
  %v289 = vunpack.c.h.b16 %v97
  %v290 = vunpack.c.l.b16 %v98
  %v291 = vunpack.c.h.b16 %v98
  %v292 = vunpack.c.l.b16 %v99
  %v293 = vunpack.c.h.b16 %v99
  %v294 = vunpack.c.l.b16 %v100
  %v295 = vunpack.c.h.b16 %v100
  %v296 = vunpack.c.l.b16 %v101
  %v297 = vunpack.c.h.b16 %v101
  %v298 = vunpack.c.l.b16 %v102
  %v299 = vunpack.c.h.b16 %v102
  %v300 = vunpack.c.l.b16 %v103
  %v301 = vunpack.c.h.b16 %v103
  %v302 = vunpack.c.l.b16 %v104
  %v303 = vunpack.c.h.b16 %v104
  %v304 = vunpack.c.l.b16 %v105
  %v305 = vunpack.c.h.b16 %v105
  %v306 = vunpack.c.l.b16 %v106
  %v307 = vunpack.c.h.b16 %v106
  %v308 = vunpack.c.l.b16 %v107
  %v309 = vunpack.c.h.b16 %v107
  %v310 = vunpack.c.l.b16 %v108
  %v311 = vunpack.c.h.b16 %v108
  %v312 = vunpack.c.l.b16 %v109
  %v313 = vunpack.c.h.b16 %v109
  %v314 = vunpack.c.l.b16 %v110
  %v315 = vunpack.c.h.b16 %v110
  %v316 = vunpack.c.l.b16 %v111
  %v317 = vunpack.c.h.b16 %v111
  %v318 = vunpack.c.l.b16 %v112
  %v319 = vunpack.c.h.b16 %v112
  %v320 = vunpack.c.l.b16 %v113
  %v321 = vunpack.c.h.b16 %v113
  %v322 = vunpack.c.l.b16 %v114
  %v323 = vunpack.c.h.b16 %v114
  %v324 = vunpack.c.l.b16 %v115
  %v325 = vunpack.c.h.b16 %v115
  %v326 = vunpack.c.l.b16 %v116
  %v327 = vunpack.c.h.b16 %v116
  %v328 = vunpack.c.l.b16 %v117
  %v329 = vunpack.c.h.b16 %v117
  %v330 = vpack.c.b16 %v206, %v202
  %v331 = vpack.c.b16 %v207, %v203
  %v332 = vpack.c.b16 %v208, %v204
  %v333 = vpack.c.b16 %v209, %v205
  %v334 = vpack.c.b16 %v214, %v210
  %v335 = vpack.c.b16 %v215, %v211
  %v336 = vpack.c.b16 %v216, %v212
  %v337 = vpack.c.b16 %v217, %v213
  %v338 = vpack.c.b16 %v222, %v218
  %v339 = vpack.c.b16 %v223, %v219
  %v340 = vpack.c.b16 %v224, %v220
  %v341 = vpack.c.b16 %v225, %v221
  %v342 = vpack.c.b16 %v230, %v226
  %v343 = vpack.c.b16 %v231, %v227
  %v344 = vpack.c.b16 %v232, %v228
  %v345 = vpack.c.b16 %v233, %v229
  %v346 = vpack.c.b16 %v238, %v234
  %v347 = vpack.c.b16 %v239, %v235
  %v348 = vpack.c.b16 %v240, %v236
  %v349 = vpack.c.b16 %v241, %v237
  %v350 = vpack.c.b16 %v246, %v242
  %v351 = vpack.c.b16 %v247, %v243
  %v352 = vpack.c.b16 %v248, %v244
  %v353 = vpack.c.b16 %v249, %v245
  %v354 = vpack.c.b16 %v254, %v250
  %v355 = vpack.c.b16 %v255, %v251
  %v356 = vpack.c.b16 %v256, %v252
  %v357 = vpack.c.b16 %v257, %v253
  %v358 = vpack.c.b16 %v262, %v258
  %v359 = vpack.c.b16 %v263, %v259
  %v360 = vpack.c.b16 %v264, %v260
  %v361 = vpack.c.b16 %v265, %v261
  %v362 = vpack.c.b16 %v270, %v266
  %v363 = vpack.c.b16 %v271, %v267
  %v364 = vpack.c.b16 %v272, %v268
  %v365 = vpack.c.b16 %v273, %v269
  %v366 = vpack.c.b16 %v278, %v274
  %v367 = vpack.c.b16 %v279, %v275
  %v368 = vpack.c.b16 %v280, %v276
  %v369 = vpack.c.b16 %v281, %v277
  %v370 = vpack.c.b16 %v286, %v282
  %v371 = vpack.c.b16 %v287, %v283
  %v372 = vpack.c.b16 %v288, %v284
  %v373 = vpack.c.b16 %v289, %v285
  %v374 = vpack.c.b16 %v294, %v290
  %v375 = vpack.c.b16 %v295, %v291
  %v376 = vpack.c.b16 %v296, %v292
  %v377 = vpack.c.b16 %v297, %v293
  %v378 = vpack.c.b16 %v302, %v298
  %v379 = vpack.c.b16 %v303, %v299
  %v380 = vpack.c.b16 %v304, %v300
  %v381 = vpack.c.b16 %v305, %v301
  %v382 = vpack.c.b16 %v310, %v306
  %v383 = vpack.c.b16 %v311, %v307
  %v384 = vpack.c.b16 %v312, %v308
  %v385 = vpack.c.b16 %v313, %v309
  %v386 = vpack.c.b16 %v318, %v314
  %v387 = vpack.c.b16 %v319, %v315
  %v388 = vpack.c.b16 %v320, %v316
  %v389 = vpack.c.b16 %v321, %v317
  %v390 = vpack.c.b16 %v326, %v322
  %v391 = vpack.c.b16 %v327, %v323
  %v392 = vpack.c.b16 %v328, %v324
  %v393 = vpack.c.b16 %v329, %v325
  %458 = vmatpush.bf16.msra.mxu0 %v358
  %459 = vmatpush.bf16.msra.mxu0 %v354
  %460 = vmatpush.bf16.msra.mxu0 %v350
  %461 = vmatpush.bf16.msra.mxu0 %v346
  %462 = vmatpush.bf16.msra.mxu0 %v342
  %463 = vmatpush.bf16.msra.mxu0 %v338
  %464 = vmatpush.bf16.msra.mxu0 %v334
  %465 = vmatpush.bf16.msra.mxu0 %v330
  %466 = vmatmul.bf16.gmra.mxu0 %v130
  %v467 = vpop.f32.mrf.mxu0
  %v468 = vadd.f32 0.0, %v467
  %v469 = vpop.f32.mrf.mxu0
  %v470 = vadd.f32 0.0, %v469
  %471 = vmatmul.bf16.gmra.mxu0 %v132
  %v472 = vpop.f32.mrf.mxu0
  %v473 = vadd.f32 0.0, %v472
  %v474 = vpop.f32.mrf.mxu0
  %v475 = vadd.f32 0.0, %v474
  %476 = vdwg.mxu0
  %477 = vmatpush.bf16.msra.mxu0 %v390
  %478 = vmatpush.bf16.msra.mxu0 %v386
  %479 = vmatpush.bf16.msra.mxu0 %v382
  %480 = vmatpush.bf16.msra.mxu0 %v378
  %481 = vmatpush.bf16.msra.mxu0 %v374
  %482 = vmatpush.bf16.msra.mxu0 %v370
  %483 = vmatpush.bf16.msra.mxu0 %v366
  %484 = vmatpush.bf16.msra.mxu0 %v362
  %485 = vmatmul.bf16.gmra.mxu0 %v131
  %v486 = vpop.f32.mrf.mxu0
  %v487 = vadd.f32 %v468, %v486
  %v488 = vpop.f32.mrf.mxu0
  %v489 = vadd.f32 %v470, %v488
  %490 = vmatmul.bf16.gmra.mxu0 %v133
  %v491 = vpop.f32.mrf.mxu0
  %v492 = vadd.f32 %v473, %v491
  %v493 = vpop.f32.mrf.mxu0
  %v494 = vadd.f32 %v475, %v493
  %495 = vdwg.mxu0
  %496 = vmatpush.bf16.msra.mxu0 %v359
  %497 = vmatpush.bf16.msra.mxu0 %v355
  %498 = vmatpush.bf16.msra.mxu0 %v351
  %499 = vmatpush.bf16.msra.mxu0 %v347
  %500 = vmatpush.bf16.msra.mxu0 %v343
  %501 = vmatpush.bf16.msra.mxu0 %v339
  %502 = vmatpush.bf16.msra.mxu0 %v335
  %503 = vmatpush.bf16.msra.mxu0 %v331
  %504 = vmatmul.bf16.gmra.mxu0 %v130
  %v505 = vpop.f32.mrf.mxu0
  %v506 = vadd.f32 0.0, %v505
  %v507 = vpop.f32.mrf.mxu0
  %v508 = vadd.f32 0.0, %v507
  %509 = vmatmul.bf16.gmra.mxu0 %v132
  %v510 = vpop.f32.mrf.mxu0
  %v511 = vadd.f32 0.0, %v510
  %v512 = vpop.f32.mrf.mxu0
  %v513 = vadd.f32 0.0, %v512
  %514 = vdwg.mxu0
  %515 = vmatpush.bf16.msra.mxu0 %v391
  %516 = vmatpush.bf16.msra.mxu0 %v387
  %517 = vmatpush.bf16.msra.mxu0 %v383
  %518 = vmatpush.bf16.msra.mxu0 %v379
  %519 = vmatpush.bf16.msra.mxu0 %v375
  %520 = vmatpush.bf16.msra.mxu0 %v371
  %521 = vmatpush.bf16.msra.mxu0 %v367
  %522 = vmatpush.bf16.msra.mxu0 %v363
  %523 = vmatmul.bf16.gmra.mxu0 %v131
  %v524 = vpop.f32.mrf.mxu0
  %v525 = vadd.f32 %v506, %v524
  %v526 = vpop.f32.mrf.mxu0
  %v527 = vadd.f32 %v508, %v526
  %528 = vmatmul.bf16.gmra.mxu0 %v133
  %v529 = vpop.f32.mrf.mxu0
  %v530 = vadd.f32 %v511, %v529
  %v531 = vpop.f32.mrf.mxu0
  %v532 = vadd.f32 %v513, %v531
  %533 = vdwg.mxu0
  %534 = vmatpush.bf16.msra.mxu0 %v360
  %535 = vmatpush.bf16.msra.mxu0 %v356
  %536 = vmatpush.bf16.msra.mxu0 %v352
  %537 = vmatpush.bf16.msra.mxu0 %v348
  %538 = vmatpush.bf16.msra.mxu0 %v344
  %539 = vmatpush.bf16.msra.mxu0 %v340
  %540 = vmatpush.bf16.msra.mxu0 %v336
  %541 = vmatpush.bf16.msra.mxu0 %v332
  %542 = vmatmul.bf16.gmra.mxu0 %v130
  %v543 = vpop.f32.mrf.mxu0
  %v544 = vadd.f32 0.0, %v543
  %v545 = vpop.f32.mrf.mxu0
  %v546 = vadd.f32 0.0, %v545
  %547 = vmatmul.bf16.gmra.mxu0 %v132
  %v548 = vpop.f32.mrf.mxu0
  %v549 = vadd.f32 0.0, %v548
  %v550 = vpop.f32.mrf.mxu0
  %v551 = vadd.f32 0.0, %v550
  %552 = vdwg.mxu0
  %553 = vmatpush.bf16.msra.mxu0 %v392
  %554 = vmatpush.bf16.msra.mxu0 %v388
  %555 = vmatpush.bf16.msra.mxu0 %v384
  %556 = vmatpush.bf16.msra.mxu0 %v380
  %557 = vmatpush.bf16.msra.mxu0 %v376
  %558 = vmatpush.bf16.msra.mxu0 %v372
  %559 = vmatpush.bf16.msra.mxu0 %v368
  %560 = vmatpush.bf16.msra.mxu0 %v364
  %561 = vmatmul.bf16.gmra.mxu0 %v131
  %v562 = vpop.f32.mrf.mxu0
  %v563 = vadd.f32 %v544, %v562
  %v564 = vpop.f32.mrf.mxu0
  %v565 = vadd.f32 %v546, %v564
  %566 = vmatmul.bf16.gmra.mxu0 %v133
  %v567 = vpop.f32.mrf.mxu0
  %v568 = vadd.f32 %v549, %v567
  %v569 = vpop.f32.mrf.mxu0
  %v570 = vadd.f32 %v551, %v569
  %571 = vdwg.mxu0
  %572 = vmatpush.bf16.msra.mxu0 %v361
  %573 = vmatpush.bf16.msra.mxu0 %v357
  %574 = vmatpush.bf16.msra.mxu0 %v353
  %575 = vmatpush.bf16.msra.mxu0 %v349
  %576 = vmatpush.bf16.msra.mxu0 %v345
  %577 = vmatpush.bf16.msra.mxu0 %v341
  %578 = vmatpush.bf16.msra.mxu0 %v337
  %579 = vmatpush.bf16.msra.mxu0 %v333
  %580 = vmatmul.bf16.gmra.mxu0 %v130
  %v581 = vpop.f32.mrf.mxu0
  %v582 = vadd.f32 0.0, %v581
  %v583 = vpop.f32.mrf.mxu0
  %v584 = vadd.f32 0.0, %v583
  %585 = vmatmul.bf16.gmra.mxu0 %v132
  %v586 = vpop.f32.mrf.mxu0
  %v587 = vadd.f32 0.0, %v586
  %v588 = vpop.f32.mrf.mxu0
  %v589 = vadd.f32 0.0, %v588
  %590 = vdwg.mxu0
  %591 = vmatpush.bf16.msra.mxu0 %v393
  %592 = vmatpush.bf16.msra.mxu0 %v389
  %593 = vmatpush.bf16.msra.mxu0 %v385
  %594 = vmatpush.bf16.msra.mxu0 %v381
  %595 = vmatpush.bf16.msra.mxu0 %v377
  %596 = vmatpush.bf16.msra.mxu0 %v373
  %597 = vmatpush.bf16.msra.mxu0 %v369
  %598 = vmatpush.bf16.msra.mxu0 %v365
  %599 = vmatmul.bf16.gmra.mxu0 %v131
  %v600 = vpop.f32.mrf.mxu0
  %v601 = vadd.f32 %v582, %v600
  %v602 = vpop.f32.mrf.mxu0
  %v603 = vadd.f32 %v584, %v602
  %604 = vmatmul.bf16.gmra.mxu0 %v133
  %v605 = vpop.f32.mrf.mxu0
  %v606 = vadd.f32 %v587, %v605
  %v607 = vpop.f32.mrf.mxu0
  %v608 = vadd.f32 %v589, %v607
  %609 = vdwg.mxu0
  %v610 = vadd.f32 %v34, %v487
  %v611 = vadd.f32 %v35, %v525
  %v612 = vadd.f32 %v36, %v563
  %v613 = vadd.f32 %v37, %v601
  %v614 = vadd.f32 %v38, %v489
  %v615 = vadd.f32 %v39, %v527
  %v616 = vadd.f32 %v40, %v565
  %v617 = vadd.f32 %v41, %v603
  %v618 = vadd.f32 %v42, %v492
  %v619 = vadd.f32 %v43, %v530
  %v620 = vadd.f32 %v44, %v568
  %v621 = vadd.f32 %v45, %v606
  %v622 = vadd.f32 %v46, %v494
  %v623 = vadd.f32 %v47, %v532
  %v624 = vadd.f32 %v48, %v570
  %v625 = vadd.f32 %v49, %v608
  %626 = vst [vmem:[#allocation2] sm:$0xff] %v610
  %627 = vst [vmem:[#allocation2 + $0x8] sm:$0xff] %v611
  %628 = vst [vmem:[#allocation2 + $0x10] sm:$0xff] %v612
  %629 = vst [vmem:[#allocation2 + $0x18] sm:$0xff] %v613
  %630 = vst [vmem:[#allocation2 + $0x20] sm:$0xff] %v614
  %631 = vst [vmem:[#allocation2 + $0x28] sm:$0xff] %v615
  %632 = vst [vmem:[#allocation2 + $0x30] sm:$0xff] %v616
  %633 = vst [vmem:[#allocation2 + $0x38] sm:$0xff] %v617
  %634 = vst [vmem:[#allocation2 + $0x40] sm:$0xff] %v618
  %635 = vst [vmem:[#allocation2 + $0x48] sm:$0xff] %v619
  %636 = vst [vmem:[#allocation2 + $0x50] sm:$0xff] %v620
  %637 = vst [vmem:[#allocation2 + $0x58] sm:$0xff] %v621
  %638 = vst [vmem:[#allocation2 + $0x60] sm:$0xff] %v622
  %639 = vst [vmem:[#allocation2 + $0x68] sm:$0xff] %v623
  %640 = vst [vmem:[#allocation2 + $0x70] sm:$0xff] %v624
  %641 = vst [vmem:[#allocation2 + $0x78] sm:$0xff] %v625
  // Predicated region
  $region18: #{forward.16} parent=0 // pred_check
    %p642 = pneg %p14
  $region19: #{forward.16} parent=0 // pred_check_branch
    %644 = sbr.rel (%p642) target = $region21
  $region20: #{forward.16} parent=0 // pred_region
    %v645 = vld [vmem:[#allocation2] sm:$0xff]
    %v646 = vld [vmem:[#allocation2 + $0x8] sm:$0xff]
    %v647 = vld [vmem:[#allocation2 + $0x10] sm:$0xff]
    %v648 = vld [vmem:[#allocation2 + $0x18] sm:$0xff]
    %v649 = vld [vmem:[#allocation2 + $0x20] sm:$0xff]
    %v650 = vld [vmem:[#allocation2 + $0x28] sm:$0xff]
    %v651 = vld [vmem:[#allocation2 + $0x30] sm:$0xff]
    %v652 = vld [vmem:[#allocation2 + $0x38] sm:$0xff]
    %v653 = vld [vmem:[#allocation2 + $0x40] sm:$0xff]
    %v654 = vld [vmem:[#allocation2 + $0x48] sm:$0xff]
    %v655 = vld [vmem:[#allocation2 + $0x50] sm:$0xff]
    %v656 = vld [vmem:[#allocation2 + $0x58] sm:$0xff]
    %v657 = vld [vmem:[#allocation2 + $0x60] sm:$0xff]
    %v658 = vld [vmem:[#allocation2 + $0x68] sm:$0xff]
    %v659 = vld [vmem:[#allocation2 + $0x70] sm:$0xff]
    %v660 = vld [vmem:[#allocation2 + $0x78] sm:$0xff]
    %v661 = vld [vmem:[%s2] sm:$0xf]
    %v663 = vperm.slane %v661, 0
    %v664 = vperm.slane %v661, 1
    %v665 = vperm.slane %v661, 2
    %v666 = vperm.slane %v661, 3
    %v671 = vadd.f32 %v645, %v663
    %v672 = vadd.f32 %v646, %v664
    %v673 = vadd.f32 %v647, %v665
    %v674 = vadd.f32 %v648, %v666
    %v675 = vadd.f32 %v649, %v663
    %v676 = vadd.f32 %v650, %v664
    %v677 = vadd.f32 %v651, %v665
    %v678 = vadd.f32 %v652, %v666
    %v679 = vadd.f32 %v653, %v663
    %v680 = vadd.f32 %v654, %v664
    %v681 = vadd.f32 %v655, %v665
    %v682 = vadd.f32 %v656, %v666
    %v683 = vadd.f32 %v657, %v663
    %v684 = vadd.f32 %v658, %v664
    %v685 = vadd.f32 %v659, %v665
    %v686 = vadd.f32 %v660, %v666
    %v687 = vmul.f32 %v671, %v671
    %v688 = vmul.f32 %v672, %v672
    %v689 = vmul.f32 %v673, %v673
    %v690 = vmul.f32 %v674, %v674
    %v691 = vmul.f32 %v675, %v675
    %v692 = vmul.f32 %v676, %v676
    %v693 = vmul.f32 %v677, %v677
    %v694 = vmul.f32 %v678, %v678
    %v695 = vmul.f32 %v679, %v679
    %v696 = vmul.f32 %v680, %v680
    %v697 = vmul.f32 %v681, %v681
    %v698 = vmul.f32 %v682, %v682
    %v699 = vmul.f32 %v683, %v683
    %v700 = vmul.f32 %v684, %v684
    %v701 = vmul.f32 %v685, %v685
    %v702 = vmul.f32 %v686, %v686
    %v703 = vmul.f32 %v671, %v687
    %v704 = vmul.f32 %v672, %v688
    %v705 = vmul.f32 %v673, %v689
    %v706 = vmul.f32 %v674, %v690
    %v707 = vmul.f32 %v675, %v691
    %v708 = vmul.f32 %v676, %v692
    %v709 = vmul.f32 %v677, %v693
    %v710 = vmul.f32 %v678, %v694
    %v711 = vmul.f32 %v679, %v695
    %v712 = vmul.f32 %v680, %v696
    %v713 = vmul.f32 %v681, %v697
    %v714 = vmul.f32 %v682, %v698
    %v715 = vmul.f32 %v683, %v699
    %v716 = vmul.f32 %v684, %v700
    %v717 = vmul.f32 %v685, %v701
    %v718 = vmul.f32 %v686, %v702
    %v719 = vmul.f32 %v703, 0.044715
    %v720 = vmul.f32 %v704, 0.044715
    %v721 = vmul.f32 %v705, 0.044715
    %v722 = vmul.f32 %v706, 0.044715
    %v723 = vmul.f32 %v707, 0.044715
    %v724 = vmul.f32 %v708, 0.044715
    %v725 = vmul.f32 %v709, 0.044715
    %v726 = vmul.f32 %v710, 0.044715
    %v727 = vmul.f32 %v711, 0.044715
    %v728 = vmul.f32 %v712, 0.044715
    %v729 = vmul.f32 %v713, 0.044715
    %v730 = vmul.f32 %v714, 0.044715
    %v731 = vmul.f32 %v715, 0.044715
    %v732 = vmul.f32 %v716, 0.044715
    %v733 = vmul.f32 %v717, 0.044715
    %v734 = vmul.f32 %v718, 0.044715
    %v735 = vadd.f32 %v671, %v719
    %v736 = vadd.f32 %v672, %v720
    %v737 = vadd.f32 %v673, %v721
    %v738 = vadd.f32 %v674, %v722
    %v739 = vadd.f32 %v675, %v723
    %v740 = vadd.f32 %v676, %v724
    %v741 = vadd.f32 %v677, %v725
    %v742 = vadd.f32 %v678, %v726
    %v743 = vadd.f32 %v679, %v727
    %v744 = vadd.f32 %v680, %v728
    %v745 = vadd.f32 %v681, %v729
    %v746 = vadd.f32 %v682, %v730
    %v747 = vadd.f32 %v683, %v731
    %v748 = vadd.f32 %v684, %v732
    %v749 = vadd.f32 %v685, %v733
    %v750 = vadd.f32 %v686, %v734
    %v751 = vmul.f32 %v735, 0.7978846
    %v752 = vmul.f32 %v736, 0.7978846
    %v753 = vmul.f32 %v737, 0.7978846
    %v754 = vmul.f32 %v738, 0.7978846
    %v755 = vmul.f32 %v739, 0.7978846
    %v756 = vmul.f32 %v740, 0.7978846
    %v757 = vmul.f32 %v741, 0.7978846
    %v758 = vmul.f32 %v742, 0.7978846
    %v759 = vmul.f32 %v743, 0.7978846
    %v760 = vmul.f32 %v744, 0.7978846
    %v761 = vmul.f32 %v745, 0.7978846
    %v762 = vmul.f32 %v746, 0.7978846
    %v763 = vmul.f32 %v747, 0.7978846
    %v764 = vmul.f32 %v748, 0.7978846
    %v765 = vmul.f32 %v749, 0.7978846
    %v766 = vmul.f32 %v750, 0.7978846
    %v767 = vtanh.pop %v751
    %v768 = vtanh.pop %v752
    %v769 = vtanh.pop %v753
    %v770 = vtanh.pop %v754
    %v771 = vtanh.pop %v755
    %v772 = vtanh.pop %v756
    %v773 = vtanh.pop %v757
    %v774 = vtanh.pop %v758
    %v775 = vtanh.pop %v759
    %v776 = vtanh.pop %v760
    %v777 = vtanh.pop %v761
    %v778 = vtanh.pop %v762
    %v779 = vtanh.pop %v763
    %v780 = vtanh.pop %v764
    %v781 = vtanh.pop %v765
    %v782 = vtanh.pop %v766
    %v783 = vadd.f32 %v767, 1.0
    %v784 = vadd.f32 %v768, 1.0
    %v785 = vadd.f32 %v769, 1.0
    %v786 = vadd.f32 %v770, 1.0
    %v787 = vadd.f32 %v771, 1.0
    %v788 = vadd.f32 %v772, 1.0
    %v789 = vadd.f32 %v773, 1.0
    %v790 = vadd.f32 %v774, 1.0
    %v791 = vadd.f32 %v775, 1.0
    %v792 = vadd.f32 %v776, 1.0
    %v793 = vadd.f32 %v777, 1.0
    %v794 = vadd.f32 %v778, 1.0
    %v795 = vadd.f32 %v779, 1.0
    %v796 = vadd.f32 %v780, 1.0
    %v797 = vadd.f32 %v781, 1.0
    %v798 = vadd.f32 %v782, 1.0
    %v799 = vmul.f32 %v783, 0.5
    %v800 = vmul.f32 %v784, 0.5
    %v801 = vmul.f32 %v785, 0.5
    %v802 = vmul.f32 %v786, 0.5
    %v803 = vmul.f32 %v787, 0.5
    %v804 = vmul.f32 %v788, 0.5
    %v805 = vmul.f32 %v789, 0.5
    %v806 = vmul.f32 %v790, 0.5
    %v807 = vmul.f32 %v791, 0.5
    %v808 = vmul.f32 %v792, 0.5
    %v809 = vmul.f32 %v793, 0.5
    %v810 = vmul.f32 %v794, 0.5
    %v811 = vmul.f32 %v795, 0.5
    %v812 = vmul.f32 %v796, 0.5
    %v813 = vmul.f32 %v797, 0.5
    %v814 = vmul.f32 %v798, 0.5
    %v815 = vmul.f32 %v671, %v799
    %v816 = vmul.f32 %v672, %v800
    %v817 = vmul.f32 %v673, %v801
    %v818 = vmul.f32 %v674, %v802
    %v819 = vmul.f32 %v675, %v803
    %v820 = vmul.f32 %v676, %v804
    %v821 = vmul.f32 %v677, %v805
    %v822 = vmul.f32 %v678, %v806
    %v823 = vmul.f32 %v679, %v807
    %v824 = vmul.f32 %v680, %v808
    %v825 = vmul.f32 %v681, %v809
    %v826 = vmul.f32 %v682, %v810
    %v827 = vmul.f32 %v683, %v811
    %v828 = vmul.f32 %v684, %v812
    %v829 = vmul.f32 %v685, %v813
    %v830 = vmul.f32 %v686, %v814
    %v831 = vpack.c.bf16 %v816, %v815
    %v832 = vpack.c.bf16 %v818, %v817
    %v833 = vpack.c.bf16 %v820, %v819
    %v834 = vpack.c.bf16 %v822, %v821
    %v835 = vpack.c.bf16 %v824, %v823
    %v836 = vpack.c.bf16 %v826, %v825
    %v837 = vpack.c.bf16 %v828, %v827
    %v838 = vpack.c.bf16 %v830, %v829
    %839 = vst [vmem:[%s3] sm:$0xff] %v831
    %840 = vst [vmem:[%s3 + $0x8] sm:$0xff] %v832
    %841 = vst [vmem:[%s3 + $0x10] sm:$0xff] %v833
    %842 = vst [vmem:[%s3 + $0x18] sm:$0xff] %v834
    %843 = vst [vmem:[%s3 + $0x20] sm:$0xff] %v835
    %844 = vst [vmem:[%s3 + $0x28] sm:$0xff] %v836
    %845 = vst [vmem:[%s3 + $0x30] sm:$0xff] %v837
    %846 = vst [vmem:[%s3 + $0x38] sm:$0xff] %v838
  $region21: #{forward.16} parent=0 // pred_fallthru
    _
  // Predicated region
  $region22: #{forward.16} parent=0 // pred_check
    _
  $region23: #{forward.16} parent=0 // pred_check_branch
    %848 = sbr.rel (0) target = $region25
  $region24: #{forward.16} parent=0 // pred_region
    _
  $region25: #{forward.16} parent=0 // pred_fallthru
    _
  // Predicated region
  $region26: #{forward.16} parent=0 // pred_check
    _
  $region27: #{forward.16} parent=0 // pred_check_branch
    %850 = sbr.rel (0) target = $region29
  $region28: #{forward.16} parent=0 // pred_region
    _
  $region29: #{forward.16} parent=0 // pred_fallthru
    _

// kernel: forward.17
$region0: #{forward.17}
  #allocation0 [shape = 'u32[]', space=smem, size = 0x4, offset = 0x4, fixed_abs, tag = 'smem constant byte address 0x4 - core index']
  #allocation1 [shape = 'u32[72,128]{1,0:T(1,128)}', space=vmem, size = 0x9000, scoped, tag = 'internal scratch']
  #allocation2 [shape = 'f32[32,256]{1,0:T(8,128)}', space=vmem, size = 0x8000, scoped, tag = 'scratch operand']
  %s0 = inlined_call_operand.vmem [shape: bf16[32,512], index: 0, kind: input, shape index: {}]
  %s1 = inlined_call_operand.hbm [shape: bf16[512,256], index: 1, kind: input, shape index: {}]
  %s2 = inlined_call_operand.vmem [shape: f32[1,256], index: 2, kind: input, shape index: {}]
  %s3 = inlined_call_operand.vmem [shape: bf16[32,256], index: 3, kind: input, shape index: {}]
  %s4 = inlined_call_operand.vmem [shape: f32[1,256], index: 4, kind: input, shape index: {}]
  %s5 = inlined_call_operand.vmem [shape: f32[1,256], index: 5, kind: input, shape index: {}]
  %s6 = inlined_call_operand.vmem [shape: bf16[32,256], index: 6, kind: output, shape index: {}]
  %s7 = sld [smem:[#allocation0]]
  $region46: #{forward.17} parent=0
    _
  %s9 = ssub.s32 1, %s7
  %s10 = scalar_select 0, %s9, %s7
  $region1: #{forward.17} parent=0
    #allocation3 [shape = 'u8[262144]{0}', space=vmem, size = 0x40000, scoped, tag = 'input window, operand 1, single buffered']
    #allocation4 [shape = 's32[1]{0}', space=sflag, size = 0x4, scoped, tag = 'scoped memory for forward.17']
    %11 = vsyncpa [#allocation4], 0
    // Predicated region
    $region2: #{forward.17} parent=1 // pred_check
      _
    $region3: #{forward.17} parent=1 // pred_check_branch
      %13 = sbr.rel (0) target = $region5
    $region4: #{forward.17} parent=1 // pred_region
      _
    $region5: #{forward.17} parent=1 // pred_fallthru
      _
    // Predicated region
    $region6: #{forward.17} parent=1 // pred_check
      _
    $region7: #{forward.17} parent=1 // pred_check_branch
      %15 = sbr.rel (0) target = $region9
    $region8: #{forward.17} parent=1 // pred_region
      %17 = vsyncadd [#allocation4], 0
      %s18 = sshll.u32 %s1, 4
      %s19 = int_to_ptr.hbm [resolvable:$true] %s18
      %s20 = sshll.u32 [#allocation3], 4
      %s21 = int_to_ptr.vmem [resolvable:$true] %s20
      %26 = dma.hbm_to_vmem [thread:$0]  %s19, 8192, %s21, [#allocation4], 128, 128, 8
    $region9: #{forward.17} parent=1 // pred_fallthru
      _
    // Predicated region
    $region10: #{forward.17} parent=1 // pred_check
      _
    $region11: #{forward.17} parent=1 // pred_check_branch
      %28 = sbr.rel (0) target = $region13
    $region12: #{forward.17} parent=1 // pred_region
      _
    $region13: #{forward.17} parent=1 // pred_fallthru
      _
    // Predicated region
    $region14: #{forward.17} parent=1 // pred_check
      _
    $region15: #{forward.17} parent=1 // pred_check_branch
      %30 = sbr.rel (0) target = $region17
    $region16: #{forward.17} parent=1 // pred_region
      _
    $region17: #{forward.17} parent=1 // pred_fallthru
      _
    // Predicated region
    $region18: #{forward.17} parent=1 // pred_check
      _
    $region19: #{forward.17} parent=1 // pred_check_branch
      %32 = sbr.rel (0) target = $region21
    $region20: #{forward.17} parent=1 // pred_region
      _
    $region21: #{forward.17} parent=1 // pred_fallthru
      _
    // Predicated region
    $region22: #{forward.17} parent=1 // pred_check
      _
    $region23: #{forward.17} parent=1 // pred_check_branch
      %34 = sbr.rel (0) target = $region25
    $region24: #{forward.17} parent=1 // pred_region
      _
    $region25: #{forward.17} parent=1 // pred_fallthru
      _
    // Predicated region
    $region26: #{forward.17} parent=1 // pred_check
      _
    $region27: #{forward.17} parent=1 // pred_check_branch
      %36 = sbr.rel (0) target = $region29
    $region28: #{forward.17} parent=1 // pred_region
      %38 = dma.done [#allocation4], 8192
    $region29: #{forward.17} parent=1 // pred_fallthru
      _
    %p39 = scmp.eq.s32.totalorder 0, 0
    // Predicated region
    $region30: #{forward.17} parent=1 // pred_check
      %p40 = pneg %p39
    $region31: #{forward.17} parent=1 // pred_check_branch
      %42 = sbr.rel (%p40) target = $region33
    $region32: #{forward.17} parent=1 // pred_region
      %43 = vst [vmem:[#allocation2] sm:$0xff] 0.0
      %44 = vst [vmem:[#allocation2 + $0x8] sm:$0xff] 0.0
      %45 = vst [vmem:[#allocation2 + $0x10] sm:$0xff] 0.0
      %46 = vst [vmem:[#allocation2 + $0x18] sm:$0xff] 0.0
      %47 = vst [vmem:[#allocation2 + $0x20] sm:$0xff] 0.0
      %48 = vst [vmem:[#allocation2 + $0x28] sm:$0xff] 0.0
      %49 = vst [vmem:[#allocation2 + $0x30] sm:$0xff] 0.0
      %50 = vst [vmem:[#allocation2 + $0x38] sm:$0xff] 0.0
    $region33: #{forward.17} parent=1 // pred_fallthru
      _
    %v51 = vld [vmem:[#allocation2] sm:$0xff]
    %v52 = vld [vmem:[#allocation2 + $0x8] sm:$0xff]
    %v53 = vld [vmem:[#allocation2 + $0x10] sm:$0xff]
    %v54 = vld [vmem:[#allocation2 + $0x18] sm:$0xff]
    %v55 = vld [vmem:[#allocation2 + $0x20] sm:$0xff]
    %v56 = vld [vmem:[#allocation2 + $0x28] sm:$0xff]
    %v57 = vld [vmem:[#allocation2 + $0x30] sm:$0xff]
    %v58 = vld [vmem:[#allocation2 + $0x38] sm:$0xff]
    %v59 = vld [vmem:[%s0] sm:$0xff]
    %v60 = vld [vmem:[%s0 + $0x8] sm:$0xff]
    %v61 = vld [vmem:[%s0 + $0x10] sm:$0xff]
    %v62 = vld [vmem:[%s0 + $0x18] sm:$0xff]
    %v63 = vld [vmem:[%s0 + $0x20] sm:$0xff]
    %v64 = vld [vmem:[%s0 + $0x28] sm:$0xff]
    %v65 = vld [vmem:[%s0 + $0x30] sm:$0xff]
    %v66 = vld [vmem:[%s0 + $0x38] sm:$0xff]
    %v67 = vld [vmem:[#allocation3] sm:$0xff]
    %v68 = vld [vmem:[#allocation3 + $0x8] sm:$0xff]
    %v69 = vld [vmem:[#allocation3 + $0x10] sm:$0xff]
    %v70 = vld [vmem:[#allocation3 + $0x18] sm:$0xff]
    %v71 = vld [vmem:[#allocation3 + $0x20] sm:$0xff]
    %v72 = vld [vmem:[#allocation3 + $0x28] sm:$0xff]
    %v73 = vld [vmem:[#allocation3 + $0x30] sm:$0xff]
    %v74 = vld [vmem:[#allocation3 + $0x38] sm:$0xff]
    %v75 = vld [vmem:[#allocation3 + $0x40] sm:$0xff]
    %v76 = vld [vmem:[#allocation3 + $0x48] sm:$0xff]
    %v77 = vld [vmem:[#allocation3 + $0x50] sm:$0xff]
    %v78 = vld [vmem:[#allocation3 + $0x58] sm:$0xff]
    %v79 = vld [vmem:[#allocation3 + $0x60] sm:$0xff]
    %v80 = vld [vmem:[#allocation3 + $0x68] sm:$0xff]
    %v81 = vld [vmem:[#allocation3 + $0x70] sm:$0xff]
    %v82 = vld [vmem:[#allocation3 + $0x78] sm:$0xff]
    %v83 = vld [vmem:[#allocation3 + $0x80] sm:$0xff]
    %v84 = vld [vmem:[#allocation3 + $0x88] sm:$0xff]
    %v85 = vld [vmem:[#allocation3 + $0x90] sm:$0xff]
    %v86 = vld [vmem:[#allocation3 + $0x98] sm:$0xff]
    %v87 = vld [vmem:[#allocation3 + $0xa0] sm:$0xff]
    %v88 = vld [vmem:[#allocation3 + $0xa8] sm:$0xff]
    %v89 = vld [vmem:[#allocation3 + $0xb0] sm:$0xff]
    %v90 = vld [vmem:[#allocation3 + $0xb8] sm:$0xff]
    %v91 = vld [vmem:[#allocation3 + $0xc0] sm:$0xff]
    %v92 = vld [vmem:[#allocation3 + $0xc8] sm:$0xff]
    %v93 = vld [vmem:[#allocation3 + $0xd0] sm:$0xff]
    %v94 = vld [vmem:[#allocation3 + $0xd8] sm:$0xff]
    %v95 = vld [vmem:[#allocation3 + $0xe0] sm:$0xff]
    %v96 = vld [vmem:[#allocation3 + $0xe8] sm:$0xff]
    %v97 = vld [vmem:[#allocation3 + $0xf0] sm:$0xff]
    %v98 = vld [vmem:[#allocation3 + $0xf8] sm:$0xff]
    %v99 = vld [vmem:[#allocation3 + $0x100] sm:$0xff]
    %v100 = vld [vmem:[#allocation3 + $0x108] sm:$0xff]
    %v101 = vld [vmem:[#allocation3 + $0x110] sm:$0xff]
    %v102 = vld [vmem:[#allocation3 + $0x118] sm:$0xff]
    %v103 = vld [vmem:[#allocation3 + $0x120] sm:$0xff]
    %v104 = vld [vmem:[#allocation3 + $0x128] sm:$0xff]
    %v105 = vld [vmem:[#allocation3 + $0x130] sm:$0xff]
    %v106 = vld [vmem:[#allocation3 + $0x138] sm:$0xff]
    %v107 = vld [vmem:[#allocation3 + $0x140] sm:$0xff]
    %v108 = vld [vmem:[#allocation3 + $0x148] sm:$0xff]
    %v109 = vld [vmem:[#allocation3 + $0x150] sm:$0xff]
    %v110 = vld [vmem:[#allocation3 + $0x158] sm:$0xff]
    %v111 = vld [vmem:[#allocation3 + $0x160] sm:$0xff]
    %v112 = vld [vmem:[#allocation3 + $0x168] sm:$0xff]
    %v113 = vld [vmem:[#allocation3 + $0x170] sm:$0xff]
    %v114 = vld [vmem:[#allocation3 + $0x178] sm:$0xff]
    %v115 = vld [vmem:[#allocation3 + $0x180] sm:$0xff]
    %v116 = vld [vmem:[#allocation3 + $0x188] sm:$0xff]
    %v117 = vld [vmem:[#allocation3 + $0x190] sm:$0xff]
    %v118 = vld [vmem:[#allocation3 + $0x198] sm:$0xff]
    %v119 = vld [vmem:[#allocation3 + $0x1a0] sm:$0xff]
    %v120 = vld [vmem:[#allocation3 + $0x1a8] sm:$0xff]
    %v121 = vld [vmem:[#allocation3 + $0x1b0] sm:$0xff]
    %v122 = vld [vmem:[#allocation3 + $0x1b8] sm:$0xff]
    %v123 = vld [vmem:[#allocation3 + $0x1c0] sm:$0xff]
    %v124 = vld [vmem:[#allocation3 + $0x1c8] sm:$0xff]
    %v125 = vld [vmem:[#allocation3 + $0x1d0] sm:$0xff]
    %v126 = vld [vmem:[#allocation3 + $0x1d8] sm:$0xff]
    %v127 = vld [vmem:[#allocation3 + $0x1e0] sm:$0xff]
    %v128 = vld [vmem:[#allocation3 + $0x1e8] sm:$0xff]
    %v129 = vld [vmem:[#allocation3 + $0x1f0] sm:$0xff]
    %v130 = vld [vmem:[#allocation3 + $0x1f8] sm:$0xff]
    %v139 = vunpack.c.l.b16 %v59
    %v140 = vunpack.c.h.b16 %v59
    %v141 = vunpack.c.l.b16 %v60
    %v142 = vunpack.c.h.b16 %v60
    %v143 = vunpack.c.l.b16 %v61
    %v144 = vunpack.c.h.b16 %v61
    %v145 = vunpack.c.l.b16 %v62
    %v146 = vunpack.c.h.b16 %v62
    %v147 = vunpack.c.l.b16 %v63
    %v148 = vunpack.c.h.b16 %v63
    %v149 = vunpack.c.l.b16 %v64
    %v150 = vunpack.c.h.b16 %v64
    %v151 = vunpack.c.l.b16 %v65
    %v152 = vunpack.c.h.b16 %v65
    %v153 = vunpack.c.l.b16 %v66
    %v154 = vunpack.c.h.b16 %v66
    %v155 = vpack.c.b16 %v143, %v139
    %v156 = vpack.c.b16 %v144, %v140
    %v157 = vpack.c.b16 %v145, %v141
    %v158 = vpack.c.b16 %v146, %v142
    %v159 = vpack.c.b16 %v151, %v147
    %v160 = vpack.c.b16 %v152, %v148
    %v161 = vpack.c.b16 %v153, %v149
    %v162 = vpack.c.b16 %v154, %v150
    %v235 = vunpack.c.l.b16 %v67
    %v236 = vunpack.c.h.b16 %v67
    %v237 = vunpack.c.l.b16 %v68
    %v238 = vunpack.c.h.b16 %v68
    %v239 = vunpack.c.l.b16 %v69
    %v240 = vunpack.c.h.b16 %v69
    %v241 = vunpack.c.l.b16 %v70
    %v242 = vunpack.c.h.b16 %v70
    %v243 = vunpack.c.l.b16 %v71
    %v244 = vunpack.c.h.b16 %v71
    %v245 = vunpack.c.l.b16 %v72
    %v246 = vunpack.c.h.b16 %v72
    %v247 = vunpack.c.l.b16 %v73
    %v248 = vunpack.c.h.b16 %v73
    %v249 = vunpack.c.l.b16 %v74
    %v250 = vunpack.c.h.b16 %v74
    %v251 = vunpack.c.l.b16 %v75
    %v252 = vunpack.c.h.b16 %v75
    %v253 = vunpack.c.l.b16 %v76
    %v254 = vunpack.c.h.b16 %v76
    %v255 = vunpack.c.l.b16 %v77
    %v256 = vunpack.c.h.b16 %v77
    %v257 = vunpack.c.l.b16 %v78
    %v258 = vunpack.c.h.b16 %v78
    %v259 = vunpack.c.l.b16 %v79
    %v260 = vunpack.c.h.b16 %v79
    %v261 = vunpack.c.l.b16 %v80
    %v262 = vunpack.c.h.b16 %v80
    %v263 = vunpack.c.l.b16 %v81
    %v264 = vunpack.c.h.b16 %v81
    %v265 = vunpack.c.l.b16 %v82
    %v266 = vunpack.c.h.b16 %v82
    %v267 = vunpack.c.l.b16 %v83
    %v268 = vunpack.c.h.b16 %v83
    %v269 = vunpack.c.l.b16 %v84
    %v270 = vunpack.c.h.b16 %v84
    %v271 = vunpack.c.l.b16 %v85
    %v272 = vunpack.c.h.b16 %v85
    %v273 = vunpack.c.l.b16 %v86
    %v274 = vunpack.c.h.b16 %v86
    %v275 = vunpack.c.l.b16 %v87
    %v276 = vunpack.c.h.b16 %v87
    %v277 = vunpack.c.l.b16 %v88
    %v278 = vunpack.c.h.b16 %v88
    %v279 = vunpack.c.l.b16 %v89
    %v280 = vunpack.c.h.b16 %v89
    %v281 = vunpack.c.l.b16 %v90
    %v282 = vunpack.c.h.b16 %v90
    %v283 = vunpack.c.l.b16 %v91
    %v284 = vunpack.c.h.b16 %v91
    %v285 = vunpack.c.l.b16 %v92
    %v286 = vunpack.c.h.b16 %v92
    %v287 = vunpack.c.l.b16 %v93
    %v288 = vunpack.c.h.b16 %v93
    %v289 = vunpack.c.l.b16 %v94
    %v290 = vunpack.c.h.b16 %v94
    %v291 = vunpack.c.l.b16 %v95
    %v292 = vunpack.c.h.b16 %v95
    %v293 = vunpack.c.l.b16 %v96
    %v294 = vunpack.c.h.b16 %v96
    %v295 = vunpack.c.l.b16 %v97
    %v296 = vunpack.c.h.b16 %v97
    %v297 = vunpack.c.l.b16 %v98
    %v298 = vunpack.c.h.b16 %v98
    %v299 = vunpack.c.l.b16 %v99
    %v300 = vunpack.c.h.b16 %v99
    %v301 = vunpack.c.l.b16 %v100
    %v302 = vunpack.c.h.b16 %v100
    %v303 = vunpack.c.l.b16 %v101
    %v304 = vunpack.c.h.b16 %v101
    %v305 = vunpack.c.l.b16 %v102
    %v306 = vunpack.c.h.b16 %v102
    %v307 = vunpack.c.l.b16 %v103
    %v308 = vunpack.c.h.b16 %v103
    %v309 = vunpack.c.l.b16 %v104
    %v310 = vunpack.c.h.b16 %v104
    %v311 = vunpack.c.l.b16 %v105
    %v312 = vunpack.c.h.b16 %v105
    %v313 = vunpack.c.l.b16 %v106
    %v314 = vunpack.c.h.b16 %v106
    %v315 = vunpack.c.l.b16 %v107
    %v316 = vunpack.c.h.b16 %v107
    %v317 = vunpack.c.l.b16 %v108
    %v318 = vunpack.c.h.b16 %v108
    %v319 = vunpack.c.l.b16 %v109
    %v320 = vunpack.c.h.b16 %v109
    %v321 = vunpack.c.l.b16 %v110
    %v322 = vunpack.c.h.b16 %v110
    %v323 = vunpack.c.l.b16 %v111
    %v324 = vunpack.c.h.b16 %v111
    %v325 = vunpack.c.l.b16 %v112
    %v326 = vunpack.c.h.b16 %v112
    %v327 = vunpack.c.l.b16 %v113
    %v328 = vunpack.c.h.b16 %v113
    %v329 = vunpack.c.l.b16 %v114
    %v330 = vunpack.c.h.b16 %v114
    %v331 = vunpack.c.l.b16 %v115
    %v332 = vunpack.c.h.b16 %v115
    %v333 = vunpack.c.l.b16 %v116
    %v334 = vunpack.c.h.b16 %v116
    %v335 = vunpack.c.l.b16 %v117
    %v336 = vunpack.c.h.b16 %v117
    %v337 = vunpack.c.l.b16 %v118
    %v338 = vunpack.c.h.b16 %v118
    %v339 = vunpack.c.l.b16 %v119
    %v340 = vunpack.c.h.b16 %v119
    %v341 = vunpack.c.l.b16 %v120
    %v342 = vunpack.c.h.b16 %v120
    %v343 = vunpack.c.l.b16 %v121
    %v344 = vunpack.c.h.b16 %v121
    %v345 = vunpack.c.l.b16 %v122
    %v346 = vunpack.c.h.b16 %v122
    %v347 = vunpack.c.l.b16 %v123
    %v348 = vunpack.c.h.b16 %v123
    %v349 = vunpack.c.l.b16 %v124
    %v350 = vunpack.c.h.b16 %v124
    %v351 = vunpack.c.l.b16 %v125
    %v352 = vunpack.c.h.b16 %v125
    %v353 = vunpack.c.l.b16 %v126
    %v354 = vunpack.c.h.b16 %v126
    %v355 = vunpack.c.l.b16 %v127
    %v356 = vunpack.c.h.b16 %v127
    %v357 = vunpack.c.l.b16 %v128
    %v358 = vunpack.c.h.b16 %v128
    %v359 = vunpack.c.l.b16 %v129
    %v360 = vunpack.c.h.b16 %v129
    %v361 = vunpack.c.l.b16 %v130
    %v362 = vunpack.c.h.b16 %v130
    %v363 = vpack.c.b16 %v237, %v235
    %v364 = vpack.c.b16 %v238, %v236
    %v365 = vpack.c.b16 %v241, %v239
    %v366 = vpack.c.b16 %v242, %v240
    %v367 = vpack.c.b16 %v245, %v243
    %v368 = vpack.c.b16 %v246, %v244
    %v369 = vpack.c.b16 %v249, %v247
    %v370 = vpack.c.b16 %v250, %v248
    %v371 = vpack.c.b16 %v253, %v251
    %v372 = vpack.c.b16 %v254, %v252
    %v373 = vpack.c.b16 %v257, %v255
    %v374 = vpack.c.b16 %v258, %v256
    %v375 = vpack.c.b16 %v261, %v259
    %v376 = vpack.c.b16 %v262, %v260
    %v377 = vpack.c.b16 %v265, %v263
    %v378 = vpack.c.b16 %v266, %v264
    %v379 = vpack.c.b16 %v269, %v267
    %v380 = vpack.c.b16 %v270, %v268
    %v381 = vpack.c.b16 %v273, %v271
    %v382 = vpack.c.b16 %v274, %v272
    %v383 = vpack.c.b16 %v277, %v275
    %v384 = vpack.c.b16 %v278, %v276
    %v385 = vpack.c.b16 %v281, %v279
    %v386 = vpack.c.b16 %v282, %v280
    %v387 = vpack.c.b16 %v285, %v283
    %v388 = vpack.c.b16 %v286, %v284
    %v389 = vpack.c.b16 %v289, %v287
    %v390 = vpack.c.b16 %v290, %v288
    %v391 = vpack.c.b16 %v293, %v291
    %v392 = vpack.c.b16 %v294, %v292
    %v393 = vpack.c.b16 %v297, %v295
    %v394 = vpack.c.b16 %v298, %v296
    %v395 = vpack.c.b16 %v301, %v299
    %v396 = vpack.c.b16 %v302, %v300
    %v397 = vpack.c.b16 %v305, %v303
    %v398 = vpack.c.b16 %v306, %v304
    %v399 = vpack.c.b16 %v309, %v307
    %v400 = vpack.c.b16 %v310, %v308
    %v401 = vpack.c.b16 %v313, %v311
    %v402 = vpack.c.b16 %v314, %v312
    %v403 = vpack.c.b16 %v317, %v315
    %v404 = vpack.c.b16 %v318, %v316
    %v405 = vpack.c.b16 %v321, %v319
    %v406 = vpack.c.b16 %v322, %v320
    %v407 = vpack.c.b16 %v325, %v323
    %v408 = vpack.c.b16 %v326, %v324
    %v409 = vpack.c.b16 %v329, %v327
    %v410 = vpack.c.b16 %v330, %v328
    %v411 = vpack.c.b16 %v333, %v331
    %v412 = vpack.c.b16 %v334, %v332
    %v413 = vpack.c.b16 %v337, %v335
    %v414 = vpack.c.b16 %v338, %v336
    %v415 = vpack.c.b16 %v341, %v339
    %v416 = vpack.c.b16 %v342, %v340
    %v417 = vpack.c.b16 %v345, %v343
    %v418 = vpack.c.b16 %v346, %v344
    %v419 = vpack.c.b16 %v349, %v347
    %v420 = vpack.c.b16 %v350, %v348
    %v421 = vpack.c.b16 %v353, %v351
    %v422 = vpack.c.b16 %v354, %v352
    %v423 = vpack.c.b16 %v357, %v355
    %v424 = vpack.c.b16 %v358, %v356
    %v425 = vpack.c.b16 %v361, %v359
    %v426 = vpack.c.b16 %v362, %v360
    %491 = vmatpush.bf16.msra.mxu0 %v377
    %492 = vmatpush.bf16.msra.mxu0 %v375
    %493 = vmatpush.bf16.msra.mxu0 %v373
    %494 = vmatpush.bf16.msra.mxu0 %v371
    %495 = vmatpush.bf16.msra.mxu0 %v369
    %496 = vmatpush.bf16.msra.mxu0 %v367
    %497 = vmatpush.bf16.msra.mxu0 %v365
    %498 = vmatpush.bf16.msra.mxu0 %v363
    %499 = vmatmul.bf16.gmra.mxu0 %v155
    %v500 = vpop.f32.mrf.mxu0
    %v501 = vadd.f32 0.0, %v500
    %v502 = vpop.f32.mrf.mxu0
    %v503 = vadd.f32 0.0, %v502
    %504 = vmatmul.bf16.gmra.mxu0 %v159
    %v505 = vpop.f32.mrf.mxu0
    %v506 = vadd.f32 0.0, %v505
    %v507 = vpop.f32.mrf.mxu0
    %v508 = vadd.f32 0.0, %v507
    %509 = vdwg.mxu0
    %510 = vmatpush.bf16.msra.mxu0 %v393
    %511 = vmatpush.bf16.msra.mxu0 %v391
    %512 = vmatpush.bf16.msra.mxu0 %v389
    %513 = vmatpush.bf16.msra.mxu0 %v387
    %514 = vmatpush.bf16.msra.mxu0 %v385
    %515 = vmatpush.bf16.msra.mxu0 %v383
    %516 = vmatpush.bf16.msra.mxu0 %v381
    %517 = vmatpush.bf16.msra.mxu0 %v379
    %518 = vmatmul.bf16.gmra.mxu0 %v156
    %v519 = vpop.f32.mrf.mxu0
    %v520 = vadd.f32 %v501, %v519
    %v521 = vpop.f32.mrf.mxu0
    %v522 = vadd.f32 %v503, %v521
    %523 = vmatmul.bf16.gmra.mxu0 %v160
    %v524 = vpop.f32.mrf.mxu0
    %v525 = vadd.f32 %v506, %v524
    %v526 = vpop.f32.mrf.mxu0
    %v527 = vadd.f32 %v508, %v526
    %528 = vdwg.mxu0
    %529 = vmatpush.bf16.msra.mxu0 %v409
    %530 = vmatpush.bf16.msra.mxu0 %v407
    %531 = vmatpush.bf16.msra.mxu0 %v405
    %532 = vmatpush.bf16.msra.mxu0 %v403
    %533 = vmatpush.bf16.msra.mxu0 %v401
    %534 = vmatpush.bf16.msra.mxu0 %v399
    %535 = vmatpush.bf16.msra.mxu0 %v397
    %536 = vmatpush.bf16.msra.mxu0 %v395
    %537 = vmatmul.bf16.gmra.mxu0 %v157
    %v538 = vpop.f32.mrf.mxu0
    %v539 = vadd.f32 %v520, %v538
    %v540 = vpop.f32.mrf.mxu0
    %v541 = vadd.f32 %v522, %v540
    %542 = vmatmul.bf16.gmra.mxu0 %v161
    %v543 = vpop.f32.mrf.mxu0
    %v544 = vadd.f32 %v525, %v543
    %v545 = vpop.f32.mrf.mxu0
    %v546 = vadd.f32 %v527, %v545
    %547 = vdwg.mxu0
    %548 = vmatpush.bf16.msra.mxu0 %v425
    %549 = vmatpush.bf16.msra.mxu0 %v423
    %550 = vmatpush.bf16.msra.mxu0 %v421
    %551 = vmatpush.bf16.msra.mxu0 %v419
    %552 = vmatpush.bf16.msra.mxu0 %v417
    %553 = vmatpush.bf16.msra.mxu0 %v415
    %554 = vmatpush.bf16.msra.mxu0 %v413
    %555 = vmatpush.bf16.msra.mxu0 %v411
    %556 = vmatmul.bf16.gmra.mxu0 %v158
    %v557 = vpop.f32.mrf.mxu0
    %v558 = vadd.f32 %v539, %v557
    %v559 = vpop.f32.mrf.mxu0
    %v560 = vadd.f32 %v541, %v559
    %561 = vmatmul.bf16.gmra.mxu0 %v162
    %v562 = vpop.f32.mrf.mxu0
    %v563 = vadd.f32 %v544, %v562
    %v564 = vpop.f32.mrf.mxu0
    %v565 = vadd.f32 %v546, %v564
    %566 = vdwg.mxu0
    %567 = vmatpush.bf16.msra.mxu0 %v378
    %568 = vmatpush.bf16.msra.mxu0 %v376
    %569 = vmatpush.bf16.msra.mxu0 %v374
    %570 = vmatpush.bf16.msra.mxu0 %v372
    %571 = vmatpush.bf16.msra.mxu0 %v370
    %572 = vmatpush.bf16.msra.mxu0 %v368
    %573 = vmatpush.bf16.msra.mxu0 %v366
    %574 = vmatpush.bf16.msra.mxu0 %v364
    %575 = vmatmul.bf16.gmra.mxu0 %v155
    %v576 = vpop.f32.mrf.mxu0
    %v577 = vadd.f32 0.0, %v576
    %v578 = vpop.f32.mrf.mxu0
    %v579 = vadd.f32 0.0, %v578
    %580 = vmatmul.bf16.gmra.mxu0 %v159
    %v581 = vpop.f32.mrf.mxu0
    %v582 = vadd.f32 0.0, %v581
    %v583 = vpop.f32.mrf.mxu0
    %v584 = vadd.f32 0.0, %v583
    %585 = vdwg.mxu0
    %586 = vmatpush.bf16.msra.mxu0 %v394
    %587 = vmatpush.bf16.msra.mxu0 %v392
    %588 = vmatpush.bf16.msra.mxu0 %v390
    %589 = vmatpush.bf16.msra.mxu0 %v388
    %590 = vmatpush.bf16.msra.mxu0 %v386
    %591 = vmatpush.bf16.msra.mxu0 %v384
    %592 = vmatpush.bf16.msra.mxu0 %v382
    %593 = vmatpush.bf16.msra.mxu0 %v380
    %594 = vmatmul.bf16.gmra.mxu0 %v156
    %v595 = vpop.f32.mrf.mxu0
    %v596 = vadd.f32 %v577, %v595
    %v597 = vpop.f32.mrf.mxu0
    %v598 = vadd.f32 %v579, %v597
    %599 = vmatmul.bf16.gmra.mxu0 %v160
    %v600 = vpop.f32.mrf.mxu0
    %v601 = vadd.f32 %v582, %v600
    %v602 = vpop.f32.mrf.mxu0
    %v603 = vadd.f32 %v584, %v602
    %604 = vdwg.mxu0
    %605 = vmatpush.bf16.msra.mxu0 %v410
    %606 = vmatpush.bf16.msra.mxu0 %v408
    %607 = vmatpush.bf16.msra.mxu0 %v406
    %608 = vmatpush.bf16.msra.mxu0 %v404
    %609 = vmatpush.bf16.msra.mxu0 %v402
    %610 = vmatpush.bf16.msra.mxu0 %v400
    %611 = vmatpush.bf16.msra.mxu0 %v398
    %612 = vmatpush.bf16.msra.mxu0 %v396
    %613 = vmatmul.bf16.gmra.mxu0 %v157
    %v614 = vpop.f32.mrf.mxu0
    %v615 = vadd.f32 %v596, %v614
    %v616 = vpop.f32.mrf.mxu0
    %v617 = vadd.f32 %v598, %v616
    %618 = vmatmul.bf16.gmra.mxu0 %v161
    %v619 = vpop.f32.mrf.mxu0
    %v620 = vadd.f32 %v601, %v619
    %v621 = vpop.f32.mrf.mxu0
    %v622 = vadd.f32 %v603, %v621
    %623 = vdwg.mxu0
    %624 = vmatpush.bf16.msra.mxu0 %v426
    %625 = vmatpush.bf16.msra.mxu0 %v424
    %626 = vmatpush.bf16.msra.mxu0 %v422
    %627 = vmatpush.bf16.msra.mxu0 %v420
    %628 = vmatpush.bf16.msra.mxu0 %v418
    %629 = vmatpush.bf16.msra.mxu0 %v416
    %630 = vmatpush.bf16.msra.mxu0 %v414
    %631 = vmatpush.bf16.msra.mxu0 %v412
    %632 = vmatmul.bf16.gmra.mxu0 %v158
    %v633 = vpop.f32.mrf.mxu0
    %v634 = vadd.f32 %v615, %v633
    %v635 = vpop.f32.mrf.mxu0
    %v636 = vadd.f32 %v617, %v635
    %637 = vmatmul.bf16.gmra.mxu0 %v162
    %v638 = vpop.f32.mrf.mxu0
    %v639 = vadd.f32 %v620, %v638
    %v640 = vpop.f32.mrf.mxu0
    %v641 = vadd.f32 %v622, %v640
    %642 = vdwg.mxu0
    %v643 = vadd.f32 %v51, %v558
    %v644 = vadd.f32 %v52, %v634
    %v645 = vadd.f32 %v53, %v560
    %v646 = vadd.f32 %v54, %v636
    %v647 = vadd.f32 %v55, %v563
    %v648 = vadd.f32 %v56, %v639
    %v649 = vadd.f32 %v57, %v565
    %v650 = vadd.f32 %v58, %v641
    %651 = vst [vmem:[#allocation2] sm:$0xff] %v643
    %652 = vst [vmem:[#allocation2 + $0x8] sm:$0xff] %v644
    %653 = vst [vmem:[#allocation2 + $0x10] sm:$0xff] %v645
    %654 = vst [vmem:[#allocation2 + $0x18] sm:$0xff] %v646
    %655 = vst [vmem:[#allocation2 + $0x20] sm:$0xff] %v647
    %656 = vst [vmem:[#allocation2 + $0x28] sm:$0xff] %v648
    %657 = vst [vmem:[#allocation2 + $0x30] sm:$0xff] %v649
    %658 = vst [vmem:[#allocation2 + $0x38] sm:$0xff] %v650
    // Predicated region
    $region34: #{forward.17} parent=1 // pred_check
      %p659 = pneg %p39
    $region35: #{forward.17} parent=1 // pred_check_branch
      %661 = sbr.rel (%p659) target = $region37
    $region36: #{forward.17} parent=1 // pred_region
      %v662 = vld [vmem:[#allocation2] sm:$0xff]
      %v663 = vld [vmem:[#allocation2 + $0x8] sm:$0xff]
      %v664 = vld [vmem:[#allocation2 + $0x10] sm:$0xff]
      %v665 = vld [vmem:[#allocation2 + $0x18] sm:$0xff]
      %v666 = vld [vmem:[#allocation2 + $0x20] sm:$0xff]
      %v667 = vld [vmem:[#allocation2 + $0x28] sm:$0xff]
      %v668 = vld [vmem:[#allocation2 + $0x30] sm:$0xff]
      %v669 = vld [vmem:[#allocation2 + $0x38] sm:$0xff]
      %v670 = vld [vmem:[%s2] sm:$0x3]
      %v672 = vperm.slane %v670, 0
      %v673 = vperm.slane %v670, 1
      %v676 = vadd.f32 %v662, %v672
      %v677 = vadd.f32 %v663, %v673
      %v678 = vadd.f32 %v664, %v672
      %v679 = vadd.f32 %v665, %v673
      %v680 = vadd.f32 %v666, %v672
      %v681 = vadd.f32 %v667, %v673
      %v682 = vadd.f32 %v668, %v672
      %v683 = vadd.f32 %v669, %v673
      %v684 = vld [vmem:[%s3] sm:$0xff]
      %v685 = vld [vmem:[%s3 + $0x8] sm:$0xff]
      %v686 = vld [vmem:[%s3 + $0x10] sm:$0xff]
      %v687 = vld [vmem:[%s3 + $0x18] sm:$0xff]
      %v688 = vunpack.c.l.bf16 %v684
      %v689 = vunpack.c.h.bf16 %v684
      %v690 = vunpack.c.l.bf16 %v685
      %v691 = vunpack.c.h.bf16 %v685
      %v692 = vunpack.c.l.bf16 %v686
      %v693 = vunpack.c.h.bf16 %v686
      %v694 = vunpack.c.l.bf16 %v687
      %v695 = vunpack.c.h.bf16 %v687
      %v696 = vadd.f32 %v676, %v688
      %v697 = vadd.f32 %v677, %v689
      %v698 = vadd.f32 %v678, %v690
      %v699 = vadd.f32 %v679, %v691
      %v700 = vadd.f32 %v680, %v692
      %v701 = vadd.f32 %v681, %v693
      %v702 = vadd.f32 %v682, %v694
      %v703 = vadd.f32 %v683, %v695
      %v704 = vadd.f32 %v696, %v697
      %705 = vadd.xlane.f32.xlu0 %v704
      %v706 = vpop.xlane.xlu0 %705
      %v707 = vadd.f32 %v698, %v699
      %708 = vadd.xlane.f32.xlu0 %v707
      %v709 = vpop.xlane.xlu0 %708
      %v710 = vadd.f32 %v700, %v701
      %711 = vadd.xlane.f32.xlu0 %v710
      %v712 = vpop.xlane.xlu0 %711
      %v713 = vadd.f32 %v702, %v703
      %714 = vadd.xlane.f32.xlu0 %v713
      %v715 = vpop.xlane.xlu0 %714
      %v716 = vrcp.pop 256.0
      %v717 = vmul.f32 256.0, %v716
      %v718 = vsub.f32 1.0, %v717
      %v719 = vmul.f32 %v716, %v718
      %v720 = vadd.f32 %v716, %v719
      %vm721 = vweird.f32 %v716
      %v722 = vsel %vm721, %v716, %v720
      %v723 = vmul.f32 %v706, %v722
      %v724 = vmul.f32 %v709, %v722
      %v725 = vmul.f32 %v712, %v722
      %v726 = vmul.f32 %v715, %v722
      %v727 = vsub.f32 %v696, %v723
      %v728 = vsub.f32 %v697, %v723
      %v729 = vsub.f32 %v698, %v724
      %v730 = vsub.f32 %v699, %v724
      %v731 = vsub.f32 %v700, %v725
      %v732 = vsub.f32 %v701, %v725
      %v733 = vsub.f32 %v702, %v726
      %v734 = vsub.f32 %v703, %v726
      %v735 = vmul.f32 %v727, %v727
      %v736 = vmul.f32 %v728, %v728
      %v737 = vmul.f32 %v729, %v729
      %v738 = vmul.f32 %v730, %v730
      %v739 = vmul.f32 %v731, %v731
      %v740 = vmul.f32 %v732, %v732
      %v741 = vmul.f32 %v733, %v733
      %v742 = vmul.f32 %v734, %v734
      %v743 = vadd.f32 %v735, %v736
      %744 = vadd.xlane.f32.xlu0 %v743
      %v745 = vpop.xlane.xlu0 %744
      %v746 = vadd.f32 %v737, %v738
      %747 = vadd.xlane.f32.xlu0 %v746
      %v748 = vpop.xlane.xlu0 %747
      %v749 = vadd.f32 %v739, %v740
      %750 = vadd.xlane.f32.xlu0 %v749
      %v751 = vpop.xlane.xlu0 %750
      %v752 = vadd.f32 %v741, %v742
      %753 = vadd.xlane.f32.xlu0 %v752
      %v754 = vpop.xlane.xlu0 %753
      %v755 = vmul.f32 %v745, %v722
      %v756 = vmul.f32 %v748, %v722
      %v757 = vmul.f32 %v751, %v722
      %v758 = vmul.f32 %v754, %v722
      %v759 = vadd.f32 %v755, 1e-05
      %v760 = vadd.f32 %v756, 1e-05
      %v761 = vadd.f32 %v757, 1e-05
      %v762 = vadd.f32 %v758, 1e-05
      %v763 = vrsqrt.pop %v759
      %v764 = vmul.f32 %v763, %v759
      %v765 = vmul.f32 %v764, %v763
      %v766 = vmul.f32 0.5, %v765
      %v767 = vsub.f32 1.5, %v766
      %v768 = vmul.f32 %v763, %v767
      %vm769 = vweird.f32 %v759
      %vm770 = vweird.f32 %v763
      %vm771 = vmor %vm769, %vm770
      %v772 = vsel %vm771, %v763, %v768
      %v773 = vrsqrt.pop %v760
      %v774 = vmul.f32 %v773, %v760
      %v775 = vmul.f32 %v774, %v773
      %v776 = vmul.f32 0.5, %v775
      %v777 = vsub.f32 1.5, %v776
      %v778 = vmul.f32 %v773, %v777
      %vm779 = vweird.f32 %v760
      %vm780 = vweird.f32 %v773
      %vm781 = vmor %vm779, %vm780
      %v782 = vsel %vm781, %v773, %v778
      %v783 = vrsqrt.pop %v761
      %v784 = vmul.f32 %v783, %v761
      %v785 = vmul.f32 %v784, %v783
      %v786 = vmul.f32 0.5, %v785
      %v787 = vsub.f32 1.5, %v786
      %v788 = vmul.f32 %v783, %v787
      %vm789 = vweird.f32 %v761
      %vm790 = vweird.f32 %v783
      %vm791 = vmor %vm789, %vm790
      %v792 = vsel %vm791, %v783, %v788
      %v793 = vrsqrt.pop %v762
      %v794 = vmul.f32 %v793, %v762
      %v795 = vmul.f32 %v794, %v793
      %v796 = vmul.f32 0.5, %v795
      %v797 = vsub.f32 1.5, %v796
      %v798 = vmul.f32 %v793, %v797
      %vm799 = vweird.f32 %v762
      %vm800 = vweird.f32 %v793
      %vm801 = vmor %vm799, %vm800
      %v802 = vsel %vm801, %v793, %v798
      %v803 = vmul.f32 %v727, %v772
      %v804 = vmul.f32 %v728, %v772
      %v805 = vmul.f32 %v729, %v782
      %v806 = vmul.f32 %v730, %v782
      %v807 = vmul.f32 %v731, %v792
      %v808 = vmul.f32 %v732, %v792
      %v809 = vmul.f32 %v733, %v802
      %v810 = vmul.f32 %v734, %v802
      %v811 = vld [vmem:[%s4] sm:$0x3]
      %v813 = vperm.slane %v811, 0
      %v814 = vperm.slane %v811, 1
      %v817 = vmul.f32 %v803, %v813
      %v818 = vmul.f32 %v804, %v814
      %v819 = vmul.f32 %v805, %v813
      %v820 = vmul.f32 %v806, %v814
      %v821 = vmul.f32 %v807, %v813
      %v822 = vmul.f32 %v808, %v814
      %v823 = vmul.f32 %v809, %v813
      %v824 = vmul.f32 %v810, %v814
      %v825 = vld [vmem:[%s5] sm:$0x3]
      %v827 = vperm.slane %v825, 0
      %v828 = vperm.slane %v825, 1
      %v831 = vadd.f32 %v817, %v827
      %v832 = vadd.f32 %v818, %v828
      %v833 = vadd.f32 %v819, %v827
      %v834 = vadd.f32 %v820, %v828
      %v835 = vadd.f32 %v821, %v827
      %v836 = vadd.f32 %v822, %v828
      %v837 = vadd.f32 %v823, %v827
      %v838 = vadd.f32 %v824, %v828
      %v839 = vpack.c.bf16 %v832, %v831
      %v840 = vpack.c.bf16 %v834, %v833
      %v841 = vpack.c.bf16 %v836, %v835
      %v842 = vpack.c.bf16 %v838, %v837
      %843 = vst [vmem:[%s6] sm:$0xff] %v839
      %844 = vst [vmem:[%s6 + $0x8] sm:$0xff] %v840
      %845 = vst [vmem:[%s6 + $0x10] sm:$0xff] %v841
      %846 = vst [vmem:[%s6 + $0x18] sm:$0xff] %v842
    $region37: #{forward.17} parent=1 // pred_fallthru
      _
    // Predicated region
    $region38: #{forward.17} parent=1 // pred_check
      _
    $region39: #{forward.17} parent=1 // pred_check_branch
      %848 = sbr.rel (0) target = $region41
    $region40: #{forward.17} parent=1 // pred_region
      _
    $region41: #{forward.17} parent=1 // pred_fallthru
      _
    // Predicated region
    $region42: #{forward.17} parent=1 // pred_check
      _
    $region43: #{forward.17} parent=1 // pred_check_branch
      %850 = sbr.rel (0) target = $region45
    $region44: #{forward.17} parent=1 // pred_region
      _
    $region45: #{forward.17} parent=1 // pred_fallthru
      _
    %851 = vsyncpa [#allocation4], 1

// kernel: forward.20
$region0: #{forward.20}
  #allocation0 [shape = 'u32[]', space=smem, size = 0x4, offset = 0x4, fixed_abs, tag = 'smem constant byte address 0x4 - core index']
  #allocation1 [shape = 'u32[72,128]{1,0:T(1,128)}', space=vmem, size = 0x9000, scoped, tag = 'internal scratch']
  #allocation2 [shape = 'f32[32,256]{1,0:T(8,128)}', space=vmem, size = 0x8000, scoped, tag = 'scratch operand']
  %s0 = inlined_call_operand.vmem [shape: bf16[32,256], index: 0, kind: input, shape index: {}]
  %s1 = inlined_call_operand.hbm [shape: bf16[256,256], index: 1, kind: input, shape index: {}]
  %s2 = inlined_call_operand.vmem [shape: f32[1,256], index: 2, kind: input, shape index: {}]
  %s3 = inlined_call_operand.vmem [shape: bf16[32,256], index: 3, kind: input, shape index: {}]
  %s4 = inlined_call_operand.vmem [shape: f32[1,256], index: 4, kind: input, shape index: {}]
  %s5 = inlined_call_operand.vmem [shape: f32[1,256], index: 5, kind: input, shape index: {}]
  %s6 = inlined_call_operand.vmem [shape: bf16[32,256], index: 6, kind: output, shape index: {}]
  %s7 = sld [smem:[#allocation0]]
  $region46: #{forward.20} parent=0
    _
  %s9 = ssub.s32 1, %s7
  %s10 = scalar_select 0, %s9, %s7
  $region1: #{forward.20} parent=0
    #allocation3 [shape = 'u8[131072]{0}', space=vmem, size = 0x20000, scoped, tag = 'input window, operand 1, single buffered']
    #allocation4 [shape = 's32[1]{0}', space=sflag, size = 0x4, scoped, tag = 'scoped memory for forward.20']
    %11 = vsyncpa [#allocation4], 0
    // Predicated region
    $region2: #{forward.20} parent=1 // pred_check
      _
    $region3: #{forward.20} parent=1 // pred_check_branch
      %13 = sbr.rel (0) target = $region5
    $region4: #{forward.20} parent=1 // pred_region
      _
    $region5: #{forward.20} parent=1 // pred_fallthru
      _
    // Predicated region
    $region6: #{forward.20} parent=1 // pred_check
      _
    $region7: #{forward.20} parent=1 // pred_check_branch
      %15 = sbr.rel (0) target = $region9
    $region8: #{forward.20} parent=1 // pred_region
      %17 = vsyncadd [#allocation4], 0
      %s18 = sshll.u32 %s1, 4
      %s19 = int_to_ptr.hbm [resolvable:$true] %s18
      %s20 = sshll.u32 [#allocation3], 4
      %s21 = int_to_ptr.vmem [resolvable:$true] %s20
      %26 = dma.hbm_to_vmem [thread:$0]  %s19, 4096, %s21, [#allocation4], 128, 128, 8
    $region9: #{forward.20} parent=1 // pred_fallthru
      _
    // Predicated region
    $region10: #{forward.20} parent=1 // pred_check
      _
    $region11: #{forward.20} parent=1 // pred_check_branch
      %28 = sbr.rel (0) target = $region13
    $region12: #{forward.20} parent=1 // pred_region
      _
    $region13: #{forward.20} parent=1 // pred_fallthru
      _
    // Predicated region
    $region14: #{forward.20} parent=1 // pred_check
      _
    $region15: #{forward.20} parent=1 // pred_check_branch
      %30 = sbr.rel (0) target = $region17
    $region16: #{forward.20} parent=1 // pred_region
      _
    $region17: #{forward.20} parent=1 // pred_fallthru
      _
    // Predicated region
    $region18: #{forward.20} parent=1 // pred_check
      _
    $region19: #{forward.20} parent=1 // pred_check_branch
      %32 = sbr.rel (0) target = $region21
    $region20: #{forward.20} parent=1 // pred_region
      _
    $region21: #{forward.20} parent=1 // pred_fallthru
      _
    // Predicated region
    $region22: #{forward.20} parent=1 // pred_check
      _
    $region23: #{forward.20} parent=1 // pred_check_branch
      %34 = sbr.rel (0) target = $region25
    $region24: #{forward.20} parent=1 // pred_region
      _
    $region25: #{forward.20} parent=1 // pred_fallthru
      _
    // Predicated region
    $region26: #{forward.20} parent=1 // pred_check
      _
    $region27: #{forward.20} parent=1 // pred_check_branch
      %36 = sbr.rel (0) target = $region29
    $region28: #{forward.20} parent=1 // pred_region
      %38 = dma.done [#allocation4], 4096
    $region29: #{forward.20} parent=1 // pred_fallthru
      _
    %p39 = scmp.eq.s32.totalorder 0, 0
    // Predicated region
    $region30: #{forward.20} parent=1 // pred_check
      %p40 = pneg %p39
    $region31: #{forward.20} parent=1 // pred_check_branch
      %42 = sbr.rel (%p40) target = $region33
    $region32: #{forward.20} parent=1 // pred_region
      %43 = vst [vmem:[#allocation2] sm:$0xff] 0.0
      %44 = vst [vmem:[#allocation2 + $0x8] sm:$0xff] 0.0
      %45 = vst [vmem:[#allocation2 + $0x10] sm:$0xff] 0.0
      %46 = vst [vmem:[#allocation2 + $0x18] sm:$0xff] 0.0
      %47 = vst [vmem:[#allocation2 + $0x20] sm:$0xff] 0.0
      %48 = vst [vmem:[#allocation2 + $0x28] sm:$0xff] 0.0
      %49 = vst [vmem:[#allocation2 + $0x30] sm:$0xff] 0.0
      %50 = vst [vmem:[#allocation2 + $0x38] sm:$0xff] 0.0
    $region33: #{forward.20} parent=1 // pred_fallthru
      _
    %v51 = vld [vmem:[#allocation2] sm:$0xff]
    %v52 = vld [vmem:[#allocation2 + $0x8] sm:$0xff]
    %v53 = vld [vmem:[#allocation2 + $0x10] sm:$0xff]
    %v54 = vld [vmem:[#allocation2 + $0x18] sm:$0xff]
    %v55 = vld [vmem:[#allocation2 + $0x20] sm:$0xff]
    %v56 = vld [vmem:[#allocation2 + $0x28] sm:$0xff]
    %v57 = vld [vmem:[#allocation2 + $0x30] sm:$0xff]
    %v58 = vld [vmem:[#allocation2 + $0x38] sm:$0xff]
    %v59 = vld [vmem:[%s0] sm:$0xff]
    %v60 = vld [vmem:[%s0 + $0x8] sm:$0xff]
    %v61 = vld [vmem:[%s0 + $0x10] sm:$0xff]
    %v62 = vld [vmem:[%s0 + $0x18] sm:$0xff]
    %v63 = vld [vmem:[#allocation3] sm:$0xff]
    %v64 = vld [vmem:[#allocation3 + $0x8] sm:$0xff]
    %v65 = vld [vmem:[#allocation3 + $0x10] sm:$0xff]
    %v66 = vld [vmem:[#allocation3 + $0x18] sm:$0xff]
    %v67 = vld [vmem:[#allocation3 + $0x20] sm:$0xff]
    %v68 = vld [vmem:[#allocation3 + $0x28] sm:$0xff]
    %v69 = vld [vmem:[#allocation3 + $0x30] sm:$0xff]
    %v70 = vld [vmem:[#allocation3 + $0x38] sm:$0xff]
    %v71 = vld [vmem:[#allocation3 + $0x40] sm:$0xff]
    %v72 = vld [vmem:[#allocation3 + $0x48] sm:$0xff]
    %v73 = vld [vmem:[#allocation3 + $0x50] sm:$0xff]
    %v74 = vld [vmem:[#allocation3 + $0x58] sm:$0xff]
    %v75 = vld [vmem:[#allocation3 + $0x60] sm:$0xff]
    %v76 = vld [vmem:[#allocation3 + $0x68] sm:$0xff]
    %v77 = vld [vmem:[#allocation3 + $0x70] sm:$0xff]
    %v78 = vld [vmem:[#allocation3 + $0x78] sm:$0xff]
    %v79 = vld [vmem:[#allocation3 + $0x80] sm:$0xff]
    %v80 = vld [vmem:[#allocation3 + $0x88] sm:$0xff]
    %v81 = vld [vmem:[#allocation3 + $0x90] sm:$0xff]
    %v82 = vld [vmem:[#allocation3 + $0x98] sm:$0xff]
    %v83 = vld [vmem:[#allocation3 + $0xa0] sm:$0xff]
    %v84 = vld [vmem:[#allocation3 + $0xa8] sm:$0xff]
    %v85 = vld [vmem:[#allocation3 + $0xb0] sm:$0xff]
    %v86 = vld [vmem:[#allocation3 + $0xb8] sm:$0xff]
    %v87 = vld [vmem:[#allocation3 + $0xc0] sm:$0xff]
    %v88 = vld [vmem:[#allocation3 + $0xc8] sm:$0xff]
    %v89 = vld [vmem:[#allocation3 + $0xd0] sm:$0xff]
    %v90 = vld [vmem:[#allocation3 + $0xd8] sm:$0xff]
    %v91 = vld [vmem:[#allocation3 + $0xe0] sm:$0xff]
    %v92 = vld [vmem:[#allocation3 + $0xe8] sm:$0xff]
    %v93 = vld [vmem:[#allocation3 + $0xf0] sm:$0xff]
    %v94 = vld [vmem:[#allocation3 + $0xf8] sm:$0xff]
    %v99 = vunpack.c.l.b16 %v59
    %v100 = vunpack.c.h.b16 %v59
    %v101 = vunpack.c.l.b16 %v60
    %v102 = vunpack.c.h.b16 %v60
    %v103 = vunpack.c.l.b16 %v61
    %v104 = vunpack.c.h.b16 %v61
    %v105 = vunpack.c.l.b16 %v62
    %v106 = vunpack.c.h.b16 %v62
    %v107 = vpack.c.b16 %v101, %v99
    %v108 = vpack.c.b16 %v102, %v100
    %v109 = vpack.c.b16 %v105, %v103
    %v110 = vpack.c.b16 %v106, %v104
    %v147 = vunpack.c.l.b16 %v63
    %v148 = vunpack.c.h.b16 %v63
    %v149 = vunpack.c.l.b16 %v64
    %v150 = vunpack.c.h.b16 %v64
    %v151 = vunpack.c.l.b16 %v65
    %v152 = vunpack.c.h.b16 %v65
    %v153 = vunpack.c.l.b16 %v66
    %v154 = vunpack.c.h.b16 %v66
    %v155 = vunpack.c.l.b16 %v67
    %v156 = vunpack.c.h.b16 %v67
    %v157 = vunpack.c.l.b16 %v68
    %v158 = vunpack.c.h.b16 %v68
    %v159 = vunpack.c.l.b16 %v69
    %v160 = vunpack.c.h.b16 %v69
    %v161 = vunpack.c.l.b16 %v70
    %v162 = vunpack.c.h.b16 %v70
    %v163 = vunpack.c.l.b16 %v71
    %v164 = vunpack.c.h.b16 %v71
    %v165 = vunpack.c.l.b16 %v72
    %v166 = vunpack.c.h.b16 %v72
    %v167 = vunpack.c.l.b16 %v73
    %v168 = vunpack.c.h.b16 %v73
    %v169 = vunpack.c.l.b16 %v74
    %v170 = vunpack.c.h.b16 %v74
    %v171 = vunpack.c.l.b16 %v75
    %v172 = vunpack.c.h.b16 %v75
    %v173 = vunpack.c.l.b16 %v76
    %v174 = vunpack.c.h.b16 %v76
    %v175 = vunpack.c.l.b16 %v77
    %v176 = vunpack.c.h.b16 %v77
    %v177 = vunpack.c.l.b16 %v78
    %v178 = vunpack.c.h.b16 %v78
    %v179 = vunpack.c.l.b16 %v79
    %v180 = vunpack.c.h.b16 %v79
    %v181 = vunpack.c.l.b16 %v80
    %v182 = vunpack.c.h.b16 %v80
    %v183 = vunpack.c.l.b16 %v81
    %v184 = vunpack.c.h.b16 %v81
    %v185 = vunpack.c.l.b16 %v82
    %v186 = vunpack.c.h.b16 %v82
    %v187 = vunpack.c.l.b16 %v83
    %v188 = vunpack.c.h.b16 %v83
    %v189 = vunpack.c.l.b16 %v84
    %v190 = vunpack.c.h.b16 %v84
    %v191 = vunpack.c.l.b16 %v85
    %v192 = vunpack.c.h.b16 %v85
    %v193 = vunpack.c.l.b16 %v86
    %v194 = vunpack.c.h.b16 %v86
    %v195 = vunpack.c.l.b16 %v87
    %v196 = vunpack.c.h.b16 %v87
    %v197 = vunpack.c.l.b16 %v88
    %v198 = vunpack.c.h.b16 %v88
    %v199 = vunpack.c.l.b16 %v89
    %v200 = vunpack.c.h.b16 %v89
    %v201 = vunpack.c.l.b16 %v90
    %v202 = vunpack.c.h.b16 %v90
    %v203 = vunpack.c.l.b16 %v91
    %v204 = vunpack.c.h.b16 %v91
    %v205 = vunpack.c.l.b16 %v92
    %v206 = vunpack.c.h.b16 %v92
    %v207 = vunpack.c.l.b16 %v93
    %v208 = vunpack.c.h.b16 %v93
    %v209 = vunpack.c.l.b16 %v94
    %v210 = vunpack.c.h.b16 %v94
    %v211 = vpack.c.b16 %v149, %v147
    %v212 = vpack.c.b16 %v150, %v148
    %v213 = vpack.c.b16 %v153, %v151
    %v214 = vpack.c.b16 %v154, %v152
    %v215 = vpack.c.b16 %v157, %v155
    %v216 = vpack.c.b16 %v158, %v156
    %v217 = vpack.c.b16 %v161, %v159
    %v218 = vpack.c.b16 %v162, %v160
    %v219 = vpack.c.b16 %v165, %v163
    %v220 = vpack.c.b16 %v166, %v164
    %v221 = vpack.c.b16 %v169, %v167
    %v222 = vpack.c.b16 %v170, %v168
    %v223 = vpack.c.b16 %v173, %v171
    %v224 = vpack.c.b16 %v174, %v172
    %v225 = vpack.c.b16 %v177, %v175
    %v226 = vpack.c.b16 %v178, %v176
    %v227 = vpack.c.b16 %v181, %v179
    %v228 = vpack.c.b16 %v182, %v180
    %v229 = vpack.c.b16 %v185, %v183
    %v230 = vpack.c.b16 %v186, %v184
    %v231 = vpack.c.b16 %v189, %v187
    %v232 = vpack.c.b16 %v190, %v188
    %v233 = vpack.c.b16 %v193, %v191
    %v234 = vpack.c.b16 %v194, %v192
    %v235 = vpack.c.b16 %v197, %v195
    %v236 = vpack.c.b16 %v198, %v196
    %v237 = vpack.c.b16 %v201, %v199
    %v238 = vpack.c.b16 %v202, %v200
    %v239 = vpack.c.b16 %v205, %v203
    %v240 = vpack.c.b16 %v206, %v204
    %v241 = vpack.c.b16 %v209, %v207
    %v242 = vpack.c.b16 %v210, %v208
    %275 = vmatpush.bf16.msra.mxu0 %v225
    %276 = vmatpush.bf16.msra.mxu0 %v223
    %277 = vmatpush.bf16.msra.mxu0 %v221
    %278 = vmatpush.bf16.msra.mxu0 %v219
    %279 = vmatpush.bf16.msra.mxu0 %v217
    %280 = vmatpush.bf16.msra.mxu0 %v215
    %281 = vmatpush.bf16.msra.mxu0 %v213
    %282 = vmatpush.bf16.msra.mxu0 %v211
    %283 = vmatmul.bf16.gmra.mxu0 %v107
    %v284 = vpop.f32.mrf.mxu0
    %v285 = vadd.f32 0.0, %v284
    %v286 = vpop.f32.mrf.mxu0
    %v287 = vadd.f32 0.0, %v286
    %288 = vmatmul.bf16.gmra.mxu0 %v109
    %v289 = vpop.f32.mrf.mxu0
    %v290 = vadd.f32 0.0, %v289
    %v291 = vpop.f32.mrf.mxu0
    %v292 = vadd.f32 0.0, %v291
    %293 = vdwg.mxu0
    %294 = vmatpush.bf16.msra.mxu0 %v241
    %295 = vmatpush.bf16.msra.mxu0 %v239
    %296 = vmatpush.bf16.msra.mxu0 %v237
    %297 = vmatpush.bf16.msra.mxu0 %v235
    %298 = vmatpush.bf16.msra.mxu0 %v233
    %299 = vmatpush.bf16.msra.mxu0 %v231
    %300 = vmatpush.bf16.msra.mxu0 %v229
    %301 = vmatpush.bf16.msra.mxu0 %v227
    %302 = vmatmul.bf16.gmra.mxu0 %v108
    %v303 = vpop.f32.mrf.mxu0
    %v304 = vadd.f32 %v285, %v303
    %v305 = vpop.f32.mrf.mxu0
    %v306 = vadd.f32 %v287, %v305
    %307 = vmatmul.bf16.gmra.mxu0 %v110
    %v308 = vpop.f32.mrf.mxu0
    %v309 = vadd.f32 %v290, %v308
    %v310 = vpop.f32.mrf.mxu0
    %v311 = vadd.f32 %v292, %v310
    %312 = vdwg.mxu0
    %313 = vmatpush.bf16.msra.mxu0 %v226
    %314 = vmatpush.bf16.msra.mxu0 %v224
    %315 = vmatpush.bf16.msra.mxu0 %v222
    %316 = vmatpush.bf16.msra.mxu0 %v220
    %317 = vmatpush.bf16.msra.mxu0 %v218
    %318 = vmatpush.bf16.msra.mxu0 %v216
    %319 = vmatpush.bf16.msra.mxu0 %v214
    %320 = vmatpush.bf16.msra.mxu0 %v212
    %321 = vmatmul.bf16.gmra.mxu0 %v107
    %v322 = vpop.f32.mrf.mxu0
    %v323 = vadd.f32 0.0, %v322
    %v324 = vpop.f32.mrf.mxu0
    %v325 = vadd.f32 0.0, %v324
    %326 = vmatmul.bf16.gmra.mxu0 %v109
    %v327 = vpop.f32.mrf.mxu0
    %v328 = vadd.f32 0.0, %v327
    %v329 = vpop.f32.mrf.mxu0
    %v330 = vadd.f32 0.0, %v329
    %331 = vdwg.mxu0
    %332 = vmatpush.bf16.msra.mxu0 %v242
    %333 = vmatpush.bf16.msra.mxu0 %v240
    %334 = vmatpush.bf16.msra.mxu0 %v238
    %335 = vmatpush.bf16.msra.mxu0 %v236
    %336 = vmatpush.bf16.msra.mxu0 %v234
    %337 = vmatpush.bf16.msra.mxu0 %v232
    %338 = vmatpush.bf16.msra.mxu0 %v230
    %339 = vmatpush.bf16.msra.mxu0 %v228
    %340 = vmatmul.bf16.gmra.mxu0 %v108
    %v341 = vpop.f32.mrf.mxu0
    %v342 = vadd.f32 %v323, %v341
    %v343 = vpop.f32.mrf.mxu0
    %v344 = vadd.f32 %v325, %v343
    %345 = vmatmul.bf16.gmra.mxu0 %v110
    %v346 = vpop.f32.mrf.mxu0
    %v347 = vadd.f32 %v328, %v346
    %v348 = vpop.f32.mrf.mxu0
    %v349 = vadd.f32 %v330, %v348
    %350 = vdwg.mxu0
    %v351 = vadd.f32 %v51, %v304
    %v352 = vadd.f32 %v52, %v342
    %v353 = vadd.f32 %v53, %v306
    %v354 = vadd.f32 %v54, %v344
    %v355 = vadd.f32 %v55, %v309
    %v356 = vadd.f32 %v56, %v347
    %v357 = vadd.f32 %v57, %v311
    %v358 = vadd.f32 %v58, %v349
    %359 = vst [vmem:[#allocation2] sm:$0xff] %v351
    %360 = vst [vmem:[#allocation2 + $0x8] sm:$0xff] %v352
    %361 = vst [vmem:[#allocation2 + $0x10] sm:$0xff] %v353
    %362 = vst [vmem:[#allocation2 + $0x18] sm:$0xff] %v354
    %363 = vst [vmem:[#allocation2 + $0x20] sm:$0xff] %v355
    %364 = vst [vmem:[#allocation2 + $0x28] sm:$0xff] %v356
    %365 = vst [vmem:[#allocation2 + $0x30] sm:$0xff] %v357
    %366 = vst [vmem:[#allocation2 + $0x38] sm:$0xff] %v358
    // Predicated region
    $region34: #{forward.20} parent=1 // pred_check
      %p367 = pneg %p39
    $region35: #{forward.20} parent=1 // pred_check_branch
      %369 = sbr.rel (%p367) target = $region37
    $region36: #{forward.20} parent=1 // pred_region
      %v370 = vld [vmem:[#allocation2] sm:$0xff]
      %v371 = vld [vmem:[#allocation2 + $0x8] sm:$0xff]
      %v372 = vld [vmem:[#allocation2 + $0x10] sm:$0xff]
      %v373 = vld [vmem:[#allocation2 + $0x18] sm:$0xff]
      %v374 = vld [vmem:[#allocation2 + $0x20] sm:$0xff]
      %v375 = vld [vmem:[#allocation2 + $0x28] sm:$0xff]
      %v376 = vld [vmem:[#allocation2 + $0x30] sm:$0xff]
      %v377 = vld [vmem:[#allocation2 + $0x38] sm:$0xff]
      %v378 = vld [vmem:[%s2] sm:$0x3]
      %v380 = vperm.slane %v378, 0
      %v381 = vperm.slane %v378, 1
      %v384 = vadd.f32 %v370, %v380
      %v385 = vadd.f32 %v371, %v381
      %v386 = vadd.f32 %v372, %v380
      %v387 = vadd.f32 %v373, %v381
      %v388 = vadd.f32 %v374, %v380
      %v389 = vadd.f32 %v375, %v381
      %v390 = vadd.f32 %v376, %v380
      %v391 = vadd.f32 %v377, %v381
      %v392 = vld [vmem:[%s3] sm:$0xff]
      %v393 = vld [vmem:[%s3 + $0x8] sm:$0xff]
      %v394 = vld [vmem:[%s3 + $0x10] sm:$0xff]
      %v395 = vld [vmem:[%s3 + $0x18] sm:$0xff]
      %v396 = vunpack.c.l.bf16 %v392
      %v397 = vunpack.c.h.bf16 %v392
      %v398 = vunpack.c.l.bf16 %v393
      %v399 = vunpack.c.h.bf16 %v393
      %v400 = vunpack.c.l.bf16 %v394
      %v401 = vunpack.c.h.bf16 %v394
      %v402 = vunpack.c.l.bf16 %v395
      %v403 = vunpack.c.h.bf16 %v395
      %v404 = vadd.f32 %v384, %v396
      %v405 = vadd.f32 %v385, %v397
      %v406 = vadd.f32 %v386, %v398
      %v407 = vadd.f32 %v387, %v399
      %v408 = vadd.f32 %v388, %v400
      %v409 = vadd.f32 %v389, %v401
      %v410 = vadd.f32 %v390, %v402
      %v411 = vadd.f32 %v391, %v403
      %v412 = vadd.f32 %v404, %v405
      %413 = vadd.xlane.f32.xlu0 %v412
      %v414 = vpop.xlane.xlu0 %413
      %v415 = vadd.f32 %v406, %v407
      %416 = vadd.xlane.f32.xlu0 %v415
      %v417 = vpop.xlane.xlu0 %416
      %v418 = vadd.f32 %v408, %v409
      %419 = vadd.xlane.f32.xlu0 %v418
      %v420 = vpop.xlane.xlu0 %419
      %v421 = vadd.f32 %v410, %v411
      %422 = vadd.xlane.f32.xlu0 %v421
      %v423 = vpop.xlane.xlu0 %422
      %v424 = vrcp.pop 256.0
      %v425 = vmul.f32 256.0, %v424
      %v426 = vsub.f32 1.0, %v425
      %v427 = vmul.f32 %v424, %v426
      %v428 = vadd.f32 %v424, %v427
      %vm429 = vweird.f32 %v424
      %v430 = vsel %vm429, %v424, %v428
      %v431 = vmul.f32 %v414, %v430
      %v432 = vmul.f32 %v417, %v430
      %v433 = vmul.f32 %v420, %v430
      %v434 = vmul.f32 %v423, %v430
      %v435 = vsub.f32 %v404, %v431
      %v436 = vsub.f32 %v405, %v431
      %v437 = vsub.f32 %v406, %v432
      %v438 = vsub.f32 %v407, %v432
      %v439 = vsub.f32 %v408, %v433
      %v440 = vsub.f32 %v409, %v433
      %v441 = vsub.f32 %v410, %v434
      %v442 = vsub.f32 %v411, %v434
      %v443 = vmul.f32 %v435, %v435
      %v444 = vmul.f32 %v436, %v436
      %v445 = vmul.f32 %v437, %v437
      %v446 = vmul.f32 %v438, %v438
      %v447 = vmul.f32 %v439, %v439
      %v448 = vmul.f32 %v440, %v440
      %v449 = vmul.f32 %v441, %v441
      %v450 = vmul.f32 %v442, %v442
      %v451 = vadd.f32 %v443, %v444
      %452 = vadd.xlane.f32.xlu0 %v451
      %v453 = vpop.xlane.xlu0 %452
      %v454 = vadd.f32 %v445, %v446
      %455 = vadd.xlane.f32.xlu0 %v454
      %v456 = vpop.xlane.xlu0 %455
      %v457 = vadd.f32 %v447, %v448
      %458 = vadd.xlane.f32.xlu0 %v457
      %v459 = vpop.xlane.xlu0 %458
      %v460 = vadd.f32 %v449, %v450
      %461 = vadd.xlane.f32.xlu0 %v460
      %v462 = vpop.xlane.xlu0 %461
      %v463 = vmul.f32 %v453, %v430
      %v464 = vmul.f32 %v456, %v430
      %v465 = vmul.f32 %v459, %v430
      %v466 = vmul.f32 %v462, %v430
      %v467 = vadd.f32 %v463, 1e-05
      %v468 = vadd.f32 %v464, 1e-05
      %v469 = vadd.f32 %v465, 1e-05
      %v470 = vadd.f32 %v466, 1e-05
      %v471 = vrsqrt.pop %v467
      %v472 = vmul.f32 %v471, %v467
      %v473 = vmul.f32 %v472, %v471
      %v474 = vmul.f32 0.5, %v473
      %v475 = vsub.f32 1.5, %v474
      %v476 = vmul.f32 %v471, %v475
      %vm477 = vweird.f32 %v467
      %vm478 = vweird.f32 %v471
      %vm479 = vmor %vm477, %vm478
      %v480 = vsel %vm479, %v471, %v476
      %v481 = vrsqrt.pop %v468
      %v482 = vmul.f32 %v481, %v468
      %v483 = vmul.f32 %v482, %v481
      %v484 = vmul.f32 0.5, %v483
      %v485 = vsub.f32 1.5, %v484
      %v486 = vmul.f32 %v481, %v485
      %vm487 = vweird.f32 %v468
      %vm488 = vweird.f32 %v481
      %vm489 = vmor %vm487, %vm488
      %v490 = vsel %vm489, %v481, %v486
      %v491 = vrsqrt.pop %v469
      %v492 = vmul.f32 %v491, %v469
      %v493 = vmul.f32 %v492, %v491
      %v494 = vmul.f32 0.5, %v493
      %v495 = vsub.f32 1.5, %v494
      %v496 = vmul.f32 %v491, %v495
      %vm497 = vweird.f32 %v469
      %vm498 = vweird.f32 %v491
      %vm499 = vmor %vm497, %vm498
      %v500 = vsel %vm499, %v491, %v496
      %v501 = vrsqrt.pop %v470
      %v502 = vmul.f32 %v501, %v470
      %v503 = vmul.f32 %v502, %v501
      %v504 = vmul.f32 0.5, %v503
      %v505 = vsub.f32 1.5, %v504
      %v506 = vmul.f32 %v501, %v505
      %vm507 = vweird.f32 %v470
      %vm508 = vweird.f32 %v501
      %vm509 = vmor %vm507, %vm508
      %v510 = vsel %vm509, %v501, %v506
      %v511 = vmul.f32 %v435, %v480
      %v512 = vmul.f32 %v436, %v480
      %v513 = vmul.f32 %v437, %v490
      %v514 = vmul.f32 %v438, %v490
      %v515 = vmul.f32 %v439, %v500
      %v516 = vmul.f32 %v440, %v500
      %v517 = vmul.f32 %v441, %v510
      %v518 = vmul.f32 %v442, %v510
      %v519 = vld [vmem:[%s4] sm:$0x3]
      %v521 = vperm.slane %v519, 0
      %v522 = vperm.slane %v519, 1
      %v525 = vmul.f32 %v511, %v521
      %v526 = vmul.f32 %v512, %v522
      %v527 = vmul.f32 %v513, %v521
      %v528 = vmul.f32 %v514, %v522
      %v529 = vmul.f32 %v515, %v521
      %v530 = vmul.f32 %v516, %v522
      %v531 = vmul.f32 %v517, %v521
      %v532 = vmul.f32 %v518, %v522
      %v533 = vld [vmem:[%s5] sm:$0x3]
      %v535 = vperm.slane %v533, 0
      %v536 = vperm.slane %v533, 1
      %v539 = vadd.f32 %v525, %v535
      %v540 = vadd.f32 %v526, %v536
      %v541 = vadd.f32 %v527, %v535
      %v542 = vadd.f32 %v528, %v536
      %v543 = vadd.f32 %v529, %v535
      %v544 = vadd.f32 %v530, %v536
      %v545 = vadd.f32 %v531, %v535
      %v546 = vadd.f32 %v532, %v536
      %v547 = vpack.c.bf16 %v540, %v539
      %v548 = vpack.c.bf16 %v542, %v541
      %v549 = vpack.c.bf16 %v544, %v543
      %v550 = vpack.c.bf16 %v546, %v545
      %551 = vst [vmem:[%s6] sm:$0xff] %v547
      %552 = vst [vmem:[%s6 + $0x8] sm:$0xff] %v548
      %553 = vst [vmem:[%s6 + $0x10] sm:$0xff] %v549
      %554 = vst [vmem:[%s6 + $0x18] sm:$0xff] %v550
    $region37: #{forward.20} parent=1 // pred_fallthru
      _
    // Predicated region
    $region38: #{forward.20} parent=1 // pred_check
      _
    $region39: #{forward.20} parent=1 // pred_check_branch
      %556 = sbr.rel (0) target = $region41
    $region40: #{forward.20} parent=1 // pred_region
      _
    $region41: #{forward.20} parent=1 // pred_fallthru
      _
    // Predicated region
    $region42: #{forward.20} parent=1 // pred_check
      _
    $region43: #{forward.20} parent=1 // pred_check_branch
      %558 = sbr.rel (0) target = $region45
    $region44: #{forward.20} parent=1 // pred_region
      _
    $region45: #{forward.20} parent=1 // pred_fallthru
      _
    %559 = vsyncpa [#allocation4], 1

// kernel: forward.21
$region0: #{forward.21}
  #allocation0 [shape = 'u32[]', space=smem, size = 0x4, offset = 0x4, fixed_abs, tag = 'smem constant byte address 0x4 - core index']
  #allocation1 [shape = 'u32[72,128]{1,0:T(1,128)}', space=vmem, size = 0x9000, scoped, tag = 'internal scratch']
  #allocation2 [shape = 'f32[32,512]{1,0:T(8,128)}', space=vmem, size = 0x10000, scoped, tag = 'scratch operand']
  %s0 = inlined_call_operand.vmem [shape: bf16[32,256], index: 0, kind: input, shape index: {}]
  %s1 = inlined_call_operand.hbm [shape: bf16[256,512], index: 1, kind: input, shape index: {}]
  %s2 = inlined_call_operand.vmem [shape: f32[1,512], index: 2, kind: input, shape index: {}]
  %s3 = inlined_call_operand.vmem [shape: bf16[32,512], index: 3, kind: output, shape index: {}]
  %s4 = sld [smem:[#allocation0]]
  $region34: #{forward.21} parent=0
    _
  %s6 = ssub.s32 1, %s4
  %s7 = scalar_select 0, %s6, %s4
  $region1: #{forward.21} parent=0
    #allocation3 [shape = 'u8[262144]{0}', space=vmem, size = 0x40000, scoped, tag = 'input window, operand 1, single buffered']
    #allocation4 [shape = 's32[1]{0}', space=sflag, size = 0x4, scoped, tag = 'scoped memory for forward.21']
    %8 = vsyncpa [#allocation4], 0
    // Predicated region
    $region2: #{forward.21} parent=1 // pred_check
      _
    $region3: #{forward.21} parent=1 // pred_check_branch
      %10 = sbr.rel (0) target = $region5
    $region4: #{forward.21} parent=1 // pred_region
      _
    $region5: #{forward.21} parent=1 // pred_fallthru
      _
    // Predicated region
    $region6: #{forward.21} parent=1 // pred_check
      _
    $region7: #{forward.21} parent=1 // pred_check_branch
      %12 = sbr.rel (0) target = $region9
    $region8: #{forward.21} parent=1 // pred_region
      %14 = vsyncadd [#allocation4], 0
      %s15 = sshll.u32 %s1, 4
      %s16 = int_to_ptr.hbm [resolvable:$true] %s15
      %s17 = sshll.u32 [#allocation3], 4
      %s18 = int_to_ptr.vmem [resolvable:$true] %s17
      %23 = dma.hbm_to_vmem [thread:$0]  %s16, 8192, %s18, [#allocation4], 256, 256, 16
    $region9: #{forward.21} parent=1 // pred_fallthru
      _
    // Predicated region
    $region10: #{forward.21} parent=1 // pred_check
      _
    $region11: #{forward.21} parent=1 // pred_check_branch
      %25 = sbr.rel (0) target = $region13
    $region12: #{forward.21} parent=1 // pred_region
      _
    $region13: #{forward.21} parent=1 // pred_fallthru
      _
    // Predicated region
    $region14: #{forward.21} parent=1 // pred_check
      _
    $region15: #{forward.21} parent=1 // pred_check_branch
      %27 = sbr.rel (0) target = $region17
    $region16: #{forward.21} parent=1 // pred_region
      %29 = dma.done [#allocation4], 8192
    $region17: #{forward.21} parent=1 // pred_fallthru
      _
    %p30 = scmp.eq.s32.totalorder 0, 0
    // Predicated region
    $region18: #{forward.21} parent=1 // pred_check
      %p31 = pneg %p30
    $region19: #{forward.21} parent=1 // pred_check_branch
      %33 = sbr.rel (%p31) target = $region21
    $region20: #{forward.21} parent=1 // pred_region
      %34 = vst [vmem:[#allocation2] sm:$0xff] 0.0
      %35 = vst [vmem:[#allocation2 + $0x8] sm:$0xff] 0.0
      %36 = vst [vmem:[#allocation2 + $0x10] sm:$0xff] 0.0
      %37 = vst [vmem:[#allocation2 + $0x18] sm:$0xff] 0.0
      %38 = vst [vmem:[#allocation2 + $0x20] sm:$0xff] 0.0
      %39 = vst [vmem:[#allocation2 + $0x28] sm:$0xff] 0.0
      %40 = vst [vmem:[#allocation2 + $0x30] sm:$0xff] 0.0
      %41 = vst [vmem:[#allocation2 + $0x38] sm:$0xff] 0.0
      %42 = vst [vmem:[#allocation2 + $0x40] sm:$0xff] 0.0
      %43 = vst [vmem:[#allocation2 + $0x48] sm:$0xff] 0.0
      %44 = vst [vmem:[#allocation2 + $0x50] sm:$0xff] 0.0
      %45 = vst [vmem:[#allocation2 + $0x58] sm:$0xff] 0.0
      %46 = vst [vmem:[#allocation2 + $0x60] sm:$0xff] 0.0
      %47 = vst [vmem:[#allocation2 + $0x68] sm:$0xff] 0.0
      %48 = vst [vmem:[#allocation2 + $0x70] sm:$0xff] 0.0
      %49 = vst [vmem:[#allocation2 + $0x78] sm:$0xff] 0.0
    $region21: #{forward.21} parent=1 // pred_fallthru
      _
    %v50 = vld [vmem:[#allocation2] sm:$0xff]
    %v51 = vld [vmem:[#allocation2 + $0x8] sm:$0xff]
    %v52 = vld [vmem:[#allocation2 + $0x10] sm:$0xff]
    %v53 = vld [vmem:[#allocation2 + $0x18] sm:$0xff]
    %v54 = vld [vmem:[#allocation2 + $0x20] sm:$0xff]
    %v55 = vld [vmem:[#allocation2 + $0x28] sm:$0xff]
    %v56 = vld [vmem:[#allocation2 + $0x30] sm:$0xff]
    %v57 = vld [vmem:[#allocation2 + $0x38] sm:$0xff]
    %v58 = vld [vmem:[#allocation2 + $0x40] sm:$0xff]
    %v59 = vld [vmem:[#allocation2 + $0x48] sm:$0xff]
    %v60 = vld [vmem:[#allocation2 + $0x50] sm:$0xff]
    %v61 = vld [vmem:[#allocation2 + $0x58] sm:$0xff]
    %v62 = vld [vmem:[#allocation2 + $0x60] sm:$0xff]
    %v63 = vld [vmem:[#allocation2 + $0x68] sm:$0xff]
    %v64 = vld [vmem:[#allocation2 + $0x70] sm:$0xff]
    %v65 = vld [vmem:[#allocation2 + $0x78] sm:$0xff]
    %v66 = vld [vmem:[%s0] sm:$0xff]
    %v67 = vld [vmem:[%s0 + $0x8] sm:$0xff]
    %v68 = vld [vmem:[%s0 + $0x10] sm:$0xff]
    %v69 = vld [vmem:[%s0 + $0x18] sm:$0xff]
    %v70 = vld [vmem:[#allocation3] sm:$0xff]
    %v71 = vld [vmem:[#allocation3 + $0x8] sm:$0xff]
    %v72 = vld [vmem:[#allocation3 + $0x10] sm:$0xff]
    %v73 = vld [vmem:[#allocation3 + $0x18] sm:$0xff]
    %v74 = vld [vmem:[#allocation3 + $0x20] sm:$0xff]
    %v75 = vld [vmem:[#allocation3 + $0x28] sm:$0xff]
    %v76 = vld [vmem:[#allocation3 + $0x30] sm:$0xff]
    %v77 = vld [vmem:[#allocation3 + $0x38] sm:$0xff]
    %v78 = vld [vmem:[#allocation3 + $0x40] sm:$0xff]
    %v79 = vld [vmem:[#allocation3 + $0x48] sm:$0xff]
    %v80 = vld [vmem:[#allocation3 + $0x50] sm:$0xff]
    %v81 = vld [vmem:[#allocation3 + $0x58] sm:$0xff]
    %v82 = vld [vmem:[#allocation3 + $0x60] sm:$0xff]
    %v83 = vld [vmem:[#allocation3 + $0x68] sm:$0xff]
    %v84 = vld [vmem:[#allocation3 + $0x70] sm:$0xff]
    %v85 = vld [vmem:[#allocation3 + $0x78] sm:$0xff]
    %v86 = vld [vmem:[#allocation3 + $0x80] sm:$0xff]
    %v87 = vld [vmem:[#allocation3 + $0x88] sm:$0xff]
    %v88 = vld [vmem:[#allocation3 + $0x90] sm:$0xff]
    %v89 = vld [vmem:[#allocation3 + $0x98] sm:$0xff]
    %v90 = vld [vmem:[#allocation3 + $0xa0] sm:$0xff]
    %v91 = vld [vmem:[#allocation3 + $0xa8] sm:$0xff]
    %v92 = vld [vmem:[#allocation3 + $0xb0] sm:$0xff]
    %v93 = vld [vmem:[#allocation3 + $0xb8] sm:$0xff]
    %v94 = vld [vmem:[#allocation3 + $0xc0] sm:$0xff]
    %v95 = vld [vmem:[#allocation3 + $0xc8] sm:$0xff]
    %v96 = vld [vmem:[#allocation3 + $0xd0] sm:$0xff]
    %v97 = vld [vmem:[#allocation3 + $0xd8] sm:$0xff]
    %v98 = vld [vmem:[#allocation3 + $0xe0] sm:$0xff]
    %v99 = vld [vmem:[#allocation3 + $0xe8] sm:$0xff]
    %v100 = vld [vmem:[#allocation3 + $0xf0] sm:$0xff]
    %v101 = vld [vmem:[#allocation3 + $0xf8] sm:$0xff]
    %v102 = vld [vmem:[#allocation3 + $0x100] sm:$0xff]
    %v103 = vld [vmem:[#allocation3 + $0x108] sm:$0xff]
    %v104 = vld [vmem:[#allocation3 + $0x110] sm:$0xff]
    %v105 = vld [vmem:[#allocation3 + $0x118] sm:$0xff]
    %v106 = vld [vmem:[#allocation3 + $0x120] sm:$0xff]
    %v107 = vld [vmem:[#allocation3 + $0x128] sm:$0xff]
    %v108 = vld [vmem:[#allocation3 + $0x130] sm:$0xff]
    %v109 = vld [vmem:[#allocation3 + $0x138] sm:$0xff]
    %v110 = vld [vmem:[#allocation3 + $0x140] sm:$0xff]
    %v111 = vld [vmem:[#allocation3 + $0x148] sm:$0xff]
    %v112 = vld [vmem:[#allocation3 + $0x150] sm:$0xff]
    %v113 = vld [vmem:[#allocation3 + $0x158] sm:$0xff]
    %v114 = vld [vmem:[#allocation3 + $0x160] sm:$0xff]
    %v115 = vld [vmem:[#allocation3 + $0x168] sm:$0xff]
    %v116 = vld [vmem:[#allocation3 + $0x170] sm:$0xff]
    %v117 = vld [vmem:[#allocation3 + $0x178] sm:$0xff]
    %v118 = vld [vmem:[#allocation3 + $0x180] sm:$0xff]
    %v119 = vld [vmem:[#allocation3 + $0x188] sm:$0xff]
    %v120 = vld [vmem:[#allocation3 + $0x190] sm:$0xff]
    %v121 = vld [vmem:[#allocation3 + $0x198] sm:$0xff]
    %v122 = vld [vmem:[#allocation3 + $0x1a0] sm:$0xff]
    %v123 = vld [vmem:[#allocation3 + $0x1a8] sm:$0xff]
    %v124 = vld [vmem:[#allocation3 + $0x1b0] sm:$0xff]
    %v125 = vld [vmem:[#allocation3 + $0x1b8] sm:$0xff]
    %v126 = vld [vmem:[#allocation3 + $0x1c0] sm:$0xff]
    %v127 = vld [vmem:[#allocation3 + $0x1c8] sm:$0xff]
    %v128 = vld [vmem:[#allocation3 + $0x1d0] sm:$0xff]
    %v129 = vld [vmem:[#allocation3 + $0x1d8] sm:$0xff]
    %v130 = vld [vmem:[#allocation3 + $0x1e0] sm:$0xff]
    %v131 = vld [vmem:[#allocation3 + $0x1e8] sm:$0xff]
    %v132 = vld [vmem:[#allocation3 + $0x1f0] sm:$0xff]
    %v133 = vld [vmem:[#allocation3 + $0x1f8] sm:$0xff]
    %v138 = vunpack.c.l.b16 %v66
    %v139 = vunpack.c.h.b16 %v66
    %v140 = vunpack.c.l.b16 %v67
    %v141 = vunpack.c.h.b16 %v67
    %v142 = vunpack.c.l.b16 %v68
    %v143 = vunpack.c.h.b16 %v68
    %v144 = vunpack.c.l.b16 %v69
    %v145 = vunpack.c.h.b16 %v69
    %v146 = vpack.c.b16 %v140, %v138
    %v147 = vpack.c.b16 %v141, %v139
    %v148 = vpack.c.b16 %v144, %v142
    %v149 = vpack.c.b16 %v145, %v143
    %v218 = vunpack.c.l.b16 %v70
    %v219 = vunpack.c.h.b16 %v70
    %v220 = vunpack.c.l.b16 %v71
    %v221 = vunpack.c.h.b16 %v71
    %v222 = vunpack.c.l.b16 %v72
    %v223 = vunpack.c.h.b16 %v72
    %v224 = vunpack.c.l.b16 %v73
    %v225 = vunpack.c.h.b16 %v73
    %v226 = vunpack.c.l.b16 %v74
    %v227 = vunpack.c.h.b16 %v74
    %v228 = vunpack.c.l.b16 %v75
    %v229 = vunpack.c.h.b16 %v75
    %v230 = vunpack.c.l.b16 %v76
    %v231 = vunpack.c.h.b16 %v76
    %v232 = vunpack.c.l.b16 %v77
    %v233 = vunpack.c.h.b16 %v77
    %v234 = vunpack.c.l.b16 %v78
    %v235 = vunpack.c.h.b16 %v78
    %v236 = vunpack.c.l.b16 %v79
    %v237 = vunpack.c.h.b16 %v79
    %v238 = vunpack.c.l.b16 %v80
    %v239 = vunpack.c.h.b16 %v80
    %v240 = vunpack.c.l.b16 %v81
    %v241 = vunpack.c.h.b16 %v81
    %v242 = vunpack.c.l.b16 %v82
    %v243 = vunpack.c.h.b16 %v82
    %v244 = vunpack.c.l.b16 %v83
    %v245 = vunpack.c.h.b16 %v83
    %v246 = vunpack.c.l.b16 %v84
    %v247 = vunpack.c.h.b16 %v84
    %v248 = vunpack.c.l.b16 %v85
    %v249 = vunpack.c.h.b16 %v85
    %v250 = vunpack.c.l.b16 %v86
    %v251 = vunpack.c.h.b16 %v86
    %v252 = vunpack.c.l.b16 %v87
    %v253 = vunpack.c.h.b16 %v87
    %v254 = vunpack.c.l.b16 %v88
    %v255 = vunpack.c.h.b16 %v88
    %v256 = vunpack.c.l.b16 %v89
    %v257 = vunpack.c.h.b16 %v89
    %v258 = vunpack.c.l.b16 %v90
    %v259 = vunpack.c.h.b16 %v90
    %v260 = vunpack.c.l.b16 %v91
    %v261 = vunpack.c.h.b16 %v91
    %v262 = vunpack.c.l.b16 %v92
    %v263 = vunpack.c.h.b16 %v92
    %v264 = vunpack.c.l.b16 %v93
    %v265 = vunpack.c.h.b16 %v93
    %v266 = vunpack.c.l.b16 %v94
    %v267 = vunpack.c.h.b16 %v94
    %v268 = vunpack.c.l.b16 %v95
    %v269 = vunpack.c.h.b16 %v95
    %v270 = vunpack.c.l.b16 %v96
    %v271 = vunpack.c.h.b16 %v96
    %v272 = vunpack.c.l.b16 %v97
    %v273 = vunpack.c.h.b16 %v97
    %v274 = vunpack.c.l.b16 %v98
    %v275 = vunpack.c.h.b16 %v98
    %v276 = vunpack.c.l.b16 %v99
    %v277 = vunpack.c.h.b16 %v99
    %v278 = vunpack.c.l.b16 %v100
    %v279 = vunpack.c.h.b16 %v100
    %v280 = vunpack.c.l.b16 %v101
    %v281 = vunpack.c.h.b16 %v101
    %v282 = vunpack.c.l.b16 %v102
    %v283 = vunpack.c.h.b16 %v102
    %v284 = vunpack.c.l.b16 %v103
    %v285 = vunpack.c.h.b16 %v103
    %v286 = vunpack.c.l.b16 %v104
    %v287 = vunpack.c.h.b16 %v104
    %v288 = vunpack.c.l.b16 %v105
    %v289 = vunpack.c.h.b16 %v105
    %v290 = vunpack.c.l.b16 %v106
    %v291 = vunpack.c.h.b16 %v106
    %v292 = vunpack.c.l.b16 %v107
    %v293 = vunpack.c.h.b16 %v107
    %v294 = vunpack.c.l.b16 %v108
    %v295 = vunpack.c.h.b16 %v108
    %v296 = vunpack.c.l.b16 %v109
    %v297 = vunpack.c.h.b16 %v109
    %v298 = vunpack.c.l.b16 %v110
    %v299 = vunpack.c.h.b16 %v110
    %v300 = vunpack.c.l.b16 %v111
    %v301 = vunpack.c.h.b16 %v111
    %v302 = vunpack.c.l.b16 %v112
    %v303 = vunpack.c.h.b16 %v112
    %v304 = vunpack.c.l.b16 %v113
    %v305 = vunpack.c.h.b16 %v113
    %v306 = vunpack.c.l.b16 %v114
    %v307 = vunpack.c.h.b16 %v114
    %v308 = vunpack.c.l.b16 %v115
    %v309 = vunpack.c.h.b16 %v115
    %v310 = vunpack.c.l.b16 %v116
    %v311 = vunpack.c.h.b16 %v116
    %v312 = vunpack.c.l.b16 %v117
    %v313 = vunpack.c.h.b16 %v117
    %v314 = vunpack.c.l.b16 %v118
    %v315 = vunpack.c.h.b16 %v118
    %v316 = vunpack.c.l.b16 %v119
    %v317 = vunpack.c.h.b16 %v119
    %v318 = vunpack.c.l.b16 %v120
    %v319 = vunpack.c.h.b16 %v120
    %v320 = vunpack.c.l.b16 %v121
    %v321 = vunpack.c.h.b16 %v121
    %v322 = vunpack.c.l.b16 %v122
    %v323 = vunpack.c.h.b16 %v122
    %v324 = vunpack.c.l.b16 %v123
    %v325 = vunpack.c.h.b16 %v123
    %v326 = vunpack.c.l.b16 %v124
    %v327 = vunpack.c.h.b16 %v124
    %v328 = vunpack.c.l.b16 %v125
    %v329 = vunpack.c.h.b16 %v125
    %v330 = vunpack.c.l.b16 %v126
    %v331 = vunpack.c.h.b16 %v126
    %v332 = vunpack.c.l.b16 %v127
    %v333 = vunpack.c.h.b16 %v127
    %v334 = vunpack.c.l.b16 %v128
    %v335 = vunpack.c.h.b16 %v128
    %v336 = vunpack.c.l.b16 %v129
    %v337 = vunpack.c.h.b16 %v129
    %v338 = vunpack.c.l.b16 %v130
    %v339 = vunpack.c.h.b16 %v130
    %v340 = vunpack.c.l.b16 %v131
    %v341 = vunpack.c.h.b16 %v131
    %v342 = vunpack.c.l.b16 %v132
    %v343 = vunpack.c.h.b16 %v132
    %v344 = vunpack.c.l.b16 %v133
    %v345 = vunpack.c.h.b16 %v133
    %v346 = vpack.c.b16 %v222, %v218
    %v347 = vpack.c.b16 %v223, %v219
    %v348 = vpack.c.b16 %v224, %v220
    %v349 = vpack.c.b16 %v225, %v221
    %v350 = vpack.c.b16 %v230, %v226
    %v351 = vpack.c.b16 %v231, %v227
    %v352 = vpack.c.b16 %v232, %v228
    %v353 = vpack.c.b16 %v233, %v229
    %v354 = vpack.c.b16 %v238, %v234
    %v355 = vpack.c.b16 %v239, %v235
    %v356 = vpack.c.b16 %v240, %v236
    %v357 = vpack.c.b16 %v241, %v237
    %v358 = vpack.c.b16 %v246, %v242
    %v359 = vpack.c.b16 %v247, %v243
    %v360 = vpack.c.b16 %v248, %v244
    %v361 = vpack.c.b16 %v249, %v245
    %v362 = vpack.c.b16 %v254, %v250
    %v363 = vpack.c.b16 %v255, %v251
    %v364 = vpack.c.b16 %v256, %v252
    %v365 = vpack.c.b16 %v257, %v253
    %v366 = vpack.c.b16 %v262, %v258
    %v367 = vpack.c.b16 %v263, %v259
    %v368 = vpack.c.b16 %v264, %v260
    %v369 = vpack.c.b16 %v265, %v261
    %v370 = vpack.c.b16 %v270, %v266
    %v371 = vpack.c.b16 %v271, %v267
    %v372 = vpack.c.b16 %v272, %v268
    %v373 = vpack.c.b16 %v273, %v269
    %v374 = vpack.c.b16 %v278, %v274
    %v375 = vpack.c.b16 %v279, %v275
    %v376 = vpack.c.b16 %v280, %v276
    %v377 = vpack.c.b16 %v281, %v277
    %v378 = vpack.c.b16 %v286, %v282
    %v379 = vpack.c.b16 %v287, %v283
    %v380 = vpack.c.b16 %v288, %v284
    %v381 = vpack.c.b16 %v289, %v285
    %v382 = vpack.c.b16 %v294, %v290
    %v383 = vpack.c.b16 %v295, %v291
    %v384 = vpack.c.b16 %v296, %v292
    %v385 = vpack.c.b16 %v297, %v293
    %v386 = vpack.c.b16 %v302, %v298
    %v387 = vpack.c.b16 %v303, %v299
    %v388 = vpack.c.b16 %v304, %v300
    %v389 = vpack.c.b16 %v305, %v301
    %v390 = vpack.c.b16 %v310, %v306
    %v391 = vpack.c.b16 %v311, %v307
    %v392 = vpack.c.b16 %v312, %v308
    %v393 = vpack.c.b16 %v313, %v309
    %v394 = vpack.c.b16 %v318, %v314
    %v395 = vpack.c.b16 %v319, %v315
    %v396 = vpack.c.b16 %v320, %v316
    %v397 = vpack.c.b16 %v321, %v317
    %v398 = vpack.c.b16 %v326, %v322
    %v399 = vpack.c.b16 %v327, %v323
    %v400 = vpack.c.b16 %v328, %v324
    %v401 = vpack.c.b16 %v329, %v325
    %v402 = vpack.c.b16 %v334, %v330
    %v403 = vpack.c.b16 %v335, %v331
    %v404 = vpack.c.b16 %v336, %v332
    %v405 = vpack.c.b16 %v337, %v333
    %v406 = vpack.c.b16 %v342, %v338
    %v407 = vpack.c.b16 %v343, %v339
    %v408 = vpack.c.b16 %v344, %v340
    %v409 = vpack.c.b16 %v345, %v341
    %474 = vmatpush.bf16.msra.mxu0 %v374
    %475 = vmatpush.bf16.msra.mxu0 %v370
    %476 = vmatpush.bf16.msra.mxu0 %v366
    %477 = vmatpush.bf16.msra.mxu0 %v362
    %478 = vmatpush.bf16.msra.mxu0 %v358
    %479 = vmatpush.bf16.msra.mxu0 %v354
    %480 = vmatpush.bf16.msra.mxu0 %v350
    %481 = vmatpush.bf16.msra.mxu0 %v346
    %482 = vmatmul.bf16.gmra.mxu0 %v146
    %v483 = vpop.f32.mrf.mxu0
    %v484 = vadd.f32 0.0, %v483
    %v485 = vpop.f32.mrf.mxu0
    %v486 = vadd.f32 0.0, %v485
    %487 = vmatmul.bf16.gmra.mxu0 %v148
    %v488 = vpop.f32.mrf.mxu0
    %v489 = vadd.f32 0.0, %v488
    %v490 = vpop.f32.mrf.mxu0
    %v491 = vadd.f32 0.0, %v490
    %492 = vdwg.mxu0
    %493 = vmatpush.bf16.msra.mxu0 %v406
    %494 = vmatpush.bf16.msra.mxu0 %v402
    %495 = vmatpush.bf16.msra.mxu0 %v398
    %496 = vmatpush.bf16.msra.mxu0 %v394
    %497 = vmatpush.bf16.msra.mxu0 %v390
    %498 = vmatpush.bf16.msra.mxu0 %v386
    %499 = vmatpush.bf16.msra.mxu0 %v382
    %500 = vmatpush.bf16.msra.mxu0 %v378
    %501 = vmatmul.bf16.gmra.mxu0 %v147
    %v502 = vpop.f32.mrf.mxu0
    %v503 = vadd.f32 %v484, %v502
    %v504 = vpop.f32.mrf.mxu0
    %v505 = vadd.f32 %v486, %v504
    %506 = vmatmul.bf16.gmra.mxu0 %v149
    %v507 = vpop.f32.mrf.mxu0
    %v508 = vadd.f32 %v489, %v507
    %v509 = vpop.f32.mrf.mxu0
    %v510 = vadd.f32 %v491, %v509
    %511 = vdwg.mxu0
    %512 = vmatpush.bf16.msra.mxu0 %v375
    %513 = vmatpush.bf16.msra.mxu0 %v371
    %514 = vmatpush.bf16.msra.mxu0 %v367
    %515 = vmatpush.bf16.msra.mxu0 %v363
    %516 = vmatpush.bf16.msra.mxu0 %v359
    %517 = vmatpush.bf16.msra.mxu0 %v355
    %518 = vmatpush.bf16.msra.mxu0 %v351
    %519 = vmatpush.bf16.msra.mxu0 %v347
    %520 = vmatmul.bf16.gmra.mxu0 %v146
    %v521 = vpop.f32.mrf.mxu0
    %v522 = vadd.f32 0.0, %v521
    %v523 = vpop.f32.mrf.mxu0
    %v524 = vadd.f32 0.0, %v523
    %525 = vmatmul.bf16.gmra.mxu0 %v148
    %v526 = vpop.f32.mrf.mxu0
    %v527 = vadd.f32 0.0, %v526
    %v528 = vpop.f32.mrf.mxu0
    %v529 = vadd.f32 0.0, %v528
    %530 = vdwg.mxu0
    %531 = vmatpush.bf16.msra.mxu0 %v407
    %532 = vmatpush.bf16.msra.mxu0 %v403
    %533 = vmatpush.bf16.msra.mxu0 %v399
    %534 = vmatpush.bf16.msra.mxu0 %v395
    %535 = vmatpush.bf16.msra.mxu0 %v391
    %536 = vmatpush.bf16.msra.mxu0 %v387
    %537 = vmatpush.bf16.msra.mxu0 %v383
    %538 = vmatpush.bf16.msra.mxu0 %v379
    %539 = vmatmul.bf16.gmra.mxu0 %v147
    %v540 = vpop.f32.mrf.mxu0
    %v541 = vadd.f32 %v522, %v540
    %v542 = vpop.f32.mrf.mxu0
    %v543 = vadd.f32 %v524, %v542
    %544 = vmatmul.bf16.gmra.mxu0 %v149
    %v545 = vpop.f32.mrf.mxu0
    %v546 = vadd.f32 %v527, %v545
    %v547 = vpop.f32.mrf.mxu0
    %v548 = vadd.f32 %v529, %v547
    %549 = vdwg.mxu0
    %550 = vmatpush.bf16.msra.mxu0 %v376
    %551 = vmatpush.bf16.msra.mxu0 %v372
    %552 = vmatpush.bf16.msra.mxu0 %v368
    %553 = vmatpush.bf16.msra.mxu0 %v364
    %554 = vmatpush.bf16.msra.mxu0 %v360
    %555 = vmatpush.bf16.msra.mxu0 %v356
    %556 = vmatpush.bf16.msra.mxu0 %v352
    %557 = vmatpush.bf16.msra.mxu0 %v348
    %558 = vmatmul.bf16.gmra.mxu0 %v146
    %v559 = vpop.f32.mrf.mxu0
    %v560 = vadd.f32 0.0, %v559
    %v561 = vpop.f32.mrf.mxu0
    %v562 = vadd.f32 0.0, %v561
    %563 = vmatmul.bf16.gmra.mxu0 %v148
    %v564 = vpop.f32.mrf.mxu0
    %v565 = vadd.f32 0.0, %v564
    %v566 = vpop.f32.mrf.mxu0
    %v567 = vadd.f32 0.0, %v566
    %568 = vdwg.mxu0
    %569 = vmatpush.bf16.msra.mxu0 %v408
    %570 = vmatpush.bf16.msra.mxu0 %v404
    %571 = vmatpush.bf16.msra.mxu0 %v400
    %572 = vmatpush.bf16.msra.mxu0 %v396
    %573 = vmatpush.bf16.msra.mxu0 %v392
    %574 = vmatpush.bf16.msra.mxu0 %v388
    %575 = vmatpush.bf16.msra.mxu0 %v384
    %576 = vmatpush.bf16.msra.mxu0 %v380
    %577 = vmatmul.bf16.gmra.mxu0 %v147
    %v578 = vpop.f32.mrf.mxu0
    %v579 = vadd.f32 %v560, %v578
    %v580 = vpop.f32.mrf.mxu0
    %v581 = vadd.f32 %v562, %v580
    %582 = vmatmul.bf16.gmra.mxu0 %v149
    %v583 = vpop.f32.mrf.mxu0
    %v584 = vadd.f32 %v565, %v583
    %v585 = vpop.f32.mrf.mxu0
    %v586 = vadd.f32 %v567, %v585
    %587 = vdwg.mxu0
    %588 = vmatpush.bf16.msra.mxu0 %v377
    %589 = vmatpush.bf16.msra.mxu0 %v373
    %590 = vmatpush.bf16.msra.mxu0 %v369
    %591 = vmatpush.bf16.msra.mxu0 %v365
    %592 = vmatpush.bf16.msra.mxu0 %v361
    %593 = vmatpush.bf16.msra.mxu0 %v357
    %594 = vmatpush.bf16.msra.mxu0 %v353
    %595 = vmatpush.bf16.msra.mxu0 %v349
    %596 = vmatmul.bf16.gmra.mxu0 %v146
    %v597 = vpop.f32.mrf.mxu0
    %v598 = vadd.f32 0.0, %v597
    %v599 = vpop.f32.mrf.mxu0
    %v600 = vadd.f32 0.0, %v599
    %601 = vmatmul.bf16.gmra.mxu0 %v148
    %v602 = vpop.f32.mrf.mxu0
    %v603 = vadd.f32 0.0, %v602
    %v604 = vpop.f32.mrf.mxu0
    %v605 = vadd.f32 0.0, %v604
    %606 = vdwg.mxu0
    %607 = vmatpush.bf16.msra.mxu0 %v409
    %608 = vmatpush.bf16.msra.mxu0 %v405
    %609 = vmatpush.bf16.msra.mxu0 %v401
    %610 = vmatpush.bf16.msra.mxu0 %v397
    %611 = vmatpush.bf16.msra.mxu0 %v393
    %612 = vmatpush.bf16.msra.mxu0 %v389
    %613 = vmatpush.bf16.msra.mxu0 %v385
    %614 = vmatpush.bf16.msra.mxu0 %v381
    %615 = vmatmul.bf16.gmra.mxu0 %v147
    %v616 = vpop.f32.mrf.mxu0
    %v617 = vadd.f32 %v598, %v616
    %v618 = vpop.f32.mrf.mxu0
    %v619 = vadd.f32 %v600, %v618
    %620 = vmatmul.bf16.gmra.mxu0 %v149
    %v621 = vpop.f32.mrf.mxu0
    %v622 = vadd.f32 %v603, %v621
    %v623 = vpop.f32.mrf.mxu0
    %v624 = vadd.f32 %v605, %v623
    %625 = vdwg.mxu0
    %v626 = vadd.f32 %v50, %v503
    %v627 = vadd.f32 %v51, %v541
    %v628 = vadd.f32 %v52, %v579
    %v629 = vadd.f32 %v53, %v617
    %v630 = vadd.f32 %v54, %v505
    %v631 = vadd.f32 %v55, %v543
    %v632 = vadd.f32 %v56, %v581
    %v633 = vadd.f32 %v57, %v619
    %v634 = vadd.f32 %v58, %v508
    %v635 = vadd.f32 %v59, %v546
    %v636 = vadd.f32 %v60, %v584
    %v637 = vadd.f32 %v61, %v622
    %v638 = vadd.f32 %v62, %v510
    %v639 = vadd.f32 %v63, %v548
    %v640 = vadd.f32 %v64, %v586
    %v641 = vadd.f32 %v65, %v624
    %642 = vst [vmem:[#allocation2] sm:$0xff] %v626
    %643 = vst [vmem:[#allocation2 + $0x8] sm:$0xff] %v627
    %644 = vst [vmem:[#allocation2 + $0x10] sm:$0xff] %v628
    %645 = vst [vmem:[#allocation2 + $0x18] sm:$0xff] %v629
    %646 = vst [vmem:[#allocation2 + $0x20] sm:$0xff] %v630
    %647 = vst [vmem:[#allocation2 + $0x28] sm:$0xff] %v631
    %648 = vst [vmem:[#allocation2 + $0x30] sm:$0xff] %v632
    %649 = vst [vmem:[#allocation2 + $0x38] sm:$0xff] %v633
    %650 = vst [vmem:[#allocation2 + $0x40] sm:$0xff] %v634
    %651 = vst [vmem:[#allocation2 + $0x48] sm:$0xff] %v635
    %652 = vst [vmem:[#allocation2 + $0x50] sm:$0xff] %v636
    %653 = vst [vmem:[#allocation2 + $0x58] sm:$0xff] %v637
    %654 = vst [vmem:[#allocation2 + $0x60] sm:$0xff] %v638
    %655 = vst [vmem:[#allocation2 + $0x68] sm:$0xff] %v639
    %656 = vst [vmem:[#allocation2 + $0x70] sm:$0xff] %v640
    %657 = vst [vmem:[#allocation2 + $0x78] sm:$0xff] %v641
    // Predicated region
    $region22: #{forward.21} parent=1 // pred_check
      %p658 = pneg %p30
    $region23: #{forward.21} parent=1 // pred_check_branch
      %660 = sbr.rel (%p658) target = $region25
    $region24: #{forward.21} parent=1 // pred_region
      %v661 = vld [vmem:[#allocation2] sm:$0xff]
      %v662 = vld [vmem:[#allocation2 + $0x8] sm:$0xff]
      %v663 = vld [vmem:[#allocation2 + $0x10] sm:$0xff]
      %v664 = vld [vmem:[#allocation2 + $0x18] sm:$0xff]
      %v665 = vld [vmem:[#allocation2 + $0x20] sm:$0xff]
      %v666 = vld [vmem:[#allocation2 + $0x28] sm:$0xff]
      %v667 = vld [vmem:[#allocation2 + $0x30] sm:$0xff]
      %v668 = vld [vmem:[#allocation2 + $0x38] sm:$0xff]
      %v669 = vld [vmem:[#allocation2 + $0x40] sm:$0xff]
      %v670 = vld [vmem:[#allocation2 + $0x48] sm:$0xff]
      %v671 = vld [vmem:[#allocation2 + $0x50] sm:$0xff]
      %v672 = vld [vmem:[#allocation2 + $0x58] sm:$0xff]
      %v673 = vld [vmem:[#allocation2 + $0x60] sm:$0xff]
      %v674 = vld [vmem:[#allocation2 + $0x68] sm:$0xff]
      %v675 = vld [vmem:[#allocation2 + $0x70] sm:$0xff]
      %v676 = vld [vmem:[#allocation2 + $0x78] sm:$0xff]
      %v677 = vld [vmem:[%s2] sm:$0xf]
      %v679 = vperm.slane %v677, 0
      %v680 = vperm.slane %v677, 1
      %v681 = vperm.slane %v677, 2
      %v682 = vperm.slane %v677, 3
      %v687 = vadd.f32 %v661, %v679
      %v688 = vadd.f32 %v662, %v680
      %v689 = vadd.f32 %v663, %v681
      %v690 = vadd.f32 %v664, %v682
      %v691 = vadd.f32 %v665, %v679
      %v692 = vadd.f32 %v666, %v680
      %v693 = vadd.f32 %v667, %v681
      %v694 = vadd.f32 %v668, %v682
      %v695 = vadd.f32 %v669, %v679
      %v696 = vadd.f32 %v670, %v680
      %v697 = vadd.f32 %v671, %v681
      %v698 = vadd.f32 %v672, %v682
      %v699 = vadd.f32 %v673, %v679
      %v700 = vadd.f32 %v674, %v680
      %v701 = vadd.f32 %v675, %v681
      %v702 = vadd.f32 %v676, %v682
      %v703 = vmul.f32 %v687, %v687
      %v704 = vmul.f32 %v688, %v688
      %v705 = vmul.f32 %v689, %v689
      %v706 = vmul.f32 %v690, %v690
      %v707 = vmul.f32 %v691, %v691
      %v708 = vmul.f32 %v692, %v692
      %v709 = vmul.f32 %v693, %v693
      %v710 = vmul.f32 %v694, %v694
      %v711 = vmul.f32 %v695, %v695
      %v712 = vmul.f32 %v696, %v696
      %v713 = vmul.f32 %v697, %v697
      %v714 = vmul.f32 %v698, %v698
      %v715 = vmul.f32 %v699, %v699
      %v716 = vmul.f32 %v700, %v700
      %v717 = vmul.f32 %v701, %v701
      %v718 = vmul.f32 %v702, %v702
      %v719 = vmul.f32 %v687, %v703
      %v720 = vmul.f32 %v688, %v704
      %v721 = vmul.f32 %v689, %v705
      %v722 = vmul.f32 %v690, %v706
      %v723 = vmul.f32 %v691, %v707
      %v724 = vmul.f32 %v692, %v708
      %v725 = vmul.f32 %v693, %v709
      %v726 = vmul.f32 %v694, %v710
      %v727 = vmul.f32 %v695, %v711
      %v728 = vmul.f32 %v696, %v712
      %v729 = vmul.f32 %v697, %v713
      %v730 = vmul.f32 %v698, %v714
      %v731 = vmul.f32 %v699, %v715
      %v732 = vmul.f32 %v700, %v716
      %v733 = vmul.f32 %v701, %v717
      %v734 = vmul.f32 %v702, %v718
      %v735 = vmul.f32 %v719, 0.044715
      %v736 = vmul.f32 %v720, 0.044715
      %v737 = vmul.f32 %v721, 0.044715
      %v738 = vmul.f32 %v722, 0.044715
      %v739 = vmul.f32 %v723, 0.044715
      %v740 = vmul.f32 %v724, 0.044715
      %v741 = vmul.f32 %v725, 0.044715
      %v742 = vmul.f32 %v726, 0.044715
      %v743 = vmul.f32 %v727, 0.044715
      %v744 = vmul.f32 %v728, 0.044715
      %v745 = vmul.f32 %v729, 0.044715
      %v746 = vmul.f32 %v730, 0.044715
      %v747 = vmul.f32 %v731, 0.044715
      %v748 = vmul.f32 %v732, 0.044715
      %v749 = vmul.f32 %v733, 0.044715
      %v750 = vmul.f32 %v734, 0.044715
      %v751 = vadd.f32 %v687, %v735
      %v752 = vadd.f32 %v688, %v736
      %v753 = vadd.f32 %v689, %v737
      %v754 = vadd.f32 %v690, %v738
      %v755 = vadd.f32 %v691, %v739
      %v756 = vadd.f32 %v692, %v740
      %v757 = vadd.f32 %v693, %v741
      %v758 = vadd.f32 %v694, %v742
      %v759 = vadd.f32 %v695, %v743
      %v760 = vadd.f32 %v696, %v744
      %v761 = vadd.f32 %v697, %v745
      %v762 = vadd.f32 %v698, %v746
      %v763 = vadd.f32 %v699, %v747
      %v764 = vadd.f32 %v700, %v748
      %v765 = vadd.f32 %v701, %v749
      %v766 = vadd.f32 %v702, %v750
      %v767 = vmul.f32 %v751, 0.7978846
      %v768 = vmul.f32 %v752, 0.7978846
      %v769 = vmul.f32 %v753, 0.7978846
      %v770 = vmul.f32 %v754, 0.7978846
      %v771 = vmul.f32 %v755, 0.7978846
      %v772 = vmul.f32 %v756, 0.7978846
      %v773 = vmul.f32 %v757, 0.7978846
      %v774 = vmul.f32 %v758, 0.7978846
      %v775 = vmul.f32 %v759, 0.7978846
      %v776 = vmul.f32 %v760, 0.7978846
      %v777 = vmul.f32 %v761, 0.7978846
      %v778 = vmul.f32 %v762, 0.7978846
      %v779 = vmul.f32 %v763, 0.7978846
      %v780 = vmul.f32 %v764, 0.7978846
      %v781 = vmul.f32 %v765, 0.7978846
      %v782 = vmul.f32 %v766, 0.7978846
      %v783 = vtanh.pop %v767
      %v784 = vtanh.pop %v768
      %v785 = vtanh.pop %v769
      %v786 = vtanh.pop %v770
      %v787 = vtanh.pop %v771
      %v788 = vtanh.pop %v772
      %v789 = vtanh.pop %v773
      %v790 = vtanh.pop %v774
      %v791 = vtanh.pop %v775
      %v792 = vtanh.pop %v776
      %v793 = vtanh.pop %v777
      %v794 = vtanh.pop %v778
      %v795 = vtanh.pop %v779
      %v796 = vtanh.pop %v780
      %v797 = vtanh.pop %v781
      %v798 = vtanh.pop %v782
      %v799 = vadd.f32 %v783, 1.0
      %v800 = vadd.f32 %v784, 1.0
      %v801 = vadd.f32 %v785, 1.0
      %v802 = vadd.f32 %v786, 1.0
      %v803 = vadd.f32 %v787, 1.0
      %v804 = vadd.f32 %v788, 1.0
      %v805 = vadd.f32 %v789, 1.0
      %v806 = vadd.f32 %v790, 1.0
      %v807 = vadd.f32 %v791, 1.0
      %v808 = vadd.f32 %v792, 1.0
      %v809 = vadd.f32 %v793, 1.0
      %v810 = vadd.f32 %v794, 1.0
      %v811 = vadd.f32 %v795, 1.0
      %v812 = vadd.f32 %v796, 1.0
      %v813 = vadd.f32 %v797, 1.0
      %v814 = vadd.f32 %v798, 1.0
      %v815 = vmul.f32 %v799, 0.5
      %v816 = vmul.f32 %v800, 0.5
      %v817 = vmul.f32 %v801, 0.5
      %v818 = vmul.f32 %v802, 0.5
      %v819 = vmul.f32 %v803, 0.5
      %v820 = vmul.f32 %v804, 0.5
      %v821 = vmul.f32 %v805, 0.5
      %v822 = vmul.f32 %v806, 0.5
      %v823 = vmul.f32 %v807, 0.5
      %v824 = vmul.f32 %v808, 0.5
      %v825 = vmul.f32 %v809, 0.5
      %v826 = vmul.f32 %v810, 0.5
      %v827 = vmul.f32 %v811, 0.5
      %v828 = vmul.f32 %v812, 0.5
      %v829 = vmul.f32 %v813, 0.5
      %v830 = vmul.f32 %v814, 0.5
      %v831 = vmul.f32 %v687, %v815
      %v832 = vmul.f32 %v688, %v816
      %v833 = vmul.f32 %v689, %v817
      %v834 = vmul.f32 %v690, %v818
      %v835 = vmul.f32 %v691, %v819
      %v836 = vmul.f32 %v692, %v820
      %v837 = vmul.f32 %v693, %v821
      %v838 = vmul.f32 %v694, %v822
      %v839 = vmul.f32 %v695, %v823
      %v840 = vmul.f32 %v696, %v824
      %v841 = vmul.f32 %v697, %v825
      %v842 = vmul.f32 %v698, %v826
      %v843 = vmul.f32 %v699, %v827
      %v844 = vmul.f32 %v700, %v828
      %v845 = vmul.f32 %v701, %v829
      %v846 = vmul.f32 %v702, %v830
      %v847 = vpack.c.bf16 %v832, %v831
      %v848 = vpack.c.bf16 %v834, %v833
      %v849 = vpack.c.bf16 %v836, %v835
      %v850 = vpack.c.bf16 %v838, %v837
      %v851 = vpack.c.bf16 %v840, %v839
      %v852 = vpack.c.bf16 %v842, %v841
      %v853 = vpack.c.bf16 %v844, %v843
      %v854 = vpack.c.bf16 %v846, %v845
      %855 = vst [vmem:[%s3] sm:$0xff] %v847
      %856 = vst [vmem:[%s3 + $0x8] sm:$0xff] %v848
      %857 = vst [vmem:[%s3 + $0x10] sm:$0xff] %v849
      %858 = vst [vmem:[%s3 + $0x18] sm:$0xff] %v850
      %859 = vst [vmem:[%s3 + $0x20] sm:$0xff] %v851
      %860 = vst [vmem:[%s3 + $0x28] sm:$0xff] %v852
      %861 = vst [vmem:[%s3 + $0x30] sm:$0xff] %v853
      %862 = vst [vmem:[%s3 + $0x38] sm:$0xff] %v854
    $region25: #{forward.21} parent=1 // pred_fallthru
      _
    // Predicated region
    $region26: #{forward.21} parent=1 // pred_check
      _
    $region27: #{forward.21} parent=1 // pred_check_branch
      %864 = sbr.rel (0) target = $region29
    $region28: #{forward.21} parent=1 // pred_region
      _
    $region29: #{forward.21} parent=1 // pred_fallthru
      _
    // Predicated region
    $region30: #{forward.21} parent=1 // pred_check
      _
    $region31: #{forward.21} parent=1 // pred_check_branch
      %866 = sbr.rel (0) target = $region33
    $region32: #{forward.21} parent=1 // pred_region
      _
    $region33: #{forward.21} parent=1 // pred_fallthru
      _
    %867 = vsyncpa [#allocation4], 1

// kernel: forward.23
$region0: #{forward.23}
  #allocation0 [shape = 'u32[]', space=smem, size = 0x4, offset = 0x4, fixed_abs, tag = 'smem constant byte address 0x4 - core index']
  #allocation1 [shape = 'u32[72,128]{1,0:T(1,128)}', space=vmem, size = 0x9000, scoped, tag = 'internal scratch']
  #allocation2 [shape = 'f32[1,1]{1,0:T(1,128)S(6)}', space=smem, size = 0x200, scoped, tag = 'scoped memory for forward.23']
  #allocation3 [shape = 'f32[1,1]{1,0:T(1,128)S(1)}', space=vmem, size = 0x200, scoped, tag = 'scoped memory for forward.23']
  %s0 = inlined_call_operand.<no memory space> [shape: f32[1,1], index: 0, kind: input, shape index: {}]
  %s1 = inlined_call_operand.vmem [shape: bf16[2,256], index: 1, kind: input, shape index: {}]
  %s2 = inlined_call_operand.vmem [shape: bf16[2,256], index: 2, kind: input, shape index: {}]
  %s3 = inlined_call_operand.hbm [shape: bf16[256,256], index: 3, kind: input, shape index: {}]
  %s4 = inlined_call_operand.vmem [shape: f32[1,256], index: 4, kind: input, shape index: {}]
  %s5 = inlined_call_operand.vmem [shape: bf16[256,1], index: 5, kind: input, shape index: {}]
  %s6 = inlined_call_operand.<no memory space> [shape: f32[1,1], index: 6, kind: input, shape index: {}]
  %s7 = inlined_call_operand.hbm [shape: f32[2,256], index: 7, kind: output, shape index: {0}]
  %s8 = inlined_call_operand.vmem [shape: f32[2,1], index: 8, kind: output, shape index: {1}]
  %9 = xla_tuple %s7, %s8
  %s10 = sld [smem:[#allocation0]]
  $region50: #{forward.23} parent=0
    _
  %s12 = ssub.s32 1, %s10
  %s13 = scalar_select 0, %s12, %s10
  %14 = sst [smem:[#allocation2]] %s0
  %v15 = vstv %s6
  %16 = vst [vmem:[#allocation3] sm:$0x1] %v15
  $region1: #{forward.23} parent=0
    #allocation4 [shape = 'u8[131072]{0}', space=vmem, size = 0x20000, scoped, tag = 'input window, operand 3, single buffered']
    #allocation5 [shape = 's32[1]{0}', space=sflag, size = 0x4, scoped, tag = 'scoped memory for forward.23']
    #allocation6 [shape = 's32[1]{0}', space=sflag, size = 0x4, scoped, tag = 'scoped memory for forward.23']
    #allocation7 [shape = 'u8[2048]{0}', space=vmem, size = 0x800, scoped, tag = 'output window, operand 0, single buffered']
    %17 = vsyncpa [#allocation5], 0
    %18 = vsyncpa [#allocation6], 0
    // Predicated region
    $region2: #{forward.23} parent=1 // pred_check
      _
    $region3: #{forward.23} parent=1 // pred_check_branch
      %20 = sbr.rel (0) target = $region5
    $region4: #{forward.23} parent=1 // pred_region
      _
    $region5: #{forward.23} parent=1 // pred_fallthru
      _
    // Predicated region
    $region6: #{forward.23} parent=1 // pred_check
      _
    $region7: #{forward.23} parent=1 // pred_check_branch
      %22 = sbr.rel (0) target = $region9
    $region8: #{forward.23} parent=1 // pred_region
      _
    $region9: #{forward.23} parent=1 // pred_fallthru
      _
    // Predicated region
    $region10: #{forward.23} parent=1 // pred_check
      _
    $region11: #{forward.23} parent=1 // pred_check_branch
      %24 = sbr.rel (0) target = $region13
    $region12: #{forward.23} parent=1 // pred_region
      _
    $region13: #{forward.23} parent=1 // pred_fallthru
      _
    // Predicated region
    $region14: #{forward.23} parent=1 // pred_check
      _
    $region15: #{forward.23} parent=1 // pred_check_branch
      %26 = sbr.rel (0) target = $region17
    $region16: #{forward.23} parent=1 // pred_region
      %28 = vsyncadd [#allocation5], 0
      %s29 = sshll.u32 %s3, 4
      %s30 = int_to_ptr.hbm [resolvable:$true] %s29
      %s31 = sshll.u32 [#allocation4], 4
      %s32 = int_to_ptr.vmem [resolvable:$true] %s31
      %37 = dma.hbm_to_vmem [thread:$0]  %s30, 4096, %s32, [#allocation5], 128, 128, 8
    $region17: #{forward.23} parent=1 // pred_fallthru
      _
    // Predicated region
    $region18: #{forward.23} parent=1 // pred_check
      _
    $region19: #{forward.23} parent=1 // pred_check_branch
      %39 = sbr.rel (0) target = $region21
    $region20: #{forward.23} parent=1 // pred_region
      _
    $region21: #{forward.23} parent=1 // pred_fallthru
      _
    // Predicated region
    $region22: #{forward.23} parent=1 // pred_check
      _
    $region23: #{forward.23} parent=1 // pred_check_branch
      %41 = sbr.rel (0) target = $region25
    $region24: #{forward.23} parent=1 // pred_region
      _
    $region25: #{forward.23} parent=1 // pred_fallthru
      _
    // Predicated region
    $region26: #{forward.23} parent=1 // pred_check
      _
    $region27: #{forward.23} parent=1 // pred_check_branch
      %43 = sbr.rel (0) target = $region29
    $region28: #{forward.23} parent=1 // pred_region
      _
    $region29: #{forward.23} parent=1 // pred_fallthru
      _
    // Predicated region
    $region30: #{forward.23} parent=1 // pred_check
      _
    $region31: #{forward.23} parent=1 // pred_check_branch
      %45 = sbr.rel (0) target = $region33
    $region32: #{forward.23} parent=1 // pred_region
      %47 = dma.done [#allocation5], 4096
    $region33: #{forward.23} parent=1 // pred_fallthru
      _
    %s48 = sld [smem:[#allocation2]]
    %v49 = vld [vmem:[#allocation4] sm:$0xff]
    %v50 = vld [vmem:[#allocation4 + $0x8] sm:$0xff]
    %v51 = vld [vmem:[#allocation4 + $0x10] sm:$0xff]
    %v52 = vld [vmem:[#allocation4 + $0x18] sm:$0xff]
    %v53 = vld [vmem:[#allocation4 + $0x20] sm:$0xff]
    %v54 = vld [vmem:[#allocation4 + $0x28] sm:$0xff]
    %v55 = vld [vmem:[#allocation4 + $0x30] sm:$0xff]
    %v56 = vld [vmem:[#allocation4 + $0x38] sm:$0xff]
    %v57 = vld [vmem:[#allocation4 + $0x40] sm:$0xff]
    %v58 = vld [vmem:[#allocation4 + $0x48] sm:$0xff]
    %v59 = vld [vmem:[#allocation4 + $0x50] sm:$0xff]
    %v60 = vld [vmem:[#allocation4 + $0x58] sm:$0xff]
    %v61 = vld [vmem:[#allocation4 + $0x60] sm:$0xff]
    %v62 = vld [vmem:[#allocation4 + $0x68] sm:$0xff]
    %v63 = vld [vmem:[#allocation4 + $0x70] sm:$0xff]
    %v64 = vld [vmem:[#allocation4 + $0x78] sm:$0xff]
    %v65 = vld [vmem:[#allocation4 + $0x80] sm:$0xff]
    %v66 = vld [vmem:[#allocation4 + $0x88] sm:$0xff]
    %v67 = vld [vmem:[#allocation4 + $0x90] sm:$0xff]
    %v68 = vld [vmem:[#allocation4 + $0x98] sm:$0xff]
    %v69 = vld [vmem:[#allocation4 + $0xa0] sm:$0xff]
    %v70 = vld [vmem:[#allocation4 + $0xa8] sm:$0xff]
    %v71 = vld [vmem:[#allocation4 + $0xb0] sm:$0xff]
    %v72 = vld [vmem:[#allocation4 + $0xb8] sm:$0xff]
    %v73 = vld [vmem:[#allocation4 + $0xc0] sm:$0xff]
    %v74 = vld [vmem:[#allocation4 + $0xc8] sm:$0xff]
    %v75 = vld [vmem:[#allocation4 + $0xd0] sm:$0xff]
    %v76 = vld [vmem:[#allocation4 + $0xd8] sm:$0xff]
    %v77 = vld [vmem:[#allocation4 + $0xe0] sm:$0xff]
    %v78 = vld [vmem:[#allocation4 + $0xe8] sm:$0xff]
    %v79 = vld [vmem:[#allocation4 + $0xf0] sm:$0xff]
    %v80 = vld [vmem:[#allocation4 + $0xf8] sm:$0xff]
    %v81 = vld [vmem:[%s4] sm:$0x3]
    %v82 = vld [vmem:[%s1] sm:$0x3]
    %v84 = vperm.slane %v81, 0
    %v85 = vperm.slane %v81, 1
    %89 = vst [vmem:[#allocation1] ss:$9 sm:$0xff] %v82
    %v90 = vld [vmem:[#allocation1] sm:$0xff]
    %v91 = vld [vmem:[#allocation1 + $0x9] sm:$0xff]
    %v126 = vunpack.c.l.b16 %v49
    %v127 = vunpack.c.h.b16 %v49
    %v128 = vunpack.c.l.b16 %v50
    %v129 = vunpack.c.h.b16 %v50
    %v130 = vunpack.c.l.b16 %v51
    %v131 = vunpack.c.h.b16 %v51
    %v132 = vunpack.c.l.b16 %v52
    %v133 = vunpack.c.h.b16 %v52
    %v134 = vunpack.c.l.b16 %v53
    %v135 = vunpack.c.h.b16 %v53
    %v136 = vunpack.c.l.b16 %v54
    %v137 = vunpack.c.h.b16 %v54
    %v138 = vunpack.c.l.b16 %v55
    %v139 = vunpack.c.h.b16 %v55
    %v140 = vunpack.c.l.b16 %v56
    %v141 = vunpack.c.h.b16 %v56
    %v142 = vunpack.c.l.b16 %v57
    %v143 = vunpack.c.h.b16 %v57
    %v144 = vunpack.c.l.b16 %v58
    %v145 = vunpack.c.h.b16 %v58
    %v146 = vunpack.c.l.b16 %v59
    %v147 = vunpack.c.h.b16 %v59
    %v148 = vunpack.c.l.b16 %v60
    %v149 = vunpack.c.h.b16 %v60
    %v150 = vunpack.c.l.b16 %v61
    %v151 = vunpack.c.h.b16 %v61
    %v152 = vunpack.c.l.b16 %v62
    %v153 = vunpack.c.h.b16 %v62
    %v154 = vunpack.c.l.b16 %v63
    %v155 = vunpack.c.h.b16 %v63
    %v156 = vunpack.c.l.b16 %v64
    %v157 = vunpack.c.h.b16 %v64
    %v158 = vunpack.c.l.b16 %v65
    %v159 = vunpack.c.h.b16 %v65
    %v160 = vunpack.c.l.b16 %v66
    %v161 = vunpack.c.h.b16 %v66
    %v162 = vunpack.c.l.b16 %v67
    %v163 = vunpack.c.h.b16 %v67
    %v164 = vunpack.c.l.b16 %v68
    %v165 = vunpack.c.h.b16 %v68
    %v166 = vunpack.c.l.b16 %v69
    %v167 = vunpack.c.h.b16 %v69
    %v168 = vunpack.c.l.b16 %v70
    %v169 = vunpack.c.h.b16 %v70
    %v170 = vunpack.c.l.b16 %v71
    %v171 = vunpack.c.h.b16 %v71
    %v172 = vunpack.c.l.b16 %v72
    %v173 = vunpack.c.h.b16 %v72
    %v174 = vunpack.c.l.b16 %v73
    %v175 = vunpack.c.h.b16 %v73
    %v176 = vunpack.c.l.b16 %v74
    %v177 = vunpack.c.h.b16 %v74
    %v178 = vunpack.c.l.b16 %v75
    %v179 = vunpack.c.h.b16 %v75
    %v180 = vunpack.c.l.b16 %v76
    %v181 = vunpack.c.h.b16 %v76
    %v182 = vunpack.c.l.b16 %v77
    %v183 = vunpack.c.h.b16 %v77
    %v184 = vunpack.c.l.b16 %v78
    %v185 = vunpack.c.h.b16 %v78
    %v186 = vunpack.c.l.b16 %v79
    %v187 = vunpack.c.h.b16 %v79
    %v188 = vunpack.c.l.b16 %v80
    %v189 = vunpack.c.h.b16 %v80
    %v190 = vpack.c.b16 %v128, %v126
    %v191 = vpack.c.b16 %v129, %v127
    %v192 = vpack.c.b16 %v132, %v130
    %v193 = vpack.c.b16 %v133, %v131
    %v194 = vpack.c.b16 %v136, %v134
    %v195 = vpack.c.b16 %v137, %v135
    %v196 = vpack.c.b16 %v140, %v138
    %v197 = vpack.c.b16 %v141, %v139
    %v198 = vpack.c.b16 %v144, %v142
    %v199 = vpack.c.b16 %v145, %v143
    %v200 = vpack.c.b16 %v148, %v146
    %v201 = vpack.c.b16 %v149, %v147
    %v202 = vpack.c.b16 %v152, %v150
    %v203 = vpack.c.b16 %v153, %v151
    %v204 = vpack.c.b16 %v156, %v154
    %v205 = vpack.c.b16 %v157, %v155
    %v206 = vpack.c.b16 %v160, %v158
    %v207 = vpack.c.b16 %v161, %v159
    %v208 = vpack.c.b16 %v164, %v162
    %v209 = vpack.c.b16 %v165, %v163
    %v210 = vpack.c.b16 %v168, %v166
    %v211 = vpack.c.b16 %v169, %v167
    %v212 = vpack.c.b16 %v172, %v170
    %v213 = vpack.c.b16 %v173, %v171
    %v214 = vpack.c.b16 %v176, %v174
    %v215 = vpack.c.b16 %v177, %v175
    %v216 = vpack.c.b16 %v180, %v178
    %v217 = vpack.c.b16 %v181, %v179
    %v218 = vpack.c.b16 %v184, %v182
    %v219 = vpack.c.b16 %v185, %v183
    %v220 = vpack.c.b16 %v188, %v186
    %v221 = vpack.c.b16 %v189, %v187
    %254 = vmatpush.bf16.msra.mxu0 %v204
    %255 = vmatpush.bf16.msra.mxu0 %v202
    %256 = vmatpush.bf16.msra.mxu0 %v200
    %257 = vmatpush.bf16.msra.mxu0 %v198
    %258 = vmatpush.bf16.msra.mxu0 %v196
    %259 = vmatpush.bf16.msra.mxu0 %v194
    %260 = vmatpush.bf16.msra.mxu0 %v192
    %261 = vmatpush.bf16.msra.mxu0 %v190
    %262 = vmatmul.bf16.gmra.mxu0 %v90
    %v263 = vpop.f32.mrf.mxu0
    %v264 = vadd.f32 %v84, %v263
    %v265 = vpop.f32.mrf.mxu0
    %266 = vdwg.mxu0
    %267 = vmatpush.bf16.msra.mxu0 %v220
    %268 = vmatpush.bf16.msra.mxu0 %v218
    %269 = vmatpush.bf16.msra.mxu0 %v216
    %270 = vmatpush.bf16.msra.mxu0 %v214
    %271 = vmatpush.bf16.msra.mxu0 %v212
    %272 = vmatpush.bf16.msra.mxu0 %v210
    %273 = vmatpush.bf16.msra.mxu0 %v208
    %274 = vmatpush.bf16.msra.mxu0 %v206
    %275 = vmatmul.bf16.gmra.mxu0 %v91
    %v276 = vpop.f32.mrf.mxu0
    %v277 = vadd.f32 %v264, %v276
    %v278 = vpop.f32.mrf.mxu0
    %279 = vdwg.mxu0
    %280 = vmatpush.bf16.msra.mxu0 %v205
    %281 = vmatpush.bf16.msra.mxu0 %v203
    %282 = vmatpush.bf16.msra.mxu0 %v201
    %283 = vmatpush.bf16.msra.mxu0 %v199
    %284 = vmatpush.bf16.msra.mxu0 %v197
    %285 = vmatpush.bf16.msra.mxu0 %v195
    %286 = vmatpush.bf16.msra.mxu0 %v193
    %287 = vmatpush.bf16.msra.mxu0 %v191
    %288 = vmatmul.bf16.gmra.mxu0 %v90
    %v289 = vpop.f32.mrf.mxu0
    %v290 = vadd.f32 %v85, %v289
    %v291 = vpop.f32.mrf.mxu0
    %292 = vdwg.mxu0
    %293 = vmatpush.bf16.msra.mxu0 %v221
    %294 = vmatpush.bf16.msra.mxu0 %v219
    %295 = vmatpush.bf16.msra.mxu0 %v217
    %296 = vmatpush.bf16.msra.mxu0 %v215
    %297 = vmatpush.bf16.msra.mxu0 %v213
    %298 = vmatpush.bf16.msra.mxu0 %v211
    %299 = vmatpush.bf16.msra.mxu0 %v209
    %300 = vmatpush.bf16.msra.mxu0 %v207
    %301 = vmatmul.bf16.gmra.mxu0 %v91
    %v302 = vpop.f32.mrf.mxu0
    %v303 = vadd.f32 %v290, %v302
    %v304 = vpop.f32.mrf.mxu0
    %305 = vdwg.mxu0
    %v306 = vtanh.pop %v277
    %v307 = vtanh.pop %v303
    %v308 = vld [vmem:[%s2] sm:$0x3]
    %310 = vst [vmem:[#allocation1] ss:$9 sm:$0xff] %v308
    %v311 = vld [vmem:[#allocation1] sm:$0xff]
    %v312 = vld [vmem:[#allocation1 + $0x9] sm:$0xff]
    %315 = vmatpush.bf16.msra.mxu0 %v204
    %316 = vmatpush.bf16.msra.mxu0 %v202
    %317 = vmatpush.bf16.msra.mxu0 %v200
    %318 = vmatpush.bf16.msra.mxu0 %v198
    %319 = vmatpush.bf16.msra.mxu0 %v196
    %320 = vmatpush.bf16.msra.mxu0 %v194
    %321 = vmatpush.bf16.msra.mxu0 %v192
    %322 = vmatpush.bf16.msra.mxu0 %v190
    %323 = vmatmul.bf16.gmra.mxu0 %v311
    %v324 = vpop.f32.mrf.mxu0
    %v325 = vadd.f32 %v84, %v324
    %v326 = vpop.f32.mrf.mxu0
    %327 = vdwg.mxu0
    %328 = vmatpush.bf16.msra.mxu0 %v220
    %329 = vmatpush.bf16.msra.mxu0 %v218
    %330 = vmatpush.bf16.msra.mxu0 %v216
    %331 = vmatpush.bf16.msra.mxu0 %v214
    %332 = vmatpush.bf16.msra.mxu0 %v212
    %333 = vmatpush.bf16.msra.mxu0 %v210
    %334 = vmatpush.bf16.msra.mxu0 %v208
    %335 = vmatpush.bf16.msra.mxu0 %v206
    %336 = vmatmul.bf16.gmra.mxu0 %v312
    %v337 = vpop.f32.mrf.mxu0
    %v338 = vadd.f32 %v325, %v337
    %v339 = vpop.f32.mrf.mxu0
    %340 = vdwg.mxu0
    %341 = vmatpush.bf16.msra.mxu0 %v205
    %342 = vmatpush.bf16.msra.mxu0 %v203
    %343 = vmatpush.bf16.msra.mxu0 %v201
    %344 = vmatpush.bf16.msra.mxu0 %v199
    %345 = vmatpush.bf16.msra.mxu0 %v197
    %346 = vmatpush.bf16.msra.mxu0 %v195
    %347 = vmatpush.bf16.msra.mxu0 %v193
    %348 = vmatpush.bf16.msra.mxu0 %v191
    %349 = vmatmul.bf16.gmra.mxu0 %v311
    %v350 = vpop.f32.mrf.mxu0
    %v351 = vadd.f32 %v85, %v350
    %v352 = vpop.f32.mrf.mxu0
    %353 = vdwg.mxu0
    %354 = vmatpush.bf16.msra.mxu0 %v221
    %355 = vmatpush.bf16.msra.mxu0 %v219
    %356 = vmatpush.bf16.msra.mxu0 %v217
    %357 = vmatpush.bf16.msra.mxu0 %v215
    %358 = vmatpush.bf16.msra.mxu0 %v213
    %359 = vmatpush.bf16.msra.mxu0 %v211
    %360 = vmatpush.bf16.msra.mxu0 %v209
    %361 = vmatpush.bf16.msra.mxu0 %v207
    %362 = vmatmul.bf16.gmra.mxu0 %v312
    %v363 = vpop.f32.mrf.mxu0
    %v364 = vadd.f32 %v351, %v363
    %v365 = vpop.f32.mrf.mxu0
    %366 = vdwg.mxu0
    %v367 = vtanh.pop %v338
    %v368 = vtanh.pop %v364
    %v369 = vstv %s48
    %v370 = vmul.f32 %v369, %v306
    %v371 = vmul.f32 %v369, %v307
    %s372 = ssub.f32 1.0, %s48
    %v373 = vstv %s372
    %v374 = vmul.f32 %v373, %v367
    %v375 = vmul.f32 %v373, %v368
    %v376 = vadd.f32 %v370, %v374
    %v377 = vadd.f32 %v371, %v375
    %v380 = vrot.slane %v377, 6
    %vm381 = vcmask 1041408
    %v382 = vsel %vm381, %v376, %v380
    %384 = vst [vmem:[#allocation7] sm:$0xf] %v382
    %v385 = vpack.c.bf16 %v376, %v376
    %v386 = vpack.c.bf16 %v377, %v377
    %v387 = vld [vmem:[%s5] sm:$0xf]
    %v388 = vld [vmem:[%s5 + $0x4] sm:$0xf]
    %v389 = vld [vmem:[%s5 + $0x8] sm:$0xf]
    %v390 = vld [vmem:[%s5 + $0xc] sm:$0xf]
    %v391 = vld [vmem:[%s5 + $0x10] sm:$0xf]
    %v392 = vld [vmem:[%s5 + $0x14] sm:$0xf]
    %v393 = vld [vmem:[%s5 + $0x18] sm:$0xf]
    %v394 = vld [vmem:[%s5 + $0x1c] sm:$0xf]
    %v395 = vld [vmem:[%s5 + $0x20] sm:$0xf]
    %v396 = vld [vmem:[%s5 + $0x24] sm:$0xf]
    %v397 = vld [vmem:[%s5 + $0x28] sm:$0xf]
    %v398 = vld [vmem:[%s5 + $0x2c] sm:$0xf]
    %v399 = vld [vmem:[%s5 + $0x30] sm:$0xf]
    %v400 = vld [vmem:[%s5 + $0x34] sm:$0xf]
    %v401 = vld [vmem:[%s5 + $0x38] sm:$0xf]
    %v402 = vld [vmem:[%s5 + $0x3c] sm:$0xf]
    %v403 = vld [vmem:[%s5 + $0x40] sm:$0xf]
    %v404 = vld [vmem:[%s5 + $0x44] sm:$0xf]
    %v405 = vld [vmem:[%s5 + $0x48] sm:$0xf]
    %v406 = vld [vmem:[%s5 + $0x4c] sm:$0xf]
    %v407 = vld [vmem:[%s5 + $0x50] sm:$0xf]
    %v408 = vld [vmem:[%s5 + $0x54] sm:$0xf]
    %v409 = vld [vmem:[%s5 + $0x58] sm:$0xf]
    %v410 = vld [vmem:[%s5 + $0x5c] sm:$0xf]
    %v411 = vld [vmem:[%s5 + $0x60] sm:$0xf]
    %v412 = vld [vmem:[%s5 + $0x64] sm:$0xf]
    %v413 = vld [vmem:[%s5 + $0x68] sm:$0xf]
    %v414 = vld [vmem:[%s5 + $0x6c] sm:$0xf]
    %v415 = vld [vmem:[%s5 + $0x70] sm:$0xf]
    %v416 = vld [vmem:[%s5 + $0x74] sm:$0xf]
    %v417 = vld [vmem:[%s5 + $0x78] sm:$0xf]
    %v418 = vld [vmem:[%s5 + $0x7c] sm:$0xf]
    %v419 = vld [vmem:[#allocation3] sm:$0x1]
    %v421 = vperm.slane %v419, 0
    %v455 = vunpack.c.l.b16 %v387
    %v456 = vunpack.c.l.b16 %v388
    %v457 = vunpack.c.l.b16 %v389
    %v458 = vunpack.c.l.b16 %v390
    %v459 = vunpack.c.l.b16 %v391
    %v460 = vunpack.c.l.b16 %v392
    %v461 = vunpack.c.l.b16 %v393
    %v462 = vunpack.c.l.b16 %v394
    %v463 = vunpack.c.l.b16 %v395
    %v464 = vunpack.c.l.b16 %v396
    %v465 = vunpack.c.l.b16 %v397
    %v466 = vunpack.c.l.b16 %v398
    %v467 = vunpack.c.l.b16 %v399
    %v468 = vunpack.c.l.b16 %v400
    %v469 = vunpack.c.l.b16 %v401
    %v470 = vunpack.c.l.b16 %v402
    %v471 = vunpack.c.l.b16 %v403
    %v472 = vunpack.c.l.b16 %v404
    %v473 = vunpack.c.l.b16 %v405
    %v474 = vunpack.c.l.b16 %v406
    %v475 = vunpack.c.l.b16 %v407
    %v476 = vunpack.c.l.b16 %v408
    %v477 = vunpack.c.l.b16 %v409
    %v478 = vunpack.c.l.b16 %v410
    %v479 = vunpack.c.l.b16 %v411
    %v480 = vunpack.c.l.b16 %v412
    %v481 = vunpack.c.l.b16 %v413
    %v482 = vunpack.c.l.b16 %v414
    %v483 = vunpack.c.l.b16 %v415
    %v484 = vunpack.c.l.b16 %v416
    %v485 = vunpack.c.l.b16 %v417
    %v486 = vunpack.c.l.b16 %v418
    %v487 = vpack.c.b16 %v456, %v455
    %v488 = vpack.c.b16 %v458, %v457
    %v489 = vpack.c.b16 %v460, %v459
    %v490 = vpack.c.b16 %v462, %v461
    %v491 = vpack.c.b16 %v464, %v463
    %v492 = vpack.c.b16 %v466, %v465
    %v493 = vpack.c.b16 %v468, %v467
    %v494 = vpack.c.b16 %v470, %v469
    %v495 = vpack.c.b16 %v472, %v471
    %v496 = vpack.c.b16 %v474, %v473
    %v497 = vpack.c.b16 %v476, %v475
    %v498 = vpack.c.b16 %v478, %v477
    %v499 = vpack.c.b16 %v480, %v479
    %v500 = vpack.c.b16 %v482, %v481
    %v501 = vpack.c.b16 %v484, %v483
    %v502 = vpack.c.b16 %v486, %v485
    %519 = vmatpush.bf16.msra.mxu0 %v494
    %520 = vmatpush.bf16.msra.mxu0 %v493
    %521 = vmatpush.bf16.msra.mxu0 %v492
    %522 = vmatpush.bf16.msra.mxu0 %v491
    %523 = vmatpush.bf16.msra.mxu0 %v490
    %524 = vmatpush.bf16.msra.mxu0 %v489
    %525 = vmatpush.bf16.msra.mxu0 %v488
    %526 = vmatpush.bf16.msra.mxu0 %v487
    %527 = vmatmul.bf16.gmra.mxu0 %v385
    %v528 = vpop.f32.mrf.mxu0
    %v529 = vadd.f32 %v421, %v528
    %v530 = vpop.f32.mrf.mxu0
    %531 = vdwg.mxu0
    %532 = vmatpush.bf16.msra.mxu0 %v502
    %533 = vmatpush.bf16.msra.mxu0 %v501
    %534 = vmatpush.bf16.msra.mxu0 %v500
    %535 = vmatpush.bf16.msra.mxu0 %v499
    %536 = vmatpush.bf16.msra.mxu0 %v498
    %537 = vmatpush.bf16.msra.mxu0 %v497
    %538 = vmatpush.bf16.msra.mxu0 %v496
    %539 = vmatpush.bf16.msra.mxu0 %v495
    %540 = vmatmul.bf16.gmra.mxu0 %v386
    %v541 = vpop.f32.mrf.mxu0
    %v542 = vadd.f32 %v529, %v541
    %v543 = vpop.f32.mrf.mxu0
    %544 = vdwg.mxu0
    %vm545 = vcmask 1024
    %546 = vst.msk [vmem:[%s8] sm:$0x3] %vm545, %v542
    // Predicated region
    $region34: #{forward.23} parent=1 // pred_check
      _
    $region35: #{forward.23} parent=1 // pred_check_branch
      %548 = sbr.rel (0) target = $region37
    $region36: #{forward.23} parent=1 // pred_region
      %550 = vsyncadd [#allocation6], 0
      %s552 = sshll.u32 [#allocation7], 4
      %s553 = int_to_ptr.vmem [resolvable:$true] %s552
      %s554 = sshll.u32 %s7, 4
      %s555 = int_to_ptr.hbm [resolvable:$true] %s554
      %557 = dma.vmem_to_hbm [thread:$0]  %s553, 64, %s555, [#allocation6]
    $region37: #{forward.23} parent=1 // pred_fallthru
      _
    // Predicated region
    $region38: #{forward.23} parent=1 // pred_check
      _
    $region39: #{forward.23} parent=1 // pred_check_branch
      %559 = sbr.rel (0) target = $region41
    $region40: #{forward.23} parent=1 // pred_region
      _
    $region41: #{forward.23} parent=1 // pred_fallthru
      _
    // Predicated region
    $region42: #{forward.23} parent=1 // pred_check
      _
    $region43: #{forward.23} parent=1 // pred_check_branch
      %561 = sbr.rel (0) target = $region45
    $region44: #{forward.23} parent=1 // pred_region
      %563 = dma.done [#allocation6], 64
    $region45: #{forward.23} parent=1 // pred_fallthru
      _
    // Predicated region
    $region46: #{forward.23} parent=1 // pred_check
      _
    $region47: #{forward.23} parent=1 // pred_check_branch
      %565 = sbr.rel (0) target = $region49
    $region48: #{forward.23} parent=1 // pred_region
      _
    $region49: #{forward.23} parent=1 // pred_fallthru
      _
    %566 = vsyncpa [#allocation5], 1
    %567 = vsyncpa [#allocation6], 1

</llo_original>
